<compile_context>
chip_gen: v7x
topology: tpu7x:2x2x1
jax: 0.10.0
libtpu: 0.0.40
codegen_flags: <defaults>
</compile_context>

<pallas_src>
import jax
import jax.numpy as jnp
from jax import lax
from jax.experimental import pallas as pl
from jax.experimental.pallas import tpu as pltpu

H = 128          # LSTM hidden size
T = 32           # sequence length (from x.view(B, 32, 32*3))
F_IN = 96        # 32 * 3 input features
F_PAD = 128      # layer-1 contraction dim padded to a full MXU tile
NUM_LAYERS = 3
NUM_CLASSES = 10
O_PAD = 128      # linear output padded to a full lane tile


def _full_spec(shape):
    n = len(shape)
    return pl.BlockSpec(shape, lambda *_: (0,) * n)


# ---------------------------------------------------------------------------
# Fused whole-network kernel (single invocation, no grid).
# Kernel args: 21 inputs, 2 outputs, 4 VMEM scratch buffers.
# ---------------------------------------------------------------------------
def _make_net_kernel(Bp):
    def lstm_gates(g, c_prev):
        # PyTorch gate order: i, f, g, o  (all elementwise math in f32)
        i = jax.nn.sigmoid(g[:, 0 * H:1 * H])
        f = jax.nn.sigmoid(g[:, 1 * H:2 * H])
        gg = jnp.tanh(g[:, 2 * H:3 * H])
        o = jax.nn.sigmoid(g[:, 3 * H:4 * H])
        c = f * c_prev + i * gg
        h = o * jnp.tanh(c)
        return h, c

    def kernel(x_ref,
               wih1f, whh1f, b1f, wih1b, whh1b, b1b,
               wih2f, whh2f, b2f, wih2b, whh2b, b2b,
               wih3f, whh3f, b3f, wih3b, whh3b, b3b,
               wout_ref, bout_ref,
               logits_ref, y_ref,
               seq_a, seq_b, gxf_sc, gxb_sc):

        def project(inp_bf16, wih_f, b_f, wih_b, b_b):
            # Hoisted input projection for the whole sequence: one big bf16
            # MXU matmul per direction (M = T*Bp), bias fused here once (f32).
            gxf_sc[...] = (jnp.dot(inp_bf16, wih_f[...],
                                   preferred_element_type=jnp.float32)
                           + b_f[...])
            gxb_sc[...] = (jnp.dot(inp_bf16, wih_b[...],
                                   preferred_element_type=jnp.float32)
                           + b_b[...])

        def recur_bidir(whh_f, whh_b, out_sc):
            # Interleaved fwd/bwd recurrence; only h_{t-1} @ W_hh in the loop.
            z = jnp.zeros((Bp, H), jnp.float32)

            def step(s, carry):
                hf, cf, hb, cb = carry
                rf = pl.multiple_of(s * Bp, 8)
                rb = pl.multiple_of((T - 1 - s) * Bp, 8)
                gf = gxf_sc[pl.ds(rf, Bp), :] + jnp.dot(
                    hf.astype(jnp.bfloat16), whh_f[...],
                    preferred_element_type=jnp.float32)
                gb = gxb_sc[pl.ds(rb, Bp), :] + jnp.dot(
                    hb.astype(jnp.bfloat16), whh_b[...],
                    preferred_element_type=jnp.float32)
                hf, cf = lstm_gates(gf, cf)
                hb, cb = lstm_gates(gb, cb)
                out_sc[pl.ds(rf, Bp), 0:H] = hf
                out_sc[pl.ds(rb, Bp), H:2 * H] = hb
                return hf, cf, hb, cb

            lax.fori_loop(0, T, step, (z, z, z, z))

        def recur_fwd_last(whh_f):
            # Forward direction only; keep just the final hidden state.
            z = jnp.zeros((Bp, H), jnp.float32)

            def step(s, carry):
                hf, cf = carry
                rf = pl.multiple_of(s * Bp, 8)
                gf = gxf_sc[pl.ds(rf, Bp), :] + jnp.dot(
                    hf.astype(jnp.bfloat16), whh_f[...],
                    preferred_element_type=jnp.float32)
                return lstm_gates(gf, cf)

            hf, _ = lax.fori_loop(0, T, step, (z, z))
            return hf

        # ---- layer 1 (input: x, (T*Bp, 128) bf16) -> seq_a (T*Bp, 256) ----
        project(x_ref[...], wih1f, b1f, wih1b, b1b)
        recur_bidir(whh1f, whh1b, seq_a)

        # ---- layer 2 (input: seq_a) -> seq_b ----
        project(seq_a[...].astype(jnp.bfloat16), wih2f, b2f, wih2b, b2b)
        recur_bidir(whh2f, whh2b, seq_b)

        # ---- layer 3: only t = T-1 is consumed downstream ----
        #   fwd: full recurrence, keep final h only (no sequence writeback)
        #   bwd: exactly ONE cell step on x[T-1] with zero initial state
        gxf_sc[...] = (jnp.dot(seq_b[...].astype(jnp.bfloat16), wih3f[...],
                               preferred_element_type=jnp.float32) + b3f[...])
        hf3 = recur_fwd_last(whh3f)

        x_last = seq_b[(T - 1) * Bp:T * Bp, :].astype(jnp.bfloat16)
        gb3 = (jnp.dot(x_last, wih3b[...],
                       preferred_element_type=jnp.float32) + b3b[...])
        hb3, _ = lstm_gates(gb3, jnp.zeros((Bp, H), jnp.float32))

        # ---- epilogue: y = [hf3 | hb3]; logits = y @ Wout^T + b (padded) ----
        y_ref[:, 0:H] = hf3
        y_ref[:, H:2 * H] = hb3
        logits_ref[...] = (
            jnp.dot(hf3.astype(jnp.bfloat16), wout_ref[0:H, :],
                    preferred_element_type=jnp.float32)
            + jnp.dot(hb3.astype(jnp.bfloat16), wout_ref[H:2 * H, :],
                      preferred_element_type=jnp.float32)
            + bout_ref[...])

    return kernel


# ---------------------------------------------------------------------------
# Full Net.forward
# ---------------------------------------------------------------------------
def net_forward(packed, x):
    B = x.shape[0]
    Bp = max(8, ((B + 7) // 8) * 8)                    # pad batch to sublanes
    xs = x.reshape(B, T, F_IN).astype(jnp.float32)     # == torch x.view(B, 32, 96)
    xs = jnp.transpose(xs, (1, 0, 2))                  # time-major (T, B, F)
    xs = jnp.pad(xs, ((0, 0), (0, Bp - B), (0, F_PAD - F_IN)))
    x2d = xs.reshape(T * Bp, F_PAD).astype(jnp.bfloat16)   # row t*Bp + b

    inputs = [x2d] + list(packed)
    kernel = _make_net_kernel(Bp)
    out_shape = (jax.ShapeDtypeStruct((Bp, O_PAD), jnp.float32),
                 jax.ShapeDtypeStruct((Bp, 2 * H), jnp.float32))
    logits_p, y_p = pl.pallas_call(
        kernel,
        out_shape=out_shape,
        in_specs=[_full_spec(a.shape) for a in inputs],
        out_specs=(_full_spec((Bp, O_PAD)), _full_spec((Bp, 2 * H))),
        scratch_shapes=[
            pltpu.VMEM((T * Bp, 2 * H), jnp.float32),   # seq_a: layer-1 output
            pltpu.VMEM((T * Bp, 2 * H), jnp.float32),   # seq_b: layer-2 output
            pltpu.VMEM((T * Bp, 4 * H), jnp.float32),   # gates_x fwd
            pltpu.VMEM((T * Bp, 4 * H), jnp.float32),   # gates_x bwd
        ],
    )(*inputs)
    return logits_p[:B, :NUM_CLASSES], y_p[:B, :]


# ---------------------------------------------------------------------------
# Weight packing: pre-transpose, fuse biases, pad layer-1 K to 128, pad
# Linear output to 128 lanes, cast matmul weights to bf16.
# Called ONCE outside the jitted forward.
# ---------------------------------------------------------------------------
def pack_params(params):
    ws = []
    for li, lp in enumerate(params["lstm"]):
        for name in ("fwd", "bwd"):
            w_ih, w_hh, b_ih, b_hh = lp[name]
            w_ih_t = jnp.transpose(w_ih).astype(jnp.float32)        # (F, 4H)
            if li == 0:
                w_ih_t = jnp.pad(w_ih_t, ((0, F_PAD - F_IN), (0, 0)))
            ws.append(w_ih_t.astype(jnp.bfloat16))                  # (Fp, 4H) bf16
            ws.append(jnp.transpose(w_hh).astype(jnp.bfloat16))     # (H, 4H) bf16
            ws.append((b_ih + b_hh).reshape(1, 4 * H).astype(jnp.float32))
    wout = jnp.zeros((2 * H, O_PAD), jnp.float32).at[:, :NUM_CLASSES].set(
        jnp.transpose(params["w_out"]).astype(jnp.float32))
    bout = jnp.zeros((1, O_PAD), jnp.float32).at[:, :NUM_CLASSES].set(
        params["b_out"].reshape(1, NUM_CLASSES).astype(jnp.float32))
    ws += [wout.astype(jnp.bfloat16), bout]
    return ws


# ---------------------------------------------------------------------------
# Deterministic parameter init (matches PyTorch LSTM/Linear shapes;
# uniform(-1/sqrt(fan), 1/sqrt(fan)) like PyTorch defaults).
# ---------------------------------------------------------------------------
def init_params(key):
    params = {"lstm": []}
    bound = 1.0 / float(jnp.sqrt(jnp.float32(H)))
    in_size = F_IN
    for _ in range(NUM_LAYERS):
        layer_p = {}
        for name in ("fwd", "bwd"):
            key, k1, k2, k3, k4 = jax.random.split(key, 5)
            w_ih = jax.random.uniform(k1, (4 * H, in_size), jnp.float32, -bound, bound)
            w_hh = jax.random.uniform(k2, (4 * H, H), jnp.float32, -bound, bound)
            b_ih = jax.random.uniform(k3, (4 * H,), jnp.float32, -bound, bound)
            b_hh = jax.random.uniform(k4, (4 * H,), jnp.float32, -bound, bound)
            layer_p[name] = (w_ih, w_hh, b_ih, b_hh)
        params["lstm"].append(layer_p)
        in_size = 2 * H
    key, k1, k2 = jax.random.split(key, 3)
    lb = 1.0 / float(jnp.sqrt(jnp.float32(2 * H)))
    params["w_out"] = jax.random.uniform(k1, (NUM_CLASSES, 2 * H), jnp.float32, -lb, lb)
    params["b_out"] = jax.random.uniform(k2, (NUM_CLASSES,), jnp.float32, -lb, lb)
    return params


# ---------------------------------------------------------------------------
# Pure-JAX f32 reference (lax.scan LSTM) for correctness check.
# ---------------------------------------------------------------------------
def _ref_dir(x_tbf, w_ih, w_hh, b_ih, b_hh, reverse):
    Tn, B, _ = x_tbf.shape
    b = b_ih + b_hh

    def cell(carry, x_t):
        h, c = carry
        gates = x_t @ w_ih.T + h @ w_hh.T + b
        i, f, g, o = jnp.split(gates, 4, axis=-1)
        i = jax.nn.sigmoid(i); f = jax.nn.sigmoid(f)
        g = jnp.tanh(g); o = jax.nn.sigmoid(o)
        c = f * c + i * g
        h = o * jnp.tanh(c)
        return (h, c), h

    xs = x_tbf[::-1] if reverse else x_tbf
    init = (jnp.zeros((B, H), jnp.float32), jnp.zeros((B, H), jnp.float32))
    _, hs = jax.lax.scan(cell, init, xs)
    return hs[::-1] if reverse else hs


def ref_forward(params, x):
    B = x.shape[0]
    h = jnp.transpose(x.reshape(B, T, F_IN).astype(jnp.float32), (1, 0, 2))
    for lp in params["lstm"]:
        fwd = _ref_dir(h, *lp["fwd"], reverse=False)
        bwd = _ref_dir(h, *lp["bwd"], reverse=True)
        h = jnp.concatenate([fwd, bwd], axis=-1)
    y = h[T - 1]
    return y @ params["w_out"].T + params["b_out"], y


if __name__ == "__main__":
    key = jax.random.PRNGKey(0)
    pkey, xkey = jax.random.split(key)
    params = init_params(pkey)
    packed = pack_params(params)
    # NCHW image input (B=2, C=3, H=32, W=32); forward views it as (B, 32, 96).
    x = jax.random.normal(xkey, (2, 3, 32, 32), jnp.float32)

    fwd = jax.jit(net_forward)
    logits, y = fwd(packed, x)
    logits = jax.block_until_ready(logits)
    y = jax.block_until_ready(y)

    ref_logits, ref_y = ref_forward(params, x)
    assert logits.shape == (2, NUM_CLASSES) and y.shape == (2, 2 * H)
    # bf16 MXU operands vs f32 reference: comfortably inside 2e-2.
    assert jnp.allclose(y, ref_y, atol=2e-2, rtol=2e-2), \
        float(jnp.max(jnp.abs(y - ref_y)))
    assert jnp.allclose(logits, ref_logits, atol=2e-2, rtol=2e-2), \
        float(jnp.max(jnp.abs(logits - ref_logits)))
    print("KERNEL_OK")
</pallas_src>

<mosaic_0001>
module attributes {stable_mosaic.version = 11 : i64} {
  func.func @kernel(%arg0: memref<256x128xbf16, #tpu.memory_space<vmem>>, %arg1: memref<128x512xbf16, #tpu.memory_space<vmem>>, %arg2: memref<128x512xbf16, #tpu.memory_space<vmem>>, %arg3: memref<1x512xf32, #tpu.memory_space<vmem>>, %arg4: memref<128x512xbf16, #tpu.memory_space<vmem>>, %arg5: memref<128x512xbf16, #tpu.memory_space<vmem>>, %arg6: memref<1x512xf32, #tpu.memory_space<vmem>>, %arg7: memref<256x512xbf16, #tpu.memory_space<vmem>>, %arg8: memref<128x512xbf16, #tpu.memory_space<vmem>>, %arg9: memref<1x512xf32, #tpu.memory_space<vmem>>, %arg10: memref<256x512xbf16, #tpu.memory_space<vmem>>, %arg11: memref<128x512xbf16, #tpu.memory_space<vmem>>, %arg12: memref<1x512xf32, #tpu.memory_space<vmem>>, %arg13: memref<256x512xbf16, #tpu.memory_space<vmem>>, %arg14: memref<128x512xbf16, #tpu.memory_space<vmem>>, %arg15: memref<1x512xf32, #tpu.memory_space<vmem>>, %arg16: memref<256x512xbf16, #tpu.memory_space<vmem>>, %arg17: memref<128x512xbf16, #tpu.memory_space<vmem>>, %arg18: memref<1x512xf32, #tpu.memory_space<vmem>>, %arg19: memref<256x128xbf16, #tpu.memory_space<vmem>>, %arg20: memref<1x128xf32, #tpu.memory_space<vmem>>, %arg21: memref<8x128xf32, #tpu.memory_space<vmem>>, %arg22: memref<8x256xf32, #tpu.memory_space<vmem>>, %arg23: memref<256x256xf32, #tpu.memory_space<vmem>>, %arg24: memref<256x256xf32, #tpu.memory_space<vmem>>, %arg25: memref<256x512xf32, #tpu.memory_space<vmem>>, %arg26: memref<256x512xf32, #tpu.memory_space<vmem>>) attributes {dimension_semantics = [], scalar_prefetch = 0 : i64, scratch_operands = 4 : i64, tpu.core_type = #tpu.core_type<tc>} {
    %c0 = arith.constant 0 : index
    %c0_0 = arith.constant 0 : index
    %0 = vector.load %arg0[%c0, %c0_0] : memref<256x128xbf16, #tpu.memory_space<vmem>>, vector<256x128xbf16>
    %c0_1 = arith.constant 0 : index
    %c0_2 = arith.constant 0 : index
    %1 = vector.load %arg1[%c0_1, %c0_2] : memref<128x512xbf16, #tpu.memory_space<vmem>>, vector<128x512xbf16>
    %cst = arith.constant dense<0.000000e+00> : vector<256x512xf32>
    %2 = tpu.matmul %0, %1, %cst {dimension_numbers = #tpu.dot_dimension_numbers<[1], [0], [0], [1], [0, 0, 1, 1], [], []>} : vector<256x128xbf16>, vector<128x512xbf16>, vector<256x512xf32> -> vector<256x512xf32>
    %c0_3 = arith.constant 0 : index
    %c0_4 = arith.constant 0 : index
    %3 = vector.load %arg3[%c0_3, %c0_4] : memref<1x512xf32, #tpu.memory_space<vmem>>, vector<1x512xf32>
    %4 = vector.broadcast %3 : vector<1x512xf32> to vector<256x512xf32>
    %5 = arith.addf %2, %4 : vector<256x512xf32>
    %c0_5 = arith.constant 0 : index
    %c0_6 = arith.constant 0 : index
    %6 = vector.load %arg25[%c0_5, %c0_6] : memref<256x512xf32, #tpu.memory_space<vmem>>, vector<256x512xf32>
    tpu.vector_store %arg25[%c0_5, %c0_6], %5 {strides = array<i32>} : memref<256x512xf32, #tpu.memory_space<vmem>>, vector<256x512xf32>,
    %c0_7 = arith.constant 0 : index
    %c0_8 = arith.constant 0 : index
    %7 = vector.load %arg4[%c0_7, %c0_8] : memref<128x512xbf16, #tpu.memory_space<vmem>>, vector<128x512xbf16>
    %cst_9 = arith.constant dense<0.000000e+00> : vector<256x512xf32>
    %8 = tpu.matmul %0, %7, %cst_9 {dimension_numbers = #tpu.dot_dimension_numbers<[1], [0], [0], [1], [0, 0, 1, 1], [], []>} : vector<256x128xbf16>, vector<128x512xbf16>, vector<256x512xf32> -> vector<256x512xf32>
    %c0_10 = arith.constant 0 : index
    %c0_11 = arith.constant 0 : index
    %9 = vector.load %arg6[%c0_10, %c0_11] : memref<1x512xf32, #tpu.memory_space<vmem>>, vector<1x512xf32>
    %10 = vector.broadcast %9 : vector<1x512xf32> to vector<256x512xf32>
    %11 = arith.addf %8, %10 : vector<256x512xf32>
    %c0_12 = arith.constant 0 : index
    %c0_13 = arith.constant 0 : index
    %12 = vector.load %arg26[%c0_12, %c0_13] : memref<256x512xf32, #tpu.memory_space<vmem>>, vector<256x512xf32>
    tpu.vector_store %arg26[%c0_12, %c0_13], %11 {strides = array<i32>} : memref<256x512xf32, #tpu.memory_space<vmem>>, vector<256x512xf32>,
    %cst_14 = arith.constant 0.000000e+00 : f32
    %13 = vector.broadcast %cst_14 : f32 to vector<8x128xf32>
    %c0_i32 = arith.constant 0 : i32
    %c32_i32 = arith.constant 32 : i32
    %14 = arith.addi %c0_i32, %c32_i32 : i32
    %c1_i32 = arith.constant 1 : i32
    %15:4 = scf.for %arg27 = %c0_i32 to %14 step %c1_i32 iter_args(%arg28 = %13, %arg29 = %13, %arg30 = %13, %arg31 = %13) -> (vector<8x128xf32>, vector<8x128xf32>, vector<8x128xf32>, vector<8x128xf32>)  : i32 {
      %c8_i32 = arith.constant 8 : i32
      %90 = arith.muli %arg27, %c8_i32 : i32
      %91 = tpu.assume_multiple %90, 8 : i32
      %c31_i32 = arith.constant 31 : i32
      %92 = arith.subi %c31_i32, %arg27 : i32
      %c8_i32_74 = arith.constant 8 : i32
      %93 = arith.muli %92, %c8_i32_74 : i32
      %94 = tpu.assume_multiple %93, 8 : i32
      %95 = arith.index_cast %91 : i32 to index
      %c0_75 = arith.constant 0 : index
      %96 = vector.load %arg25[%95, %c0_75] : memref<256x512xf32, #tpu.memory_space<vmem>>, vector<8x512xf32>
      %97 = arith.truncf %arg28 : vector<8x128xf32> to vector<8x128xbf16>
      %c0_76 = arith.constant 0 : index
      %c0_77 = arith.constant 0 : index
      %98 = vector.load %arg2[%c0_76, %c0_77] : memref<128x512xbf16, #tpu.memory_space<vmem>>, vector<128x512xbf16>
      %cst_78 = arith.constant dense<0.000000e+00> : vector<8x512xf32>
      %99 = tpu.matmul %97, %98, %cst_78 {dimension_numbers = #tpu.dot_dimension_numbers<[1], [0], [0], [1], [0, 0, 1, 1], [], []>} : vector<8x128xbf16>, vector<128x512xbf16>, vector<8x512xf32> -> vector<8x512xf32>
      %100 = arith.addf %96, %99 : vector<8x512xf32>
      %101 = arith.index_cast %94 : i32 to index
      %c0_79 = arith.constant 0 : index
      %102 = vector.load %arg26[%101, %c0_79] : memref<256x512xf32, #tpu.memory_space<vmem>>, vector<8x512xf32>
      %103 = arith.truncf %arg30 : vector<8x128xf32> to vector<8x128xbf16>
      %c0_80 = arith.constant 0 : index
      %c0_81 = arith.constant 0 : index
      %104 = vector.load %arg5[%c0_80, %c0_81] : memref<128x512xbf16, #tpu.memory_space<vmem>>, vector<128x512xbf16>
      %cst_82 = arith.constant dense<0.000000e+00> : vector<8x512xf32>
      %105 = tpu.matmul %103, %104, %cst_82 {dimension_numbers = #tpu.dot_dimension_numbers<[1], [0], [0], [1], [0, 0, 1, 1], [], []>} : vector<8x128xbf16>, vector<128x512xbf16>, vector<8x512xf32> -> vector<8x512xf32>
      %106 = arith.addf %102, %105 : vector<8x512xf32>
      %107 = vector.extract_strided_slice %100 {offsets = [0, 0], sizes = [8, 128], strides = [1, 1]} : vector<8x512xf32> to vector<8x128xf32>
      %108 = arith.negf %107 : vector<8x128xf32>
      %109 = math.exp %108 : vector<8x128xf32>
      %cst_83 = arith.constant 1.000000e+00 : f32
      %110 = vector.broadcast %cst_83 : f32 to vector<8x128xf32>
      %111 = arith.addf %110, %109 : vector<8x128xf32>
      %112 = arith.divf %110, %111 : vector<8x128xf32>
      %113 = vector.extract_strided_slice %100 {offsets = [0, 128], sizes = [8, 128], strides = [1, 1]} : vector<8x512xf32> to vector<8x128xf32>
      %114 = arith.negf %113 : vector<8x128xf32>
      %115 = math.exp %114 : vector<8x128xf32>
      %cst_84 = arith.constant 1.000000e+00 : f32
      %116 = vector.broadcast %cst_84 : f32 to vector<8x128xf32>
      %117 = arith.addf %116, %115 : vector<8x128xf32>
      %118 = arith.divf %116, %117 : vector<8x128xf32>
      %119 = vector.extract_strided_slice %100 {offsets = [0, 256], sizes = [8, 128], strides = [1, 1]} : vector<8x512xf32> to vector<8x128xf32>
      %120 = math.tanh %119 : vector<8x128xf32>
      %121 = vector.extract_strided_slice %100 {offsets = [0, 384], sizes = [8, 128], strides = [1, 1]} : vector<8x512xf32> to vector<8x128xf32>
      %122 = arith.negf %121 : vector<8x128xf32>
      %123 = math.exp %122 : vector<8x128xf32>
      %cst_85 = arith.constant 1.000000e+00 : f32
      %124 = vector.broadcast %cst_85 : f32 to vector<8x128xf32>
      %125 = arith.addf %124, %123 : vector<8x128xf32>
      %126 = arith.divf %124, %125 : vector<8x128xf32>
      %127 = arith.mulf %118, %arg29 : vector<8x128xf32>
      %128 = arith.mulf %112, %120 : vector<8x128xf32>
      %129 = arith.addf %127, %128 : vector<8x128xf32>
      %130 = math.tanh %129 : vector<8x128xf32>
      %131 = arith.mulf %126, %130 : vector<8x128xf32>
      %132 = vector.extract_strided_slice %106 {offsets = [0, 0], sizes = [8, 128], strides = [1, 1]} : vector<8x512xf32> to vector<8x128xf32>
      %133 = arith.negf %132 : vector<8x128xf32>
      %134 = math.exp %133 : vector<8x128xf32>
      %cst_86 = arith.constant 1.000000e+00 : f32
      %135 = vector.broadcast %cst_86 : f32 to vector<8x128xf32>
      %136 = arith.addf %135, %134 : vector<8x128xf32>
      %137 = arith.divf %135, %136 : vector<8x128xf32>
      %138 = vector.extract_strided_slice %106 {offsets = [0, 128], sizes = [8, 128], strides = [1, 1]} : vector<8x512xf32> to vector<8x128xf32>
      %139 = arith.negf %138 : vector<8x128xf32>
      %140 = math.exp %139 : vector<8x128xf32>
      %cst_87 = arith.constant 1.000000e+00 : f32
      %141 = vector.broadcast %cst_87 : f32 to vector<8x128xf32>
      %142 = arith.addf %141, %140 : vector<8x128xf32>
      %143 = arith.divf %141, %142 : vector<8x128xf32>
      %144 = vector.extract_strided_slice %106 {offsets = [0, 256], sizes = [8, 128], strides = [1, 1]} : vector<8x512xf32> to vector<8x128xf32>
      %145 = math.tanh %144 : vector<8x128xf32>
      %146 = vector.extract_strided_slice %106 {offsets = [0, 384], sizes = [8, 128], strides = [1, 1]} : vector<8x512xf32> to vector<8x128xf32>
      %147 = arith.negf %146 : vector<8x128xf32>
      %148 = math.exp %147 : vector<8x128xf32>
      %cst_88 = arith.constant 1.000000e+00 : f32
      %149 = vector.broadcast %cst_88 : f32 to vector<8x128xf32>
      %150 = arith.addf %149, %148 : vector<8x128xf32>
      %151 = arith.divf %149, %150 : vector<8x128xf32>
      %152 = arith.mulf %143, %arg31 : vector<8x128xf32>
      %153 = arith.mulf %137, %145 : vector<8x128xf32>
      %154 = arith.addf %152, %153 : vector<8x128xf32>
      %155 = math.tanh %154 : vector<8x128xf32>
      %156 = arith.mulf %151, %155 : vector<8x128xf32>
      %157 = arith.index_cast %91 : i32 to index
      %c0_89 = arith.constant 0 : index
      %158 = vector.load %arg23[%157, %c0_89] : memref<256x256xf32, #tpu.memory_space<vmem>>, vector<8x128xf32>
      tpu.vector_store %arg23[%157, %c0_89], %131 {strides = array<i32>} : memref<256x256xf32, #tpu.memory_space<vmem>>, vector<8x128xf32>,
      %159 = arith.index_cast %94 : i32 to index
      %c128_90 = arith.constant 128 : index
      %160 = vector.load %arg23[%159, %c128_90] : memref<256x256xf32, #tpu.memory_space<vmem>>, vector<8x128xf32>
      tpu.vector_store %arg23[%159, %c128_90], %156 {strides = array<i32>} : memref<256x256xf32, #tpu.memory_space<vmem>>, vector<8x128xf32>,
      scf.yield %131, %129, %156, %154 : vector<8x128xf32>, vector<8x128xf32>, vector<8x128xf32>, vector<8x128xf32>
    }
    %c32_i32_15 = arith.constant 32 : i32
    %c0_16 = arith.constant 0 : index
    %c0_17 = arith.constant 0 : index
    %16 = vector.load %arg23[%c0_16, %c0_17] : memref<256x256xf32, #tpu.memory_space<vmem>>, vector<256x256xf32>
    %17 = arith.truncf %16 : vector<256x256xf32> to vector<256x256xbf16>
    %c0_18 = arith.constant 0 : index
    %c0_19 = arith.constant 0 : index
    %18 = vector.load %arg7[%c0_18, %c0_19] : memref<256x512xbf16, #tpu.memory_space<vmem>>, vector<256x512xbf16>
    %cst_20 = arith.constant dense<0.000000e+00> : vector<256x512xf32>
    %19 = tpu.matmul %17, %18, %cst_20 {dimension_numbers = #tpu.dot_dimension_numbers<[1], [0], [0], [1], [0, 0, 1, 1], [], []>} : vector<256x256xbf16>, vector<256x512xbf16>, vector<256x512xf32> -> vector<256x512xf32>
    %c0_21 = arith.constant 0 : index
    %c0_22 = arith.constant 0 : index
    %20 = vector.load %arg9[%c0_21, %c0_22] : memref<1x512xf32, #tpu.memory_space<vmem>>, vector<1x512xf32>
    %21 = vector.broadcast %20 : vector<1x512xf32> to vector<256x512xf32>
    %22 = arith.addf %19, %21 : vector<256x512xf32>
    %c0_23 = arith.constant 0 : index
    %c0_24 = arith.constant 0 : index
    %23 = vector.load %arg25[%c0_23, %c0_24] : memref<256x512xf32, #tpu.memory_space<vmem>>, vector<256x512xf32>
    tpu.vector_store %arg25[%c0_23, %c0_24], %22 {strides = array<i32>} : memref<256x512xf32, #tpu.memory_space<vmem>>, vector<256x512xf32>,
    %c0_25 = arith.constant 0 : index
    %c0_26 = arith.constant 0 : index
    %24 = vector.load %arg10[%c0_25, %c0_26] : memref<256x512xbf16, #tpu.memory_space<vmem>>, vector<256x512xbf16>
    %cst_27 = arith.constant dense<0.000000e+00> : vector<256x512xf32>
    %25 = tpu.matmul %17, %24, %cst_27 {dimension_numbers = #tpu.dot_dimension_numbers<[1], [0], [0], [1], [0, 0, 1, 1], [], []>} : vector<256x256xbf16>, vector<256x512xbf16>, vector<256x512xf32> -> vector<256x512xf32>
    %c0_28 = arith.constant 0 : index
    %c0_29 = arith.constant 0 : index
    %26 = vector.load %arg12[%c0_28, %c0_29] : memref<1x512xf32, #tpu.memory_space<vmem>>, vector<1x512xf32>
    %27 = vector.broadcast %26 : vector<1x512xf32> to vector<256x512xf32>
    %28 = arith.addf %25, %27 : vector<256x512xf32>
    %c0_30 = arith.constant 0 : index
    %c0_31 = arith.constant 0 : index
    %29 = vector.load %arg26[%c0_30, %c0_31] : memref<256x512xf32, #tpu.memory_space<vmem>>, vector<256x512xf32>
    tpu.vector_store %arg26[%c0_30, %c0_31], %28 {strides = array<i32>} : memref<256x512xf32, #tpu.memory_space<vmem>>, vector<256x512xf32>,
    %cst_32 = arith.constant 0.000000e+00 : f32
    %30 = vector.broadcast %cst_32 : f32 to vector<8x128xf32>
    %c0_i32_33 = arith.constant 0 : i32
    %c32_i32_34 = arith.constant 32 : i32
    %31 = arith.addi %c0_i32_33, %c32_i32_34 : i32
    %c1_i32_35 = arith.constant 1 : i32
    %32:4 = scf.for %arg27 = %c0_i32_33 to %31 step %c1_i32_35 iter_args(%arg28 = %30, %arg29 = %30, %arg30 = %30, %arg31 = %30) -> (vector<8x128xf32>, vector<8x128xf32>, vector<8x128xf32>, vector<8x128xf32>)  : i32 {
      %c8_i32 = arith.constant 8 : i32
      %90 = arith.muli %arg27, %c8_i32 : i32
      %91 = tpu.assume_multiple %90, 8 : i32
      %c31_i32 = arith.constant 31 : i32
      %92 = arith.subi %c31_i32, %arg27 : i32
      %c8_i32_74 = arith.constant 8 : i32
      %93 = arith.muli %92, %c8_i32_74 : i32
      %94 = tpu.assume_multiple %93, 8 : i32
      %95 = arith.index_cast %91 : i32 to index
      %c0_75 = arith.constant 0 : index
      %96 = vector.load %arg25[%95, %c0_75] : memref<256x512xf32, #tpu.memory_space<vmem>>, vector<8x512xf32>
      %97 = arith.truncf %arg28 : vector<8x128xf32> to vector<8x128xbf16>
      %c0_76 = arith.constant 0 : index
      %c0_77 = arith.constant 0 : index
      %98 = vector.load %arg8[%c0_76, %c0_77] : memref<128x512xbf16, #tpu.memory_space<vmem>>, vector<128x512xbf16>
      %cst_78 = arith.constant dense<0.000000e+00> : vector<8x512xf32>
      %99 = tpu.matmul %97, %98, %cst_78 {dimension_numbers = #tpu.dot_dimension_numbers<[1], [0], [0], [1], [0, 0, 1, 1], [], []>} : vector<8x128xbf16>, vector<128x512xbf16>, vector<8x512xf32> -> vector<8x512xf32>
      %100 = arith.addf %96, %99 : vector<8x512xf32>
      %101 = arith.index_cast %94 : i32 to index
      %c0_79 = arith.constant 0 : index
      %102 = vector.load %arg26[%101, %c0_79] : memref<256x512xf32, #tpu.memory_space<vmem>>, vector<8x512xf32>
      %103 = arith.truncf %arg30 : vector<8x128xf32> to vector<8x128xbf16>
      %c0_80 = arith.constant 0 : index
      %c0_81 = arith.constant 0 : index
      %104 = vector.load %arg11[%c0_80, %c0_81] : memref<128x512xbf16, #tpu.memory_space<vmem>>, vector<128x512xbf16>
      %cst_82 = arith.constant dense<0.000000e+00> : vector<8x512xf32>
      %105 = tpu.matmul %103, %104, %cst_82 {dimension_numbers = #tpu.dot_dimension_numbers<[1], [0], [0], [1], [0, 0, 1, 1], [], []>} : vector<8x128xbf16>, vector<128x512xbf16>, vector<8x512xf32> -> vector<8x512xf32>
      %106 = arith.addf %102, %105 : vector<8x512xf32>
      %107 = vector.extract_strided_slice %100 {offsets = [0, 0], sizes = [8, 128], strides = [1, 1]} : vector<8x512xf32> to vector<8x128xf32>
      %108 = arith.negf %107 : vector<8x128xf32>
      %109 = math.exp %108 : vector<8x128xf32>
      %cst_83 = arith.constant 1.000000e+00 : f32
      %110 = vector.broadcast %cst_83 : f32 to vector<8x128xf32>
      %111 = arith.addf %110, %109 : vector<8x128xf32>
      %112 = arith.divf %110, %111 : vector<8x128xf32>
      %113 = vector.extract_strided_slice %100 {offsets = [0, 128], sizes = [8, 128], strides = [1, 1]} : vector<8x512xf32> to vector<8x128xf32>
      %114 = arith.negf %113 : vector<8x128xf32>
      %115 = math.exp %114 : vector<8x128xf32>
      %cst_84 = arith.constant 1.000000e+00 : f32
      %116 = vector.broadcast %cst_84 : f32 to vector<8x128xf32>
      %117 = arith.addf %116, %115 : vector<8x128xf32>
      %118 = arith.divf %116, %117 : vector<8x128xf32>
      %119 = vector.extract_strided_slice %100 {offsets = [0, 256], sizes = [8, 128], strides = [1, 1]} : vector<8x512xf32> to vector<8x128xf32>
      %120 = math.tanh %119 : vector<8x128xf32>
      %121 = vector.extract_strided_slice %100 {offsets = [0, 384], sizes = [8, 128], strides = [1, 1]} : vector<8x512xf32> to vector<8x128xf32>
      %122 = arith.negf %121 : vector<8x128xf32>
      %123 = math.exp %122 : vector<8x128xf32>
      %cst_85 = arith.constant 1.000000e+00 : f32
      %124 = vector.broadcast %cst_85 : f32 to vector<8x128xf32>
      %125 = arith.addf %124, %123 : vector<8x128xf32>
      %126 = arith.divf %124, %125 : vector<8x128xf32>
      %127 = arith.mulf %118, %arg29 : vector<8x128xf32>
      %128 = arith.mulf %112, %120 : vector<8x128xf32>
      %129 = arith.addf %127, %128 : vector<8x128xf32>
      %130 = math.tanh %129 : vector<8x128xf32>
      %131 = arith.mulf %126, %130 : vector<8x128xf32>
      %132 = vector.extract_strided_slice %106 {offsets = [0, 0], sizes = [8, 128], strides = [1, 1]} : vector<8x512xf32> to vector<8x128xf32>
      %133 = arith.negf %132 : vector<8x128xf32>
      %134 = math.exp %133 : vector<8x128xf32>
      %cst_86 = arith.constant 1.000000e+00 : f32
      %135 = vector.broadcast %cst_86 : f32 to vector<8x128xf32>
      %136 = arith.addf %135, %134 : vector<8x128xf32>
      %137 = arith.divf %135, %136 : vector<8x128xf32>
      %138 = vector.extract_strided_slice %106 {offsets = [0, 128], sizes = [8, 128], strides = [1, 1]} : vector<8x512xf32> to vector<8x128xf32>
      %139 = arith.negf %138 : vector<8x128xf32>
      %140 = math.exp %139 : vector<8x128xf32>
      %cst_87 = arith.constant 1.000000e+00 : f32
      %141 = vector.broadcast %cst_87 : f32 to vector<8x128xf32>
      %142 = arith.addf %141, %140 : vector<8x128xf32>
      %143 = arith.divf %141, %142 : vector<8x128xf32>
      %144 = vector.extract_strided_slice %106 {offsets = [0, 256], sizes = [8, 128], strides = [1, 1]} : vector<8x512xf32> to vector<8x128xf32>
      %145 = math.tanh %144 : vector<8x128xf32>
      %146 = vector.extract_strided_slice %106 {offsets = [0, 384], sizes = [8, 128], strides = [1, 1]} : vector<8x512xf32> to vector<8x128xf32>
      %147 = arith.negf %146 : vector<8x128xf32>
      %148 = math.exp %147 : vector<8x128xf32>
      %cst_88 = arith.constant 1.000000e+00 : f32
      %149 = vector.broadcast %cst_88 : f32 to vector<8x128xf32>
      %150 = arith.addf %149, %148 : vector<8x128xf32>
      %151 = arith.divf %149, %150 : vector<8x128xf32>
      %152 = arith.mulf %143, %arg31 : vector<8x128xf32>
      %153 = arith.mulf %137, %145 : vector<8x128xf32>
      %154 = arith.addf %152, %153 : vector<8x128xf32>
      %155 = math.tanh %154 : vector<8x128xf32>
      %156 = arith.mulf %151, %155 : vector<8x128xf32>
      %157 = arith.index_cast %91 : i32 to index
      %c0_89 = arith.constant 0 : index
      %158 = vector.load %arg24[%157, %c0_89] : memref<256x256xf32, #tpu.memory_space<vmem>>, vector<8x128xf32>
      tpu.vector_store %arg24[%157, %c0_89], %131 {strides = array<i32>} : memref<256x256xf32, #tpu.memory_space<vmem>>, vector<8x128xf32>,
      %159 = arith.index_cast %94 : i32 to index
      %c128_90 = arith.constant 128 : index
      %160 = vector.load %arg24[%159, %c128_90] : memref<256x256xf32, #tpu.memory_space<vmem>>, vector<8x128xf32>
      tpu.vector_store %arg24[%159, %c128_90], %156 {strides = array<i32>} : memref<256x256xf32, #tpu.memory_space<vmem>>, vector<8x128xf32>,
      scf.yield %131, %129, %156, %154 : vector<8x128xf32>, vector<8x128xf32>, vector<8x128xf32>, vector<8x128xf32>
    }
    %c32_i32_36 = arith.constant 32 : i32
    %c0_37 = arith.constant 0 : index
    %c0_38 = arith.constant 0 : index
    %33 = vector.load %arg24[%c0_37, %c0_38] : memref<256x256xf32, #tpu.memory_space<vmem>>, vector<256x256xf32>
    %34 = arith.truncf %33 : vector<256x256xf32> to vector<256x256xbf16>
    %c0_39 = arith.constant 0 : index
    %c0_40 = arith.constant 0 : index
    %35 = vector.load %arg13[%c0_39, %c0_40] : memref<256x512xbf16, #tpu.memory_space<vmem>>, vector<256x512xbf16>
    %cst_41 = arith.constant dense<0.000000e+00> : vector<256x512xf32>
    %36 = tpu.matmul %34, %35, %cst_41 {dimension_numbers = #tpu.dot_dimension_numbers<[1], [0], [0], [1], [0, 0, 1, 1], [], []>} : vector<256x256xbf16>, vector<256x512xbf16>, vector<256x512xf32> -> vector<256x512xf32>
    %c0_42 = arith.constant 0 : index
    %c0_43 = arith.constant 0 : index
    %37 = vector.load %arg15[%c0_42, %c0_43] : memref<1x512xf32, #tpu.memory_space<vmem>>, vector<1x512xf32>
    %38 = vector.broadcast %37 : vector<1x512xf32> to vector<256x512xf32>
    %39 = arith.addf %36, %38 : vector<256x512xf32>
    %c0_44 = arith.constant 0 : index
    %c0_45 = arith.constant 0 : index
    %40 = vector.load %arg25[%c0_44, %c0_45] : memref<256x512xf32, #tpu.memory_space<vmem>>, vector<256x512xf32>
    tpu.vector_store %arg25[%c0_44, %c0_45], %39 {strides = array<i32>} : memref<256x512xf32, #tpu.memory_space<vmem>>, vector<256x512xf32>,
    %cst_46 = arith.constant 0.000000e+00 : f32
    %41 = vector.broadcast %cst_46 : f32 to vector<8x128xf32>
    %c0_i32_47 = arith.constant 0 : i32
    %c32_i32_48 = arith.constant 32 : i32
    %42 = arith.addi %c0_i32_47, %c32_i32_48 : i32
    %c1_i32_49 = arith.constant 1 : i32
    %43:2 = scf.for %arg27 = %c0_i32_47 to %42 step %c1_i32_49 iter_args(%arg28 = %41, %arg29 = %41) -> (vector<8x128xf32>, vector<8x128xf32>)  : i32 {
      %c8_i32 = arith.constant 8 : i32
      %90 = arith.muli %arg27, %c8_i32 : i32
      %91 = tpu.assume_multiple %90, 8 : i32
      %92 = arith.index_cast %91 : i32 to index
      %c0_74 = arith.constant 0 : index
      %93 = vector.load %arg25[%92, %c0_74] : memref<256x512xf32, #tpu.memory_space<vmem>>, vector<8x512xf32>
      %94 = arith.truncf %arg28 : vector<8x128xf32> to vector<8x128xbf16>
      %c0_75 = arith.constant 0 : index
      %c0_76 = arith.constant 0 : index
      %95 = vector.load %arg14[%c0_75, %c0_76] : memref<128x512xbf16, #tpu.memory_space<vmem>>, vector<128x512xbf16>
      %cst_77 = arith.constant dense<0.000000e+00> : vector<8x512xf32>
      %96 = tpu.matmul %94, %95, %cst_77 {dimension_numbers = #tpu.dot_dimension_numbers<[1], [0], [0], [1], [0, 0, 1, 1], [], []>} : vector<8x128xbf16>, vector<128x512xbf16>, vector<8x512xf32> -> vector<8x512xf32>
      %97 = arith.addf %93, %96 : vector<8x512xf32>
      %98 = vector.extract_strided_slice %97 {offsets = [0, 0], sizes = [8, 128], strides = [1, 1]} : vector<8x512xf32> to vector<8x128xf32>
      %99 = arith.negf %98 : vector<8x128xf32>
      %100 = math.exp %99 : vector<8x128xf32>
      %cst_78 = arith.constant 1.000000e+00 : f32
      %101 = vector.broadcast %cst_78 : f32 to vector<8x128xf32>
      %102 = arith.addf %101, %100 : vector<8x128xf32>
      %103 = arith.divf %101, %102 : vector<8x128xf32>
      %104 = vector.extract_strided_slice %97 {offsets = [0, 128], sizes = [8, 128], strides = [1, 1]} : vector<8x512xf32> to vector<8x128xf32>
      %105 = arith.negf %104 : vector<8x128xf32>
      %106 = math.exp %105 : vector<8x128xf32>
      %cst_79 = arith.constant 1.000000e+00 : f32
      %107 = vector.broadcast %cst_79 : f32 to vector<8x128xf32>
      %108 = arith.addf %107, %106 : vector<8x128xf32>
      %109 = arith.divf %107, %108 : vector<8x128xf32>
      %110 = vector.extract_strided_slice %97 {offsets = [0, 256], sizes = [8, 128], strides = [1, 1]} : vector<8x512xf32> to vector<8x128xf32>
      %111 = math.tanh %110 : vector<8x128xf32>
      %112 = vector.extract_strided_slice %97 {offsets = [0, 384], sizes = [8, 128], strides = [1, 1]} : vector<8x512xf32> to vector<8x128xf32>
      %113 = arith.negf %112 : vector<8x128xf32>
      %114 = math.exp %113 : vector<8x128xf32>
      %cst_80 = arith.constant 1.000000e+00 : f32
      %115 = vector.broadcast %cst_80 : f32 to vector<8x128xf32>
      %116 = arith.addf %115, %114 : vector<8x128xf32>
      %117 = arith.divf %115, %116 : vector<8x128xf32>
      %118 = arith.mulf %109, %arg29 : vector<8x128xf32>
      %119 = arith.mulf %103, %111 : vector<8x128xf32>
      %120 = arith.addf %118, %119 : vector<8x128xf32>
      %121 = math.tanh %120 : vector<8x128xf32>
      %122 = arith.mulf %117, %121 : vector<8x128xf32>
      scf.yield %122, %120 : vector<8x128xf32>, vector<8x128xf32>
    }
    %c32_i32_50 = arith.constant 32 : i32
    %c248 = arith.constant 248 : index
    %c0_51 = arith.constant 0 : index
    %44 = vector.load %arg24[%c248, %c0_51] : memref<256x256xf32, #tpu.memory_space<vmem>>, vector<8x256xf32>
    %45 = arith.truncf %44 : vector<8x256xf32> to vector<8x256xbf16>
    %c0_52 = arith.constant 0 : index
    %c0_53 = arith.constant 0 : index
    %46 = vector.load %arg16[%c0_52, %c0_53] : memref<256x512xbf16, #tpu.memory_space<vmem>>, vector<256x512xbf16>
    %cst_54 = arith.constant dense<0.000000e+00> : vector<8x512xf32>
    %47 = tpu.matmul %45, %46, %cst_54 {dimension_numbers = #tpu.dot_dimension_numbers<[1], [0], [0], [1], [0, 0, 1, 1], [], []>} : vector<8x256xbf16>, vector<256x512xbf16>, vector<8x512xf32> -> vector<8x512xf32>
    %c0_55 = arith.constant 0 : index
    %c0_56 = arith.constant 0 : index
    %48 = vector.load %arg18[%c0_55, %c0_56] : memref<1x512xf32, #tpu.memory_space<vmem>>, vector<1x512xf32>
    %49 = vector.broadcast %48 : vector<1x512xf32> to vector<8x512xf32>
    %50 = arith.addf %47, %49 : vector<8x512xf32>
    %cst_57 = arith.constant 0.000000e+00 : f32
    %51 = vector.broadcast %cst_57 : f32 to vector<8x128xf32>
    %52 = vector.extract_strided_slice %50 {offsets = [0, 0], sizes = [8, 128], strides = [1, 1]} : vector<8x512xf32> to vector<8x128xf32>
    %53 = arith.negf %52 : vector<8x128xf32>
    %54 = math.exp %53 : vector<8x128xf32>
    %cst_58 = arith.constant 1.000000e+00 : f32
    %55 = vector.broadcast %cst_58 : f32 to vector<8x128xf32>
    %56 = arith.addf %55, %54 : vector<8x128xf32>
    %57 = arith.divf %55, %56 : vector<8x128xf32>
    %58 = vector.extract_strided_slice %50 {offsets = [0, 128], sizes = [8, 128], strides = [1, 1]} : vector<8x512xf32> to vector<8x128xf32>
    %59 = arith.negf %58 : vector<8x128xf32>
    %60 = math.exp %59 : vector<8x128xf32>
    %cst_59 = arith.constant 1.000000e+00 : f32
    %61 = vector.broadcast %cst_59 : f32 to vector<8x128xf32>
    %62 = arith.addf %61, %60 : vector<8x128xf32>
    %63 = arith.divf %61, %62 : vector<8x128xf32>
    %64 = vector.extract_strided_slice %50 {offsets = [0, 256], sizes = [8, 128], strides = [1, 1]} : vector<8x512xf32> to vector<8x128xf32>
    %65 = math.tanh %64 : vector<8x128xf32>
    %66 = vector.extract_strided_slice %50 {offsets = [0, 384], sizes = [8, 128], strides = [1, 1]} : vector<8x512xf32> to vector<8x128xf32>
    %67 = arith.negf %66 : vector<8x128xf32>
    %68 = math.exp %67 : vector<8x128xf32>
    %cst_60 = arith.constant 1.000000e+00 : f32
    %69 = vector.broadcast %cst_60 : f32 to vector<8x128xf32>
    %70 = arith.addf %69, %68 : vector<8x128xf32>
    %71 = arith.divf %69, %70 : vector<8x128xf32>
    %72 = arith.mulf %63, %51 : vector<8x128xf32>
    %73 = arith.mulf %57, %65 : vector<8x128xf32>
    %74 = arith.addf %72, %73 : vector<8x128xf32>
    %75 = math.tanh %74 : vector<8x128xf32>
    %76 = arith.mulf %71, %75 : vector<8x128xf32>
    %c0_61 = arith.constant 0 : index
    %c0_62 = arith.constant 0 : index
    %77 = vector.load %arg22[%c0_61, %c0_62] : memref<8x256xf32, #tpu.memory_space<vmem>>, vector<8x128xf32>
    tpu.vector_store %arg22[%c0_61, %c0_62], %43#0 {strides = array<i32>} : memref<8x256xf32, #tpu.memory_space<vmem>>, vector<8x128xf32>,
    %c0_63 = arith.constant 0 : index
    %c128 = arith.constant 128 : index
    %78 = vector.load %arg22[%c0_63, %c128] : memref<8x256xf32, #tpu.memory_space<vmem>>, vector<8x128xf32>
    tpu.vector_store %arg22[%c0_63, %c128], %76 {strides = array<i32>} : memref<8x256xf32, #tpu.memory_space<vmem>>, vector<8x128xf32>,
    %79 = arith.truncf %43#0 : vector<8x128xf32> to vector<8x128xbf16>
    %c0_64 = arith.constant 0 : index
    %c0_65 = arith.constant 0 : index
    %80 = vector.load %arg19[%c0_64, %c0_65] : memref<256x128xbf16, #tpu.memory_space<vmem>>, vector<128x128xbf16>
    %cst_66 = arith.constant dense<0.000000e+00> : vector<8x128xf32>
    %81 = tpu.matmul %79, %80, %cst_66 {dimension_numbers = #tpu.dot_dimension_numbers<[1], [0], [0], [1], [0, 0, 1, 1], [], []>} : vector<8x128xbf16>, vector<128x128xbf16>, vector<8x128xf32> -> vector<8x128xf32>
    %82 = arith.truncf %76 : vector<8x128xf32> to vector<8x128xbf16>
    %c128_67 = arith.constant 128 : index
    %c0_68 = arith.constant 0 : index
    %83 = vector.load %arg19[%c128_67, %c0_68] : memref<256x128xbf16, #tpu.memory_space<vmem>>, vector<128x128xbf16>
    %cst_69 = arith.constant dense<0.000000e+00> : vector<8x128xf32>
    %84 = tpu.matmul %82, %83, %cst_69 {dimension_numbers = #tpu.dot_dimension_numbers<[1], [0], [0], [1], [0, 0, 1, 1], [], []>} : vector<8x128xbf16>, vector<128x128xbf16>, vector<8x128xf32> -> vector<8x128xf32>
    %85 = arith.addf %81, %84 : vector<8x128xf32>
    %c0_70 = arith.constant 0 : index
    %c0_71 = arith.constant 0 : index
    %86 = vector.load %arg20[%c0_70, %c0_71] : memref<1x128xf32, #tpu.memory_space<vmem>>, vector<1x128xf32>
    %87 = vector.broadcast %86 : vector<1x128xf32> to vector<8x128xf32>
    %88 = arith.addf %85, %87 : vector<8x128xf32>
    %c0_72 = arith.constant 0 : index
    %c0_73 = arith.constant 0 : index
    %89 = vector.load %arg21[%c0_72, %c0_73] : memref<8x128xf32, #tpu.memory_space<vmem>>, vector<8x128xf32>
    tpu.vector_store %arg21[%c0_72, %c0_73], %88 {strides = array<i32>} : memref<8x128xf32, #tpu.memory_space<vmem>>, vector<8x128xf32>,
    return
  }
}

</mosaic_0001>

<llo_original>
// kernel: net_forward.1
$region0: #{net_forward.1}
  #allocation0 [shape = 'u32[]', space=smem, size = 0x4, offset = 0x4, fixed_abs, tag = 'smem constant byte address 0x4 - core index']
  #allocation1 [shape = 'u32[144,128]{1,0:T(1,128)}', space=vmem, size = 0x12000, scoped, tag = 'internal scratch']
  #allocation2 [shape = 'f32[256,256]{1,0:T(8,128)}', space=vmem, size = 0x40000, scoped, tag = 'scratch operand']
  #allocation3 [shape = 'f32[256,256]{1,0:T(8,128)}', space=vmem, size = 0x40000, scoped, tag = 'scratch operand']
  #allocation4 [shape = 'f32[256,512]{1,0:T(8,128)}', space=vmem, size = 0x80000, scoped, tag = 'scratch operand']
  #allocation5 [shape = 'f32[256,512]{1,0:T(8,128)}', space=vmem, size = 0x80000, scoped, tag = 'scratch operand']
  %s0 = inlined_call_operand.vmem [shape: bf16[256,128], index: 0, kind: input, shape index: {}]
  %s1 = inlined_call_operand.hbm [shape: bf16[128,512], index: 1, kind: input, shape index: {}]
  %s2 = inlined_call_operand.hbm [shape: bf16[128,512], index: 2, kind: input, shape index: {}]
  %s3 = inlined_call_operand.vmem [shape: f32[1,512], index: 3, kind: input, shape index: {}]
  %s4 = inlined_call_operand.hbm [shape: bf16[128,512], index: 4, kind: input, shape index: {}]
  %s5 = inlined_call_operand.hbm [shape: bf16[128,512], index: 5, kind: input, shape index: {}]
  %s6 = inlined_call_operand.vmem [shape: f32[1,512], index: 6, kind: input, shape index: {}]
  %s7 = inlined_call_operand.vmem [shape: bf16[256,512], index: 7, kind: input, shape index: {}]
  %s8 = inlined_call_operand.hbm [shape: bf16[128,512], index: 8, kind: input, shape index: {}]
  %s9 = inlined_call_operand.vmem [shape: f32[1,512], index: 9, kind: input, shape index: {}]
  %s10 = inlined_call_operand.hbm [shape: bf16[256,512], index: 10, kind: input, shape index: {}]
  %s11 = inlined_call_operand.hbm [shape: bf16[128,512], index: 11, kind: input, shape index: {}]
  %s12 = inlined_call_operand.vmem [shape: f32[1,512], index: 12, kind: input, shape index: {}]
  %s13 = inlined_call_operand.hbm [shape: bf16[256,512], index: 13, kind: input, shape index: {}]
  %s14 = inlined_call_operand.hbm [shape: bf16[128,512], index: 14, kind: input, shape index: {}]
  %s15 = inlined_call_operand.vmem [shape: f32[1,512], index: 15, kind: input, shape index: {}]
  %s16 = inlined_call_operand.hbm [shape: bf16[256,512], index: 16, kind: input, shape index: {}]
  %s17 = inlined_call_operand.hbm [shape: bf16[128,512], index: 17, kind: input, shape index: {}]
  %s18 = inlined_call_operand.vmem [shape: f32[1,512], index: 18, kind: input, shape index: {}]
  %s19 = inlined_call_operand.vmem [shape: bf16[256,128], index: 19, kind: input, shape index: {}]
  %s20 = inlined_call_operand.vmem [shape: f32[1,128], index: 20, kind: input, shape index: {}]
  %s21 = inlined_call_operand.vmem [shape: f32[8,128], index: 21, kind: output, shape index: {0}]
  %s22 = inlined_call_operand.vmem [shape: f32[8,256], index: 22, kind: output, shape index: {1}]
  %23 = xla_tuple %s21, %s22
  %s24 = sld [smem:[#allocation0]]
  $region167: #{net_forward.1} parent=0
    _
  %s26 = ssub.s32 1, %s24
  %s27 = scalar_select 0, %s26, %s24
  $region1: #{net_forward.1} parent=0
    #allocation6 [shape = 'u8[131072]{0}', space=vmem, size = 0x20000, scoped, tag = 'input window, operand 1, single buffered']
    #allocation7 [shape = 's32[1]{0}', space=sflag, size = 0x4, scoped, tag = 'scoped memory for net_forward.1']
    #allocation8 [shape = 'u8[131072]{0}', space=vmem, size = 0x20000, scoped, tag = 'input window, operand 2, single buffered']
    #allocation9 [shape = 's32[1]{0}', space=sflag, size = 0x4, scoped, tag = 'scoped memory for net_forward.1']
    #allocation10 [shape = 'u8[131072]{0}', space=vmem, size = 0x20000, scoped, tag = 'input window, operand 4, single buffered']
    #allocation11 [shape = 'u8[131072]{0}', space=vmem, size = 0x20000, scoped, tag = 'input window, operand 5, single buffered']
    #allocation12 [shape = 's32[1]{0}', space=sflag, size = 0x4, scoped, tag = 'scoped memory for net_forward.1']
    #allocation13 [shape = 'u8[131072]{0}', space=vmem, size = 0x20000, scoped, tag = 'input window, operand 8, single buffered']
    #allocation14 [shape = 'u8[262144]{0}', space=vmem, size = 0x40000, scoped, tag = 'input window, operand 10, single buffered']
    #allocation15 [shape = 's32[1]{0}', space=sflag, size = 0x4, scoped, tag = 'scoped memory for net_forward.1']
    #allocation16 [shape = 'u8[131072]{0}', space=vmem, size = 0x20000, scoped, tag = 'input window, operand 11, single buffered']
    #allocation17 [shape = 'u8[262144]{0}', space=vmem, size = 0x40000, scoped, tag = 'input window, operand 13, single buffered']
    #allocation18 [shape = 's32[1]{0}', space=sflag, size = 0x4, scoped, tag = 'scoped memory for net_forward.1']
    #allocation19 [shape = 'u8[131072]{0}', space=vmem, size = 0x20000, scoped, tag = 'input window, operand 14, single buffered']
    #allocation20 [shape = 'u8[262144]{0}', space=vmem, size = 0x40000, scoped, tag = 'input window, operand 16, single buffered']
    #allocation21 [shape = 's32[1]{0}', space=sflag, size = 0x4, scoped, tag = 'scoped memory for net_forward.1']
    #allocation22 [shape = 'u8[131072]{0}', space=vmem, size = 0x20000, scoped, tag = 'input window, operand 17, single buffered']
    %28 = vsyncpa [#allocation7], 0
    %29 = vsyncpa [#allocation9], 0
    %30 = vsyncpa [#allocation12], 0
    %31 = vsyncpa [#allocation15], 0
    %32 = vsyncpa [#allocation18], 0
    %33 = vsyncpa [#allocation21], 0
    // Predicated region
    $region2: #{net_forward.1} parent=1 // pred_check
      _
    $region3: #{net_forward.1} parent=1 // pred_check_branch
      %35 = sbr.rel (0) target = $region5
    $region4: #{net_forward.1} parent=1 // pred_region
      _
    $region5: #{net_forward.1} parent=1 // pred_fallthru
      _
    // Predicated region
    $region6: #{net_forward.1} parent=1 // pred_check
      _
    $region7: #{net_forward.1} parent=1 // pred_check_branch
      %37 = sbr.rel (0) target = $region9
    $region8: #{net_forward.1} parent=1 // pred_region
      %s39 = ssub.s32 4096, 4096
      %40 = vsyncadd [#allocation7], %s39
      %s41 = sshll.u32 [#allocation6], 4
      %s42 = int_to_ptr.vmem [resolvable:$true] %s41
      %47 = dma.hbm_to_vmem [thread:$0]  %s1, 4096, %s42, [#allocation7], 256, 256, 16
    $region9: #{net_forward.1} parent=1 // pred_fallthru
      _
    // Predicated region
    $region10: #{net_forward.1} parent=1 // pred_check
      _
    $region11: #{net_forward.1} parent=1 // pred_check_branch
      %49 = sbr.rel (0) target = $region13
    $region12: #{net_forward.1} parent=1 // pred_region
      %s51 = ssub.s32 4096, 4096
      %52 = vsyncadd [#allocation9], %s51
      %s53 = sshll.u32 [#allocation8], 4
      %s54 = int_to_ptr.vmem [resolvable:$true] %s53
      %59 = dma.hbm_to_vmem [thread:$0]  %s2, 4096, %s54, [#allocation9], 256, 256, 16
    $region13: #{net_forward.1} parent=1 // pred_fallthru
      _
    // Predicated region
    $region14: #{net_forward.1} parent=1 // pred_check
      _
    $region15: #{net_forward.1} parent=1 // pred_check_branch
      %61 = sbr.rel (0) target = $region17
    $region16: #{net_forward.1} parent=1 // pred_region
      _
    $region17: #{net_forward.1} parent=1 // pred_fallthru
      _
    // Predicated region
    $region18: #{net_forward.1} parent=1 // pred_check
      _
    $region19: #{net_forward.1} parent=1 // pred_check_branch
      %63 = sbr.rel (0) target = $region21
    $region20: #{net_forward.1} parent=1 // pred_region
      %s65 = ssub.s32 4096, 4096
      %66 = vsyncadd [#allocation9], %s65
      %s67 = sshll.u32 [#allocation10], 4
      %s68 = int_to_ptr.vmem [resolvable:$true] %s67
      %73 = dma.hbm_to_vmem [thread:$0]  %s4, 4096, %s68, [#allocation9], 256, 256, 16
    $region21: #{net_forward.1} parent=1 // pred_fallthru
      _
    // Predicated region
    $region22: #{net_forward.1} parent=1 // pred_check
      _
    $region23: #{net_forward.1} parent=1 // pred_check_branch
      %75 = sbr.rel (0) target = $region25
    $region24: #{net_forward.1} parent=1 // pred_region
      %s77 = ssub.s32 4096, 4096
      %78 = vsyncadd [#allocation12], %s77
      %s79 = sshll.u32 [#allocation11], 4
      %s80 = int_to_ptr.vmem [resolvable:$true] %s79
      %85 = dma.hbm_to_vmem [thread:$0]  %s5, 4096, %s80, [#allocation12], 256, 256, 16
    $region25: #{net_forward.1} parent=1 // pred_fallthru
      _
    // Predicated region
    $region26: #{net_forward.1} parent=1 // pred_check
      _
    $region27: #{net_forward.1} parent=1 // pred_check_branch
      %87 = sbr.rel (0) target = $region29
    $region28: #{net_forward.1} parent=1 // pred_region
      _
    $region29: #{net_forward.1} parent=1 // pred_fallthru
      _
    // Predicated region
    $region30: #{net_forward.1} parent=1 // pred_check
      _
    $region31: #{net_forward.1} parent=1 // pred_check_branch
      %89 = sbr.rel (0) target = $region33
    $region32: #{net_forward.1} parent=1 // pred_region
      _
    $region33: #{net_forward.1} parent=1 // pred_fallthru
      _
    // Predicated region
    $region34: #{net_forward.1} parent=1 // pred_check
      _
    $region35: #{net_forward.1} parent=1 // pred_check_branch
      %91 = sbr.rel (0) target = $region37
    $region36: #{net_forward.1} parent=1 // pred_region
      %s93 = ssub.s32 4096, 4096
      %94 = vsyncadd [#allocation12], %s93
      %s95 = sshll.u32 [#allocation13], 4
      %s96 = int_to_ptr.vmem [resolvable:$true] %s95
      %101 = dma.hbm_to_vmem [thread:$0]  %s8, 4096, %s96, [#allocation12], 256, 256, 16
    $region37: #{net_forward.1} parent=1 // pred_fallthru
      _
    // Predicated region
    $region38: #{net_forward.1} parent=1 // pred_check
      _
    $region39: #{net_forward.1} parent=1 // pred_check_branch
      %103 = sbr.rel (0) target = $region41
    $region40: #{net_forward.1} parent=1 // pred_region
      _
    $region41: #{net_forward.1} parent=1 // pred_fallthru
      _
    // Predicated region
    $region42: #{net_forward.1} parent=1 // pred_check
      _
    $region43: #{net_forward.1} parent=1 // pred_check_branch
      %105 = sbr.rel (0) target = $region45
    $region44: #{net_forward.1} parent=1 // pred_region
      %s107 = ssub.s32 8192, 8192
      %108 = vsyncadd [#allocation15], %s107
      %s109 = sshll.u32 [#allocation14], 4
      %s110 = int_to_ptr.vmem [resolvable:$true] %s109
      %115 = dma.hbm_to_vmem [thread:$0]  %s10, 8192, %s110, [#allocation15], 256, 256, 16
    $region45: #{net_forward.1} parent=1 // pred_fallthru
      _
    // Predicated region
    $region46: #{net_forward.1} parent=1 // pred_check
      _
    $region47: #{net_forward.1} parent=1 // pred_check_branch
      %117 = sbr.rel (0) target = $region49
    $region48: #{net_forward.1} parent=1 // pred_region
      %s119 = ssub.s32 4096, 4096
      %120 = vsyncadd [#allocation15], %s119
      %s121 = sshll.u32 [#allocation16], 4
      %s122 = int_to_ptr.vmem [resolvable:$true] %s121
      %127 = dma.hbm_to_vmem [thread:$0]  %s11, 4096, %s122, [#allocation15], 256, 256, 16
    $region49: #{net_forward.1} parent=1 // pred_fallthru
      _
    // Predicated region
    $region50: #{net_forward.1} parent=1 // pred_check
      _
    $region51: #{net_forward.1} parent=1 // pred_check_branch
      %129 = sbr.rel (0) target = $region53
    $region52: #{net_forward.1} parent=1 // pred_region
      _
    $region53: #{net_forward.1} parent=1 // pred_fallthru
      _
    // Predicated region
    $region54: #{net_forward.1} parent=1 // pred_check
      _
    $region55: #{net_forward.1} parent=1 // pred_check_branch
      %131 = sbr.rel (0) target = $region57
    $region56: #{net_forward.1} parent=1 // pred_region
      %s133 = ssub.s32 8192, 8192
      %134 = vsyncadd [#allocation18], %s133
      %s135 = sshll.u32 [#allocation17], 4
      %s136 = int_to_ptr.vmem [resolvable:$true] %s135
      %141 = dma.hbm_to_vmem [thread:$0]  %s13, 8192, %s136, [#allocation18], 256, 256, 16
    $region57: #{net_forward.1} parent=1 // pred_fallthru
      _
    // Predicated region
    $region58: #{net_forward.1} parent=1 // pred_check
      _
    $region59: #{net_forward.1} parent=1 // pred_check_branch
      %143 = sbr.rel (0) target = $region61
    $region60: #{net_forward.1} parent=1 // pred_region
      %s145 = ssub.s32 4096, 4096
      %146 = vsyncadd [#allocation18], %s145
      %s147 = sshll.u32 [#allocation19], 4
      %s148 = int_to_ptr.vmem [resolvable:$true] %s147
      %153 = dma.hbm_to_vmem [thread:$0]  %s14, 4096, %s148, [#allocation18], 256, 256, 16
    $region61: #{net_forward.1} parent=1 // pred_fallthru
      _
    // Predicated region
    $region62: #{net_forward.1} parent=1 // pred_check
      _
    $region63: #{net_forward.1} parent=1 // pred_check_branch
      %155 = sbr.rel (0) target = $region65
    $region64: #{net_forward.1} parent=1 // pred_region
      _
    $region65: #{net_forward.1} parent=1 // pred_fallthru
      _
    // Predicated region
    $region66: #{net_forward.1} parent=1 // pred_check
      _
    $region67: #{net_forward.1} parent=1 // pred_check_branch
      %157 = sbr.rel (0) target = $region69
    $region68: #{net_forward.1} parent=1 // pred_region
      %s159 = ssub.s32 8192, 8192
      %160 = vsyncadd [#allocation21], %s159
      %s161 = sshll.u32 [#allocation20], 4
      %s162 = int_to_ptr.vmem [resolvable:$true] %s161
      %167 = dma.hbm_to_vmem [thread:$0]  %s16, 8192, %s162, [#allocation21], 256, 256, 16
    $region69: #{net_forward.1} parent=1 // pred_fallthru
      _
    // Predicated region
    $region70: #{net_forward.1} parent=1 // pred_check
      _
    $region71: #{net_forward.1} parent=1 // pred_check_branch
      %169 = sbr.rel (0) target = $region73
    $region72: #{net_forward.1} parent=1 // pred_region
      %s171 = ssub.s32 4096, 4096
      %172 = vsyncadd [#allocation21], %s171
      %s173 = sshll.u32 [#allocation22], 4
      %s174 = int_to_ptr.vmem [resolvable:$true] %s173
      %179 = dma.hbm_to_vmem [thread:$0]  %s17, 4096, %s174, [#allocation21], 256, 256, 16
    $region73: #{net_forward.1} parent=1 // pred_fallthru
      _
    // Predicated region
    $region74: #{net_forward.1} parent=1 // pred_check
      _
    $region75: #{net_forward.1} parent=1 // pred_check_branch
      %181 = sbr.rel (0) target = $region77
    $region76: #{net_forward.1} parent=1 // pred_region
      _
    $region77: #{net_forward.1} parent=1 // pred_fallthru
      _
    // Predicated region
    $region78: #{net_forward.1} parent=1 // pred_check
      _
    $region79: #{net_forward.1} parent=1 // pred_check_branch
      %183 = sbr.rel (0) target = $region81
    $region80: #{net_forward.1} parent=1 // pred_region
      _
    $region81: #{net_forward.1} parent=1 // pred_fallthru
      _
    // Predicated region
    $region82: #{net_forward.1} parent=1 // pred_check
      _
    $region83: #{net_forward.1} parent=1 // pred_check_branch
      %185 = sbr.rel (0) target = $region85
    $region84: #{net_forward.1} parent=1 // pred_region
      _
    $region85: #{net_forward.1} parent=1 // pred_fallthru
      _
    // Predicated region
    $region86: #{net_forward.1} parent=1 // pred_check
      _
    $region87: #{net_forward.1} parent=1 // pred_check_branch
      %187 = sbr.rel (0) target = $region89
    $region88: #{net_forward.1} parent=1 // pred_region
      %188 = dma.done [#allocation7], 4096
    $region89: #{net_forward.1} parent=1 // pred_fallthru
      _
    // Predicated region
    $region90: #{net_forward.1} parent=1 // pred_check
      _
    $region91: #{net_forward.1} parent=1 // pred_check_branch
      %190 = sbr.rel (0) target = $region93
    $region92: #{net_forward.1} parent=1 // pred_region
      %191 = dma.done [#allocation9], 4096
    $region93: #{net_forward.1} parent=1 // pred_fallthru
      _
    // Predicated region
    $region94: #{net_forward.1} parent=1 // pred_check
      _
    $region95: #{net_forward.1} parent=1 // pred_check_branch
      %193 = sbr.rel (0) target = $region97
    $region96: #{net_forward.1} parent=1 // pred_region
      %194 = dma.done [#allocation9], 4096
    $region97: #{net_forward.1} parent=1 // pred_fallthru
      _
    // Predicated region
    $region98: #{net_forward.1} parent=1 // pred_check
      _
    $region99: #{net_forward.1} parent=1 // pred_check_branch
      %196 = sbr.rel (0) target = $region101
    $region100: #{net_forward.1} parent=1 // pred_region
      %197 = dma.done [#allocation12], 4096
    $region101: #{net_forward.1} parent=1 // pred_fallthru
      _
    // Predicated region
    $region102: #{net_forward.1} parent=1 // pred_check
      _
    $region103: #{net_forward.1} parent=1 // pred_check_branch
      %199 = sbr.rel (0) target = $region105
    $region104: #{net_forward.1} parent=1 // pred_region
      %200 = dma.done [#allocation12], 4096
    $region105: #{net_forward.1} parent=1 // pred_fallthru
      _
    // Predicated region
    $region106: #{net_forward.1} parent=1 // pred_check
      _
    $region107: #{net_forward.1} parent=1 // pred_check_branch
      %202 = sbr.rel (0) target = $region109
    $region108: #{net_forward.1} parent=1 // pred_region
      %203 = dma.done [#allocation15], 8192
    $region109: #{net_forward.1} parent=1 // pred_fallthru
      _
    // Predicated region
    $region110: #{net_forward.1} parent=1 // pred_check
      _
    $region111: #{net_forward.1} parent=1 // pred_check_branch
      %205 = sbr.rel (0) target = $region113
    $region112: #{net_forward.1} parent=1 // pred_region
      %206 = dma.done [#allocation15], 4096
    $region113: #{net_forward.1} parent=1 // pred_fallthru
      _
    // Predicated region
    $region114: #{net_forward.1} parent=1 // pred_check
      _
    $region115: #{net_forward.1} parent=1 // pred_check_branch
      %208 = sbr.rel (0) target = $region117
    $region116: #{net_forward.1} parent=1 // pred_region
      %209 = dma.done [#allocation18], 8192
    $region117: #{net_forward.1} parent=1 // pred_fallthru
      _
    // Predicated region
    $region118: #{net_forward.1} parent=1 // pred_check
      _
    $region119: #{net_forward.1} parent=1 // pred_check_branch
      %211 = sbr.rel (0) target = $region121
    $region120: #{net_forward.1} parent=1 // pred_region
      %212 = dma.done [#allocation18], 4096
    $region121: #{net_forward.1} parent=1 // pred_fallthru
      _
    // Predicated region
    $region122: #{net_forward.1} parent=1 // pred_check
      _
    $region123: #{net_forward.1} parent=1 // pred_check_branch
      %214 = sbr.rel (0) target = $region125
    $region124: #{net_forward.1} parent=1 // pred_region
      %215 = dma.done [#allocation21], 8192
    $region125: #{net_forward.1} parent=1 // pred_fallthru
      _
    // Predicated region
    $region126: #{net_forward.1} parent=1 // pred_check
      _
    $region127: #{net_forward.1} parent=1 // pred_check_branch
      %217 = sbr.rel (0) target = $region129
    $region128: #{net_forward.1} parent=1 // pred_region
      %218 = dma.done [#allocation21], 4096
    $region129: #{net_forward.1} parent=1 // pred_fallthru
      _
    %v220 = vld [vmem:[%s0] sm:$0xf]
    %v221 = vld [vmem:[%s0 + $0x4] sm:$0xf]
    %v222 = vld [vmem:[%s0 + $0x8] sm:$0xf]
    %v223 = vld [vmem:[%s0 + $0xc] sm:$0xf]
    %v224 = vld [vmem:[%s0 + $0x10] sm:$0xf]
    %v225 = vld [vmem:[%s0 + $0x14] sm:$0xf]
    %v226 = vld [vmem:[%s0 + $0x18] sm:$0xf]
    %v227 = vld [vmem:[%s0 + $0x1c] sm:$0xf]
    %v228 = vld [vmem:[%s0 + $0x20] sm:$0xf]
    %v229 = vld [vmem:[%s0 + $0x24] sm:$0xf]
    %v230 = vld [vmem:[%s0 + $0x28] sm:$0xf]
    %v231 = vld [vmem:[%s0 + $0x2c] sm:$0xf]
    %v232 = vld [vmem:[%s0 + $0x30] sm:$0xf]
    %v233 = vld [vmem:[%s0 + $0x34] sm:$0xf]
    %v234 = vld [vmem:[%s0 + $0x38] sm:$0xf]
    %v235 = vld [vmem:[%s0 + $0x3c] sm:$0xf]
    %v236 = vld [vmem:[%s0 + $0x40] sm:$0xf]
    %v237 = vld [vmem:[%s0 + $0x44] sm:$0xf]
    %v238 = vld [vmem:[%s0 + $0x48] sm:$0xf]
    %v239 = vld [vmem:[%s0 + $0x4c] sm:$0xf]
    %v240 = vld [vmem:[%s0 + $0x50] sm:$0xf]
    %v241 = vld [vmem:[%s0 + $0x54] sm:$0xf]
    %v242 = vld [vmem:[%s0 + $0x58] sm:$0xf]
    %v243 = vld [vmem:[%s0 + $0x5c] sm:$0xf]
    %v244 = vld [vmem:[%s0 + $0x60] sm:$0xf]
    %v245 = vld [vmem:[%s0 + $0x64] sm:$0xf]
    %v246 = vld [vmem:[%s0 + $0x68] sm:$0xf]
    %v247 = vld [vmem:[%s0 + $0x6c] sm:$0xf]
    %v248 = vld [vmem:[%s0 + $0x70] sm:$0xf]
    %v249 = vld [vmem:[%s0 + $0x74] sm:$0xf]
    %v250 = vld [vmem:[%s0 + $0x78] sm:$0xf]
    %v251 = vld [vmem:[%s0 + $0x7c] sm:$0xf]
    %v252 = vld [vmem:[#allocation6] sm:$0xff]
    %v253 = vld [vmem:[#allocation6 + $0x8] sm:$0xff]
    %v254 = vld [vmem:[#allocation6 + $0x10] sm:$0xff]
    %v255 = vld [vmem:[#allocation6 + $0x18] sm:$0xff]
    %v256 = vld [vmem:[#allocation6 + $0x20] sm:$0xff]
    %v257 = vld [vmem:[#allocation6 + $0x28] sm:$0xff]
    %v258 = vld [vmem:[#allocation6 + $0x30] sm:$0xff]
    %v259 = vld [vmem:[#allocation6 + $0x38] sm:$0xff]
    %v260 = vld [vmem:[#allocation6 + $0x40] sm:$0xff]
    %v261 = vld [vmem:[#allocation6 + $0x48] sm:$0xff]
    %v262 = vld [vmem:[#allocation6 + $0x50] sm:$0xff]
    %v263 = vld [vmem:[#allocation6 + $0x58] sm:$0xff]
    %v264 = vld [vmem:[#allocation6 + $0x60] sm:$0xff]
    %v265 = vld [vmem:[#allocation6 + $0x68] sm:$0xff]
    %v266 = vld [vmem:[#allocation6 + $0x70] sm:$0xff]
    %v267 = vld [vmem:[#allocation6 + $0x78] sm:$0xff]
    %v268 = vld [vmem:[#allocation6 + $0x80] sm:$0xff]
    %v269 = vld [vmem:[#allocation6 + $0x88] sm:$0xff]
    %v270 = vld [vmem:[#allocation6 + $0x90] sm:$0xff]
    %v271 = vld [vmem:[#allocation6 + $0x98] sm:$0xff]
    %v272 = vld [vmem:[#allocation6 + $0xa0] sm:$0xff]
    %v273 = vld [vmem:[#allocation6 + $0xa8] sm:$0xff]
    %v274 = vld [vmem:[#allocation6 + $0xb0] sm:$0xff]
    %v275 = vld [vmem:[#allocation6 + $0xb8] sm:$0xff]
    %v276 = vld [vmem:[#allocation6 + $0xc0] sm:$0xff]
    %v277 = vld [vmem:[#allocation6 + $0xc8] sm:$0xff]
    %v278 = vld [vmem:[#allocation6 + $0xd0] sm:$0xff]
    %v279 = vld [vmem:[#allocation6 + $0xd8] sm:$0xff]
    %v280 = vld [vmem:[#allocation6 + $0xe0] sm:$0xff]
    %v281 = vld [vmem:[#allocation6 + $0xe8] sm:$0xff]
    %v282 = vld [vmem:[#allocation6 + $0xf0] sm:$0xff]
    %v283 = vld [vmem:[#allocation6 + $0xf8] sm:$0xff]
    %v284 = vld [vmem:[%s3] sm:$0xf]
    %v286 = vlaneseq
    %v287 = vshrl.u32 %v286, 7
    %v288 = vsub.s32 0, %v287
    %v289 = vrot.slane %v284, %v288
    %v290 = vlaneseq
    %v291 = vshrl.u32 %v290, 7
    %v292 = vsub.s32 1, %v291
    %v293 = vrot.slane %v284, %v292
    %v294 = vlaneseq
    %v295 = vshrl.u32 %v294, 7
    %v296 = vsub.s32 2, %v295
    %v297 = vrot.slane %v284, %v296
    %v298 = vlaneseq
    %v299 = vshrl.u32 %v298, 7
    %v300 = vsub.s32 3, %v299
    %v301 = vrot.slane %v284, %v300
    %v338 = vunpack.c.l.b16 %v220
    %v339 = vunpack.c.l.b16 %v221
    %v340 = vunpack.c.l.b16 %v222
    %v341 = vunpack.c.l.b16 %v223
    %v342 = vunpack.c.l.b16 %v224
    %v343 = vunpack.c.l.b16 %v225
    %v344 = vunpack.c.l.b16 %v226
    %v345 = vunpack.c.l.b16 %v227
    %v346 = vunpack.c.l.b16 %v228
    %v347 = vunpack.c.l.b16 %v229
    %v348 = vunpack.c.l.b16 %v230
    %v349 = vunpack.c.l.b16 %v231
    %v350 = vunpack.c.l.b16 %v232
    %v351 = vunpack.c.l.b16 %v233
    %v352 = vunpack.c.l.b16 %v234
    %v353 = vunpack.c.l.b16 %v235
    %v354 = vunpack.c.l.b16 %v236
    %v355 = vunpack.c.l.b16 %v237
    %v356 = vunpack.c.l.b16 %v238
    %v357 = vunpack.c.l.b16 %v239
    %v358 = vunpack.c.l.b16 %v240
    %v359 = vunpack.c.l.b16 %v241
    %v360 = vunpack.c.l.b16 %v242
    %v361 = vunpack.c.l.b16 %v243
    %v362 = vunpack.c.l.b16 %v244
    %v363 = vunpack.c.l.b16 %v245
    %v364 = vunpack.c.l.b16 %v246
    %v365 = vunpack.c.l.b16 %v247
    %v366 = vunpack.c.l.b16 %v248
    %v367 = vunpack.c.l.b16 %v249
    %v368 = vunpack.c.l.b16 %v250
    %v369 = vunpack.c.l.b16 %v251
    %v370 = vpack.c.b16 %v339, %v338
    %v371 = vpack.c.b16 %v341, %v340
    %v372 = vpack.c.b16 %v343, %v342
    %v373 = vpack.c.b16 %v345, %v344
    %v374 = vpack.c.b16 %v347, %v346
    %v375 = vpack.c.b16 %v349, %v348
    %v376 = vpack.c.b16 %v351, %v350
    %v377 = vpack.c.b16 %v353, %v352
    %v378 = vpack.c.b16 %v355, %v354
    %v379 = vpack.c.b16 %v357, %v356
    %v380 = vpack.c.b16 %v359, %v358
    %v381 = vpack.c.b16 %v361, %v360
    %v382 = vpack.c.b16 %v363, %v362
    %v383 = vpack.c.b16 %v365, %v364
    %v384 = vpack.c.b16 %v367, %v366
    %v385 = vpack.c.b16 %v369, %v368
    %v434 = vunpack.c.l.b16 %v252
    %v435 = vunpack.c.h.b16 %v252
    %v436 = vunpack.c.l.b16 %v253
    %v437 = vunpack.c.h.b16 %v253
    %v438 = vunpack.c.l.b16 %v254
    %v439 = vunpack.c.h.b16 %v254
    %v440 = vunpack.c.l.b16 %v255
    %v441 = vunpack.c.h.b16 %v255
    %v442 = vunpack.c.l.b16 %v256
    %v443 = vunpack.c.h.b16 %v256
    %v444 = vunpack.c.l.b16 %v257
    %v445 = vunpack.c.h.b16 %v257
    %v446 = vunpack.c.l.b16 %v258
    %v447 = vunpack.c.h.b16 %v258
    %v448 = vunpack.c.l.b16 %v259
    %v449 = vunpack.c.h.b16 %v259
    %v450 = vunpack.c.l.b16 %v260
    %v451 = vunpack.c.h.b16 %v260
    %v452 = vunpack.c.l.b16 %v261
    %v453 = vunpack.c.h.b16 %v261
    %v454 = vunpack.c.l.b16 %v262
    %v455 = vunpack.c.h.b16 %v262
    %v456 = vunpack.c.l.b16 %v263
    %v457 = vunpack.c.h.b16 %v263
    %v458 = vunpack.c.l.b16 %v264
    %v459 = vunpack.c.h.b16 %v264
    %v460 = vunpack.c.l.b16 %v265
    %v461 = vunpack.c.h.b16 %v265
    %v462 = vunpack.c.l.b16 %v266
    %v463 = vunpack.c.h.b16 %v266
    %v464 = vunpack.c.l.b16 %v267
    %v465 = vunpack.c.h.b16 %v267
    %v466 = vunpack.c.l.b16 %v268
    %v467 = vunpack.c.h.b16 %v268
    %v468 = vunpack.c.l.b16 %v269
    %v469 = vunpack.c.h.b16 %v269
    %v470 = vunpack.c.l.b16 %v270
    %v471 = vunpack.c.h.b16 %v270
    %v472 = vunpack.c.l.b16 %v271
    %v473 = vunpack.c.h.b16 %v271
    %v474 = vunpack.c.l.b16 %v272
    %v475 = vunpack.c.h.b16 %v272
    %v476 = vunpack.c.l.b16 %v273
    %v477 = vunpack.c.h.b16 %v273
    %v478 = vunpack.c.l.b16 %v274
    %v479 = vunpack.c.h.b16 %v274
    %v480 = vunpack.c.l.b16 %v275
    %v481 = vunpack.c.h.b16 %v275
    %v482 = vunpack.c.l.b16 %v276
    %v483 = vunpack.c.h.b16 %v276
    %v484 = vunpack.c.l.b16 %v277
    %v485 = vunpack.c.h.b16 %v277
    %v486 = vunpack.c.l.b16 %v278
    %v487 = vunpack.c.h.b16 %v278
    %v488 = vunpack.c.l.b16 %v279
    %v489 = vunpack.c.h.b16 %v279
    %v490 = vunpack.c.l.b16 %v280
    %v491 = vunpack.c.h.b16 %v280
    %v492 = vunpack.c.l.b16 %v281
    %v493 = vunpack.c.h.b16 %v281
    %v494 = vunpack.c.l.b16 %v282
    %v495 = vunpack.c.h.b16 %v282
    %v496 = vunpack.c.l.b16 %v283
    %v497 = vunpack.c.h.b16 %v283
    %v498 = vpack.c.b16 %v438, %v434
    %v499 = vpack.c.b16 %v439, %v435
    %v500 = vpack.c.b16 %v440, %v436
    %v501 = vpack.c.b16 %v441, %v437
    %v502 = vpack.c.b16 %v446, %v442
    %v503 = vpack.c.b16 %v447, %v443
    %v504 = vpack.c.b16 %v448, %v444
    %v505 = vpack.c.b16 %v449, %v445
    %v506 = vpack.c.b16 %v454, %v450
    %v507 = vpack.c.b16 %v455, %v451
    %v508 = vpack.c.b16 %v456, %v452
    %v509 = vpack.c.b16 %v457, %v453
    %v510 = vpack.c.b16 %v462, %v458
    %v511 = vpack.c.b16 %v463, %v459
    %v512 = vpack.c.b16 %v464, %v460
    %v513 = vpack.c.b16 %v465, %v461
    %v514 = vpack.c.b16 %v470, %v466
    %v515 = vpack.c.b16 %v471, %v467
    %v516 = vpack.c.b16 %v472, %v468
    %v517 = vpack.c.b16 %v473, %v469
    %v518 = vpack.c.b16 %v478, %v474
    %v519 = vpack.c.b16 %v479, %v475
    %v520 = vpack.c.b16 %v480, %v476
    %v521 = vpack.c.b16 %v481, %v477
    %v522 = vpack.c.b16 %v486, %v482
    %v523 = vpack.c.b16 %v487, %v483
    %v524 = vpack.c.b16 %v488, %v484
    %v525 = vpack.c.b16 %v489, %v485
    %v526 = vpack.c.b16 %v494, %v490
    %v527 = vpack.c.b16 %v495, %v491
    %v528 = vpack.c.b16 %v496, %v492
    %v529 = vpack.c.b16 %v497, %v493
    %562 = vmatprep.subr.bf16.mxu0 %v499
    %563 = vmatpush1.bf16.msra.mxu0 %v498
    %564 = vmatprep.subr.bf16.mxu0 %v503
    %565 = vmatpush1.bf16.msra.mxu0 %v502
    %566 = vmatprep.subr.bf16.mxu0 %v507
    %567 = vmatpush1.bf16.msra.mxu0 %v506
    %568 = vmatprep.subr.bf16.mxu0 %v511
    %569 = vmatpush1.bf16.msra.mxu0 %v510
    %570 = vmatprep.subr.bf16.mxu0 %v515
    %571 = vmatpush1.bf16.msra.mxu0 %v514
    %572 = vmatprep.subr.bf16.mxu0 %v519
    %573 = vmatpush1.bf16.msra.mxu0 %v518
    %574 = vmatprep.subr.bf16.mxu0 %v523
    %575 = vmatpush1.bf16.msra.mxu0 %v522
    %576 = vmatprep.subr.bf16.mxu0 %v527
    %577 = vmatpush1.bf16.msra.mxu0 %v526
    %578 = vmatprep.subr.bf16.mxu0 0
    %579 = vmatpush1.bf16.msra.mxu0 0
    %580 = vmatprep.subr.bf16.mxu0 0
    %581 = vmatpush1.bf16.msra.mxu0 0
    %582 = vmatprep.subr.bf16.mxu0 0
    %583 = vmatpush1.bf16.msra.mxu0 0
    %584 = vmatprep.subr.bf16.mxu0 0
    %585 = vmatpush1.bf16.msra.mxu0 0
    %586 = vmatprep.subr.bf16.mxu0 0
    %587 = vmatpush1.bf16.msra.mxu0 0
    %588 = vmatprep.subr.bf16.mxu0 0
    %589 = vmatpush1.bf16.msra.mxu0 0
    %590 = vmatprep.subr.bf16.mxu0 0
    %591 = vmatpush1.bf16.msra.mxu0 0
    %592 = vmatprep.subr.bf16.mxu0 0
    %593 = vmatpush1.bf16.msra.mxu0 0
    %594 = vmatprep.mubr.bf16.mxu0 0
    %595 = vmatmul.mubr.bf16.gmra.mrb[0].mxu0 %v370
    %v596 = vpop.f32.mrb[0].mxu0
    %v597 = vadd.f32 %v289, %v596
    %v598 = vpop.f32.mrb[0].mxu0
    %v599 = vadd.f32 %v293, %v598
    %v600 = vpop.f32.mrb[0].mxu0
    %v601 = vadd.f32 %v289, %v600
    %v602 = vpop.f32.mrb[0].mxu0
    %v603 = vadd.f32 %v293, %v602
    %604 = vmatprep.mubr.bf16.mxu0 0
    %605 = vmatmul.mubr.bf16.gmra.mrb[0].mxu0 %v371
    %v606 = vpop.f32.mrb[0].mxu0
    %v607 = vadd.f32 %v289, %v606
    %v608 = vpop.f32.mrb[0].mxu0
    %v609 = vadd.f32 %v293, %v608
    %v610 = vpop.f32.mrb[0].mxu0
    %v611 = vadd.f32 %v289, %v610
    %v612 = vpop.f32.mrb[0].mxu0
    %v613 = vadd.f32 %v293, %v612
    %614 = vmatprep.mubr.bf16.mxu0 0
    %615 = vmatmul.mubr.bf16.gmra.mrb[0].mxu0 %v372
    %v616 = vpop.f32.mrb[0].mxu0
    %v617 = vadd.f32 %v289, %v616
    %v618 = vpop.f32.mrb[0].mxu0
    %v619 = vadd.f32 %v293, %v618
    %v620 = vpop.f32.mrb[0].mxu0
    %v621 = vadd.f32 %v289, %v620
    %v622 = vpop.f32.mrb[0].mxu0
    %v623 = vadd.f32 %v293, %v622
    %624 = vmatprep.mubr.bf16.mxu0 0
    %625 = vmatmul.mubr.bf16.gmra.mrb[0].mxu0 %v373
    %v626 = vpop.f32.mrb[0].mxu0
    %v627 = vadd.f32 %v289, %v626
    %v628 = vpop.f32.mrb[0].mxu0
    %v629 = vadd.f32 %v293, %v628
    %v630 = vpop.f32.mrb[0].mxu0
    %v631 = vadd.f32 %v289, %v630
    %v632 = vpop.f32.mrb[0].mxu0
    %v633 = vadd.f32 %v293, %v632
    %634 = vmatprep.mubr.bf16.mxu0 0
    %635 = vmatmul.mubr.bf16.gmra.mrb[0].mxu0 %v374
    %v636 = vpop.f32.mrb[0].mxu0
    %v637 = vadd.f32 %v289, %v636
    %v638 = vpop.f32.mrb[0].mxu0
    %v639 = vadd.f32 %v293, %v638
    %v640 = vpop.f32.mrb[0].mxu0
    %v641 = vadd.f32 %v289, %v640
    %v642 = vpop.f32.mrb[0].mxu0
    %v643 = vadd.f32 %v293, %v642
    %644 = vmatprep.mubr.bf16.mxu0 0
    %645 = vmatmul.mubr.bf16.gmra.mrb[0].mxu0 %v375
    %v646 = vpop.f32.mrb[0].mxu0
    %v647 = vadd.f32 %v289, %v646
    %v648 = vpop.f32.mrb[0].mxu0
    %v649 = vadd.f32 %v293, %v648
    %v650 = vpop.f32.mrb[0].mxu0
    %v651 = vadd.f32 %v289, %v650
    %v652 = vpop.f32.mrb[0].mxu0
    %v653 = vadd.f32 %v293, %v652
    %654 = vmatprep.mubr.bf16.mxu0 0
    %655 = vmatmul.mubr.bf16.gmra.mrb[0].mxu0 %v376
    %v656 = vpop.f32.mrb[0].mxu0
    %v657 = vadd.f32 %v289, %v656
    %v658 = vpop.f32.mrb[0].mxu0
    %v659 = vadd.f32 %v293, %v658
    %v660 = vpop.f32.mrb[0].mxu0
    %v661 = vadd.f32 %v289, %v660
    %v662 = vpop.f32.mrb[0].mxu0
    %v663 = vadd.f32 %v293, %v662
    %664 = vmatprep.mubr.bf16.mxu0 0
    %665 = vmatmul.mubr.bf16.gmra.mrb[0].mxu0 %v377
    %v666 = vpop.f32.mrb[0].mxu0
    %v667 = vadd.f32 %v289, %v666
    %v668 = vpop.f32.mrb[0].mxu0
    %v669 = vadd.f32 %v293, %v668
    %v670 = vpop.f32.mrb[0].mxu0
    %v671 = vadd.f32 %v289, %v670
    %v672 = vpop.f32.mrb[0].mxu0
    %v673 = vadd.f32 %v293, %v672
    %674 = vmatprep.mubr.bf16.mxu0 0
    %675 = vmatmul.mubr.bf16.gmra.mrb[0].mxu0 %v378
    %v676 = vpop.f32.mrb[0].mxu0
    %v677 = vadd.f32 %v289, %v676
    %v678 = vpop.f32.mrb[0].mxu0
    %v679 = vadd.f32 %v293, %v678
    %v680 = vpop.f32.mrb[0].mxu0
    %v681 = vadd.f32 %v289, %v680
    %v682 = vpop.f32.mrb[0].mxu0
    %v683 = vadd.f32 %v293, %v682
    %684 = vmatprep.mubr.bf16.mxu0 0
    %685 = vmatmul.mubr.bf16.gmra.mrb[0].mxu0 %v379
    %v686 = vpop.f32.mrb[0].mxu0
    %v687 = vadd.f32 %v289, %v686
    %v688 = vpop.f32.mrb[0].mxu0
    %v689 = vadd.f32 %v293, %v688
    %v690 = vpop.f32.mrb[0].mxu0
    %v691 = vadd.f32 %v289, %v690
    %v692 = vpop.f32.mrb[0].mxu0
    %v693 = vadd.f32 %v293, %v692
    %694 = vmatprep.mubr.bf16.mxu0 0
    %695 = vmatmul.mubr.bf16.gmra.mrb[0].mxu0 %v380
    %v696 = vpop.f32.mrb[0].mxu0
    %v697 = vadd.f32 %v289, %v696
    %v698 = vpop.f32.mrb[0].mxu0
    %v699 = vadd.f32 %v293, %v698
    %v700 = vpop.f32.mrb[0].mxu0
    %v701 = vadd.f32 %v289, %v700
    %v702 = vpop.f32.mrb[0].mxu0
    %v703 = vadd.f32 %v293, %v702
    %704 = vmatprep.mubr.bf16.mxu0 0
    %705 = vmatmul.mubr.bf16.gmra.mrb[0].mxu0 %v381
    %v706 = vpop.f32.mrb[0].mxu0
    %v707 = vadd.f32 %v289, %v706
    %v708 = vpop.f32.mrb[0].mxu0
    %v709 = vadd.f32 %v293, %v708
    %v710 = vpop.f32.mrb[0].mxu0
    %v711 = vadd.f32 %v289, %v710
    %v712 = vpop.f32.mrb[0].mxu0
    %v713 = vadd.f32 %v293, %v712
    %714 = vmatprep.mubr.bf16.mxu0 0
    %715 = vmatmul.mubr.bf16.gmra.mrb[0].mxu0 %v382
    %v716 = vpop.f32.mrb[0].mxu0
    %v717 = vadd.f32 %v289, %v716
    %v718 = vpop.f32.mrb[0].mxu0
    %v719 = vadd.f32 %v293, %v718
    %v720 = vpop.f32.mrb[0].mxu0
    %v721 = vadd.f32 %v289, %v720
    %v722 = vpop.f32.mrb[0].mxu0
    %v723 = vadd.f32 %v293, %v722
    %724 = vmatprep.mubr.bf16.mxu0 0
    %725 = vmatmul.mubr.bf16.gmra.mrb[0].mxu0 %v383
    %v726 = vpop.f32.mrb[0].mxu0
    %v727 = vadd.f32 %v289, %v726
    %v728 = vpop.f32.mrb[0].mxu0
    %v729 = vadd.f32 %v293, %v728
    %v730 = vpop.f32.mrb[0].mxu0
    %v731 = vadd.f32 %v289, %v730
    %v732 = vpop.f32.mrb[0].mxu0
    %v733 = vadd.f32 %v293, %v732
    %734 = vmatprep.mubr.bf16.mxu0 0
    %735 = vmatmul.mubr.bf16.gmra.mrb[0].mxu0 %v384
    %v736 = vpop.f32.mrb[0].mxu0
    %v737 = vadd.f32 %v289, %v736
    %v738 = vpop.f32.mrb[0].mxu0
    %v739 = vadd.f32 %v293, %v738
    %v740 = vpop.f32.mrb[0].mxu0
    %v741 = vadd.f32 %v289, %v740
    %v742 = vpop.f32.mrb[0].mxu0
    %v743 = vadd.f32 %v293, %v742
    %744 = vmatprep.mubr.bf16.mxu0 0
    %745 = vmatmul.mubr.bf16.gmra.mrb[0].mxu0 %v385
    %v746 = vpop.f32.mrb[0].mxu0
    %v747 = vadd.f32 %v289, %v746
    %v748 = vpop.f32.mrb[0].mxu0
    %v749 = vadd.f32 %v293, %v748
    %v750 = vpop.f32.mrb[0].mxu0
    %v751 = vadd.f32 %v289, %v750
    %v752 = vpop.f32.mrb[0].mxu0
    %v753 = vadd.f32 %v293, %v752
    %754 = vdwg.mxu0
    %755 = vmatprep.subr.bf16.mxu0 %v501
    %756 = vmatpush1.bf16.msra.mxu0 %v500
    %757 = vmatprep.subr.bf16.mxu0 %v505
    %758 = vmatpush1.bf16.msra.mxu0 %v504
    %759 = vmatprep.subr.bf16.mxu0 %v509
    %760 = vmatpush1.bf16.msra.mxu0 %v508
    %761 = vmatprep.subr.bf16.mxu0 %v513
    %762 = vmatpush1.bf16.msra.mxu0 %v512
    %763 = vmatprep.subr.bf16.mxu0 %v517
    %764 = vmatpush1.bf16.msra.mxu0 %v516
    %765 = vmatprep.subr.bf16.mxu0 %v521
    %766 = vmatpush1.bf16.msra.mxu0 %v520
    %767 = vmatprep.subr.bf16.mxu0 %v525
    %768 = vmatpush1.bf16.msra.mxu0 %v524
    %769 = vmatprep.subr.bf16.mxu0 %v529
    %770 = vmatpush1.bf16.msra.mxu0 %v528
    %771 = vmatprep.subr.bf16.mxu0 0
    %772 = vmatpush1.bf16.msra.mxu0 0
    %773 = vmatprep.subr.bf16.mxu0 0
    %774 = vmatpush1.bf16.msra.mxu0 0
    %775 = vmatprep.subr.bf16.mxu0 0
    %776 = vmatpush1.bf16.msra.mxu0 0
    %777 = vmatprep.subr.bf16.mxu0 0
    %778 = vmatpush1.bf16.msra.mxu0 0
    %779 = vmatprep.subr.bf16.mxu0 0
    %780 = vmatpush1.bf16.msra.mxu0 0
    %781 = vmatprep.subr.bf16.mxu0 0
    %782 = vmatpush1.bf16.msra.mxu0 0
    %783 = vmatprep.subr.bf16.mxu0 0
    %784 = vmatpush1.bf16.msra.mxu0 0
    %785 = vmatprep.subr.bf16.mxu0 0
    %786 = vmatpush1.bf16.msra.mxu0 0
    %787 = vmatprep.mubr.bf16.mxu0 0
    %788 = vmatmul.mubr.bf16.gmra.mrb[0].mxu0 %v370
    %v789 = vpop.f32.mrb[0].mxu0
    %v790 = vadd.f32 %v297, %v789
    %v791 = vpop.f32.mrb[0].mxu0
    %v792 = vadd.f32 %v301, %v791
    %v793 = vpop.f32.mrb[0].mxu0
    %v794 = vadd.f32 %v297, %v793
    %v795 = vpop.f32.mrb[0].mxu0
    %v796 = vadd.f32 %v301, %v795
    %797 = vmatprep.mubr.bf16.mxu0 0
    %798 = vmatmul.mubr.bf16.gmra.mrb[0].mxu0 %v371
    %v799 = vpop.f32.mrb[0].mxu0
    %v800 = vadd.f32 %v297, %v799
    %v801 = vpop.f32.mrb[0].mxu0
    %v802 = vadd.f32 %v301, %v801
    %v803 = vpop.f32.mrb[0].mxu0
    %v804 = vadd.f32 %v297, %v803
    %v805 = vpop.f32.mrb[0].mxu0
    %v806 = vadd.f32 %v301, %v805
    %807 = vmatprep.mubr.bf16.mxu0 0
    %808 = vmatmul.mubr.bf16.gmra.mrb[0].mxu0 %v372
    %v809 = vpop.f32.mrb[0].mxu0
    %v810 = vadd.f32 %v297, %v809
    %v811 = vpop.f32.mrb[0].mxu0
    %v812 = vadd.f32 %v301, %v811
    %v813 = vpop.f32.mrb[0].mxu0
    %v814 = vadd.f32 %v297, %v813
    %v815 = vpop.f32.mrb[0].mxu0
    %v816 = vadd.f32 %v301, %v815
    %817 = vmatprep.mubr.bf16.mxu0 0
    %818 = vmatmul.mubr.bf16.gmra.mrb[0].mxu0 %v373
    %v819 = vpop.f32.mrb[0].mxu0
    %v820 = vadd.f32 %v297, %v819
    %v821 = vpop.f32.mrb[0].mxu0
    %v822 = vadd.f32 %v301, %v821
    %v823 = vpop.f32.mrb[0].mxu0
    %v824 = vadd.f32 %v297, %v823
    %v825 = vpop.f32.mrb[0].mxu0
    %v826 = vadd.f32 %v301, %v825
    %827 = vmatprep.mubr.bf16.mxu0 0
    %828 = vmatmul.mubr.bf16.gmra.mrb[0].mxu0 %v374
    %v829 = vpop.f32.mrb[0].mxu0
    %v830 = vadd.f32 %v297, %v829
    %v831 = vpop.f32.mrb[0].mxu0
    %v832 = vadd.f32 %v301, %v831
    %v833 = vpop.f32.mrb[0].mxu0
    %v834 = vadd.f32 %v297, %v833
    %v835 = vpop.f32.mrb[0].mxu0
    %v836 = vadd.f32 %v301, %v835
    %837 = vmatprep.mubr.bf16.mxu0 0
    %838 = vmatmul.mubr.bf16.gmra.mrb[0].mxu0 %v375
    %v839 = vpop.f32.mrb[0].mxu0
    %v840 = vadd.f32 %v297, %v839
    %v841 = vpop.f32.mrb[0].mxu0
    %v842 = vadd.f32 %v301, %v841
    %v843 = vpop.f32.mrb[0].mxu0
    %v844 = vadd.f32 %v297, %v843
    %v845 = vpop.f32.mrb[0].mxu0
    %v846 = vadd.f32 %v301, %v845
    %847 = vmatprep.mubr.bf16.mxu0 0
    %848 = vmatmul.mubr.bf16.gmra.mrb[0].mxu0 %v376
    %v849 = vpop.f32.mrb[0].mxu0
    %v850 = vadd.f32 %v297, %v849
    %v851 = vpop.f32.mrb[0].mxu0
    %v852 = vadd.f32 %v301, %v851
    %v853 = vpop.f32.mrb[0].mxu0
    %v854 = vadd.f32 %v297, %v853
    %v855 = vpop.f32.mrb[0].mxu0
    %v856 = vadd.f32 %v301, %v855
    %857 = vmatprep.mubr.bf16.mxu0 0
    %858 = vmatmul.mubr.bf16.gmra.mrb[0].mxu0 %v377
    %v859 = vpop.f32.mrb[0].mxu0
    %v860 = vadd.f32 %v297, %v859
    %v861 = vpop.f32.mrb[0].mxu0
    %v862 = vadd.f32 %v301, %v861
    %v863 = vpop.f32.mrb[0].mxu0
    %v864 = vadd.f32 %v297, %v863
    %v865 = vpop.f32.mrb[0].mxu0
    %v866 = vadd.f32 %v301, %v865
    %867 = vmatprep.mubr.bf16.mxu0 0
    %868 = vmatmul.mubr.bf16.gmra.mrb[0].mxu0 %v378
    %v869 = vpop.f32.mrb[0].mxu0
    %v870 = vadd.f32 %v297, %v869
    %v871 = vpop.f32.mrb[0].mxu0
    %v872 = vadd.f32 %v301, %v871
    %v873 = vpop.f32.mrb[0].mxu0
    %v874 = vadd.f32 %v297, %v873
    %v875 = vpop.f32.mrb[0].mxu0
    %v876 = vadd.f32 %v301, %v875
    %877 = vmatprep.mubr.bf16.mxu0 0
    %878 = vmatmul.mubr.bf16.gmra.mrb[0].mxu0 %v379
    %v879 = vpop.f32.mrb[0].mxu0
    %v880 = vadd.f32 %v297, %v879
    %v881 = vpop.f32.mrb[0].mxu0
    %v882 = vadd.f32 %v301, %v881
    %v883 = vpop.f32.mrb[0].mxu0
    %v884 = vadd.f32 %v297, %v883
    %v885 = vpop.f32.mrb[0].mxu0
    %v886 = vadd.f32 %v301, %v885
    %887 = vmatprep.mubr.bf16.mxu0 0
    %888 = vmatmul.mubr.bf16.gmra.mrb[0].mxu0 %v380
    %v889 = vpop.f32.mrb[0].mxu0
    %v890 = vadd.f32 %v297, %v889
    %v891 = vpop.f32.mrb[0].mxu0
    %v892 = vadd.f32 %v301, %v891
    %v893 = vpop.f32.mrb[0].mxu0
    %v894 = vadd.f32 %v297, %v893
    %v895 = vpop.f32.mrb[0].mxu0
    %v896 = vadd.f32 %v301, %v895
    %897 = vmatprep.mubr.bf16.mxu0 0
    %898 = vmatmul.mubr.bf16.gmra.mrb[0].mxu0 %v381
    %v899 = vpop.f32.mrb[0].mxu0
    %v900 = vadd.f32 %v297, %v899
    %v901 = vpop.f32.mrb[0].mxu0
    %v902 = vadd.f32 %v301, %v901
    %v903 = vpop.f32.mrb[0].mxu0
    %v904 = vadd.f32 %v297, %v903
    %v905 = vpop.f32.mrb[0].mxu0
    %v906 = vadd.f32 %v301, %v905
    %907 = vmatprep.mubr.bf16.mxu0 0
    %908 = vmatmul.mubr.bf16.gmra.mrb[0].mxu0 %v382
    %v909 = vpop.f32.mrb[0].mxu0
    %v910 = vadd.f32 %v297, %v909
    %v911 = vpop.f32.mrb[0].mxu0
    %v912 = vadd.f32 %v301, %v911
    %v913 = vpop.f32.mrb[0].mxu0
    %v914 = vadd.f32 %v297, %v913
    %v915 = vpop.f32.mrb[0].mxu0
    %v916 = vadd.f32 %v301, %v915
    %917 = vmatprep.mubr.bf16.mxu0 0
    %918 = vmatmul.mubr.bf16.gmra.mrb[0].mxu0 %v383
    %v919 = vpop.f32.mrb[0].mxu0
    %v920 = vadd.f32 %v297, %v919
    %v921 = vpop.f32.mrb[0].mxu0
    %v922 = vadd.f32 %v301, %v921
    %v923 = vpop.f32.mrb[0].mxu0
    %v924 = vadd.f32 %v297, %v923
    %v925 = vpop.f32.mrb[0].mxu0
    %v926 = vadd.f32 %v301, %v925
    %927 = vmatprep.mubr.bf16.mxu0 0
    %928 = vmatmul.mubr.bf16.gmra.mrb[0].mxu0 %v384
    %v929 = vpop.f32.mrb[0].mxu0
    %v930 = vadd.f32 %v297, %v929
    %v931 = vpop.f32.mrb[0].mxu0
    %v932 = vadd.f32 %v301, %v931
    %v933 = vpop.f32.mrb[0].mxu0
    %v934 = vadd.f32 %v297, %v933
    %v935 = vpop.f32.mrb[0].mxu0
    %v936 = vadd.f32 %v301, %v935
    %937 = vmatprep.mubr.bf16.mxu0 0
    %938 = vmatmul.mubr.bf16.gmra.mrb[0].mxu0 %v385
    %v939 = vpop.f32.mrb[0].mxu0
    %v940 = vadd.f32 %v297, %v939
    %v941 = vpop.f32.mrb[0].mxu0
    %v942 = vadd.f32 %v301, %v941
    %v943 = vpop.f32.mrb[0].mxu0
    %v944 = vadd.f32 %v297, %v943
    %v945 = vpop.f32.mrb[0].mxu0
    %v946 = vadd.f32 %v301, %v945
    %947 = vdwg.mxu0
    %948 = vst [vmem:[#allocation4] sm:$0xff] %v597
    %949 = vst [vmem:[#allocation4 + $0x8] sm:$0xff] %v599
    %950 = vst [vmem:[#allocation4 + $0x10] sm:$0xff] %v790
    %951 = vst [vmem:[#allocation4 + $0x18] sm:$0xff] %v792
    %952 = vst [vmem:[#allocation4 + $0x20] sm:$0xff] %v601
    %953 = vst [vmem:[#allocation4 + $0x28] sm:$0xff] %v603
    %954 = vst [vmem:[#allocation4 + $0x30] sm:$0xff] %v794
    %955 = vst [vmem:[#allocation4 + $0x38] sm:$0xff] %v796
    %956 = vst [vmem:[#allocation4 + $0x40] sm:$0xff] %v607
    %957 = vst [vmem:[#allocation4 + $0x48] sm:$0xff] %v609
    %958 = vst [vmem:[#allocation4 + $0x50] sm:$0xff] %v800
    %959 = vst [vmem:[#allocation4 + $0x58] sm:$0xff] %v802
    %960 = vst [vmem:[#allocation4 + $0x60] sm:$0xff] %v611
    %961 = vst [vmem:[#allocation4 + $0x68] sm:$0xff] %v613
    %962 = vst [vmem:[#allocation4 + $0x70] sm:$0xff] %v804
    %963 = vst [vmem:[#allocation4 + $0x78] sm:$0xff] %v806
    %964 = vst [vmem:[#allocation4 + $0x80] sm:$0xff] %v617
    %965 = vst [vmem:[#allocation4 + $0x88] sm:$0xff] %v619
    %966 = vst [vmem:[#allocation4 + $0x90] sm:$0xff] %v810
    %967 = vst [vmem:[#allocation4 + $0x98] sm:$0xff] %v812
    %968 = vst [vmem:[#allocation4 + $0xa0] sm:$0xff] %v621
    %969 = vst [vmem:[#allocation4 + $0xa8] sm:$0xff] %v623
    %970 = vst [vmem:[#allocation4 + $0xb0] sm:$0xff] %v814
    %971 = vst [vmem:[#allocation4 + $0xb8] sm:$0xff] %v816
    %972 = vst [vmem:[#allocation4 + $0xc0] sm:$0xff] %v627
    %973 = vst [vmem:[#allocation4 + $0xc8] sm:$0xff] %v629
    %974 = vst [vmem:[#allocation4 + $0xd0] sm:$0xff] %v820
    %975 = vst [vmem:[#allocation4 + $0xd8] sm:$0xff] %v822
    %976 = vst [vmem:[#allocation4 + $0xe0] sm:$0xff] %v631
    %977 = vst [vmem:[#allocation4 + $0xe8] sm:$0xff] %v633
    %978 = vst [vmem:[#allocation4 + $0xf0] sm:$0xff] %v824
    %979 = vst [vmem:[#allocation4 + $0xf8] sm:$0xff] %v826
    %980 = vst [vmem:[#allocation4 + $0x100] sm:$0xff] %v637
    %981 = vst [vmem:[#allocation4 + $0x108] sm:$0xff] %v639
    %982 = vst [vmem:[#allocation4 + $0x110] sm:$0xff] %v830
    %983 = vst [vmem:[#allocation4 + $0x118] sm:$0xff] %v832
    %984 = vst [vmem:[#allocation4 + $0x120] sm:$0xff] %v641
    %985 = vst [vmem:[#allocation4 + $0x128] sm:$0xff] %v643
    %986 = vst [vmem:[#allocation4 + $0x130] sm:$0xff] %v834
    %987 = vst [vmem:[#allocation4 + $0x138] sm:$0xff] %v836
    %988 = vst [vmem:[#allocation4 + $0x140] sm:$0xff] %v647
    %989 = vst [vmem:[#allocation4 + $0x148] sm:$0xff] %v649
    %990 = vst [vmem:[#allocation4 + $0x150] sm:$0xff] %v840
    %991 = vst [vmem:[#allocation4 + $0x158] sm:$0xff] %v842
    %992 = vst [vmem:[#allocation4 + $0x160] sm:$0xff] %v651
    %993 = vst [vmem:[#allocation4 + $0x168] sm:$0xff] %v653
    %994 = vst [vmem:[#allocation4 + $0x170] sm:$0xff] %v844
    %995 = vst [vmem:[#allocation4 + $0x178] sm:$0xff] %v846
    %996 = vst [vmem:[#allocation4 + $0x180] sm:$0xff] %v657
    %997 = vst [vmem:[#allocation4 + $0x188] sm:$0xff] %v659
    %998 = vst [vmem:[#allocation4 + $0x190] sm:$0xff] %v850
    %999 = vst [vmem:[#allocation4 + $0x198] sm:$0xff] %v852
    %1000 = vst [vmem:[#allocation4 + $0x1a0] sm:$0xff] %v661
    %1001 = vst [vmem:[#allocation4 + $0x1a8] sm:$0xff] %v663
    %1002 = vst [vmem:[#allocation4 + $0x1b0] sm:$0xff] %v854
    %1003 = vst [vmem:[#allocation4 + $0x1b8] sm:$0xff] %v856
    %1004 = vst [vmem:[#allocation4 + $0x1c0] sm:$0xff] %v667
    %1005 = vst [vmem:[#allocation4 + $0x1c8] sm:$0xff] %v669
    %1006 = vst [vmem:[#allocation4 + $0x1d0] sm:$0xff] %v860
    %1007 = vst [vmem:[#allocation4 + $0x1d8] sm:$0xff] %v862
    %1008 = vst [vmem:[#allocation4 + $0x1e0] sm:$0xff] %v671
    %1009 = vst [vmem:[#allocation4 + $0x1e8] sm:$0xff] %v673
    %1010 = vst [vmem:[#allocation4 + $0x1f0] sm:$0xff] %v864
    %1011 = vst [vmem:[#allocation4 + $0x1f8] sm:$0xff] %v866
    %1012 = vst [vmem:[#allocation4 + $0x200] sm:$0xff] %v677
    %1013 = vst [vmem:[#allocation4 + $0x208] sm:$0xff] %v679
    %1014 = vst [vmem:[#allocation4 + $0x210] sm:$0xff] %v870
    %1015 = vst [vmem:[#allocation4 + $0x218] sm:$0xff] %v872
    %1016 = vst [vmem:[#allocation4 + $0x220] sm:$0xff] %v681
    %1017 = vst [vmem:[#allocation4 + $0x228] sm:$0xff] %v683
    %1018 = vst [vmem:[#allocation4 + $0x230] sm:$0xff] %v874
    %1019 = vst [vmem:[#allocation4 + $0x238] sm:$0xff] %v876
    %1020 = vst [vmem:[#allocation4 + $0x240] sm:$0xff] %v687
    %1021 = vst [vmem:[#allocation4 + $0x248] sm:$0xff] %v689
    %1022 = vst [vmem:[#allocation4 + $0x250] sm:$0xff] %v880
    %1023 = vst [vmem:[#allocation4 + $0x258] sm:$0xff] %v882
    %1024 = vst [vmem:[#allocation4 + $0x260] sm:$0xff] %v691
    %1025 = vst [vmem:[#allocation4 + $0x268] sm:$0xff] %v693
    %1026 = vst [vmem:[#allocation4 + $0x270] sm:$0xff] %v884
    %1027 = vst [vmem:[#allocation4 + $0x278] sm:$0xff] %v886
    %1028 = vst [vmem:[#allocation4 + $0x280] sm:$0xff] %v697
    %1029 = vst [vmem:[#allocation4 + $0x288] sm:$0xff] %v699
    %1030 = vst [vmem:[#allocation4 + $0x290] sm:$0xff] %v890
    %1031 = vst [vmem:[#allocation4 + $0x298] sm:$0xff] %v892
    %1032 = vst [vmem:[#allocation4 + $0x2a0] sm:$0xff] %v701
    %1033 = vst [vmem:[#allocation4 + $0x2a8] sm:$0xff] %v703
    %1034 = vst [vmem:[#allocation4 + $0x2b0] sm:$0xff] %v894
    %1035 = vst [vmem:[#allocation4 + $0x2b8] sm:$0xff] %v896
    %1036 = vst [vmem:[#allocation4 + $0x2c0] sm:$0xff] %v707
    %1037 = vst [vmem:[#allocation4 + $0x2c8] sm:$0xff] %v709
    %1038 = vst [vmem:[#allocation4 + $0x2d0] sm:$0xff] %v900
    %1039 = vst [vmem:[#allocation4 + $0x2d8] sm:$0xff] %v902
    %1040 = vst [vmem:[#allocation4 + $0x2e0] sm:$0xff] %v711
    %1041 = vst [vmem:[#allocation4 + $0x2e8] sm:$0xff] %v713
    %1042 = vst [vmem:[#allocation4 + $0x2f0] sm:$0xff] %v904
    %1043 = vst [vmem:[#allocation4 + $0x2f8] sm:$0xff] %v906
    %1044 = vst [vmem:[#allocation4 + $0x300] sm:$0xff] %v717
    %1045 = vst [vmem:[#allocation4 + $0x308] sm:$0xff] %v719
    %1046 = vst [vmem:[#allocation4 + $0x310] sm:$0xff] %v910
    %1047 = vst [vmem:[#allocation4 + $0x318] sm:$0xff] %v912
    %1048 = vst [vmem:[#allocation4 + $0x320] sm:$0xff] %v721
    %1049 = vst [vmem:[#allocation4 + $0x328] sm:$0xff] %v723
    %1050 = vst [vmem:[#allocation4 + $0x330] sm:$0xff] %v914
    %1051 = vst [vmem:[#allocation4 + $0x338] sm:$0xff] %v916
    %1052 = vst [vmem:[#allocation4 + $0x340] sm:$0xff] %v727
    %1053 = vst [vmem:[#allocation4 + $0x348] sm:$0xff] %v729
    %1054 = vst [vmem:[#allocation4 + $0x350] sm:$0xff] %v920
    %1055 = vst [vmem:[#allocation4 + $0x358] sm:$0xff] %v922
    %1056 = vst [vmem:[#allocation4 + $0x360] sm:$0xff] %v731
    %1057 = vst [vmem:[#allocation4 + $0x368] sm:$0xff] %v733
    %1058 = vst [vmem:[#allocation4 + $0x370] sm:$0xff] %v924
    %1059 = vst [vmem:[#allocation4 + $0x378] sm:$0xff] %v926
    %1060 = vst [vmem:[#allocation4 + $0x380] sm:$0xff] %v737
    %1061 = vst [vmem:[#allocation4 + $0x388] sm:$0xff] %v739
    %1062 = vst [vmem:[#allocation4 + $0x390] sm:$0xff] %v930
    %1063 = vst [vmem:[#allocation4 + $0x398] sm:$0xff] %v932
    %1064 = vst [vmem:[#allocation4 + $0x3a0] sm:$0xff] %v741
    %1065 = vst [vmem:[#allocation4 + $0x3a8] sm:$0xff] %v743
    %1066 = vst [vmem:[#allocation4 + $0x3b0] sm:$0xff] %v934
    %1067 = vst [vmem:[#allocation4 + $0x3b8] sm:$0xff] %v936
    %1068 = vst [vmem:[#allocation4 + $0x3c0] sm:$0xff] %v747
    %1069 = vst [vmem:[#allocation4 + $0x3c8] sm:$0xff] %v749
    %1070 = vst [vmem:[#allocation4 + $0x3d0] sm:$0xff] %v940
    %1071 = vst [vmem:[#allocation4 + $0x3d8] sm:$0xff] %v942
    %1072 = vst [vmem:[#allocation4 + $0x3e0] sm:$0xff] %v751
    %1073 = vst [vmem:[#allocation4 + $0x3e8] sm:$0xff] %v753
    %1074 = vst [vmem:[#allocation4 + $0x3f0] sm:$0xff] %v944
    %1075 = vst [vmem:[#allocation4 + $0x3f8] sm:$0xff] %v946
    %v1076 = vld [vmem:[#allocation10] sm:$0xff]
    %v1077 = vld [vmem:[#allocation10 + $0x8] sm:$0xff]
    %v1078 = vld [vmem:[#allocation10 + $0x10] sm:$0xff]
    %v1079 = vld [vmem:[#allocation10 + $0x18] sm:$0xff]
    %v1080 = vld [vmem:[#allocation10 + $0x20] sm:$0xff]
    %v1081 = vld [vmem:[#allocation10 + $0x28] sm:$0xff]
    %v1082 = vld [vmem:[#allocation10 + $0x30] sm:$0xff]
    %v1083 = vld [vmem:[#allocation10 + $0x38] sm:$0xff]
    %v1084 = vld [vmem:[#allocation10 + $0x40] sm:$0xff]
    %v1085 = vld [vmem:[#allocation10 + $0x48] sm:$0xff]
    %v1086 = vld [vmem:[#allocation10 + $0x50] sm:$0xff]
    %v1087 = vld [vmem:[#allocation10 + $0x58] sm:$0xff]
    %v1088 = vld [vmem:[#allocation10 + $0x60] sm:$0xff]
    %v1089 = vld [vmem:[#allocation10 + $0x68] sm:$0xff]
    %v1090 = vld [vmem:[#allocation10 + $0x70] sm:$0xff]
    %v1091 = vld [vmem:[#allocation10 + $0x78] sm:$0xff]
    %v1092 = vld [vmem:[#allocation10 + $0x80] sm:$0xff]
    %v1093 = vld [vmem:[#allocation10 + $0x88] sm:$0xff]
    %v1094 = vld [vmem:[#allocation10 + $0x90] sm:$0xff]
    %v1095 = vld [vmem:[#allocation10 + $0x98] sm:$0xff]
    %v1096 = vld [vmem:[#allocation10 + $0xa0] sm:$0xff]
    %v1097 = vld [vmem:[#allocation10 + $0xa8] sm:$0xff]
    %v1098 = vld [vmem:[#allocation10 + $0xb0] sm:$0xff]
    %v1099 = vld [vmem:[#allocation10 + $0xb8] sm:$0xff]
    %v1100 = vld [vmem:[#allocation10 + $0xc0] sm:$0xff]
    %v1101 = vld [vmem:[#allocation10 + $0xc8] sm:$0xff]
    %v1102 = vld [vmem:[#allocation10 + $0xd0] sm:$0xff]
    %v1103 = vld [vmem:[#allocation10 + $0xd8] sm:$0xff]
    %v1104 = vld [vmem:[#allocation10 + $0xe0] sm:$0xff]
    %v1105 = vld [vmem:[#allocation10 + $0xe8] sm:$0xff]
    %v1106 = vld [vmem:[#allocation10 + $0xf0] sm:$0xff]
    %v1107 = vld [vmem:[#allocation10 + $0xf8] sm:$0xff]
    %v1108 = vld [vmem:[%s6] sm:$0xf]
    %v1110 = vlaneseq
    %v1111 = vshrl.u32 %v1110, 7
    %v1112 = vsub.s32 0, %v1111
    %v1113 = vrot.slane %v1108, %v1112
    %v1114 = vlaneseq
    %v1115 = vshrl.u32 %v1114, 7
    %v1116 = vsub.s32 1, %v1115
    %v1117 = vrot.slane %v1108, %v1116
    %v1118 = vlaneseq
    %v1119 = vshrl.u32 %v1118, 7
    %v1120 = vsub.s32 2, %v1119
    %v1121 = vrot.slane %v1108, %v1120
    %v1122 = vlaneseq
    %v1123 = vshrl.u32 %v1122, 7
    %v1124 = vsub.s32 3, %v1123
    %v1125 = vrot.slane %v1108, %v1124
    %v1162 = vunpack.c.l.b16 %v1076
    %v1163 = vunpack.c.h.b16 %v1076
    %v1164 = vunpack.c.l.b16 %v1077
    %v1165 = vunpack.c.h.b16 %v1077
    %v1166 = vunpack.c.l.b16 %v1078
    %v1167 = vunpack.c.h.b16 %v1078
    %v1168 = vunpack.c.l.b16 %v1079
    %v1169 = vunpack.c.h.b16 %v1079
    %v1170 = vunpack.c.l.b16 %v1080
    %v1171 = vunpack.c.h.b16 %v1080
    %v1172 = vunpack.c.l.b16 %v1081
    %v1173 = vunpack.c.h.b16 %v1081
    %v1174 = vunpack.c.l.b16 %v1082
    %v1175 = vunpack.c.h.b16 %v1082
    %v1176 = vunpack.c.l.b16 %v1083
    %v1177 = vunpack.c.h.b16 %v1083
    %v1178 = vunpack.c.l.b16 %v1084
    %v1179 = vunpack.c.h.b16 %v1084
    %v1180 = vunpack.c.l.b16 %v1085
    %v1181 = vunpack.c.h.b16 %v1085
    %v1182 = vunpack.c.l.b16 %v1086
    %v1183 = vunpack.c.h.b16 %v1086
    %v1184 = vunpack.c.l.b16 %v1087
    %v1185 = vunpack.c.h.b16 %v1087
    %v1186 = vunpack.c.l.b16 %v1088
    %v1187 = vunpack.c.h.b16 %v1088
    %v1188 = vunpack.c.l.b16 %v1089
    %v1189 = vunpack.c.h.b16 %v1089
    %v1190 = vunpack.c.l.b16 %v1090
    %v1191 = vunpack.c.h.b16 %v1090
    %v1192 = vunpack.c.l.b16 %v1091
    %v1193 = vunpack.c.h.b16 %v1091
    %v1194 = vunpack.c.l.b16 %v1092
    %v1195 = vunpack.c.h.b16 %v1092
    %v1196 = vunpack.c.l.b16 %v1093
    %v1197 = vunpack.c.h.b16 %v1093
    %v1198 = vunpack.c.l.b16 %v1094
    %v1199 = vunpack.c.h.b16 %v1094
    %v1200 = vunpack.c.l.b16 %v1095
    %v1201 = vunpack.c.h.b16 %v1095
    %v1202 = vunpack.c.l.b16 %v1096
    %v1203 = vunpack.c.h.b16 %v1096
    %v1204 = vunpack.c.l.b16 %v1097
    %v1205 = vunpack.c.h.b16 %v1097
    %v1206 = vunpack.c.l.b16 %v1098
    %v1207 = vunpack.c.h.b16 %v1098
    %v1208 = vunpack.c.l.b16 %v1099
    %v1209 = vunpack.c.h.b16 %v1099
    %v1210 = vunpack.c.l.b16 %v1100
    %v1211 = vunpack.c.h.b16 %v1100
    %v1212 = vunpack.c.l.b16 %v1101
    %v1213 = vunpack.c.h.b16 %v1101
    %v1214 = vunpack.c.l.b16 %v1102
    %v1215 = vunpack.c.h.b16 %v1102
    %v1216 = vunpack.c.l.b16 %v1103
    %v1217 = vunpack.c.h.b16 %v1103
    %v1218 = vunpack.c.l.b16 %v1104
    %v1219 = vunpack.c.h.b16 %v1104
    %v1220 = vunpack.c.l.b16 %v1105
    %v1221 = vunpack.c.h.b16 %v1105
    %v1222 = vunpack.c.l.b16 %v1106
    %v1223 = vunpack.c.h.b16 %v1106
    %v1224 = vunpack.c.l.b16 %v1107
    %v1225 = vunpack.c.h.b16 %v1107
    %v1226 = vpack.c.b16 %v1166, %v1162
    %v1227 = vpack.c.b16 %v1167, %v1163
    %v1228 = vpack.c.b16 %v1168, %v1164
    %v1229 = vpack.c.b16 %v1169, %v1165
    %v1230 = vpack.c.b16 %v1174, %v1170
    %v1231 = vpack.c.b16 %v1175, %v1171
    %v1232 = vpack.c.b16 %v1176, %v1172
    %v1233 = vpack.c.b16 %v1177, %v1173
    %v1234 = vpack.c.b16 %v1182, %v1178
    %v1235 = vpack.c.b16 %v1183, %v1179
    %v1236 = vpack.c.b16 %v1184, %v1180
    %v1237 = vpack.c.b16 %v1185, %v1181
    %v1238 = vpack.c.b16 %v1190, %v1186
    %v1239 = vpack.c.b16 %v1191, %v1187
    %v1240 = vpack.c.b16 %v1192, %v1188
    %v1241 = vpack.c.b16 %v1193, %v1189
    %v1242 = vpack.c.b16 %v1198, %v1194
    %v1243 = vpack.c.b16 %v1199, %v1195
    %v1244 = vpack.c.b16 %v1200, %v1196
    %v1245 = vpack.c.b16 %v1201, %v1197
    %v1246 = vpack.c.b16 %v1206, %v1202
    %v1247 = vpack.c.b16 %v1207, %v1203
    %v1248 = vpack.c.b16 %v1208, %v1204
    %v1249 = vpack.c.b16 %v1209, %v1205
    %v1250 = vpack.c.b16 %v1214, %v1210
    %v1251 = vpack.c.b16 %v1215, %v1211
    %v1252 = vpack.c.b16 %v1216, %v1212
    %v1253 = vpack.c.b16 %v1217, %v1213
    %v1254 = vpack.c.b16 %v1222, %v1218
    %v1255 = vpack.c.b16 %v1223, %v1219
    %v1256 = vpack.c.b16 %v1224, %v1220
    %v1257 = vpack.c.b16 %v1225, %v1221
    %1290 = vmatprep.subr.bf16.mxu0 %v1227
    %1291 = vmatpush1.bf16.msra.mxu0 %v1226
    %1292 = vmatprep.subr.bf16.mxu0 %v1231
    %1293 = vmatpush1.bf16.msra.mxu0 %v1230
    %1294 = vmatprep.subr.bf16.mxu0 %v1235
    %1295 = vmatpush1.bf16.msra.mxu0 %v1234
    %1296 = vmatprep.subr.bf16.mxu0 %v1239
    %1297 = vmatpush1.bf16.msra.mxu0 %v1238
    %1298 = vmatprep.subr.bf16.mxu0 %v1243
    %1299 = vmatpush1.bf16.msra.mxu0 %v1242
    %1300 = vmatprep.subr.bf16.mxu0 %v1247
    %1301 = vmatpush1.bf16.msra.mxu0 %v1246
    %1302 = vmatprep.subr.bf16.mxu0 %v1251
    %1303 = vmatpush1.bf16.msra.mxu0 %v1250
    %1304 = vmatprep.subr.bf16.mxu0 %v1255
    %1305 = vmatpush1.bf16.msra.mxu0 %v1254
    %1306 = vmatprep.subr.bf16.mxu0 0
    %1307 = vmatpush1.bf16.msra.mxu0 0
    %1308 = vmatprep.subr.bf16.mxu0 0
    %1309 = vmatpush1.bf16.msra.mxu0 0
    %1310 = vmatprep.subr.bf16.mxu0 0
    %1311 = vmatpush1.bf16.msra.mxu0 0
    %1312 = vmatprep.subr.bf16.mxu0 0
    %1313 = vmatpush1.bf16.msra.mxu0 0
    %1314 = vmatprep.subr.bf16.mxu0 0
    %1315 = vmatpush1.bf16.msra.mxu0 0
    %1316 = vmatprep.subr.bf16.mxu0 0
    %1317 = vmatpush1.bf16.msra.mxu0 0
    %1318 = vmatprep.subr.bf16.mxu0 0
    %1319 = vmatpush1.bf16.msra.mxu0 0
    %1320 = vmatprep.subr.bf16.mxu0 0
    %1321 = vmatpush1.bf16.msra.mxu0 0
    %1322 = vmatprep.mubr.bf16.mxu0 0
    %1323 = vmatmul.mubr.bf16.gmra.mrb[0].mxu0 %v370
    %v1324 = vpop.f32.mrb[0].mxu0
    %v1325 = vadd.f32 %v1113, %v1324
    %v1326 = vpop.f32.mrb[0].mxu0
    %v1327 = vadd.f32 %v1117, %v1326
    %v1328 = vpop.f32.mrb[0].mxu0
    %v1329 = vadd.f32 %v1113, %v1328
    %v1330 = vpop.f32.mrb[0].mxu0
    %v1331 = vadd.f32 %v1117, %v1330
    %1332 = vmatprep.mubr.bf16.mxu0 0
    %1333 = vmatmul.mubr.bf16.gmra.mrb[0].mxu0 %v371
    %v1334 = vpop.f32.mrb[0].mxu0
    %v1335 = vadd.f32 %v1113, %v1334
    %v1336 = vpop.f32.mrb[0].mxu0
    %v1337 = vadd.f32 %v1117, %v1336
    %v1338 = vpop.f32.mrb[0].mxu0
    %v1339 = vadd.f32 %v1113, %v1338
    %v1340 = vpop.f32.mrb[0].mxu0
    %v1341 = vadd.f32 %v1117, %v1340
    %1342 = vmatprep.mubr.bf16.mxu0 0
    %1343 = vmatmul.mubr.bf16.gmra.mrb[0].mxu0 %v372
    %v1344 = vpop.f32.mrb[0].mxu0
    %v1345 = vadd.f32 %v1113, %v1344
    %v1346 = vpop.f32.mrb[0].mxu0
    %v1347 = vadd.f32 %v1117, %v1346
    %v1348 = vpop.f32.mrb[0].mxu0
    %v1349 = vadd.f32 %v1113, %v1348
    %v1350 = vpop.f32.mrb[0].mxu0
    %v1351 = vadd.f32 %v1117, %v1350
    %1352 = vmatprep.mubr.bf16.mxu0 0
    %1353 = vmatmul.mubr.bf16.gmra.mrb[0].mxu0 %v373
    %v1354 = vpop.f32.mrb[0].mxu0
    %v1355 = vadd.f32 %v1113, %v1354
    %v1356 = vpop.f32.mrb[0].mxu0
    %v1357 = vadd.f32 %v1117, %v1356
    %v1358 = vpop.f32.mrb[0].mxu0
    %v1359 = vadd.f32 %v1113, %v1358
    %v1360 = vpop.f32.mrb[0].mxu0
    %v1361 = vadd.f32 %v1117, %v1360
    %1362 = vmatprep.mubr.bf16.mxu0 0
    %1363 = vmatmul.mubr.bf16.gmra.mrb[0].mxu0 %v374
    %v1364 = vpop.f32.mrb[0].mxu0
    %v1365 = vadd.f32 %v1113, %v1364
    %v1366 = vpop.f32.mrb[0].mxu0
    %v1367 = vadd.f32 %v1117, %v1366
    %v1368 = vpop.f32.mrb[0].mxu0
    %v1369 = vadd.f32 %v1113, %v1368
    %v1370 = vpop.f32.mrb[0].mxu0
    %v1371 = vadd.f32 %v1117, %v1370
    %1372 = vmatprep.mubr.bf16.mxu0 0
    %1373 = vmatmul.mubr.bf16.gmra.mrb[0].mxu0 %v375
    %v1374 = vpop.f32.mrb[0].mxu0
    %v1375 = vadd.f32 %v1113, %v1374
    %v1376 = vpop.f32.mrb[0].mxu0
    %v1377 = vadd.f32 %v1117, %v1376
    %v1378 = vpop.f32.mrb[0].mxu0
    %v1379 = vadd.f32 %v1113, %v1378
    %v1380 = vpop.f32.mrb[0].mxu0
    %v1381 = vadd.f32 %v1117, %v1380
    %1382 = vmatprep.mubr.bf16.mxu0 0
    %1383 = vmatmul.mubr.bf16.gmra.mrb[0].mxu0 %v376
    %v1384 = vpop.f32.mrb[0].mxu0
    %v1385 = vadd.f32 %v1113, %v1384
    %v1386 = vpop.f32.mrb[0].mxu0
    %v1387 = vadd.f32 %v1117, %v1386
    %v1388 = vpop.f32.mrb[0].mxu0
    %v1389 = vadd.f32 %v1113, %v1388
    %v1390 = vpop.f32.mrb[0].mxu0
    %v1391 = vadd.f32 %v1117, %v1390
    %1392 = vmatprep.mubr.bf16.mxu0 0
    %1393 = vmatmul.mubr.bf16.gmra.mrb[0].mxu0 %v377
    %v1394 = vpop.f32.mrb[0].mxu0
    %v1395 = vadd.f32 %v1113, %v1394
    %v1396 = vpop.f32.mrb[0].mxu0
    %v1397 = vadd.f32 %v1117, %v1396
    %v1398 = vpop.f32.mrb[0].mxu0
    %v1399 = vadd.f32 %v1113, %v1398
    %v1400 = vpop.f32.mrb[0].mxu0
    %v1401 = vadd.f32 %v1117, %v1400
    %1402 = vmatprep.mubr.bf16.mxu0 0
    %1403 = vmatmul.mubr.bf16.gmra.mrb[0].mxu0 %v378
    %v1404 = vpop.f32.mrb[0].mxu0
    %v1405 = vadd.f32 %v1113, %v1404
    %v1406 = vpop.f32.mrb[0].mxu0
    %v1407 = vadd.f32 %v1117, %v1406
    %v1408 = vpop.f32.mrb[0].mxu0
    %v1409 = vadd.f32 %v1113, %v1408
    %v1410 = vpop.f32.mrb[0].mxu0
    %v1411 = vadd.f32 %v1117, %v1410
    %1412 = vmatprep.mubr.bf16.mxu0 0
    %1413 = vmatmul.mubr.bf16.gmra.mrb[0].mxu0 %v379
    %v1414 = vpop.f32.mrb[0].mxu0
    %v1415 = vadd.f32 %v1113, %v1414
    %v1416 = vpop.f32.mrb[0].mxu0
    %v1417 = vadd.f32 %v1117, %v1416
    %v1418 = vpop.f32.mrb[0].mxu0
    %v1419 = vadd.f32 %v1113, %v1418
    %v1420 = vpop.f32.mrb[0].mxu0
    %v1421 = vadd.f32 %v1117, %v1420
    %1422 = vmatprep.mubr.bf16.mxu0 0
    %1423 = vmatmul.mubr.bf16.gmra.mrb[0].mxu0 %v380
    %v1424 = vpop.f32.mrb[0].mxu0
    %v1425 = vadd.f32 %v1113, %v1424
    %v1426 = vpop.f32.mrb[0].mxu0
    %v1427 = vadd.f32 %v1117, %v1426
    %v1428 = vpop.f32.mrb[0].mxu0
    %v1429 = vadd.f32 %v1113, %v1428
    %v1430 = vpop.f32.mrb[0].mxu0
    %v1431 = vadd.f32 %v1117, %v1430
    %1432 = vmatprep.mubr.bf16.mxu0 0
    %1433 = vmatmul.mubr.bf16.gmra.mrb[0].mxu0 %v381
    %v1434 = vpop.f32.mrb[0].mxu0
    %v1435 = vadd.f32 %v1113, %v1434
    %v1436 = vpop.f32.mrb[0].mxu0
    %v1437 = vadd.f32 %v1117, %v1436
    %v1438 = vpop.f32.mrb[0].mxu0
    %v1439 = vadd.f32 %v1113, %v1438
    %v1440 = vpop.f32.mrb[0].mxu0
    %v1441 = vadd.f32 %v1117, %v1440
    %1442 = vmatprep.mubr.bf16.mxu0 0
    %1443 = vmatmul.mubr.bf16.gmra.mrb[0].mxu0 %v382
    %v1444 = vpop.f32.mrb[0].mxu0
    %v1445 = vadd.f32 %v1113, %v1444
    %v1446 = vpop.f32.mrb[0].mxu0
    %v1447 = vadd.f32 %v1117, %v1446
    %v1448 = vpop.f32.mrb[0].mxu0
    %v1449 = vadd.f32 %v1113, %v1448
    %v1450 = vpop.f32.mrb[0].mxu0
    %v1451 = vadd.f32 %v1117, %v1450
    %1452 = vmatprep.mubr.bf16.mxu0 0
    %1453 = vmatmul.mubr.bf16.gmra.mrb[0].mxu0 %v383
    %v1454 = vpop.f32.mrb[0].mxu0
    %v1455 = vadd.f32 %v1113, %v1454
    %v1456 = vpop.f32.mrb[0].mxu0
    %v1457 = vadd.f32 %v1117, %v1456
    %v1458 = vpop.f32.mrb[0].mxu0
    %v1459 = vadd.f32 %v1113, %v1458
    %v1460 = vpop.f32.mrb[0].mxu0
    %v1461 = vadd.f32 %v1117, %v1460
    %1462 = vmatprep.mubr.bf16.mxu0 0
    %1463 = vmatmul.mubr.bf16.gmra.mrb[0].mxu0 %v384
    %v1464 = vpop.f32.mrb[0].mxu0
    %v1465 = vadd.f32 %v1113, %v1464
    %v1466 = vpop.f32.mrb[0].mxu0
    %v1467 = vadd.f32 %v1117, %v1466
    %v1468 = vpop.f32.mrb[0].mxu0
    %v1469 = vadd.f32 %v1113, %v1468
    %v1470 = vpop.f32.mrb[0].mxu0
    %v1471 = vadd.f32 %v1117, %v1470
    %1472 = vmatprep.mubr.bf16.mxu0 0
    %1473 = vmatmul.mubr.bf16.gmra.mrb[0].mxu0 %v385
    %v1474 = vpop.f32.mrb[0].mxu0
    %v1475 = vadd.f32 %v1113, %v1474
    %v1476 = vpop.f32.mrb[0].mxu0
    %v1477 = vadd.f32 %v1117, %v1476
    %v1478 = vpop.f32.mrb[0].mxu0
    %v1479 = vadd.f32 %v1113, %v1478
    %v1480 = vpop.f32.mrb[0].mxu0
    %v1481 = vadd.f32 %v1117, %v1480
    %1482 = vdwg.mxu0
    %1483 = vmatprep.subr.bf16.mxu0 %v1229
    %1484 = vmatpush1.bf16.msra.mxu0 %v1228
    %1485 = vmatprep.subr.bf16.mxu0 %v1233
    %1486 = vmatpush1.bf16.msra.mxu0 %v1232
    %1487 = vmatprep.subr.bf16.mxu0 %v1237
    %1488 = vmatpush1.bf16.msra.mxu0 %v1236
    %1489 = vmatprep.subr.bf16.mxu0 %v1241
    %1490 = vmatpush1.bf16.msra.mxu0 %v1240
    %1491 = vmatprep.subr.bf16.mxu0 %v1245
    %1492 = vmatpush1.bf16.msra.mxu0 %v1244
    %1493 = vmatprep.subr.bf16.mxu0 %v1249
    %1494 = vmatpush1.bf16.msra.mxu0 %v1248
    %1495 = vmatprep.subr.bf16.mxu0 %v1253
    %1496 = vmatpush1.bf16.msra.mxu0 %v1252
    %1497 = vmatprep.subr.bf16.mxu0 %v1257
    %1498 = vmatpush1.bf16.msra.mxu0 %v1256
    %1499 = vmatprep.subr.bf16.mxu0 0
    %1500 = vmatpush1.bf16.msra.mxu0 0
    %1501 = vmatprep.subr.bf16.mxu0 0
    %1502 = vmatpush1.bf16.msra.mxu0 0
    %1503 = vmatprep.subr.bf16.mxu0 0
    %1504 = vmatpush1.bf16.msra.mxu0 0
    %1505 = vmatprep.subr.bf16.mxu0 0
    %1506 = vmatpush1.bf16.msra.mxu0 0
    %1507 = vmatprep.subr.bf16.mxu0 0
    %1508 = vmatpush1.bf16.msra.mxu0 0
    %1509 = vmatprep.subr.bf16.mxu0 0
    %1510 = vmatpush1.bf16.msra.mxu0 0
    %1511 = vmatprep.subr.bf16.mxu0 0
    %1512 = vmatpush1.bf16.msra.mxu0 0
    %1513 = vmatprep.subr.bf16.mxu0 0
    %1514 = vmatpush1.bf16.msra.mxu0 0
    %1515 = vmatprep.mubr.bf16.mxu0 0
    %1516 = vmatmul.mubr.bf16.gmra.mrb[0].mxu0 %v370
    %v1517 = vpop.f32.mrb[0].mxu0
    %v1518 = vadd.f32 %v1121, %v1517
    %v1519 = vpop.f32.mrb[0].mxu0
    %v1520 = vadd.f32 %v1125, %v1519
    %v1521 = vpop.f32.mrb[0].mxu0
    %v1522 = vadd.f32 %v1121, %v1521
    %v1523 = vpop.f32.mrb[0].mxu0
    %v1524 = vadd.f32 %v1125, %v1523
    %1525 = vmatprep.mubr.bf16.mxu0 0
    %1526 = vmatmul.mubr.bf16.gmra.mrb[0].mxu0 %v371
    %v1527 = vpop.f32.mrb[0].mxu0
    %v1528 = vadd.f32 %v1121, %v1527
    %v1529 = vpop.f32.mrb[0].mxu0
    %v1530 = vadd.f32 %v1125, %v1529
    %v1531 = vpop.f32.mrb[0].mxu0
    %v1532 = vadd.f32 %v1121, %v1531
    %v1533 = vpop.f32.mrb[0].mxu0
    %v1534 = vadd.f32 %v1125, %v1533
    %1535 = vmatprep.mubr.bf16.mxu0 0
    %1536 = vmatmul.mubr.bf16.gmra.mrb[0].mxu0 %v372
    %v1537 = vpop.f32.mrb[0].mxu0
    %v1538 = vadd.f32 %v1121, %v1537
    %v1539 = vpop.f32.mrb[0].mxu0
    %v1540 = vadd.f32 %v1125, %v1539
    %v1541 = vpop.f32.mrb[0].mxu0
    %v1542 = vadd.f32 %v1121, %v1541
    %v1543 = vpop.f32.mrb[0].mxu0
    %v1544 = vadd.f32 %v1125, %v1543
    %1545 = vmatprep.mubr.bf16.mxu0 0
    %1546 = vmatmul.mubr.bf16.gmra.mrb[0].mxu0 %v373
    %v1547 = vpop.f32.mrb[0].mxu0
    %v1548 = vadd.f32 %v1121, %v1547
    %v1549 = vpop.f32.mrb[0].mxu0
    %v1550 = vadd.f32 %v1125, %v1549
    %v1551 = vpop.f32.mrb[0].mxu0
    %v1552 = vadd.f32 %v1121, %v1551
    %v1553 = vpop.f32.mrb[0].mxu0
    %v1554 = vadd.f32 %v1125, %v1553
    %1555 = vmatprep.mubr.bf16.mxu0 0
    %1556 = vmatmul.mubr.bf16.gmra.mrb[0].mxu0 %v374
    %v1557 = vpop.f32.mrb[0].mxu0
    %v1558 = vadd.f32 %v1121, %v1557
    %v1559 = vpop.f32.mrb[0].mxu0
    %v1560 = vadd.f32 %v1125, %v1559
    %v1561 = vpop.f32.mrb[0].mxu0
    %v1562 = vadd.f32 %v1121, %v1561
    %v1563 = vpop.f32.mrb[0].mxu0
    %v1564 = vadd.f32 %v1125, %v1563
    %1565 = vmatprep.mubr.bf16.mxu0 0
    %1566 = vmatmul.mubr.bf16.gmra.mrb[0].mxu0 %v375
    %v1567 = vpop.f32.mrb[0].mxu0
    %v1568 = vadd.f32 %v1121, %v1567
    %v1569 = vpop.f32.mrb[0].mxu0
    %v1570 = vadd.f32 %v1125, %v1569
    %v1571 = vpop.f32.mrb[0].mxu0
    %v1572 = vadd.f32 %v1121, %v1571
    %v1573 = vpop.f32.mrb[0].mxu0
    %v1574 = vadd.f32 %v1125, %v1573
    %1575 = vmatprep.mubr.bf16.mxu0 0
    %1576 = vmatmul.mubr.bf16.gmra.mrb[0].mxu0 %v376
    %v1577 = vpop.f32.mrb[0].mxu0
    %v1578 = vadd.f32 %v1121, %v1577
    %v1579 = vpop.f32.mrb[0].mxu0
    %v1580 = vadd.f32 %v1125, %v1579
    %v1581 = vpop.f32.mrb[0].mxu0
    %v1582 = vadd.f32 %v1121, %v1581
    %v1583 = vpop.f32.mrb[0].mxu0
    %v1584 = vadd.f32 %v1125, %v1583
    %1585 = vmatprep.mubr.bf16.mxu0 0
    %1586 = vmatmul.mubr.bf16.gmra.mrb[0].mxu0 %v377
    %v1587 = vpop.f32.mrb[0].mxu0
    %v1588 = vadd.f32 %v1121, %v1587
    %v1589 = vpop.f32.mrb[0].mxu0
    %v1590 = vadd.f32 %v1125, %v1589
    %v1591 = vpop.f32.mrb[0].mxu0
    %v1592 = vadd.f32 %v1121, %v1591
    %v1593 = vpop.f32.mrb[0].mxu0
    %v1594 = vadd.f32 %v1125, %v1593
    %1595 = vmatprep.mubr.bf16.mxu0 0
    %1596 = vmatmul.mubr.bf16.gmra.mrb[0].mxu0 %v378
    %v1597 = vpop.f32.mrb[0].mxu0
    %v1598 = vadd.f32 %v1121, %v1597
    %v1599 = vpop.f32.mrb[0].mxu0
    %v1600 = vadd.f32 %v1125, %v1599
    %v1601 = vpop.f32.mrb[0].mxu0
    %v1602 = vadd.f32 %v1121, %v1601
    %v1603 = vpop.f32.mrb[0].mxu0
    %v1604 = vadd.f32 %v1125, %v1603
    %1605 = vmatprep.mubr.bf16.mxu0 0
    %1606 = vmatmul.mubr.bf16.gmra.mrb[0].mxu0 %v379
    %v1607 = vpop.f32.mrb[0].mxu0
    %v1608 = vadd.f32 %v1121, %v1607
    %v1609 = vpop.f32.mrb[0].mxu0
    %v1610 = vadd.f32 %v1125, %v1609
    %v1611 = vpop.f32.mrb[0].mxu0
    %v1612 = vadd.f32 %v1121, %v1611
    %v1613 = vpop.f32.mrb[0].mxu0
    %v1614 = vadd.f32 %v1125, %v1613
    %1615 = vmatprep.mubr.bf16.mxu0 0
    %1616 = vmatmul.mubr.bf16.gmra.mrb[0].mxu0 %v380
    %v1617 = vpop.f32.mrb[0].mxu0
    %v1618 = vadd.f32 %v1121, %v1617
    %v1619 = vpop.f32.mrb[0].mxu0
    %v1620 = vadd.f32 %v1125, %v1619
    %v1621 = vpop.f32.mrb[0].mxu0
    %v1622 = vadd.f32 %v1121, %v1621
    %v1623 = vpop.f32.mrb[0].mxu0
    %v1624 = vadd.f32 %v1125, %v1623
    %1625 = vmatprep.mubr.bf16.mxu0 0
    %1626 = vmatmul.mubr.bf16.gmra.mrb[0].mxu0 %v381
    %v1627 = vpop.f32.mrb[0].mxu0
    %v1628 = vadd.f32 %v1121, %v1627
    %v1629 = vpop.f32.mrb[0].mxu0
    %v1630 = vadd.f32 %v1125, %v1629
    %v1631 = vpop.f32.mrb[0].mxu0
    %v1632 = vadd.f32 %v1121, %v1631
    %v1633 = vpop.f32.mrb[0].mxu0
    %v1634 = vadd.f32 %v1125, %v1633
    %1635 = vmatprep.mubr.bf16.mxu0 0
    %1636 = vmatmul.mubr.bf16.gmra.mrb[0].mxu0 %v382
    %v1637 = vpop.f32.mrb[0].mxu0
    %v1638 = vadd.f32 %v1121, %v1637
    %v1639 = vpop.f32.mrb[0].mxu0
    %v1640 = vadd.f32 %v1125, %v1639
    %v1641 = vpop.f32.mrb[0].mxu0
    %v1642 = vadd.f32 %v1121, %v1641
    %v1643 = vpop.f32.mrb[0].mxu0
    %v1644 = vadd.f32 %v1125, %v1643
    %1645 = vmatprep.mubr.bf16.mxu0 0
    %1646 = vmatmul.mubr.bf16.gmra.mrb[0].mxu0 %v383
    %v1647 = vpop.f32.mrb[0].mxu0
    %v1648 = vadd.f32 %v1121, %v1647
    %v1649 = vpop.f32.mrb[0].mxu0
    %v1650 = vadd.f32 %v1125, %v1649
    %v1651 = vpop.f32.mrb[0].mxu0
    %v1652 = vadd.f32 %v1121, %v1651
    %v1653 = vpop.f32.mrb[0].mxu0
    %v1654 = vadd.f32 %v1125, %v1653
    %1655 = vmatprep.mubr.bf16.mxu0 0
    %1656 = vmatmul.mubr.bf16.gmra.mrb[0].mxu0 %v384
    %v1657 = vpop.f32.mrb[0].mxu0
    %v1658 = vadd.f32 %v1121, %v1657
    %v1659 = vpop.f32.mrb[0].mxu0
    %v1660 = vadd.f32 %v1125, %v1659
    %v1661 = vpop.f32.mrb[0].mxu0
    %v1662 = vadd.f32 %v1121, %v1661
    %v1663 = vpop.f32.mrb[0].mxu0
    %v1664 = vadd.f32 %v1125, %v1663
    %1665 = vmatprep.mubr.bf16.mxu0 0
    %1666 = vmatmul.mubr.bf16.gmra.mrb[0].mxu0 %v385
    %v1667 = vpop.f32.mrb[0].mxu0
    %v1668 = vadd.f32 %v1121, %v1667
    %v1669 = vpop.f32.mrb[0].mxu0
    %v1670 = vadd.f32 %v1125, %v1669
    %v1671 = vpop.f32.mrb[0].mxu0
    %v1672 = vadd.f32 %v1121, %v1671
    %v1673 = vpop.f32.mrb[0].mxu0
    %v1674 = vadd.f32 %v1125, %v1673
    %1675 = vdwg.mxu0
    %1676 = vst [vmem:[#allocation5] sm:$0xff] %v1325
    %1677 = vst [vmem:[#allocation5 + $0x8] sm:$0xff] %v1327
    %1678 = vst [vmem:[#allocation5 + $0x10] sm:$0xff] %v1518
    %1679 = vst [vmem:[#allocation5 + $0x18] sm:$0xff] %v1520
    %1680 = vst [vmem:[#allocation5 + $0x20] sm:$0xff] %v1329
    %1681 = vst [vmem:[#allocation5 + $0x28] sm:$0xff] %v1331
    %1682 = vst [vmem:[#allocation5 + $0x30] sm:$0xff] %v1522
    %1683 = vst [vmem:[#allocation5 + $0x38] sm:$0xff] %v1524
    %1684 = vst [vmem:[#allocation5 + $0x40] sm:$0xff] %v1335
    %1685 = vst [vmem:[#allocation5 + $0x48] sm:$0xff] %v1337
    %1686 = vst [vmem:[#allocation5 + $0x50] sm:$0xff] %v1528
    %1687 = vst [vmem:[#allocation5 + $0x58] sm:$0xff] %v1530
    %1688 = vst [vmem:[#allocation5 + $0x60] sm:$0xff] %v1339
    %1689 = vst [vmem:[#allocation5 + $0x68] sm:$0xff] %v1341
    %1690 = vst [vmem:[#allocation5 + $0x70] sm:$0xff] %v1532
    %1691 = vst [vmem:[#allocation5 + $0x78] sm:$0xff] %v1534
    %1692 = vst [vmem:[#allocation5 + $0x80] sm:$0xff] %v1345
    %1693 = vst [vmem:[#allocation5 + $0x88] sm:$0xff] %v1347
    %1694 = vst [vmem:[#allocation5 + $0x90] sm:$0xff] %v1538
    %1695 = vst [vmem:[#allocation5 + $0x98] sm:$0xff] %v1540
    %1696 = vst [vmem:[#allocation5 + $0xa0] sm:$0xff] %v1349
    %1697 = vst [vmem:[#allocation5 + $0xa8] sm:$0xff] %v1351
    %1698 = vst [vmem:[#allocation5 + $0xb0] sm:$0xff] %v1542
    %1699 = vst [vmem:[#allocation5 + $0xb8] sm:$0xff] %v1544
    %1700 = vst [vmem:[#allocation5 + $0xc0] sm:$0xff] %v1355
    %1701 = vst [vmem:[#allocation5 + $0xc8] sm:$0xff] %v1357
    %1702 = vst [vmem:[#allocation5 + $0xd0] sm:$0xff] %v1548
    %1703 = vst [vmem:[#allocation5 + $0xd8] sm:$0xff] %v1550
    %1704 = vst [vmem:[#allocation5 + $0xe0] sm:$0xff] %v1359
    %1705 = vst [vmem:[#allocation5 + $0xe8] sm:$0xff] %v1361
    %1706 = vst [vmem:[#allocation5 + $0xf0] sm:$0xff] %v1552
    %1707 = vst [vmem:[#allocation5 + $0xf8] sm:$0xff] %v1554
    %1708 = vst [vmem:[#allocation5 + $0x100] sm:$0xff] %v1365
    %1709 = vst [vmem:[#allocation5 + $0x108] sm:$0xff] %v1367
    %1710 = vst [vmem:[#allocation5 + $0x110] sm:$0xff] %v1558
    %1711 = vst [vmem:[#allocation5 + $0x118] sm:$0xff] %v1560
    %1712 = vst [vmem:[#allocation5 + $0x120] sm:$0xff] %v1369
    %1713 = vst [vmem:[#allocation5 + $0x128] sm:$0xff] %v1371
    %1714 = vst [vmem:[#allocation5 + $0x130] sm:$0xff] %v1562
    %1715 = vst [vmem:[#allocation5 + $0x138] sm:$0xff] %v1564
    %1716 = vst [vmem:[#allocation5 + $0x140] sm:$0xff] %v1375
    %1717 = vst [vmem:[#allocation5 + $0x148] sm:$0xff] %v1377
    %1718 = vst [vmem:[#allocation5 + $0x150] sm:$0xff] %v1568
    %1719 = vst [vmem:[#allocation5 + $0x158] sm:$0xff] %v1570
    %1720 = vst [vmem:[#allocation5 + $0x160] sm:$0xff] %v1379
    %1721 = vst [vmem:[#allocation5 + $0x168] sm:$0xff] %v1381
    %1722 = vst [vmem:[#allocation5 + $0x170] sm:$0xff] %v1572
    %1723 = vst [vmem:[#allocation5 + $0x178] sm:$0xff] %v1574
    %1724 = vst [vmem:[#allocation5 + $0x180] sm:$0xff] %v1385
    %1725 = vst [vmem:[#allocation5 + $0x188] sm:$0xff] %v1387
    %1726 = vst [vmem:[#allocation5 + $0x190] sm:$0xff] %v1578
    %1727 = vst [vmem:[#allocation5 + $0x198] sm:$0xff] %v1580
    %1728 = vst [vmem:[#allocation5 + $0x1a0] sm:$0xff] %v1389
    %1729 = vst [vmem:[#allocation5 + $0x1a8] sm:$0xff] %v1391
    %1730 = vst [vmem:[#allocation5 + $0x1b0] sm:$0xff] %v1582
    %1731 = vst [vmem:[#allocation5 + $0x1b8] sm:$0xff] %v1584
    %1732 = vst [vmem:[#allocation5 + $0x1c0] sm:$0xff] %v1395
    %1733 = vst [vmem:[#allocation5 + $0x1c8] sm:$0xff] %v1397
    %1734 = vst [vmem:[#allocation5 + $0x1d0] sm:$0xff] %v1588
    %1735 = vst [vmem:[#allocation5 + $0x1d8] sm:$0xff] %v1590
    %1736 = vst [vmem:[#allocation5 + $0x1e0] sm:$0xff] %v1399
    %1737 = vst [vmem:[#allocation5 + $0x1e8] sm:$0xff] %v1401
    %1738 = vst [vmem:[#allocation5 + $0x1f0] sm:$0xff] %v1592
    %1739 = vst [vmem:[#allocation5 + $0x1f8] sm:$0xff] %v1594
    %1740 = vst [vmem:[#allocation5 + $0x200] sm:$0xff] %v1405
    %1741 = vst [vmem:[#allocation5 + $0x208] sm:$0xff] %v1407
    %1742 = vst [vmem:[#allocation5 + $0x210] sm:$0xff] %v1598
    %1743 = vst [vmem:[#allocation5 + $0x218] sm:$0xff] %v1600
    %1744 = vst [vmem:[#allocation5 + $0x220] sm:$0xff] %v1409
    %1745 = vst [vmem:[#allocation5 + $0x228] sm:$0xff] %v1411
    %1746 = vst [vmem:[#allocation5 + $0x230] sm:$0xff] %v1602
    %1747 = vst [vmem:[#allocation5 + $0x238] sm:$0xff] %v1604
    %1748 = vst [vmem:[#allocation5 + $0x240] sm:$0xff] %v1415
    %1749 = vst [vmem:[#allocation5 + $0x248] sm:$0xff] %v1417
    %1750 = vst [vmem:[#allocation5 + $0x250] sm:$0xff] %v1608
    %1751 = vst [vmem:[#allocation5 + $0x258] sm:$0xff] %v1610
    %1752 = vst [vmem:[#allocation5 + $0x260] sm:$0xff] %v1419
    %1753 = vst [vmem:[#allocation5 + $0x268] sm:$0xff] %v1421
    %1754 = vst [vmem:[#allocation5 + $0x270] sm:$0xff] %v1612
    %1755 = vst [vmem:[#allocation5 + $0x278] sm:$0xff] %v1614
    %1756 = vst [vmem:[#allocation5 + $0x280] sm:$0xff] %v1425
    %1757 = vst [vmem:[#allocation5 + $0x288] sm:$0xff] %v1427
    %1758 = vst [vmem:[#allocation5 + $0x290] sm:$0xff] %v1618
    %1759 = vst [vmem:[#allocation5 + $0x298] sm:$0xff] %v1620
    %1760 = vst [vmem:[#allocation5 + $0x2a0] sm:$0xff] %v1429
    %1761 = vst [vmem:[#allocation5 + $0x2a8] sm:$0xff] %v1431
    %1762 = vst [vmem:[#allocation5 + $0x2b0] sm:$0xff] %v1622
    %1763 = vst [vmem:[#allocation5 + $0x2b8] sm:$0xff] %v1624
    %1764 = vst [vmem:[#allocation5 + $0x2c0] sm:$0xff] %v1435
    %1765 = vst [vmem:[#allocation5 + $0x2c8] sm:$0xff] %v1437
    %1766 = vst [vmem:[#allocation5 + $0x2d0] sm:$0xff] %v1628
    %1767 = vst [vmem:[#allocation5 + $0x2d8] sm:$0xff] %v1630
    %1768 = vst [vmem:[#allocation5 + $0x2e0] sm:$0xff] %v1439
    %1769 = vst [vmem:[#allocation5 + $0x2e8] sm:$0xff] %v1441
    %1770 = vst [vmem:[#allocation5 + $0x2f0] sm:$0xff] %v1632
    %1771 = vst [vmem:[#allocation5 + $0x2f8] sm:$0xff] %v1634
    %1772 = vst [vmem:[#allocation5 + $0x300] sm:$0xff] %v1445
    %1773 = vst [vmem:[#allocation5 + $0x308] sm:$0xff] %v1447
    %1774 = vst [vmem:[#allocation5 + $0x310] sm:$0xff] %v1638
    %1775 = vst [vmem:[#allocation5 + $0x318] sm:$0xff] %v1640
    %1776 = vst [vmem:[#allocation5 + $0x320] sm:$0xff] %v1449
    %1777 = vst [vmem:[#allocation5 + $0x328] sm:$0xff] %v1451
    %1778 = vst [vmem:[#allocation5 + $0x330] sm:$0xff] %v1642
    %1779 = vst [vmem:[#allocation5 + $0x338] sm:$0xff] %v1644
    %1780 = vst [vmem:[#allocation5 + $0x340] sm:$0xff] %v1455
    %1781 = vst [vmem:[#allocation5 + $0x348] sm:$0xff] %v1457
    %1782 = vst [vmem:[#allocation5 + $0x350] sm:$0xff] %v1648
    %1783 = vst [vmem:[#allocation5 + $0x358] sm:$0xff] %v1650
    %1784 = vst [vmem:[#allocation5 + $0x360] sm:$0xff] %v1459
    %1785 = vst [vmem:[#allocation5 + $0x368] sm:$0xff] %v1461
    %1786 = vst [vmem:[#allocation5 + $0x370] sm:$0xff] %v1652
    %1787 = vst [vmem:[#allocation5 + $0x378] sm:$0xff] %v1654
    %1788 = vst [vmem:[#allocation5 + $0x380] sm:$0xff] %v1465
    %1789 = vst [vmem:[#allocation5 + $0x388] sm:$0xff] %v1467
    %1790 = vst [vmem:[#allocation5 + $0x390] sm:$0xff] %v1658
    %1791 = vst [vmem:[#allocation5 + $0x398] sm:$0xff] %v1660
    %1792 = vst [vmem:[#allocation5 + $0x3a0] sm:$0xff] %v1469
    %1793 = vst [vmem:[#allocation5 + $0x3a8] sm:$0xff] %v1471
    %1794 = vst [vmem:[#allocation5 + $0x3b0] sm:$0xff] %v1662
    %1795 = vst [vmem:[#allocation5 + $0x3b8] sm:$0xff] %v1664
    %1796 = vst [vmem:[#allocation5 + $0x3c0] sm:$0xff] %v1475
    %1797 = vst [vmem:[#allocation5 + $0x3c8] sm:$0xff] %v1477
    %1798 = vst [vmem:[#allocation5 + $0x3d0] sm:$0xff] %v1668
    %1799 = vst [vmem:[#allocation5 + $0x3d8] sm:$0xff] %v1670
    %1800 = vst [vmem:[#allocation5 + $0x3e0] sm:$0xff] %v1479
    %1801 = vst [vmem:[#allocation5 + $0x3e8] sm:$0xff] %v1481
    %1802 = vst [vmem:[#allocation5 + $0x3f0] sm:$0xff] %v1672
    %1803 = vst [vmem:[#allocation5 + $0x3f8] sm:$0xff] %v1674
    loop: start=0, step=1, limit=32
    $region130: #{net_forward.1} parent=1 // loop_pre_header
      _
    $region131: #{net_forward.1} parent=1 // loop_header
      %s1805 = sphi 0, %s1809
      %p1806 = scmp.ge.s32.totalorder %s1805, 32
      %v1810 = vphi 0.0, %v2416
      %v1811 = vphi 0.0, %v2414
      %v1812 = vphi 0.0, %v2440
      %v1813 = vphi 0.0, %v2438
    $region132: #{net_forward.1} parent=1 // loop_header_branch
      %1808 = sbr.rel (%p1806) target = $region136
    $region133: #{net_forward.1} parent=1 // loop_body
      %s1814 = smul.u32 %s1805, 8
      %s1815 = ssub.s32 31, %s1805
      %s1816 = smul.u32 %s1815, 8
      %s1817 = sshra.s32 %s1814, 3
      %s1818 = sand.u32 %s1814, 7
      %s1819 = smul.u32 %s1817, 4
      %s1820 = smul.addr %s1819, 8
      %s1821 = scalar_lea.vmem [#allocation4], %s1820
      %v1822 = vld [vmem:[%s1821] sm:$0xff]
      %v1823 = vld [vmem:[%s1821 + $0x8] sm:$0xff]
      %v1824 = vld [vmem:[%s1821 + $0x10] sm:$0xff]
      %v1825 = vld [vmem:[%s1821 + $0x18] sm:$0xff]
      %v1826 = vpack.c.bf16 %v1810, %v1810
      %v1827 = vld [vmem:[#allocation8] sm:$0xff]
      %v1828 = vld [vmem:[#allocation8 + $0x8] sm:$0xff]
      %v1829 = vld [vmem:[#allocation8 + $0x10] sm:$0xff]
      %v1830 = vld [vmem:[#allocation8 + $0x18] sm:$0xff]
      %v1831 = vld [vmem:[#allocation8 + $0x20] sm:$0xff]
      %v1832 = vld [vmem:[#allocation8 + $0x28] sm:$0xff]
      %v1833 = vld [vmem:[#allocation8 + $0x30] sm:$0xff]
      %v1834 = vld [vmem:[#allocation8 + $0x38] sm:$0xff]
      %v1835 = vld [vmem:[#allocation8 + $0x40] sm:$0xff]
      %v1836 = vld [vmem:[#allocation8 + $0x48] sm:$0xff]
      %v1837 = vld [vmem:[#allocation8 + $0x50] sm:$0xff]
      %v1838 = vld [vmem:[#allocation8 + $0x58] sm:$0xff]
      %v1839 = vld [vmem:[#allocation8 + $0x60] sm:$0xff]
      %v1840 = vld [vmem:[#allocation8 + $0x68] sm:$0xff]
      %v1841 = vld [vmem:[#allocation8 + $0x70] sm:$0xff]
      %v1842 = vld [vmem:[#allocation8 + $0x78] sm:$0xff]
      %v1843 = vld [vmem:[#allocation8 + $0x80] sm:$0xff]
      %v1844 = vld [vmem:[#allocation8 + $0x88] sm:$0xff]
      %v1845 = vld [vmem:[#allocation8 + $0x90] sm:$0xff]
      %v1846 = vld [vmem:[#allocation8 + $0x98] sm:$0xff]
      %v1847 = vld [vmem:[#allocation8 + $0xa0] sm:$0xff]
      %v1848 = vld [vmem:[#allocation8 + $0xa8] sm:$0xff]
      %v1849 = vld [vmem:[#allocation8 + $0xb0] sm:$0xff]
      %v1850 = vld [vmem:[#allocation8 + $0xb8] sm:$0xff]
      %v1851 = vld [vmem:[#allocation8 + $0xc0] sm:$0xff]
      %v1852 = vld [vmem:[#allocation8 + $0xc8] sm:$0xff]
      %v1853 = vld [vmem:[#allocation8 + $0xd0] sm:$0xff]
      %v1854 = vld [vmem:[#allocation8 + $0xd8] sm:$0xff]
      %v1855 = vld [vmem:[#allocation8 + $0xe0] sm:$0xff]
      %v1856 = vld [vmem:[#allocation8 + $0xe8] sm:$0xff]
      %v1857 = vld [vmem:[#allocation8 + $0xf0] sm:$0xff]
      %v1858 = vld [vmem:[#allocation8 + $0xf8] sm:$0xff]
      %v1891 = vunpack.c.l.b16 %v1827
      %v1892 = vunpack.c.h.b16 %v1827
      %v1893 = vunpack.c.l.b16 %v1828
      %v1894 = vunpack.c.h.b16 %v1828
      %v1895 = vunpack.c.l.b16 %v1829
      %v1896 = vunpack.c.h.b16 %v1829
      %v1897 = vunpack.c.l.b16 %v1830
      %v1898 = vunpack.c.h.b16 %v1830
      %v1899 = vunpack.c.l.b16 %v1831
      %v1900 = vunpack.c.h.b16 %v1831
      %v1901 = vunpack.c.l.b16 %v1832
      %v1902 = vunpack.c.h.b16 %v1832
      %v1903 = vunpack.c.l.b16 %v1833
      %v1904 = vunpack.c.h.b16 %v1833
      %v1905 = vunpack.c.l.b16 %v1834
      %v1906 = vunpack.c.h.b16 %v1834
      %v1907 = vunpack.c.l.b16 %v1835
      %v1908 = vunpack.c.h.b16 %v1835
      %v1909 = vunpack.c.l.b16 %v1836
      %v1910 = vunpack.c.h.b16 %v1836
      %v1911 = vunpack.c.l.b16 %v1837
      %v1912 = vunpack.c.h.b16 %v1837
      %v1913 = vunpack.c.l.b16 %v1838
      %v1914 = vunpack.c.h.b16 %v1838
      %v1915 = vunpack.c.l.b16 %v1839
      %v1916 = vunpack.c.h.b16 %v1839
      %v1917 = vunpack.c.l.b16 %v1840
      %v1918 = vunpack.c.h.b16 %v1840
      %v1919 = vunpack.c.l.b16 %v1841
      %v1920 = vunpack.c.h.b16 %v1841
      %v1921 = vunpack.c.l.b16 %v1842
      %v1922 = vunpack.c.h.b16 %v1842
      %v1923 = vunpack.c.l.b16 %v1843
      %v1924 = vunpack.c.h.b16 %v1843
      %v1925 = vunpack.c.l.b16 %v1844
      %v1926 = vunpack.c.h.b16 %v1844
      %v1927 = vunpack.c.l.b16 %v1845
      %v1928 = vunpack.c.h.b16 %v1845
      %v1929 = vunpack.c.l.b16 %v1846
      %v1930 = vunpack.c.h.b16 %v1846
      %v1931 = vunpack.c.l.b16 %v1847
      %v1932 = vunpack.c.h.b16 %v1847
      %v1933 = vunpack.c.l.b16 %v1848
      %v1934 = vunpack.c.h.b16 %v1848
      %v1935 = vunpack.c.l.b16 %v1849
      %v1936 = vunpack.c.h.b16 %v1849
      %v1937 = vunpack.c.l.b16 %v1850
      %v1938 = vunpack.c.h.b16 %v1850
      %v1939 = vunpack.c.l.b16 %v1851
      %v1940 = vunpack.c.h.b16 %v1851
      %v1941 = vunpack.c.l.b16 %v1852
      %v1942 = vunpack.c.h.b16 %v1852
      %v1943 = vunpack.c.l.b16 %v1853
      %v1944 = vunpack.c.h.b16 %v1853
      %v1945 = vunpack.c.l.b16 %v1854
      %v1946 = vunpack.c.h.b16 %v1854
      %v1947 = vunpack.c.l.b16 %v1855
      %v1948 = vunpack.c.h.b16 %v1855
      %v1949 = vunpack.c.l.b16 %v1856
      %v1950 = vunpack.c.h.b16 %v1856
      %v1951 = vunpack.c.l.b16 %v1857
      %v1952 = vunpack.c.h.b16 %v1857
      %v1953 = vunpack.c.l.b16 %v1858
      %v1954 = vunpack.c.h.b16 %v1858
      %v1955 = vpack.c.b16 %v1895, %v1891
      %v1956 = vpack.c.b16 %v1896, %v1892
      %v1957 = vpack.c.b16 %v1897, %v1893
      %v1958 = vpack.c.b16 %v1898, %v1894
      %v1959 = vpack.c.b16 %v1903, %v1899
      %v1960 = vpack.c.b16 %v1904, %v1900
      %v1961 = vpack.c.b16 %v1905, %v1901
      %v1962 = vpack.c.b16 %v1906, %v1902
      %v1963 = vpack.c.b16 %v1911, %v1907
      %v1964 = vpack.c.b16 %v1912, %v1908
      %v1965 = vpack.c.b16 %v1913, %v1909
      %v1966 = vpack.c.b16 %v1914, %v1910
      %v1967 = vpack.c.b16 %v1919, %v1915
      %v1968 = vpack.c.b16 %v1920, %v1916
      %v1969 = vpack.c.b16 %v1921, %v1917
      %v1970 = vpack.c.b16 %v1922, %v1918
      %v1971 = vpack.c.b16 %v1927, %v1923
      %v1972 = vpack.c.b16 %v1928, %v1924
      %v1973 = vpack.c.b16 %v1929, %v1925
      %v1974 = vpack.c.b16 %v1930, %v1926
      %v1975 = vpack.c.b16 %v1935, %v1931
      %v1976 = vpack.c.b16 %v1936, %v1932
      %v1977 = vpack.c.b16 %v1937, %v1933
      %v1978 = vpack.c.b16 %v1938, %v1934
      %v1979 = vpack.c.b16 %v1943, %v1939
      %v1980 = vpack.c.b16 %v1944, %v1940
      %v1981 = vpack.c.b16 %v1945, %v1941
      %v1982 = vpack.c.b16 %v1946, %v1942
      %v1983 = vpack.c.b16 %v1951, %v1947
      %v1984 = vpack.c.b16 %v1952, %v1948
      %v1985 = vpack.c.b16 %v1953, %v1949
      %v1986 = vpack.c.b16 %v1954, %v1950
      %2019 = vmatprep.subr.bf16.mxu0 %v1956
      %2020 = vmatpush1.bf16.msra.mxu0 %v1955
      %2021 = vmatprep.subr.bf16.mxu0 %v1960
      %2022 = vmatpush1.bf16.msra.mxu0 %v1959
      %2023 = vmatprep.subr.bf16.mxu0 %v1964
      %2024 = vmatpush1.bf16.msra.mxu0 %v1963
      %2025 = vmatprep.subr.bf16.mxu0 %v1968
      %2026 = vmatpush1.bf16.msra.mxu0 %v1967
      %2027 = vmatprep.subr.bf16.mxu0 %v1972
      %2028 = vmatpush1.bf16.msra.mxu0 %v1971
      %2029 = vmatprep.subr.bf16.mxu0 %v1976
      %2030 = vmatpush1.bf16.msra.mxu0 %v1975
      %2031 = vmatprep.subr.bf16.mxu0 %v1980
      %2032 = vmatpush1.bf16.msra.mxu0 %v1979
      %2033 = vmatprep.subr.bf16.mxu0 %v1984
      %2034 = vmatpush1.bf16.msra.mxu0 %v1983
      %2035 = vmatprep.subr.bf16.mxu0 0
      %2036 = vmatpush1.bf16.msra.mxu0 0
      %2037 = vmatprep.subr.bf16.mxu0 0
      %2038 = vmatpush1.bf16.msra.mxu0 0
      %2039 = vmatprep.subr.bf16.mxu0 0
      %2040 = vmatpush1.bf16.msra.mxu0 0
      %2041 = vmatprep.subr.bf16.mxu0 0
      %2042 = vmatpush1.bf16.msra.mxu0 0
      %2043 = vmatprep.subr.bf16.mxu0 0
      %2044 = vmatpush1.bf16.msra.mxu0 0
      %2045 = vmatprep.subr.bf16.mxu0 0
      %2046 = vmatpush1.bf16.msra.mxu0 0
      %2047 = vmatprep.subr.bf16.mxu0 0
      %2048 = vmatpush1.bf16.msra.mxu0 0
      %2049 = vmatprep.subr.bf16.mxu0 0
      %2050 = vmatpush1.bf16.msra.mxu0 0
      %2051 = vmatprep.mubr.bf16.mxu0 0
      %2052 = vmatmul.mubr.bf16.gmra.mrb[0].mxu0 %v1826
      %v2053 = vpop.f32.mrb[0].mxu0
      %v2054 = vadd.f32 0.0, %v2053
      %v2055 = vpop.f32.mrb[0].mxu0
      %v2056 = vadd.f32 0.0, %v2055
      %v2057 = vpop.f32.mrb[0].mxu0
      %v2058 = vpop.f32.mrb[0].mxu0
      %2059 = vdwg.mxu0
      %2060 = vmatprep.subr.bf16.mxu0 %v1958
      %2061 = vmatpush1.bf16.msra.mxu0 %v1957
      %2062 = vmatprep.subr.bf16.mxu0 %v1962
      %2063 = vmatpush1.bf16.msra.mxu0 %v1961
      %2064 = vmatprep.subr.bf16.mxu0 %v1966
      %2065 = vmatpush1.bf16.msra.mxu0 %v1965
      %2066 = vmatprep.subr.bf16.mxu0 %v1970
      %2067 = vmatpush1.bf16.msra.mxu0 %v1969
      %2068 = vmatprep.subr.bf16.mxu0 %v1974
      %2069 = vmatpush1.bf16.msra.mxu0 %v1973
      %2070 = vmatprep.subr.bf16.mxu0 %v1978
      %2071 = vmatpush1.bf16.msra.mxu0 %v1977
      %2072 = vmatprep.subr.bf16.mxu0 %v1982
      %2073 = vmatpush1.bf16.msra.mxu0 %v1981
      %2074 = vmatprep.subr.bf16.mxu0 %v1986
      %2075 = vmatpush1.bf16.msra.mxu0 %v1985
      %2076 = vmatprep.subr.bf16.mxu0 0
      %2077 = vmatpush1.bf16.msra.mxu0 0
      %2078 = vmatprep.subr.bf16.mxu0 0
      %2079 = vmatpush1.bf16.msra.mxu0 0
      %2080 = vmatprep.subr.bf16.mxu0 0
      %2081 = vmatpush1.bf16.msra.mxu0 0
      %2082 = vmatprep.subr.bf16.mxu0 0
      %2083 = vmatpush1.bf16.msra.mxu0 0
      %2084 = vmatprep.subr.bf16.mxu0 0
      %2085 = vmatpush1.bf16.msra.mxu0 0
      %2086 = vmatprep.subr.bf16.mxu0 0
      %2087 = vmatpush1.bf16.msra.mxu0 0
      %2088 = vmatprep.subr.bf16.mxu0 0
      %2089 = vmatpush1.bf16.msra.mxu0 0
      %2090 = vmatprep.subr.bf16.mxu0 0
      %2091 = vmatpush1.bf16.msra.mxu0 0
      %2092 = vmatprep.mubr.bf16.mxu0 0
      %2093 = vmatmul.mubr.bf16.gmra.mrb[0].mxu0 %v1826
      %v2094 = vpop.f32.mrb[0].mxu0
      %v2095 = vadd.f32 0.0, %v2094
      %v2096 = vpop.f32.mrb[0].mxu0
      %v2097 = vadd.f32 0.0, %v2096
      %v2098 = vpop.f32.mrb[0].mxu0
      %v2099 = vpop.f32.mrb[0].mxu0
      %2100 = vdwg.mxu0
      %v2101 = vadd.f32 %v1822, %v2054
      %v2102 = vadd.f32 %v1823, %v2056
      %v2103 = vadd.f32 %v1824, %v2095
      %v2104 = vadd.f32 %v1825, %v2097
      %s2105 = sshra.s32 %s1816, 3
      %s2106 = sand.u32 %s1816, 7
      %s2107 = smul.u32 %s2105, 4
      %s2108 = smul.addr %s2107, 8
      %s2109 = scalar_lea.vmem [#allocation5], %s2108
      %v2110 = vld [vmem:[%s2109] sm:$0xff]
      %v2111 = vld [vmem:[%s2109 + $0x8] sm:$0xff]
      %v2112 = vld [vmem:[%s2109 + $0x10] sm:$0xff]
      %v2113 = vld [vmem:[%s2109 + $0x18] sm:$0xff]
      %v2114 = vpack.c.bf16 %v1812, %v1812
      %v2115 = vld [vmem:[#allocation11] sm:$0xff]
      %v2116 = vld [vmem:[#allocation11 + $0x8] sm:$0xff]
      %v2117 = vld [vmem:[#allocation11 + $0x10] sm:$0xff]
      %v2118 = vld [vmem:[#allocation11 + $0x18] sm:$0xff]
      %v2119 = vld [vmem:[#allocation11 + $0x20] sm:$0xff]
      %v2120 = vld [vmem:[#allocation11 + $0x28] sm:$0xff]
      %v2121 = vld [vmem:[#allocation11 + $0x30] sm:$0xff]
      %v2122 = vld [vmem:[#allocation11 + $0x38] sm:$0xff]
      %v2123 = vld [vmem:[#allocation11 + $0x40] sm:$0xff]
      %v2124 = vld [vmem:[#allocation11 + $0x48] sm:$0xff]
      %v2125 = vld [vmem:[#allocation11 + $0x50] sm:$0xff]
      %v2126 = vld [vmem:[#allocation11 + $0x58] sm:$0xff]
      %v2127 = vld [vmem:[#allocation11 + $0x60] sm:$0xff]
      %v2128 = vld [vmem:[#allocation11 + $0x68] sm:$0xff]
      %v2129 = vld [vmem:[#allocation11 + $0x70] sm:$0xff]
      %v2130 = vld [vmem:[#allocation11 + $0x78] sm:$0xff]
      %v2131 = vld [vmem:[#allocation11 + $0x80] sm:$0xff]
      %v2132 = vld [vmem:[#allocation11 + $0x88] sm:$0xff]
      %v2133 = vld [vmem:[#allocation11 + $0x90] sm:$0xff]
      %v2134 = vld [vmem:[#allocation11 + $0x98] sm:$0xff]
      %v2135 = vld [vmem:[#allocation11 + $0xa0] sm:$0xff]
      %v2136 = vld [vmem:[#allocation11 + $0xa8] sm:$0xff]
      %v2137 = vld [vmem:[#allocation11 + $0xb0] sm:$0xff]
      %v2138 = vld [vmem:[#allocation11 + $0xb8] sm:$0xff]
      %v2139 = vld [vmem:[#allocation11 + $0xc0] sm:$0xff]
      %v2140 = vld [vmem:[#allocation11 + $0xc8] sm:$0xff]
      %v2141 = vld [vmem:[#allocation11 + $0xd0] sm:$0xff]
      %v2142 = vld [vmem:[#allocation11 + $0xd8] sm:$0xff]
      %v2143 = vld [vmem:[#allocation11 + $0xe0] sm:$0xff]
      %v2144 = vld [vmem:[#allocation11 + $0xe8] sm:$0xff]
      %v2145 = vld [vmem:[#allocation11 + $0xf0] sm:$0xff]
      %v2146 = vld [vmem:[#allocation11 + $0xf8] sm:$0xff]
      %v2179 = vunpack.c.l.b16 %v2115
      %v2180 = vunpack.c.h.b16 %v2115
      %v2181 = vunpack.c.l.b16 %v2116
      %v2182 = vunpack.c.h.b16 %v2116
      %v2183 = vunpack.c.l.b16 %v2117
      %v2184 = vunpack.c.h.b16 %v2117
      %v2185 = vunpack.c.l.b16 %v2118
      %v2186 = vunpack.c.h.b16 %v2118
      %v2187 = vunpack.c.l.b16 %v2119
      %v2188 = vunpack.c.h.b16 %v2119
      %v2189 = vunpack.c.l.b16 %v2120
      %v2190 = vunpack.c.h.b16 %v2120
      %v2191 = vunpack.c.l.b16 %v2121
      %v2192 = vunpack.c.h.b16 %v2121
      %v2193 = vunpack.c.l.b16 %v2122
      %v2194 = vunpack.c.h.b16 %v2122
      %v2195 = vunpack.c.l.b16 %v2123
      %v2196 = vunpack.c.h.b16 %v2123
      %v2197 = vunpack.c.l.b16 %v2124
      %v2198 = vunpack.c.h.b16 %v2124
      %v2199 = vunpack.c.l.b16 %v2125
      %v2200 = vunpack.c.h.b16 %v2125
      %v2201 = vunpack.c.l.b16 %v2126
      %v2202 = vunpack.c.h.b16 %v2126
      %v2203 = vunpack.c.l.b16 %v2127
      %v2204 = vunpack.c.h.b16 %v2127
      %v2205 = vunpack.c.l.b16 %v2128
      %v2206 = vunpack.c.h.b16 %v2128
      %v2207 = vunpack.c.l.b16 %v2129
      %v2208 = vunpack.c.h.b16 %v2129
      %v2209 = vunpack.c.l.b16 %v2130
      %v2210 = vunpack.c.h.b16 %v2130
      %v2211 = vunpack.c.l.b16 %v2131
      %v2212 = vunpack.c.h.b16 %v2131
      %v2213 = vunpack.c.l.b16 %v2132
      %v2214 = vunpack.c.h.b16 %v2132
      %v2215 = vunpack.c.l.b16 %v2133
      %v2216 = vunpack.c.h.b16 %v2133
      %v2217 = vunpack.c.l.b16 %v2134
      %v2218 = vunpack.c.h.b16 %v2134
      %v2219 = vunpack.c.l.b16 %v2135
      %v2220 = vunpack.c.h.b16 %v2135
      %v2221 = vunpack.c.l.b16 %v2136
      %v2222 = vunpack.c.h.b16 %v2136
      %v2223 = vunpack.c.l.b16 %v2137
      %v2224 = vunpack.c.h.b16 %v2137
      %v2225 = vunpack.c.l.b16 %v2138
      %v2226 = vunpack.c.h.b16 %v2138
      %v2227 = vunpack.c.l.b16 %v2139
      %v2228 = vunpack.c.h.b16 %v2139
      %v2229 = vunpack.c.l.b16 %v2140
      %v2230 = vunpack.c.h.b16 %v2140
      %v2231 = vunpack.c.l.b16 %v2141
      %v2232 = vunpack.c.h.b16 %v2141
      %v2233 = vunpack.c.l.b16 %v2142
      %v2234 = vunpack.c.h.b16 %v2142
      %v2235 = vunpack.c.l.b16 %v2143
      %v2236 = vunpack.c.h.b16 %v2143
      %v2237 = vunpack.c.l.b16 %v2144
      %v2238 = vunpack.c.h.b16 %v2144
      %v2239 = vunpack.c.l.b16 %v2145
      %v2240 = vunpack.c.h.b16 %v2145
      %v2241 = vunpack.c.l.b16 %v2146
      %v2242 = vunpack.c.h.b16 %v2146
      %v2243 = vpack.c.b16 %v2183, %v2179
      %v2244 = vpack.c.b16 %v2184, %v2180
      %v2245 = vpack.c.b16 %v2185, %v2181
      %v2246 = vpack.c.b16 %v2186, %v2182
      %v2247 = vpack.c.b16 %v2191, %v2187
      %v2248 = vpack.c.b16 %v2192, %v2188
      %v2249 = vpack.c.b16 %v2193, %v2189
      %v2250 = vpack.c.b16 %v2194, %v2190
      %v2251 = vpack.c.b16 %v2199, %v2195
      %v2252 = vpack.c.b16 %v2200, %v2196
      %v2253 = vpack.c.b16 %v2201, %v2197
      %v2254 = vpack.c.b16 %v2202, %v2198
      %v2255 = vpack.c.b16 %v2207, %v2203
      %v2256 = vpack.c.b16 %v2208, %v2204
      %v2257 = vpack.c.b16 %v2209, %v2205
      %v2258 = vpack.c.b16 %v2210, %v2206
      %v2259 = vpack.c.b16 %v2215, %v2211
      %v2260 = vpack.c.b16 %v2216, %v2212
      %v2261 = vpack.c.b16 %v2217, %v2213
      %v2262 = vpack.c.b16 %v2218, %v2214
      %v2263 = vpack.c.b16 %v2223, %v2219
      %v2264 = vpack.c.b16 %v2224, %v2220
      %v2265 = vpack.c.b16 %v2225, %v2221
      %v2266 = vpack.c.b16 %v2226, %v2222
      %v2267 = vpack.c.b16 %v2231, %v2227
      %v2268 = vpack.c.b16 %v2232, %v2228
      %v2269 = vpack.c.b16 %v2233, %v2229
      %v2270 = vpack.c.b16 %v2234, %v2230
      %v2271 = vpack.c.b16 %v2239, %v2235
      %v2272 = vpack.c.b16 %v2240, %v2236
      %v2273 = vpack.c.b16 %v2241, %v2237
      %v2274 = vpack.c.b16 %v2242, %v2238
      %2307 = vmatprep.subr.bf16.mxu0 %v2244
      %2308 = vmatpush1.bf16.msra.mxu0 %v2243
      %2309 = vmatprep.subr.bf16.mxu0 %v2248
      %2310 = vmatpush1.bf16.msra.mxu0 %v2247
      %2311 = vmatprep.subr.bf16.mxu0 %v2252
      %2312 = vmatpush1.bf16.msra.mxu0 %v2251
      %2313 = vmatprep.subr.bf16.mxu0 %v2256
      %2314 = vmatpush1.bf16.msra.mxu0 %v2255
      %2315 = vmatprep.subr.bf16.mxu0 %v2260
      %2316 = vmatpush1.bf16.msra.mxu0 %v2259
      %2317 = vmatprep.subr.bf16.mxu0 %v2264
      %2318 = vmatpush1.bf16.msra.mxu0 %v2263
      %2319 = vmatprep.subr.bf16.mxu0 %v2268
      %2320 = vmatpush1.bf16.msra.mxu0 %v2267
      %2321 = vmatprep.subr.bf16.mxu0 %v2272
      %2322 = vmatpush1.bf16.msra.mxu0 %v2271
      %2323 = vmatprep.subr.bf16.mxu0 0
      %2324 = vmatpush1.bf16.msra.mxu0 0
      %2325 = vmatprep.subr.bf16.mxu0 0
      %2326 = vmatpush1.bf16.msra.mxu0 0
      %2327 = vmatprep.subr.bf16.mxu0 0
      %2328 = vmatpush1.bf16.msra.mxu0 0
      %2329 = vmatprep.subr.bf16.mxu0 0
      %2330 = vmatpush1.bf16.msra.mxu0 0
      %2331 = vmatprep.subr.bf16.mxu0 0
      %2332 = vmatpush1.bf16.msra.mxu0 0
      %2333 = vmatprep.subr.bf16.mxu0 0
      %2334 = vmatpush1.bf16.msra.mxu0 0
      %2335 = vmatprep.subr.bf16.mxu0 0
      %2336 = vmatpush1.bf16.msra.mxu0 0
      %2337 = vmatprep.subr.bf16.mxu0 0
      %2338 = vmatpush1.bf16.msra.mxu0 0
      %2339 = vmatprep.mubr.bf16.mxu0 0
      %2340 = vmatmul.mubr.bf16.gmra.mrb[0].mxu0 %v2114
      %v2341 = vpop.f32.mrb[0].mxu0
      %v2342 = vadd.f32 0.0, %v2341
      %v2343 = vpop.f32.mrb[0].mxu0
      %v2344 = vadd.f32 0.0, %v2343
      %v2345 = vpop.f32.mrb[0].mxu0
      %v2346 = vpop.f32.mrb[0].mxu0
      %2347 = vdwg.mxu0
      %2348 = vmatprep.subr.bf16.mxu0 %v2246
      %2349 = vmatpush1.bf16.msra.mxu0 %v2245
      %2350 = vmatprep.subr.bf16.mxu0 %v2250
      %2351 = vmatpush1.bf16.msra.mxu0 %v2249
      %2352 = vmatprep.subr.bf16.mxu0 %v2254
      %2353 = vmatpush1.bf16.msra.mxu0 %v2253
      %2354 = vmatprep.subr.bf16.mxu0 %v2258
      %2355 = vmatpush1.bf16.msra.mxu0 %v2257
      %2356 = vmatprep.subr.bf16.mxu0 %v2262
      %2357 = vmatpush1.bf16.msra.mxu0 %v2261
      %2358 = vmatprep.subr.bf16.mxu0 %v2266
      %2359 = vmatpush1.bf16.msra.mxu0 %v2265
      %2360 = vmatprep.subr.bf16.mxu0 %v2270
      %2361 = vmatpush1.bf16.msra.mxu0 %v2269
      %2362 = vmatprep.subr.bf16.mxu0 %v2274
      %2363 = vmatpush1.bf16.msra.mxu0 %v2273
      %2364 = vmatprep.subr.bf16.mxu0 0
      %2365 = vmatpush1.bf16.msra.mxu0 0
      %2366 = vmatprep.subr.bf16.mxu0 0
      %2367 = vmatpush1.bf16.msra.mxu0 0
      %2368 = vmatprep.subr.bf16.mxu0 0
      %2369 = vmatpush1.bf16.msra.mxu0 0
      %2370 = vmatprep.subr.bf16.mxu0 0
      %2371 = vmatpush1.bf16.msra.mxu0 0
      %2372 = vmatprep.subr.bf16.mxu0 0
      %2373 = vmatpush1.bf16.msra.mxu0 0
      %2374 = vmatprep.subr.bf16.mxu0 0
      %2375 = vmatpush1.bf16.msra.mxu0 0
      %2376 = vmatprep.subr.bf16.mxu0 0
      %2377 = vmatpush1.bf16.msra.mxu0 0
      %2378 = vmatprep.subr.bf16.mxu0 0
      %2379 = vmatpush1.bf16.msra.mxu0 0
      %2380 = vmatprep.mubr.bf16.mxu0 0
      %2381 = vmatmul.mubr.bf16.gmra.mrb[0].mxu0 %v2114
      %v2382 = vpop.f32.mrb[0].mxu0
      %v2383 = vadd.f32 0.0, %v2382
      %v2384 = vpop.f32.mrb[0].mxu0
      %v2385 = vadd.f32 0.0, %v2384
      %v2386 = vpop.f32.mrb[0].mxu0
      %v2387 = vpop.f32.mrb[0].mxu0
      %2388 = vdwg.mxu0
      %v2389 = vadd.f32 %v2110, %v2342
      %v2390 = vadd.f32 %v2111, %v2344
      %v2391 = vadd.f32 %v2112, %v2383
      %v2392 = vadd.f32 %v2113, %v2385
      %v2393 = vxor.u32 %v2101, 2147483648
      %v2394 = vmul.f32 %v2393, 1.442695
      %v2395 = vpow.pop %v2394
      %v2396 = vadd.f32 %v2395, 1.0
      %v2397 = vrcp.pop %v2396
      %v2398 = vmul.f32 1.0, %v2397
      %v2399 = vxor.u32 %v2102, 2147483648
      %v2400 = vmul.f32 %v2399, 1.442695
      %v2401 = vpow.pop %v2400
      %v2402 = vadd.f32 %v2401, 1.0
      %v2403 = vrcp.pop %v2402
      %v2404 = vmul.f32 1.0, %v2403
      %v2405 = vtanh.pop %v2103
      %v2406 = vxor.u32 %v2104, 2147483648
      %v2407 = vmul.f32 %v2406, 1.442695
      %v2408 = vpow.pop %v2407
      %v2409 = vadd.f32 %v2408, 1.0
      %v2410 = vrcp.pop %v2409
      %v2411 = vmul.f32 1.0, %v2410
      %v2412 = vmul.f32 %v2404, %v1811
      %v2413 = vmul.f32 %v2398, %v2405
      %v2414 = vadd.f32 %v2412, %v2413
      %v2415 = vtanh.pop %v2414
      %v2416 = vmul.f32 %v2411, %v2415
      %v2417 = vxor.u32 %v2389, 2147483648
      %v2418 = vmul.f32 %v2417, 1.442695
      %v2419 = vpow.pop %v2418
      %v2420 = vadd.f32 %v2419, 1.0
      %v2421 = vrcp.pop %v2420
      %v2422 = vmul.f32 1.0, %v2421
      %v2423 = vxor.u32 %v2390, 2147483648
      %v2424 = vmul.f32 %v2423, 1.442695
      %v2425 = vpow.pop %v2424
      %v2426 = vadd.f32 %v2425, 1.0
      %v2427 = vrcp.pop %v2426
      %v2428 = vmul.f32 1.0, %v2427
      %v2429 = vtanh.pop %v2391
      %v2430 = vxor.u32 %v2392, 2147483648
      %v2431 = vmul.f32 %v2430, 1.442695
      %v2432 = vpow.pop %v2431
      %v2433 = vadd.f32 %v2432, 1.0
      %v2434 = vrcp.pop %v2433
      %v2435 = vmul.f32 1.0, %v2434
      %v2436 = vmul.f32 %v2428, %v1813
      %v2437 = vmul.f32 %v2422, %v2429
      %v2438 = vadd.f32 %v2436, %v2437
      %v2439 = vtanh.pop %v2438
      %v2440 = vmul.f32 %v2435, %v2439
      %s2441 = smul.u32 %s1817, 2
      %s2442 = smul.addr %s2441, 8
      %s2443 = scalar_lea.vmem [#allocation2], %s2442
      %2444 = vst [vmem:[%s2443] sm:$0xff] %v2416
      %s2445 = smul.u32 %s2105, 2
      %s2446 = smul.addr %s2445, 8
      %s2447 = scalar_lea.vmem [#allocation2], %s2446
      %2448 = vst [vmem:[%s2447 + $0x8] sm:$0xff] %v2440
    $region134: #{net_forward.1} parent=1 // loop_footer
      %s1809 = sadd.s32 1, %s1805
    $region135: #{net_forward.1} parent=1 // loop_footer_branch
      %1804 = sbr.rel target = $region131
    $region136: #{net_forward.1} parent=1 // loop_exit
      _
    %v2449 = vld [vmem:[#allocation2] sm:$0xff]
    %v2450 = vld [vmem:[#allocation2 + $0x8] sm:$0xff]
    %v2451 = vld [vmem:[#allocation2 + $0x10] sm:$0xff]
    %v2452 = vld [vmem:[#allocation2 + $0x18] sm:$0xff]
    %v2453 = vld [vmem:[#allocation2 + $0x20] sm:$0xff]
    %v2454 = vld [vmem:[#allocation2 + $0x28] sm:$0xff]
    %v2455 = vld [vmem:[#allocation2 + $0x30] sm:$0xff]
    %v2456 = vld [vmem:[#allocation2 + $0x38] sm:$0xff]
    %v2457 = vld [vmem:[#allocation2 + $0x40] sm:$0xff]
    %v2458 = vld [vmem:[#allocation2 + $0x48] sm:$0xff]
    %v2459 = vld [vmem:[#allocation2 + $0x50] sm:$0xff]
    %v2460 = vld [vmem:[#allocation2 + $0x58] sm:$0xff]
    %v2461 = vld [vmem:[#allocation2 + $0x60] sm:$0xff]
    %v2462 = vld [vmem:[#allocation2 + $0x68] sm:$0xff]
    %v2463 = vld [vmem:[#allocation2 + $0x70] sm:$0xff]
    %v2464 = vld [vmem:[#allocation2 + $0x78] sm:$0xff]
    %v2465 = vld [vmem:[#allocation2 + $0x80] sm:$0xff]
    %v2466 = vld [vmem:[#allocation2 + $0x88] sm:$0xff]
    %v2467 = vld [vmem:[#allocation2 + $0x90] sm:$0xff]
    %v2468 = vld [vmem:[#allocation2 + $0x98] sm:$0xff]
    %v2469 = vld [vmem:[#allocation2 + $0xa0] sm:$0xff]
    %v2470 = vld [vmem:[#allocation2 + $0xa8] sm:$0xff]
    %v2471 = vld [vmem:[#allocation2 + $0xb0] sm:$0xff]
    %v2472 = vld [vmem:[#allocation2 + $0xb8] sm:$0xff]
    %v2473 = vld [vmem:[#allocation2 + $0xc0] sm:$0xff]
    %v2474 = vld [vmem:[#allocation2 + $0xc8] sm:$0xff]
    %v2475 = vld [vmem:[#allocation2 + $0xd0] sm:$0xff]
    %v2476 = vld [vmem:[#allocation2 + $0xd8] sm:$0xff]
    %v2477 = vld [vmem:[#allocation2 + $0xe0] sm:$0xff]
    %v2478 = vld [vmem:[#allocation2 + $0xe8] sm:$0xff]
    %v2479 = vld [vmem:[#allocation2 + $0xf0] sm:$0xff]
    %v2480 = vld [vmem:[#allocation2 + $0xf8] sm:$0xff]
    %v2481 = vld [vmem:[#allocation2 + $0x100] sm:$0xff]
    %v2482 = vld [vmem:[#allocation2 + $0x108] sm:$0xff]
    %v2483 = vld [vmem:[#allocation2 + $0x110] sm:$0xff]
    %v2484 = vld [vmem:[#allocation2 + $0x118] sm:$0xff]
    %v2485 = vld [vmem:[#allocation2 + $0x120] sm:$0xff]
    %v2486 = vld [vmem:[#allocation2 + $0x128] sm:$0xff]
    %v2487 = vld [vmem:[#allocation2 + $0x130] sm:$0xff]
    %v2488 = vld [vmem:[#allocation2 + $0x138] sm:$0xff]
    %v2489 = vld [vmem:[#allocation2 + $0x140] sm:$0xff]
    %v2490 = vld [vmem:[#allocation2 + $0x148] sm:$0xff]
    %v2491 = vld [vmem:[#allocation2 + $0x150] sm:$0xff]
    %v2492 = vld [vmem:[#allocation2 + $0x158] sm:$0xff]
    %v2493 = vld [vmem:[#allocation2 + $0x160] sm:$0xff]
    %v2494 = vld [vmem:[#allocation2 + $0x168] sm:$0xff]
    %v2495 = vld [vmem:[#allocation2 + $0x170] sm:$0xff]
    %v2496 = vld [vmem:[#allocation2 + $0x178] sm:$0xff]
    %v2497 = vld [vmem:[#allocation2 + $0x180] sm:$0xff]
    %v2498 = vld [vmem:[#allocation2 + $0x188] sm:$0xff]
    %v2499 = vld [vmem:[#allocation2 + $0x190] sm:$0xff]
    %v2500 = vld [vmem:[#allocation2 + $0x198] sm:$0xff]
    %v2501 = vld [vmem:[#allocation2 + $0x1a0] sm:$0xff]
    %v2502 = vld [vmem:[#allocation2 + $0x1a8] sm:$0xff]
    %v2503 = vld [vmem:[#allocation2 + $0x1b0] sm:$0xff]
    %v2504 = vld [vmem:[#allocation2 + $0x1b8] sm:$0xff]
    %v2505 = vld [vmem:[#allocation2 + $0x1c0] sm:$0xff]
    %v2506 = vld [vmem:[#allocation2 + $0x1c8] sm:$0xff]
    %v2507 = vld [vmem:[#allocation2 + $0x1d0] sm:$0xff]
    %v2508 = vld [vmem:[#allocation2 + $0x1d8] sm:$0xff]
    %v2509 = vld [vmem:[#allocation2 + $0x1e0] sm:$0xff]
    %v2510 = vld [vmem:[#allocation2 + $0x1e8] sm:$0xff]
    %v2511 = vld [vmem:[#allocation2 + $0x1f0] sm:$0xff]
    %v2512 = vld [vmem:[#allocation2 + $0x1f8] sm:$0xff]
    %v2513 = vpack.c.bf16 %v2451, %v2449
    %v2514 = vpack.c.bf16 %v2452, %v2450
    %v2515 = vpack.c.bf16 %v2455, %v2453
    %v2516 = vpack.c.bf16 %v2456, %v2454
    %v2517 = vpack.c.bf16 %v2459, %v2457
    %v2518 = vpack.c.bf16 %v2460, %v2458
    %v2519 = vpack.c.bf16 %v2463, %v2461
    %v2520 = vpack.c.bf16 %v2464, %v2462
    %v2521 = vpack.c.bf16 %v2467, %v2465
    %v2522 = vpack.c.bf16 %v2468, %v2466
    %v2523 = vpack.c.bf16 %v2471, %v2469
    %v2524 = vpack.c.bf16 %v2472, %v2470
    %v2525 = vpack.c.bf16 %v2475, %v2473
    %v2526 = vpack.c.bf16 %v2476, %v2474
    %v2527 = vpack.c.bf16 %v2479, %v2477
    %v2528 = vpack.c.bf16 %v2480, %v2478
    %v2529 = vpack.c.bf16 %v2483, %v2481
    %v2530 = vpack.c.bf16 %v2484, %v2482
    %v2531 = vpack.c.bf16 %v2487, %v2485
    %v2532 = vpack.c.bf16 %v2488, %v2486
    %v2533 = vpack.c.bf16 %v2491, %v2489
    %v2534 = vpack.c.bf16 %v2492, %v2490
    %v2535 = vpack.c.bf16 %v2495, %v2493
    %v2536 = vpack.c.bf16 %v2496, %v2494
    %v2537 = vpack.c.bf16 %v2499, %v2497
    %v2538 = vpack.c.bf16 %v2500, %v2498
    %v2539 = vpack.c.bf16 %v2503, %v2501
    %v2540 = vpack.c.bf16 %v2504, %v2502
    %v2541 = vpack.c.bf16 %v2507, %v2505
    %v2542 = vpack.c.bf16 %v2508, %v2506
    %v2543 = vpack.c.bf16 %v2511, %v2509
    %v2544 = vpack.c.bf16 %v2512, %v2510
    %v2545 = vld [vmem:[%s7] sm:$0xff]
    %v2546 = vld [vmem:[%s7 + $0x8] sm:$0xff]
    %v2547 = vld [vmem:[%s7 + $0x10] sm:$0xff]
    %v2548 = vld [vmem:[%s7 + $0x18] sm:$0xff]
    %v2549 = vld [vmem:[%s7 + $0x20] sm:$0xff]
    %v2550 = vld [vmem:[%s7 + $0x28] sm:$0xff]
    %v2551 = vld [vmem:[%s7 + $0x30] sm:$0xff]
    %v2552 = vld [vmem:[%s7 + $0x38] sm:$0xff]
    %v2553 = vld [vmem:[%s7 + $0x40] sm:$0xff]
    %v2554 = vld [vmem:[%s7 + $0x48] sm:$0xff]
    %v2555 = vld [vmem:[%s7 + $0x50] sm:$0xff]
    %v2556 = vld [vmem:[%s7 + $0x58] sm:$0xff]
    %v2557 = vld [vmem:[%s7 + $0x60] sm:$0xff]
    %v2558 = vld [vmem:[%s7 + $0x68] sm:$0xff]
    %v2559 = vld [vmem:[%s7 + $0x70] sm:$0xff]
    %v2560 = vld [vmem:[%s7 + $0x78] sm:$0xff]
    %v2561 = vld [vmem:[%s7 + $0x80] sm:$0xff]
    %v2562 = vld [vmem:[%s7 + $0x88] sm:$0xff]
    %v2563 = vld [vmem:[%s7 + $0x90] sm:$0xff]
    %v2564 = vld [vmem:[%s7 + $0x98] sm:$0xff]
    %v2565 = vld [vmem:[%s7 + $0xa0] sm:$0xff]
    %v2566 = vld [vmem:[%s7 + $0xa8] sm:$0xff]
    %v2567 = vld [vmem:[%s7 + $0xb0] sm:$0xff]
    %v2568 = vld [vmem:[%s7 + $0xb8] sm:$0xff]
    %v2569 = vld [vmem:[%s7 + $0xc0] sm:$0xff]
    %v2570 = vld [vmem:[%s7 + $0xc8] sm:$0xff]
    %v2571 = vld [vmem:[%s7 + $0xd0] sm:$0xff]
    %v2572 = vld [vmem:[%s7 + $0xd8] sm:$0xff]
    %v2573 = vld [vmem:[%s7 + $0xe0] sm:$0xff]
    %v2574 = vld [vmem:[%s7 + $0xe8] sm:$0xff]
    %v2575 = vld [vmem:[%s7 + $0xf0] sm:$0xff]
    %v2576 = vld [vmem:[%s7 + $0xf8] sm:$0xff]
    %v2577 = vld [vmem:[%s7 + $0x100] sm:$0xff]
    %v2578 = vld [vmem:[%s7 + $0x108] sm:$0xff]
    %v2579 = vld [vmem:[%s7 + $0x110] sm:$0xff]
    %v2580 = vld [vmem:[%s7 + $0x118] sm:$0xff]
    %v2581 = vld [vmem:[%s7 + $0x120] sm:$0xff]
    %v2582 = vld [vmem:[%s7 + $0x128] sm:$0xff]
    %v2583 = vld [vmem:[%s7 + $0x130] sm:$0xff]
    %v2584 = vld [vmem:[%s7 + $0x138] sm:$0xff]
    %v2585 = vld [vmem:[%s7 + $0x140] sm:$0xff]
    %v2586 = vld [vmem:[%s7 + $0x148] sm:$0xff]
    %v2587 = vld [vmem:[%s7 + $0x150] sm:$0xff]
    %v2588 = vld [vmem:[%s7 + $0x158] sm:$0xff]
    %v2589 = vld [vmem:[%s7 + $0x160] sm:$0xff]
    %v2590 = vld [vmem:[%s7 + $0x168] sm:$0xff]
    %v2591 = vld [vmem:[%s7 + $0x170] sm:$0xff]
    %v2592 = vld [vmem:[%s7 + $0x178] sm:$0xff]
    %v2593 = vld [vmem:[%s7 + $0x180] sm:$0xff]
    %v2594 = vld [vmem:[%s7 + $0x188] sm:$0xff]
    %v2595 = vld [vmem:[%s7 + $0x190] sm:$0xff]
    %v2596 = vld [vmem:[%s7 + $0x198] sm:$0xff]
    %v2597 = vld [vmem:[%s7 + $0x1a0] sm:$0xff]
    %v2598 = vld [vmem:[%s7 + $0x1a8] sm:$0xff]
    %v2599 = vld [vmem:[%s7 + $0x1b0] sm:$0xff]
    %v2600 = vld [vmem:[%s7 + $0x1b8] sm:$0xff]
    %v2601 = vld [vmem:[%s7 + $0x1c0] sm:$0xff]
    %v2602 = vld [vmem:[%s7 + $0x1c8] sm:$0xff]
    %v2603 = vld [vmem:[%s7 + $0x1d0] sm:$0xff]
    %v2604 = vld [vmem:[%s7 + $0x1d8] sm:$0xff]
    %v2605 = vld [vmem:[%s7 + $0x1e0] sm:$0xff]
    %v2606 = vld [vmem:[%s7 + $0x1e8] sm:$0xff]
    %v2607 = vld [vmem:[%s7 + $0x1f0] sm:$0xff]
    %v2608 = vld [vmem:[%s7 + $0x1f8] sm:$0xff]
    %v2609 = vld [vmem:[%s9] sm:$0xf]
    %v2611 = vlaneseq
    %v2612 = vshrl.u32 %v2611, 7
    %v2613 = vsub.s32 0, %v2612
    %v2614 = vrot.slane %v2609, %v2613
    %v2615 = vlaneseq
    %v2616 = vshrl.u32 %v2615, 7
    %v2617 = vsub.s32 1, %v2616
    %v2618 = vrot.slane %v2609, %v2617
    %v2619 = vlaneseq
    %v2620 = vshrl.u32 %v2619, 7
    %v2621 = vsub.s32 2, %v2620
    %v2622 = vrot.slane %v2609, %v2621
    %v2623 = vlaneseq
    %v2624 = vshrl.u32 %v2623, 7
    %v2625 = vsub.s32 3, %v2624
    %v2626 = vrot.slane %v2609, %v2625
    %v2695 = vunpack.c.l.b16 %v2545
    %v2696 = vunpack.c.h.b16 %v2545
    %v2697 = vunpack.c.l.b16 %v2546
    %v2698 = vunpack.c.h.b16 %v2546
    %v2699 = vunpack.c.l.b16 %v2547
    %v2700 = vunpack.c.h.b16 %v2547
    %v2701 = vunpack.c.l.b16 %v2548
    %v2702 = vunpack.c.h.b16 %v2548
    %v2703 = vunpack.c.l.b16 %v2549
    %v2704 = vunpack.c.h.b16 %v2549
    %v2705 = vunpack.c.l.b16 %v2550
    %v2706 = vunpack.c.h.b16 %v2550
    %v2707 = vunpack.c.l.b16 %v2551
    %v2708 = vunpack.c.h.b16 %v2551
    %v2709 = vunpack.c.l.b16 %v2552
    %v2710 = vunpack.c.h.b16 %v2552
    %v2711 = vunpack.c.l.b16 %v2553
    %v2712 = vunpack.c.h.b16 %v2553
    %v2713 = vunpack.c.l.b16 %v2554
    %v2714 = vunpack.c.h.b16 %v2554
    %v2715 = vunpack.c.l.b16 %v2555
    %v2716 = vunpack.c.h.b16 %v2555
    %v2717 = vunpack.c.l.b16 %v2556
    %v2718 = vunpack.c.h.b16 %v2556
    %v2719 = vunpack.c.l.b16 %v2557
    %v2720 = vunpack.c.h.b16 %v2557
    %v2721 = vunpack.c.l.b16 %v2558
    %v2722 = vunpack.c.h.b16 %v2558
    %v2723 = vunpack.c.l.b16 %v2559
    %v2724 = vunpack.c.h.b16 %v2559
    %v2725 = vunpack.c.l.b16 %v2560
    %v2726 = vunpack.c.h.b16 %v2560
    %v2727 = vunpack.c.l.b16 %v2561
    %v2728 = vunpack.c.h.b16 %v2561
    %v2729 = vunpack.c.l.b16 %v2562
    %v2730 = vunpack.c.h.b16 %v2562
    %v2731 = vunpack.c.l.b16 %v2563
    %v2732 = vunpack.c.h.b16 %v2563
    %v2733 = vunpack.c.l.b16 %v2564
    %v2734 = vunpack.c.h.b16 %v2564
    %v2735 = vunpack.c.l.b16 %v2565
    %v2736 = vunpack.c.h.b16 %v2565
    %v2737 = vunpack.c.l.b16 %v2566
    %v2738 = vunpack.c.h.b16 %v2566
    %v2739 = vunpack.c.l.b16 %v2567
    %v2740 = vunpack.c.h.b16 %v2567
    %v2741 = vunpack.c.l.b16 %v2568
    %v2742 = vunpack.c.h.b16 %v2568
    %v2743 = vunpack.c.l.b16 %v2569
    %v2744 = vunpack.c.h.b16 %v2569
    %v2745 = vunpack.c.l.b16 %v2570
    %v2746 = vunpack.c.h.b16 %v2570
    %v2747 = vunpack.c.l.b16 %v2571
    %v2748 = vunpack.c.h.b16 %v2571
    %v2749 = vunpack.c.l.b16 %v2572
    %v2750 = vunpack.c.h.b16 %v2572
    %v2751 = vunpack.c.l.b16 %v2573
    %v2752 = vunpack.c.h.b16 %v2573
    %v2753 = vunpack.c.l.b16 %v2574
    %v2754 = vunpack.c.h.b16 %v2574
    %v2755 = vunpack.c.l.b16 %v2575
    %v2756 = vunpack.c.h.b16 %v2575
    %v2757 = vunpack.c.l.b16 %v2576
    %v2758 = vunpack.c.h.b16 %v2576
    %v2759 = vunpack.c.l.b16 %v2577
    %v2760 = vunpack.c.h.b16 %v2577
    %v2761 = vunpack.c.l.b16 %v2578
    %v2762 = vunpack.c.h.b16 %v2578
    %v2763 = vunpack.c.l.b16 %v2579
    %v2764 = vunpack.c.h.b16 %v2579
    %v2765 = vunpack.c.l.b16 %v2580
    %v2766 = vunpack.c.h.b16 %v2580
    %v2767 = vunpack.c.l.b16 %v2581
    %v2768 = vunpack.c.h.b16 %v2581
    %v2769 = vunpack.c.l.b16 %v2582
    %v2770 = vunpack.c.h.b16 %v2582
    %v2771 = vunpack.c.l.b16 %v2583
    %v2772 = vunpack.c.h.b16 %v2583
    %v2773 = vunpack.c.l.b16 %v2584
    %v2774 = vunpack.c.h.b16 %v2584
    %v2775 = vunpack.c.l.b16 %v2585
    %v2776 = vunpack.c.h.b16 %v2585
    %v2777 = vunpack.c.l.b16 %v2586
    %v2778 = vunpack.c.h.b16 %v2586
    %v2779 = vunpack.c.l.b16 %v2587
    %v2780 = vunpack.c.h.b16 %v2587
    %v2781 = vunpack.c.l.b16 %v2588
    %v2782 = vunpack.c.h.b16 %v2588
    %v2783 = vunpack.c.l.b16 %v2589
    %v2784 = vunpack.c.h.b16 %v2589
    %v2785 = vunpack.c.l.b16 %v2590
    %v2786 = vunpack.c.h.b16 %v2590
    %v2787 = vunpack.c.l.b16 %v2591
    %v2788 = vunpack.c.h.b16 %v2591
    %v2789 = vunpack.c.l.b16 %v2592
    %v2790 = vunpack.c.h.b16 %v2592
    %v2791 = vunpack.c.l.b16 %v2593
    %v2792 = vunpack.c.h.b16 %v2593
    %v2793 = vunpack.c.l.b16 %v2594
    %v2794 = vunpack.c.h.b16 %v2594
    %v2795 = vunpack.c.l.b16 %v2595
    %v2796 = vunpack.c.h.b16 %v2595
    %v2797 = vunpack.c.l.b16 %v2596
    %v2798 = vunpack.c.h.b16 %v2596
    %v2799 = vunpack.c.l.b16 %v2597
    %v2800 = vunpack.c.h.b16 %v2597
    %v2801 = vunpack.c.l.b16 %v2598
    %v2802 = vunpack.c.h.b16 %v2598
    %v2803 = vunpack.c.l.b16 %v2599
    %v2804 = vunpack.c.h.b16 %v2599
    %v2805 = vunpack.c.l.b16 %v2600
    %v2806 = vunpack.c.h.b16 %v2600
    %v2807 = vunpack.c.l.b16 %v2601
    %v2808 = vunpack.c.h.b16 %v2601
    %v2809 = vunpack.c.l.b16 %v2602
    %v2810 = vunpack.c.h.b16 %v2602
    %v2811 = vunpack.c.l.b16 %v2603
    %v2812 = vunpack.c.h.b16 %v2603
    %v2813 = vunpack.c.l.b16 %v2604
    %v2814 = vunpack.c.h.b16 %v2604
    %v2815 = vunpack.c.l.b16 %v2605
    %v2816 = vunpack.c.h.b16 %v2605
    %v2817 = vunpack.c.l.b16 %v2606
    %v2818 = vunpack.c.h.b16 %v2606
    %v2819 = vunpack.c.l.b16 %v2607
    %v2820 = vunpack.c.h.b16 %v2607
    %v2821 = vunpack.c.l.b16 %v2608
    %v2822 = vunpack.c.h.b16 %v2608
    %v2823 = vpack.c.b16 %v2699, %v2695
    %v2824 = vpack.c.b16 %v2700, %v2696
    %v2825 = vpack.c.b16 %v2701, %v2697
    %v2826 = vpack.c.b16 %v2702, %v2698
    %v2827 = vpack.c.b16 %v2707, %v2703
    %v2828 = vpack.c.b16 %v2708, %v2704
    %v2829 = vpack.c.b16 %v2709, %v2705
    %v2830 = vpack.c.b16 %v2710, %v2706
    %v2831 = vpack.c.b16 %v2715, %v2711
    %v2832 = vpack.c.b16 %v2716, %v2712
    %v2833 = vpack.c.b16 %v2717, %v2713
    %v2834 = vpack.c.b16 %v2718, %v2714
    %v2835 = vpack.c.b16 %v2723, %v2719
    %v2836 = vpack.c.b16 %v2724, %v2720
    %v2837 = vpack.c.b16 %v2725, %v2721
    %v2838 = vpack.c.b16 %v2726, %v2722
    %v2839 = vpack.c.b16 %v2731, %v2727
    %v2840 = vpack.c.b16 %v2732, %v2728
    %v2841 = vpack.c.b16 %v2733, %v2729
    %v2842 = vpack.c.b16 %v2734, %v2730
    %v2843 = vpack.c.b16 %v2739, %v2735
    %v2844 = vpack.c.b16 %v2740, %v2736
    %v2845 = vpack.c.b16 %v2741, %v2737
    %v2846 = vpack.c.b16 %v2742, %v2738
    %v2847 = vpack.c.b16 %v2747, %v2743
    %v2848 = vpack.c.b16 %v2748, %v2744
    %v2849 = vpack.c.b16 %v2749, %v2745
    %v2850 = vpack.c.b16 %v2750, %v2746
    %v2851 = vpack.c.b16 %v2755, %v2751
    %v2852 = vpack.c.b16 %v2756, %v2752
    %v2853 = vpack.c.b16 %v2757, %v2753
    %v2854 = vpack.c.b16 %v2758, %v2754
    %v2855 = vpack.c.b16 %v2763, %v2759
    %v2856 = vpack.c.b16 %v2764, %v2760
    %v2857 = vpack.c.b16 %v2765, %v2761
    %v2858 = vpack.c.b16 %v2766, %v2762
    %v2859 = vpack.c.b16 %v2771, %v2767
    %v2860 = vpack.c.b16 %v2772, %v2768
    %v2861 = vpack.c.b16 %v2773, %v2769
    %v2862 = vpack.c.b16 %v2774, %v2770
    %v2863 = vpack.c.b16 %v2779, %v2775
    %v2864 = vpack.c.b16 %v2780, %v2776
    %v2865 = vpack.c.b16 %v2781, %v2777
    %v2866 = vpack.c.b16 %v2782, %v2778
    %v2867 = vpack.c.b16 %v2787, %v2783
    %v2868 = vpack.c.b16 %v2788, %v2784
    %v2869 = vpack.c.b16 %v2789, %v2785
    %v2870 = vpack.c.b16 %v2790, %v2786
    %v2871 = vpack.c.b16 %v2795, %v2791
    %v2872 = vpack.c.b16 %v2796, %v2792
    %v2873 = vpack.c.b16 %v2797, %v2793
    %v2874 = vpack.c.b16 %v2798, %v2794
    %v2875 = vpack.c.b16 %v2803, %v2799
    %v2876 = vpack.c.b16 %v2804, %v2800
    %v2877 = vpack.c.b16 %v2805, %v2801
    %v2878 = vpack.c.b16 %v2806, %v2802
    %v2879 = vpack.c.b16 %v2811, %v2807
    %v2880 = vpack.c.b16 %v2812, %v2808
    %v2881 = vpack.c.b16 %v2813, %v2809
    %v2882 = vpack.c.b16 %v2814, %v2810
    %v2883 = vpack.c.b16 %v2819, %v2815
    %v2884 = vpack.c.b16 %v2820, %v2816
    %v2885 = vpack.c.b16 %v2821, %v2817
    %v2886 = vpack.c.b16 %v2822, %v2818
    %2951 = vmatprep.subr.bf16.mxu0 %v2824
    %2952 = vmatpush1.bf16.msra.mxu0 %v2823
    %2953 = vmatprep.subr.bf16.mxu0 %v2828
    %2954 = vmatpush1.bf16.msra.mxu0 %v2827
    %2955 = vmatprep.subr.bf16.mxu0 %v2832
    %2956 = vmatpush1.bf16.msra.mxu0 %v2831
    %2957 = vmatprep.subr.bf16.mxu0 %v2836
    %2958 = vmatpush1.bf16.msra.mxu0 %v2835
    %2959 = vmatprep.subr.bf16.mxu0 %v2840
    %2960 = vmatpush1.bf16.msra.mxu0 %v2839
    %2961 = vmatprep.subr.bf16.mxu0 %v2844
    %2962 = vmatpush1.bf16.msra.mxu0 %v2843
    %2963 = vmatprep.subr.bf16.mxu0 %v2848
    %2964 = vmatpush1.bf16.msra.mxu0 %v2847
    %2965 = vmatprep.subr.bf16.mxu0 %v2852
    %2966 = vmatpush1.bf16.msra.mxu0 %v2851
    %2967 = vmatprep.subr.bf16.mxu0 %v2856
    %2968 = vmatpush1.bf16.msra.mxu0 %v2855
    %2969 = vmatprep.subr.bf16.mxu0 %v2860
    %2970 = vmatpush1.bf16.msra.mxu0 %v2859
    %2971 = vmatprep.subr.bf16.mxu0 %v2864
    %2972 = vmatpush1.bf16.msra.mxu0 %v2863
    %2973 = vmatprep.subr.bf16.mxu0 %v2868
    %2974 = vmatpush1.bf16.msra.mxu0 %v2867
    %2975 = vmatprep.subr.bf16.mxu0 %v2872
    %2976 = vmatpush1.bf16.msra.mxu0 %v2871
    %2977 = vmatprep.subr.bf16.mxu0 %v2876
    %2978 = vmatpush1.bf16.msra.mxu0 %v2875
    %2979 = vmatprep.subr.bf16.mxu0 %v2880
    %2980 = vmatpush1.bf16.msra.mxu0 %v2879
    %2981 = vmatprep.subr.bf16.mxu0 %v2884
    %2982 = vmatpush1.bf16.msra.mxu0 %v2883
    %2983 = vmatprep.mubr.bf16.mxu0 %v2514
    %2984 = vmatmul.mubr.bf16.gmra.mrb[0].mxu0 %v2513
    %v2985 = vpop.f32.mrb[0].mxu0
    %v2986 = vadd.f32 %v2614, %v2985
    %v2987 = vpop.f32.mrb[0].mxu0
    %v2988 = vadd.f32 %v2618, %v2987
    %v2989 = vpop.f32.mrb[0].mxu0
    %v2990 = vadd.f32 %v2614, %v2989
    %v2991 = vpop.f32.mrb[0].mxu0
    %v2992 = vadd.f32 %v2618, %v2991
    %2993 = vmatprep.mubr.bf16.mxu0 %v2516
    %2994 = vmatmul.mubr.bf16.gmra.mrb[0].mxu0 %v2515
    %v2995 = vpop.f32.mrb[0].mxu0
    %v2996 = vadd.f32 %v2614, %v2995
    %v2997 = vpop.f32.mrb[0].mxu0
    %v2998 = vadd.f32 %v2618, %v2997
    %v2999 = vpop.f32.mrb[0].mxu0
    %v3000 = vadd.f32 %v2614, %v2999
    %v3001 = vpop.f32.mrb[0].mxu0
    %v3002 = vadd.f32 %v2618, %v3001
    %3003 = vmatprep.mubr.bf16.mxu0 %v2518
    %3004 = vmatmul.mubr.bf16.gmra.mrb[0].mxu0 %v2517
    %v3005 = vpop.f32.mrb[0].mxu0
    %v3006 = vadd.f32 %v2614, %v3005
    %v3007 = vpop.f32.mrb[0].mxu0
    %v3008 = vadd.f32 %v2618, %v3007
    %v3009 = vpop.f32.mrb[0].mxu0
    %v3010 = vadd.f32 %v2614, %v3009
    %v3011 = vpop.f32.mrb[0].mxu0
    %v3012 = vadd.f32 %v2618, %v3011
    %3013 = vmatprep.mubr.bf16.mxu0 %v2520
    %3014 = vmatmul.mubr.bf16.gmra.mrb[0].mxu0 %v2519
    %v3015 = vpop.f32.mrb[0].mxu0
    %v3016 = vadd.f32 %v2614, %v3015
    %v3017 = vpop.f32.mrb[0].mxu0
    %v3018 = vadd.f32 %v2618, %v3017
    %v3019 = vpop.f32.mrb[0].mxu0
    %v3020 = vadd.f32 %v2614, %v3019
    %v3021 = vpop.f32.mrb[0].mxu0
    %v3022 = vadd.f32 %v2618, %v3021
    %3023 = vmatprep.mubr.bf16.mxu0 %v2522
    %3024 = vmatmul.mubr.bf16.gmra.mrb[0].mxu0 %v2521
    %v3025 = vpop.f32.mrb[0].mxu0
    %v3026 = vadd.f32 %v2614, %v3025
    %v3027 = vpop.f32.mrb[0].mxu0
    %v3028 = vadd.f32 %v2618, %v3027
    %v3029 = vpop.f32.mrb[0].mxu0
    %v3030 = vadd.f32 %v2614, %v3029
    %v3031 = vpop.f32.mrb[0].mxu0
    %v3032 = vadd.f32 %v2618, %v3031
    %3033 = vmatprep.mubr.bf16.mxu0 %v2524
    %3034 = vmatmul.mubr.bf16.gmra.mrb[0].mxu0 %v2523
    %v3035 = vpop.f32.mrb[0].mxu0
    %v3036 = vadd.f32 %v2614, %v3035
    %v3037 = vpop.f32.mrb[0].mxu0
    %v3038 = vadd.f32 %v2618, %v3037
    %v3039 = vpop.f32.mrb[0].mxu0
    %v3040 = vadd.f32 %v2614, %v3039
    %v3041 = vpop.f32.mrb[0].mxu0
    %v3042 = vadd.f32 %v2618, %v3041
    %3043 = vmatprep.mubr.bf16.mxu0 %v2526
    %3044 = vmatmul.mubr.bf16.gmra.mrb[0].mxu0 %v2525
    %v3045 = vpop.f32.mrb[0].mxu0
    %v3046 = vadd.f32 %v2614, %v3045
    %v3047 = vpop.f32.mrb[0].mxu0
    %v3048 = vadd.f32 %v2618, %v3047
    %v3049 = vpop.f32.mrb[0].mxu0
    %v3050 = vadd.f32 %v2614, %v3049
    %v3051 = vpop.f32.mrb[0].mxu0
    %v3052 = vadd.f32 %v2618, %v3051
    %3053 = vmatprep.mubr.bf16.mxu0 %v2528
    %3054 = vmatmul.mubr.bf16.gmra.mrb[0].mxu0 %v2527
    %v3055 = vpop.f32.mrb[0].mxu0
    %v3056 = vadd.f32 %v2614, %v3055
    %v3057 = vpop.f32.mrb[0].mxu0
    %v3058 = vadd.f32 %v2618, %v3057
    %v3059 = vpop.f32.mrb[0].mxu0
    %v3060 = vadd.f32 %v2614, %v3059
    %v3061 = vpop.f32.mrb[0].mxu0
    %v3062 = vadd.f32 %v2618, %v3061
    %3063 = vmatprep.mubr.bf16.mxu0 %v2530
    %3064 = vmatmul.mubr.bf16.gmra.mrb[0].mxu0 %v2529
    %v3065 = vpop.f32.mrb[0].mxu0
    %v3066 = vadd.f32 %v2614, %v3065
    %v3067 = vpop.f32.mrb[0].mxu0
    %v3068 = vadd.f32 %v2618, %v3067
    %v3069 = vpop.f32.mrb[0].mxu0
    %v3070 = vadd.f32 %v2614, %v3069
    %v3071 = vpop.f32.mrb[0].mxu0
    %v3072 = vadd.f32 %v2618, %v3071
    %3073 = vmatprep.mubr.bf16.mxu0 %v2532
    %3074 = vmatmul.mubr.bf16.gmra.mrb[0].mxu0 %v2531
    %v3075 = vpop.f32.mrb[0].mxu0
    %v3076 = vadd.f32 %v2614, %v3075
    %v3077 = vpop.f32.mrb[0].mxu0
    %v3078 = vadd.f32 %v2618, %v3077
    %v3079 = vpop.f32.mrb[0].mxu0
    %v3080 = vadd.f32 %v2614, %v3079
    %v3081 = vpop.f32.mrb[0].mxu0
    %v3082 = vadd.f32 %v2618, %v3081
    %3083 = vmatprep.mubr.bf16.mxu0 %v2534
    %3084 = vmatmul.mubr.bf16.gmra.mrb[0].mxu0 %v2533
    %v3085 = vpop.f32.mrb[0].mxu0
    %v3086 = vadd.f32 %v2614, %v3085
    %v3087 = vpop.f32.mrb[0].mxu0
    %v3088 = vadd.f32 %v2618, %v3087
    %v3089 = vpop.f32.mrb[0].mxu0
    %v3090 = vadd.f32 %v2614, %v3089
    %v3091 = vpop.f32.mrb[0].mxu0
    %v3092 = vadd.f32 %v2618, %v3091
    %3093 = vmatprep.mubr.bf16.mxu0 %v2536
    %3094 = vmatmul.mubr.bf16.gmra.mrb[0].mxu0 %v2535
    %v3095 = vpop.f32.mrb[0].mxu0
    %v3096 = vadd.f32 %v2614, %v3095
    %v3097 = vpop.f32.mrb[0].mxu0
    %v3098 = vadd.f32 %v2618, %v3097
    %v3099 = vpop.f32.mrb[0].mxu0
    %v3100 = vadd.f32 %v2614, %v3099
    %v3101 = vpop.f32.mrb[0].mxu0
    %v3102 = vadd.f32 %v2618, %v3101
    %3103 = vmatprep.mubr.bf16.mxu0 %v2538
    %3104 = vmatmul.mubr.bf16.gmra.mrb[0].mxu0 %v2537
    %v3105 = vpop.f32.mrb[0].mxu0
    %v3106 = vadd.f32 %v2614, %v3105
    %v3107 = vpop.f32.mrb[0].mxu0
    %v3108 = vadd.f32 %v2618, %v3107
    %v3109 = vpop.f32.mrb[0].mxu0
    %v3110 = vadd.f32 %v2614, %v3109
    %v3111 = vpop.f32.mrb[0].mxu0
    %v3112 = vadd.f32 %v2618, %v3111
    %3113 = vmatprep.mubr.bf16.mxu0 %v2540
    %3114 = vmatmul.mubr.bf16.gmra.mrb[0].mxu0 %v2539
    %v3115 = vpop.f32.mrb[0].mxu0
    %v3116 = vadd.f32 %v2614, %v3115
    %v3117 = vpop.f32.mrb[0].mxu0
    %v3118 = vadd.f32 %v2618, %v3117
    %v3119 = vpop.f32.mrb[0].mxu0
    %v3120 = vadd.f32 %v2614, %v3119
    %v3121 = vpop.f32.mrb[0].mxu0
    %v3122 = vadd.f32 %v2618, %v3121
    %3123 = vmatprep.mubr.bf16.mxu0 %v2542
    %3124 = vmatmul.mubr.bf16.gmra.mrb[0].mxu0 %v2541
    %v3125 = vpop.f32.mrb[0].mxu0
    %v3126 = vadd.f32 %v2614, %v3125
    %v3127 = vpop.f32.mrb[0].mxu0
    %v3128 = vadd.f32 %v2618, %v3127
    %v3129 = vpop.f32.mrb[0].mxu0
    %v3130 = vadd.f32 %v2614, %v3129
    %v3131 = vpop.f32.mrb[0].mxu0
    %v3132 = vadd.f32 %v2618, %v3131
    %3133 = vmatprep.mubr.bf16.mxu0 %v2544
    %3134 = vmatmul.mubr.bf16.gmra.mrb[0].mxu0 %v2543
    %v3135 = vpop.f32.mrb[0].mxu0
    %v3136 = vadd.f32 %v2614, %v3135
    %v3137 = vpop.f32.mrb[0].mxu0
    %v3138 = vadd.f32 %v2618, %v3137
    %v3139 = vpop.f32.mrb[0].mxu0
    %v3140 = vadd.f32 %v2614, %v3139
    %v3141 = vpop.f32.mrb[0].mxu0
    %v3142 = vadd.f32 %v2618, %v3141
    %3143 = vdwg.mxu0
    %3144 = vmatprep.subr.bf16.mxu0 %v2826
    %3145 = vmatpush1.bf16.msra.mxu0 %v2825
    %3146 = vmatprep.subr.bf16.mxu0 %v2830
    %3147 = vmatpush1.bf16.msra.mxu0 %v2829
    %3148 = vmatprep.subr.bf16.mxu0 %v2834
    %3149 = vmatpush1.bf16.msra.mxu0 %v2833
    %3150 = vmatprep.subr.bf16.mxu0 %v2838
    %3151 = vmatpush1.bf16.msra.mxu0 %v2837
    %3152 = vmatprep.subr.bf16.mxu0 %v2842
    %3153 = vmatpush1.bf16.msra.mxu0 %v2841
    %3154 = vmatprep.subr.bf16.mxu0 %v2846
    %3155 = vmatpush1.bf16.msra.mxu0 %v2845
    %3156 = vmatprep.subr.bf16.mxu0 %v2850
    %3157 = vmatpush1.bf16.msra.mxu0 %v2849
    %3158 = vmatprep.subr.bf16.mxu0 %v2854
    %3159 = vmatpush1.bf16.msra.mxu0 %v2853
    %3160 = vmatprep.subr.bf16.mxu0 %v2858
    %3161 = vmatpush1.bf16.msra.mxu0 %v2857
    %3162 = vmatprep.subr.bf16.mxu0 %v2862
    %3163 = vmatpush1.bf16.msra.mxu0 %v2861
    %3164 = vmatprep.subr.bf16.mxu0 %v2866
    %3165 = vmatpush1.bf16.msra.mxu0 %v2865
    %3166 = vmatprep.subr.bf16.mxu0 %v2870
    %3167 = vmatpush1.bf16.msra.mxu0 %v2869
    %3168 = vmatprep.subr.bf16.mxu0 %v2874
    %3169 = vmatpush1.bf16.msra.mxu0 %v2873
    %3170 = vmatprep.subr.bf16.mxu0 %v2878
    %3171 = vmatpush1.bf16.msra.mxu0 %v2877
    %3172 = vmatprep.subr.bf16.mxu0 %v2882
    %3173 = vmatpush1.bf16.msra.mxu0 %v2881
    %3174 = vmatprep.subr.bf16.mxu0 %v2886
    %3175 = vmatpush1.bf16.msra.mxu0 %v2885
    %3176 = vmatprep.mubr.bf16.mxu0 %v2514
    %3177 = vmatmul.mubr.bf16.gmra.mrb[0].mxu0 %v2513
    %v3178 = vpop.f32.mrb[0].mxu0
    %v3179 = vadd.f32 %v2622, %v3178
    %v3180 = vpop.f32.mrb[0].mxu0
    %v3181 = vadd.f32 %v2626, %v3180
    %v3182 = vpop.f32.mrb[0].mxu0
    %v3183 = vadd.f32 %v2622, %v3182
    %v3184 = vpop.f32.mrb[0].mxu0
    %v3185 = vadd.f32 %v2626, %v3184
    %3186 = vmatprep.mubr.bf16.mxu0 %v2516
    %3187 = vmatmul.mubr.bf16.gmra.mrb[0].mxu0 %v2515
    %v3188 = vpop.f32.mrb[0].mxu0
    %v3189 = vadd.f32 %v2622, %v3188
    %v3190 = vpop.f32.mrb[0].mxu0
    %v3191 = vadd.f32 %v2626, %v3190
    %v3192 = vpop.f32.mrb[0].mxu0
    %v3193 = vadd.f32 %v2622, %v3192
    %v3194 = vpop.f32.mrb[0].mxu0
    %v3195 = vadd.f32 %v2626, %v3194
    %3196 = vmatprep.mubr.bf16.mxu0 %v2518
    %3197 = vmatmul.mubr.bf16.gmra.mrb[0].mxu0 %v2517
    %v3198 = vpop.f32.mrb[0].mxu0
    %v3199 = vadd.f32 %v2622, %v3198
    %v3200 = vpop.f32.mrb[0].mxu0
    %v3201 = vadd.f32 %v2626, %v3200
    %v3202 = vpop.f32.mrb[0].mxu0
    %v3203 = vadd.f32 %v2622, %v3202
    %v3204 = vpop.f32.mrb[0].mxu0
    %v3205 = vadd.f32 %v2626, %v3204
    %3206 = vmatprep.mubr.bf16.mxu0 %v2520
    %3207 = vmatmul.mubr.bf16.gmra.mrb[0].mxu0 %v2519
    %v3208 = vpop.f32.mrb[0].mxu0
    %v3209 = vadd.f32 %v2622, %v3208
    %v3210 = vpop.f32.mrb[0].mxu0
    %v3211 = vadd.f32 %v2626, %v3210
    %v3212 = vpop.f32.mrb[0].mxu0
    %v3213 = vadd.f32 %v2622, %v3212
    %v3214 = vpop.f32.mrb[0].mxu0
    %v3215 = vadd.f32 %v2626, %v3214
    %3216 = vmatprep.mubr.bf16.mxu0 %v2522
    %3217 = vmatmul.mubr.bf16.gmra.mrb[0].mxu0 %v2521
    %v3218 = vpop.f32.mrb[0].mxu0
    %v3219 = vadd.f32 %v2622, %v3218
    %v3220 = vpop.f32.mrb[0].mxu0
    %v3221 = vadd.f32 %v2626, %v3220
    %v3222 = vpop.f32.mrb[0].mxu0
    %v3223 = vadd.f32 %v2622, %v3222
    %v3224 = vpop.f32.mrb[0].mxu0
    %v3225 = vadd.f32 %v2626, %v3224
    %3226 = vmatprep.mubr.bf16.mxu0 %v2524
    %3227 = vmatmul.mubr.bf16.gmra.mrb[0].mxu0 %v2523
    %v3228 = vpop.f32.mrb[0].mxu0
    %v3229 = vadd.f32 %v2622, %v3228
    %v3230 = vpop.f32.mrb[0].mxu0
    %v3231 = vadd.f32 %v2626, %v3230
    %v3232 = vpop.f32.mrb[0].mxu0
    %v3233 = vadd.f32 %v2622, %v3232
    %v3234 = vpop.f32.mrb[0].mxu0
    %v3235 = vadd.f32 %v2626, %v3234
    %3236 = vmatprep.mubr.bf16.mxu0 %v2526
    %3237 = vmatmul.mubr.bf16.gmra.mrb[0].mxu0 %v2525
    %v3238 = vpop.f32.mrb[0].mxu0
    %v3239 = vadd.f32 %v2622, %v3238
    %v3240 = vpop.f32.mrb[0].mxu0
    %v3241 = vadd.f32 %v2626, %v3240
    %v3242 = vpop.f32.mrb[0].mxu0
    %v3243 = vadd.f32 %v2622, %v3242
    %v3244 = vpop.f32.mrb[0].mxu0
    %v3245 = vadd.f32 %v2626, %v3244
    %3246 = vmatprep.mubr.bf16.mxu0 %v2528
    %3247 = vmatmul.mubr.bf16.gmra.mrb[0].mxu0 %v2527
    %v3248 = vpop.f32.mrb[0].mxu0
    %v3249 = vadd.f32 %v2622, %v3248
    %v3250 = vpop.f32.mrb[0].mxu0
    %v3251 = vadd.f32 %v2626, %v3250
    %v3252 = vpop.f32.mrb[0].mxu0
    %v3253 = vadd.f32 %v2622, %v3252
    %v3254 = vpop.f32.mrb[0].mxu0
    %v3255 = vadd.f32 %v2626, %v3254
    %3256 = vmatprep.mubr.bf16.mxu0 %v2530
    %3257 = vmatmul.mubr.bf16.gmra.mrb[0].mxu0 %v2529
    %v3258 = vpop.f32.mrb[0].mxu0
    %v3259 = vadd.f32 %v2622, %v3258
    %v3260 = vpop.f32.mrb[0].mxu0
    %v3261 = vadd.f32 %v2626, %v3260
    %v3262 = vpop.f32.mrb[0].mxu0
    %v3263 = vadd.f32 %v2622, %v3262
    %v3264 = vpop.f32.mrb[0].mxu0
    %v3265 = vadd.f32 %v2626, %v3264
    %3266 = vmatprep.mubr.bf16.mxu0 %v2532
    %3267 = vmatmul.mubr.bf16.gmra.mrb[0].mxu0 %v2531
    %v3268 = vpop.f32.mrb[0].mxu0
    %v3269 = vadd.f32 %v2622, %v3268
    %v3270 = vpop.f32.mrb[0].mxu0
    %v3271 = vadd.f32 %v2626, %v3270
    %v3272 = vpop.f32.mrb[0].mxu0
    %v3273 = vadd.f32 %v2622, %v3272
    %v3274 = vpop.f32.mrb[0].mxu0
    %v3275 = vadd.f32 %v2626, %v3274
    %3276 = vmatprep.mubr.bf16.mxu0 %v2534
    %3277 = vmatmul.mubr.bf16.gmra.mrb[0].mxu0 %v2533
    %v3278 = vpop.f32.mrb[0].mxu0
    %v3279 = vadd.f32 %v2622, %v3278
    %v3280 = vpop.f32.mrb[0].mxu0
    %v3281 = vadd.f32 %v2626, %v3280
    %v3282 = vpop.f32.mrb[0].mxu0
    %v3283 = vadd.f32 %v2622, %v3282
    %v3284 = vpop.f32.mrb[0].mxu0
    %v3285 = vadd.f32 %v2626, %v3284
    %3286 = vmatprep.mubr.bf16.mxu0 %v2536
    %3287 = vmatmul.mubr.bf16.gmra.mrb[0].mxu0 %v2535
    %v3288 = vpop.f32.mrb[0].mxu0
    %v3289 = vadd.f32 %v2622, %v3288
    %v3290 = vpop.f32.mrb[0].mxu0
    %v3291 = vadd.f32 %v2626, %v3290
    %v3292 = vpop.f32.mrb[0].mxu0
    %v3293 = vadd.f32 %v2622, %v3292
    %v3294 = vpop.f32.mrb[0].mxu0
    %v3295 = vadd.f32 %v2626, %v3294
    %3296 = vmatprep.mubr.bf16.mxu0 %v2538
    %3297 = vmatmul.mubr.bf16.gmra.mrb[0].mxu0 %v2537
    %v3298 = vpop.f32.mrb[0].mxu0
    %v3299 = vadd.f32 %v2622, %v3298
    %v3300 = vpop.f32.mrb[0].mxu0
    %v3301 = vadd.f32 %v2626, %v3300
    %v3302 = vpop.f32.mrb[0].mxu0
    %v3303 = vadd.f32 %v2622, %v3302
    %v3304 = vpop.f32.mrb[0].mxu0
    %v3305 = vadd.f32 %v2626, %v3304
    %3306 = vmatprep.mubr.bf16.mxu0 %v2540
    %3307 = vmatmul.mubr.bf16.gmra.mrb[0].mxu0 %v2539
    %v3308 = vpop.f32.mrb[0].mxu0
    %v3309 = vadd.f32 %v2622, %v3308
    %v3310 = vpop.f32.mrb[0].mxu0
    %v3311 = vadd.f32 %v2626, %v3310
    %v3312 = vpop.f32.mrb[0].mxu0
    %v3313 = vadd.f32 %v2622, %v3312
    %v3314 = vpop.f32.mrb[0].mxu0
    %v3315 = vadd.f32 %v2626, %v3314
    %3316 = vmatprep.mubr.bf16.mxu0 %v2542
    %3317 = vmatmul.mubr.bf16.gmra.mrb[0].mxu0 %v2541
    %v3318 = vpop.f32.mrb[0].mxu0
    %v3319 = vadd.f32 %v2622, %v3318
    %v3320 = vpop.f32.mrb[0].mxu0
    %v3321 = vadd.f32 %v2626, %v3320
    %v3322 = vpop.f32.mrb[0].mxu0
    %v3323 = vadd.f32 %v2622, %v3322
    %v3324 = vpop.f32.mrb[0].mxu0
    %v3325 = vadd.f32 %v2626, %v3324
    %3326 = vmatprep.mubr.bf16.mxu0 %v2544
    %3327 = vmatmul.mubr.bf16.gmra.mrb[0].mxu0 %v2543
    %v3328 = vpop.f32.mrb[0].mxu0
    %v3329 = vadd.f32 %v2622, %v3328
    %v3330 = vpop.f32.mrb[0].mxu0
    %v3331 = vadd.f32 %v2626, %v3330
    %v3332 = vpop.f32.mrb[0].mxu0
    %v3333 = vadd.f32 %v2622, %v3332
    %v3334 = vpop.f32.mrb[0].mxu0
    %v3335 = vadd.f32 %v2626, %v3334
    %3336 = vdwg.mxu0
    %3337 = vst [vmem:[#allocation4] sm:$0xff] %v2986
    %3338 = vst [vmem:[#allocation4 + $0x8] sm:$0xff] %v2988
    %3339 = vst [vmem:[#allocation4 + $0x10] sm:$0xff] %v3179
    %3340 = vst [vmem:[#allocation4 + $0x18] sm:$0xff] %v3181
    %3341 = vst [vmem:[#allocation4 + $0x20] sm:$0xff] %v2990
    %3342 = vst [vmem:[#allocation4 + $0x28] sm:$0xff] %v2992
    %3343 = vst [vmem:[#allocation4 + $0x30] sm:$0xff] %v3183
    %3344 = vst [vmem:[#allocation4 + $0x38] sm:$0xff] %v3185
    %3345 = vst [vmem:[#allocation4 + $0x40] sm:$0xff] %v2996
    %3346 = vst [vmem:[#allocation4 + $0x48] sm:$0xff] %v2998
    %3347 = vst [vmem:[#allocation4 + $0x50] sm:$0xff] %v3189
    %3348 = vst [vmem:[#allocation4 + $0x58] sm:$0xff] %v3191
    %3349 = vst [vmem:[#allocation4 + $0x60] sm:$0xff] %v3000
    %3350 = vst [vmem:[#allocation4 + $0x68] sm:$0xff] %v3002
    %3351 = vst [vmem:[#allocation4 + $0x70] sm:$0xff] %v3193
    %3352 = vst [vmem:[#allocation4 + $0x78] sm:$0xff] %v3195
    %3353 = vst [vmem:[#allocation4 + $0x80] sm:$0xff] %v3006
    %3354 = vst [vmem:[#allocation4 + $0x88] sm:$0xff] %v3008
    %3355 = vst [vmem:[#allocation4 + $0x90] sm:$0xff] %v3199
    %3356 = vst [vmem:[#allocation4 + $0x98] sm:$0xff] %v3201
    %3357 = vst [vmem:[#allocation4 + $0xa0] sm:$0xff] %v3010
    %3358 = vst [vmem:[#allocation4 + $0xa8] sm:$0xff] %v3012
    %3359 = vst [vmem:[#allocation4 + $0xb0] sm:$0xff] %v3203
    %3360 = vst [vmem:[#allocation4 + $0xb8] sm:$0xff] %v3205
    %3361 = vst [vmem:[#allocation4 + $0xc0] sm:$0xff] %v3016
    %3362 = vst [vmem:[#allocation4 + $0xc8] sm:$0xff] %v3018
    %3363 = vst [vmem:[#allocation4 + $0xd0] sm:$0xff] %v3209
    %3364 = vst [vmem:[#allocation4 + $0xd8] sm:$0xff] %v3211
    %3365 = vst [vmem:[#allocation4 + $0xe0] sm:$0xff] %v3020
    %3366 = vst [vmem:[#allocation4 + $0xe8] sm:$0xff] %v3022
    %3367 = vst [vmem:[#allocation4 + $0xf0] sm:$0xff] %v3213
    %3368 = vst [vmem:[#allocation4 + $0xf8] sm:$0xff] %v3215
    %3369 = vst [vmem:[#allocation4 + $0x100] sm:$0xff] %v3026
    %3370 = vst [vmem:[#allocation4 + $0x108] sm:$0xff] %v3028
    %3371 = vst [vmem:[#allocation4 + $0x110] sm:$0xff] %v3219
    %3372 = vst [vmem:[#allocation4 + $0x118] sm:$0xff] %v3221
    %3373 = vst [vmem:[#allocation4 + $0x120] sm:$0xff] %v3030
    %3374 = vst [vmem:[#allocation4 + $0x128] sm:$0xff] %v3032
    %3375 = vst [vmem:[#allocation4 + $0x130] sm:$0xff] %v3223
    %3376 = vst [vmem:[#allocation4 + $0x138] sm:$0xff] %v3225
    %3377 = vst [vmem:[#allocation4 + $0x140] sm:$0xff] %v3036
    %3378 = vst [vmem:[#allocation4 + $0x148] sm:$0xff] %v3038
    %3379 = vst [vmem:[#allocation4 + $0x150] sm:$0xff] %v3229
    %3380 = vst [vmem:[#allocation4 + $0x158] sm:$0xff] %v3231
    %3381 = vst [vmem:[#allocation4 + $0x160] sm:$0xff] %v3040
    %3382 = vst [vmem:[#allocation4 + $0x168] sm:$0xff] %v3042
    %3383 = vst [vmem:[#allocation4 + $0x170] sm:$0xff] %v3233
    %3384 = vst [vmem:[#allocation4 + $0x178] sm:$0xff] %v3235
    %3385 = vst [vmem:[#allocation4 + $0x180] sm:$0xff] %v3046
    %3386 = vst [vmem:[#allocation4 + $0x188] sm:$0xff] %v3048
    %3387 = vst [vmem:[#allocation4 + $0x190] sm:$0xff] %v3239
    %3388 = vst [vmem:[#allocation4 + $0x198] sm:$0xff] %v3241
    %3389 = vst [vmem:[#allocation4 + $0x1a0] sm:$0xff] %v3050
    %3390 = vst [vmem:[#allocation4 + $0x1a8] sm:$0xff] %v3052
    %3391 = vst [vmem:[#allocation4 + $0x1b0] sm:$0xff] %v3243
    %3392 = vst [vmem:[#allocation4 + $0x1b8] sm:$0xff] %v3245
    %3393 = vst [vmem:[#allocation4 + $0x1c0] sm:$0xff] %v3056
    %3394 = vst [vmem:[#allocation4 + $0x1c8] sm:$0xff] %v3058
    %3395 = vst [vmem:[#allocation4 + $0x1d0] sm:$0xff] %v3249
    %3396 = vst [vmem:[#allocation4 + $0x1d8] sm:$0xff] %v3251
    %3397 = vst [vmem:[#allocation4 + $0x1e0] sm:$0xff] %v3060
    %3398 = vst [vmem:[#allocation4 + $0x1e8] sm:$0xff] %v3062
    %3399 = vst [vmem:[#allocation4 + $0x1f0] sm:$0xff] %v3253
    %3400 = vst [vmem:[#allocation4 + $0x1f8] sm:$0xff] %v3255
    %3401 = vst [vmem:[#allocation4 + $0x200] sm:$0xff] %v3066
    %3402 = vst [vmem:[#allocation4 + $0x208] sm:$0xff] %v3068
    %3403 = vst [vmem:[#allocation4 + $0x210] sm:$0xff] %v3259
    %3404 = vst [vmem:[#allocation4 + $0x218] sm:$0xff] %v3261
    %3405 = vst [vmem:[#allocation4 + $0x220] sm:$0xff] %v3070
    %3406 = vst [vmem:[#allocation4 + $0x228] sm:$0xff] %v3072
    %3407 = vst [vmem:[#allocation4 + $0x230] sm:$0xff] %v3263
    %3408 = vst [vmem:[#allocation4 + $0x238] sm:$0xff] %v3265
    %3409 = vst [vmem:[#allocation4 + $0x240] sm:$0xff] %v3076
    %3410 = vst [vmem:[#allocation4 + $0x248] sm:$0xff] %v3078
    %3411 = vst [vmem:[#allocation4 + $0x250] sm:$0xff] %v3269
    %3412 = vst [vmem:[#allocation4 + $0x258] sm:$0xff] %v3271
    %3413 = vst [vmem:[#allocation4 + $0x260] sm:$0xff] %v3080
    %3414 = vst [vmem:[#allocation4 + $0x268] sm:$0xff] %v3082
    %3415 = vst [vmem:[#allocation4 + $0x270] sm:$0xff] %v3273
    %3416 = vst [vmem:[#allocation4 + $0x278] sm:$0xff] %v3275
    %3417 = vst [vmem:[#allocation4 + $0x280] sm:$0xff] %v3086
    %3418 = vst [vmem:[#allocation4 + $0x288] sm:$0xff] %v3088
    %3419 = vst [vmem:[#allocation4 + $0x290] sm:$0xff] %v3279
    %3420 = vst [vmem:[#allocation4 + $0x298] sm:$0xff] %v3281
    %3421 = vst [vmem:[#allocation4 + $0x2a0] sm:$0xff] %v3090
    %3422 = vst [vmem:[#allocation4 + $0x2a8] sm:$0xff] %v3092
    %3423 = vst [vmem:[#allocation4 + $0x2b0] sm:$0xff] %v3283
    %3424 = vst [vmem:[#allocation4 + $0x2b8] sm:$0xff] %v3285
    %3425 = vst [vmem:[#allocation4 + $0x2c0] sm:$0xff] %v3096
    %3426 = vst [vmem:[#allocation4 + $0x2c8] sm:$0xff] %v3098
    %3427 = vst [vmem:[#allocation4 + $0x2d0] sm:$0xff] %v3289
    %3428 = vst [vmem:[#allocation4 + $0x2d8] sm:$0xff] %v3291
    %3429 = vst [vmem:[#allocation4 + $0x2e0] sm:$0xff] %v3100
    %3430 = vst [vmem:[#allocation4 + $0x2e8] sm:$0xff] %v3102
    %3431 = vst [vmem:[#allocation4 + $0x2f0] sm:$0xff] %v3293
    %3432 = vst [vmem:[#allocation4 + $0x2f8] sm:$0xff] %v3295
    %3433 = vst [vmem:[#allocation4 + $0x300] sm:$0xff] %v3106
    %3434 = vst [vmem:[#allocation4 + $0x308] sm:$0xff] %v3108
    %3435 = vst [vmem:[#allocation4 + $0x310] sm:$0xff] %v3299
    %3436 = vst [vmem:[#allocation4 + $0x318] sm:$0xff] %v3301
    %3437 = vst [vmem:[#allocation4 + $0x320] sm:$0xff] %v3110
    %3438 = vst [vmem:[#allocation4 + $0x328] sm:$0xff] %v3112
    %3439 = vst [vmem:[#allocation4 + $0x330] sm:$0xff] %v3303
    %3440 = vst [vmem:[#allocation4 + $0x338] sm:$0xff] %v3305
    %3441 = vst [vmem:[#allocation4 + $0x340] sm:$0xff] %v3116
    %3442 = vst [vmem:[#allocation4 + $0x348] sm:$0xff] %v3118
    %3443 = vst [vmem:[#allocation4 + $0x350] sm:$0xff] %v3309
    %3444 = vst [vmem:[#allocation4 + $0x358] sm:$0xff] %v3311
    %3445 = vst [vmem:[#allocation4 + $0x360] sm:$0xff] %v3120
    %3446 = vst [vmem:[#allocation4 + $0x368] sm:$0xff] %v3122
    %3447 = vst [vmem:[#allocation4 + $0x370] sm:$0xff] %v3313
    %3448 = vst [vmem:[#allocation4 + $0x378] sm:$0xff] %v3315
    %3449 = vst [vmem:[#allocation4 + $0x380] sm:$0xff] %v3126
    %3450 = vst [vmem:[#allocation4 + $0x388] sm:$0xff] %v3128
    %3451 = vst [vmem:[#allocation4 + $0x390] sm:$0xff] %v3319
    %3452 = vst [vmem:[#allocation4 + $0x398] sm:$0xff] %v3321
    %3453 = vst [vmem:[#allocation4 + $0x3a0] sm:$0xff] %v3130
    %3454 = vst [vmem:[#allocation4 + $0x3a8] sm:$0xff] %v3132
    %3455 = vst [vmem:[#allocation4 + $0x3b0] sm:$0xff] %v3323
    %3456 = vst [vmem:[#allocation4 + $0x3b8] sm:$0xff] %v3325
    %3457 = vst [vmem:[#allocation4 + $0x3c0] sm:$0xff] %v3136
    %3458 = vst [vmem:[#allocation4 + $0x3c8] sm:$0xff] %v3138
    %3459 = vst [vmem:[#allocation4 + $0x3d0] sm:$0xff] %v3329
    %3460 = vst [vmem:[#allocation4 + $0x3d8] sm:$0xff] %v3331
    %3461 = vst [vmem:[#allocation4 + $0x3e0] sm:$0xff] %v3140
    %3462 = vst [vmem:[#allocation4 + $0x3e8] sm:$0xff] %v3142
    %3463 = vst [vmem:[#allocation4 + $0x3f0] sm:$0xff] %v3333
    %3464 = vst [vmem:[#allocation4 + $0x3f8] sm:$0xff] %v3335
    %v3465 = vld [vmem:[#allocation14] sm:$0xff]
    %v3466 = vld [vmem:[#allocation14 + $0x8] sm:$0xff]
    %v3467 = vld [vmem:[#allocation14 + $0x10] sm:$0xff]
    %v3468 = vld [vmem:[#allocation14 + $0x18] sm:$0xff]
    %v3469 = vld [vmem:[#allocation14 + $0x20] sm:$0xff]
    %v3470 = vld [vmem:[#allocation14 + $0x28] sm:$0xff]
    %v3471 = vld [vmem:[#allocation14 + $0x30] sm:$0xff]
    %v3472 = vld [vmem:[#allocation14 + $0x38] sm:$0xff]
    %v3473 = vld [vmem:[#allocation14 + $0x40] sm:$0xff]
    %v3474 = vld [vmem:[#allocation14 + $0x48] sm:$0xff]
    %v3475 = vld [vmem:[#allocation14 + $0x50] sm:$0xff]
    %v3476 = vld [vmem:[#allocation14 + $0x58] sm:$0xff]
    %v3477 = vld [vmem:[#allocation14 + $0x60] sm:$0xff]
    %v3478 = vld [vmem:[#allocation14 + $0x68] sm:$0xff]
    %v3479 = vld [vmem:[#allocation14 + $0x70] sm:$0xff]
    %v3480 = vld [vmem:[#allocation14 + $0x78] sm:$0xff]
    %v3481 = vld [vmem:[#allocation14 + $0x80] sm:$0xff]
    %v3482 = vld [vmem:[#allocation14 + $0x88] sm:$0xff]
    %v3483 = vld [vmem:[#allocation14 + $0x90] sm:$0xff]
    %v3484 = vld [vmem:[#allocation14 + $0x98] sm:$0xff]
    %v3485 = vld [vmem:[#allocation14 + $0xa0] sm:$0xff]
    %v3486 = vld [vmem:[#allocation14 + $0xa8] sm:$0xff]
    %v3487 = vld [vmem:[#allocation14 + $0xb0] sm:$0xff]
    %v3488 = vld [vmem:[#allocation14 + $0xb8] sm:$0xff]
    %v3489 = vld [vmem:[#allocation14 + $0xc0] sm:$0xff]
    %v3490 = vld [vmem:[#allocation14 + $0xc8] sm:$0xff]
    %v3491 = vld [vmem:[#allocation14 + $0xd0] sm:$0xff]
    %v3492 = vld [vmem:[#allocation14 + $0xd8] sm:$0xff]
    %v3493 = vld [vmem:[#allocation14 + $0xe0] sm:$0xff]
    %v3494 = vld [vmem:[#allocation14 + $0xe8] sm:$0xff]
    %v3495 = vld [vmem:[#allocation14 + $0xf0] sm:$0xff]
    %v3496 = vld [vmem:[#allocation14 + $0xf8] sm:$0xff]
    %v3497 = vld [vmem:[#allocation14 + $0x100] sm:$0xff]
    %v3498 = vld [vmem:[#allocation14 + $0x108] sm:$0xff]
    %v3499 = vld [vmem:[#allocation14 + $0x110] sm:$0xff]
    %v3500 = vld [vmem:[#allocation14 + $0x118] sm:$0xff]
    %v3501 = vld [vmem:[#allocation14 + $0x120] sm:$0xff]
    %v3502 = vld [vmem:[#allocation14 + $0x128] sm:$0xff]
    %v3503 = vld [vmem:[#allocation14 + $0x130] sm:$0xff]
    %v3504 = vld [vmem:[#allocation14 + $0x138] sm:$0xff]
    %v3505 = vld [vmem:[#allocation14 + $0x140] sm:$0xff]
    %v3506 = vld [vmem:[#allocation14 + $0x148] sm:$0xff]
    %v3507 = vld [vmem:[#allocation14 + $0x150] sm:$0xff]
    %v3508 = vld [vmem:[#allocation14 + $0x158] sm:$0xff]
    %v3509 = vld [vmem:[#allocation14 + $0x160] sm:$0xff]
    %v3510 = vld [vmem:[#allocation14 + $0x168] sm:$0xff]
    %v3511 = vld [vmem:[#allocation14 + $0x170] sm:$0xff]
    %v3512 = vld [vmem:[#allocation14 + $0x178] sm:$0xff]
    %v3513 = vld [vmem:[#allocation14 + $0x180] sm:$0xff]
    %v3514 = vld [vmem:[#allocation14 + $0x188] sm:$0xff]
    %v3515 = vld [vmem:[#allocation14 + $0x190] sm:$0xff]
    %v3516 = vld [vmem:[#allocation14 + $0x198] sm:$0xff]
    %v3517 = vld [vmem:[#allocation14 + $0x1a0] sm:$0xff]
    %v3518 = vld [vmem:[#allocation14 + $0x1a8] sm:$0xff]
    %v3519 = vld [vmem:[#allocation14 + $0x1b0] sm:$0xff]
    %v3520 = vld [vmem:[#allocation14 + $0x1b8] sm:$0xff]
    %v3521 = vld [vmem:[#allocation14 + $0x1c0] sm:$0xff]
    %v3522 = vld [vmem:[#allocation14 + $0x1c8] sm:$0xff]
    %v3523 = vld [vmem:[#allocation14 + $0x1d0] sm:$0xff]
    %v3524 = vld [vmem:[#allocation14 + $0x1d8] sm:$0xff]
    %v3525 = vld [vmem:[#allocation14 + $0x1e0] sm:$0xff]
    %v3526 = vld [vmem:[#allocation14 + $0x1e8] sm:$0xff]
    %v3527 = vld [vmem:[#allocation14 + $0x1f0] sm:$0xff]
    %v3528 = vld [vmem:[#allocation14 + $0x1f8] sm:$0xff]
    %v3529 = vld [vmem:[%s12] sm:$0xf]
    %v3531 = vlaneseq
    %v3532 = vshrl.u32 %v3531, 7
    %v3533 = vsub.s32 0, %v3532
    %v3534 = vrot.slane %v3529, %v3533
    %v3535 = vlaneseq
    %v3536 = vshrl.u32 %v3535, 7
    %v3537 = vsub.s32 1, %v3536
    %v3538 = vrot.slane %v3529, %v3537
    %v3539 = vlaneseq
    %v3540 = vshrl.u32 %v3539, 7
    %v3541 = vsub.s32 2, %v3540
    %v3542 = vrot.slane %v3529, %v3541
    %v3543 = vlaneseq
    %v3544 = vshrl.u32 %v3543, 7
    %v3545 = vsub.s32 3, %v3544
    %v3546 = vrot.slane %v3529, %v3545
    %v3615 = vunpack.c.l.b16 %v3465
    %v3616 = vunpack.c.h.b16 %v3465
    %v3617 = vunpack.c.l.b16 %v3466
    %v3618 = vunpack.c.h.b16 %v3466
    %v3619 = vunpack.c.l.b16 %v3467
    %v3620 = vunpack.c.h.b16 %v3467
    %v3621 = vunpack.c.l.b16 %v3468
    %v3622 = vunpack.c.h.b16 %v3468
    %v3623 = vunpack.c.l.b16 %v3469
    %v3624 = vunpack.c.h.b16 %v3469
    %v3625 = vunpack.c.l.b16 %v3470
    %v3626 = vunpack.c.h.b16 %v3470
    %v3627 = vunpack.c.l.b16 %v3471
    %v3628 = vunpack.c.h.b16 %v3471
    %v3629 = vunpack.c.l.b16 %v3472
    %v3630 = vunpack.c.h.b16 %v3472
    %v3631 = vunpack.c.l.b16 %v3473
    %v3632 = vunpack.c.h.b16 %v3473
    %v3633 = vunpack.c.l.b16 %v3474
    %v3634 = vunpack.c.h.b16 %v3474
    %v3635 = vunpack.c.l.b16 %v3475
    %v3636 = vunpack.c.h.b16 %v3475
    %v3637 = vunpack.c.l.b16 %v3476
    %v3638 = vunpack.c.h.b16 %v3476
    %v3639 = vunpack.c.l.b16 %v3477
    %v3640 = vunpack.c.h.b16 %v3477
    %v3641 = vunpack.c.l.b16 %v3478
    %v3642 = vunpack.c.h.b16 %v3478
    %v3643 = vunpack.c.l.b16 %v3479
    %v3644 = vunpack.c.h.b16 %v3479
    %v3645 = vunpack.c.l.b16 %v3480
    %v3646 = vunpack.c.h.b16 %v3480
    %v3647 = vunpack.c.l.b16 %v3481
    %v3648 = vunpack.c.h.b16 %v3481
    %v3649 = vunpack.c.l.b16 %v3482
    %v3650 = vunpack.c.h.b16 %v3482
    %v3651 = vunpack.c.l.b16 %v3483
    %v3652 = vunpack.c.h.b16 %v3483
    %v3653 = vunpack.c.l.b16 %v3484
    %v3654 = vunpack.c.h.b16 %v3484
    %v3655 = vunpack.c.l.b16 %v3485
    %v3656 = vunpack.c.h.b16 %v3485
    %v3657 = vunpack.c.l.b16 %v3486
    %v3658 = vunpack.c.h.b16 %v3486
    %v3659 = vunpack.c.l.b16 %v3487
    %v3660 = vunpack.c.h.b16 %v3487
    %v3661 = vunpack.c.l.b16 %v3488
    %v3662 = vunpack.c.h.b16 %v3488
    %v3663 = vunpack.c.l.b16 %v3489
    %v3664 = vunpack.c.h.b16 %v3489
    %v3665 = vunpack.c.l.b16 %v3490
    %v3666 = vunpack.c.h.b16 %v3490
    %v3667 = vunpack.c.l.b16 %v3491
    %v3668 = vunpack.c.h.b16 %v3491
    %v3669 = vunpack.c.l.b16 %v3492
    %v3670 = vunpack.c.h.b16 %v3492
    %v3671 = vunpack.c.l.b16 %v3493
    %v3672 = vunpack.c.h.b16 %v3493
    %v3673 = vunpack.c.l.b16 %v3494
    %v3674 = vunpack.c.h.b16 %v3494
    %v3675 = vunpack.c.l.b16 %v3495
    %v3676 = vunpack.c.h.b16 %v3495
    %v3677 = vunpack.c.l.b16 %v3496
    %v3678 = vunpack.c.h.b16 %v3496
    %v3679 = vunpack.c.l.b16 %v3497
    %v3680 = vunpack.c.h.b16 %v3497
    %v3681 = vunpack.c.l.b16 %v3498
    %v3682 = vunpack.c.h.b16 %v3498
    %v3683 = vunpack.c.l.b16 %v3499
    %v3684 = vunpack.c.h.b16 %v3499
    %v3685 = vunpack.c.l.b16 %v3500
    %v3686 = vunpack.c.h.b16 %v3500
    %v3687 = vunpack.c.l.b16 %v3501
    %v3688 = vunpack.c.h.b16 %v3501
    %v3689 = vunpack.c.l.b16 %v3502
    %v3690 = vunpack.c.h.b16 %v3502
    %v3691 = vunpack.c.l.b16 %v3503
    %v3692 = vunpack.c.h.b16 %v3503
    %v3693 = vunpack.c.l.b16 %v3504
    %v3694 = vunpack.c.h.b16 %v3504
    %v3695 = vunpack.c.l.b16 %v3505
    %v3696 = vunpack.c.h.b16 %v3505
    %v3697 = vunpack.c.l.b16 %v3506
    %v3698 = vunpack.c.h.b16 %v3506
    %v3699 = vunpack.c.l.b16 %v3507
    %v3700 = vunpack.c.h.b16 %v3507
    %v3701 = vunpack.c.l.b16 %v3508
    %v3702 = vunpack.c.h.b16 %v3508
    %v3703 = vunpack.c.l.b16 %v3509
    %v3704 = vunpack.c.h.b16 %v3509
    %v3705 = vunpack.c.l.b16 %v3510
    %v3706 = vunpack.c.h.b16 %v3510
    %v3707 = vunpack.c.l.b16 %v3511
    %v3708 = vunpack.c.h.b16 %v3511
    %v3709 = vunpack.c.l.b16 %v3512
    %v3710 = vunpack.c.h.b16 %v3512
    %v3711 = vunpack.c.l.b16 %v3513
    %v3712 = vunpack.c.h.b16 %v3513
    %v3713 = vunpack.c.l.b16 %v3514
    %v3714 = vunpack.c.h.b16 %v3514
    %v3715 = vunpack.c.l.b16 %v3515
    %v3716 = vunpack.c.h.b16 %v3515
    %v3717 = vunpack.c.l.b16 %v3516
    %v3718 = vunpack.c.h.b16 %v3516
    %v3719 = vunpack.c.l.b16 %v3517
    %v3720 = vunpack.c.h.b16 %v3517
    %v3721 = vunpack.c.l.b16 %v3518
    %v3722 = vunpack.c.h.b16 %v3518
    %v3723 = vunpack.c.l.b16 %v3519
    %v3724 = vunpack.c.h.b16 %v3519
    %v3725 = vunpack.c.l.b16 %v3520
    %v3726 = vunpack.c.h.b16 %v3520
    %v3727 = vunpack.c.l.b16 %v3521
    %v3728 = vunpack.c.h.b16 %v3521
    %v3729 = vunpack.c.l.b16 %v3522
    %v3730 = vunpack.c.h.b16 %v3522
    %v3731 = vunpack.c.l.b16 %v3523
    %v3732 = vunpack.c.h.b16 %v3523
    %v3733 = vunpack.c.l.b16 %v3524
    %v3734 = vunpack.c.h.b16 %v3524
    %v3735 = vunpack.c.l.b16 %v3525
    %v3736 = vunpack.c.h.b16 %v3525
    %v3737 = vunpack.c.l.b16 %v3526
    %v3738 = vunpack.c.h.b16 %v3526
    %v3739 = vunpack.c.l.b16 %v3527
    %v3740 = vunpack.c.h.b16 %v3527
    %v3741 = vunpack.c.l.b16 %v3528
    %v3742 = vunpack.c.h.b16 %v3528
    %v3743 = vpack.c.b16 %v3619, %v3615
    %v3744 = vpack.c.b16 %v3620, %v3616
    %v3745 = vpack.c.b16 %v3621, %v3617
    %v3746 = vpack.c.b16 %v3622, %v3618
    %v3747 = vpack.c.b16 %v3627, %v3623
    %v3748 = vpack.c.b16 %v3628, %v3624
    %v3749 = vpack.c.b16 %v3629, %v3625
    %v3750 = vpack.c.b16 %v3630, %v3626
    %v3751 = vpack.c.b16 %v3635, %v3631
    %v3752 = vpack.c.b16 %v3636, %v3632
    %v3753 = vpack.c.b16 %v3637, %v3633
    %v3754 = vpack.c.b16 %v3638, %v3634
    %v3755 = vpack.c.b16 %v3643, %v3639
    %v3756 = vpack.c.b16 %v3644, %v3640
    %v3757 = vpack.c.b16 %v3645, %v3641
    %v3758 = vpack.c.b16 %v3646, %v3642
    %v3759 = vpack.c.b16 %v3651, %v3647
    %v3760 = vpack.c.b16 %v3652, %v3648
    %v3761 = vpack.c.b16 %v3653, %v3649
    %v3762 = vpack.c.b16 %v3654, %v3650
    %v3763 = vpack.c.b16 %v3659, %v3655
    %v3764 = vpack.c.b16 %v3660, %v3656
    %v3765 = vpack.c.b16 %v3661, %v3657
    %v3766 = vpack.c.b16 %v3662, %v3658
    %v3767 = vpack.c.b16 %v3667, %v3663
    %v3768 = vpack.c.b16 %v3668, %v3664
    %v3769 = vpack.c.b16 %v3669, %v3665
    %v3770 = vpack.c.b16 %v3670, %v3666
    %v3771 = vpack.c.b16 %v3675, %v3671
    %v3772 = vpack.c.b16 %v3676, %v3672
    %v3773 = vpack.c.b16 %v3677, %v3673
    %v3774 = vpack.c.b16 %v3678, %v3674
    %v3775 = vpack.c.b16 %v3683, %v3679
    %v3776 = vpack.c.b16 %v3684, %v3680
    %v3777 = vpack.c.b16 %v3685, %v3681
    %v3778 = vpack.c.b16 %v3686, %v3682
    %v3779 = vpack.c.b16 %v3691, %v3687
    %v3780 = vpack.c.b16 %v3692, %v3688
    %v3781 = vpack.c.b16 %v3693, %v3689
    %v3782 = vpack.c.b16 %v3694, %v3690
    %v3783 = vpack.c.b16 %v3699, %v3695
    %v3784 = vpack.c.b16 %v3700, %v3696
    %v3785 = vpack.c.b16 %v3701, %v3697
    %v3786 = vpack.c.b16 %v3702, %v3698
    %v3787 = vpack.c.b16 %v3707, %v3703
    %v3788 = vpack.c.b16 %v3708, %v3704
    %v3789 = vpack.c.b16 %v3709, %v3705
    %v3790 = vpack.c.b16 %v3710, %v3706
    %v3791 = vpack.c.b16 %v3715, %v3711
    %v3792 = vpack.c.b16 %v3716, %v3712
    %v3793 = vpack.c.b16 %v3717, %v3713
    %v3794 = vpack.c.b16 %v3718, %v3714
    %v3795 = vpack.c.b16 %v3723, %v3719
    %v3796 = vpack.c.b16 %v3724, %v3720
    %v3797 = vpack.c.b16 %v3725, %v3721
    %v3798 = vpack.c.b16 %v3726, %v3722
    %v3799 = vpack.c.b16 %v3731, %v3727
    %v3800 = vpack.c.b16 %v3732, %v3728
    %v3801 = vpack.c.b16 %v3733, %v3729
    %v3802 = vpack.c.b16 %v3734, %v3730
    %v3803 = vpack.c.b16 %v3739, %v3735
    %v3804 = vpack.c.b16 %v3740, %v3736
    %v3805 = vpack.c.b16 %v3741, %v3737
    %v3806 = vpack.c.b16 %v3742, %v3738
    %3871 = vmatprep.subr.bf16.mxu0 %v3744
    %3872 = vmatpush1.bf16.msra.mxu0 %v3743
    %3873 = vmatprep.subr.bf16.mxu0 %v3748
    %3874 = vmatpush1.bf16.msra.mxu0 %v3747
    %3875 = vmatprep.subr.bf16.mxu0 %v3752
    %3876 = vmatpush1.bf16.msra.mxu0 %v3751
    %3877 = vmatprep.subr.bf16.mxu0 %v3756
    %3878 = vmatpush1.bf16.msra.mxu0 %v3755
    %3879 = vmatprep.subr.bf16.mxu0 %v3760
    %3880 = vmatpush1.bf16.msra.mxu0 %v3759
    %3881 = vmatprep.subr.bf16.mxu0 %v3764
    %3882 = vmatpush1.bf16.msra.mxu0 %v3763
    %3883 = vmatprep.subr.bf16.mxu0 %v3768
    %3884 = vmatpush1.bf16.msra.mxu0 %v3767
    %3885 = vmatprep.subr.bf16.mxu0 %v3772
    %3886 = vmatpush1.bf16.msra.mxu0 %v3771
    %3887 = vmatprep.subr.bf16.mxu0 %v3776
    %3888 = vmatpush1.bf16.msra.mxu0 %v3775
    %3889 = vmatprep.subr.bf16.mxu0 %v3780
    %3890 = vmatpush1.bf16.msra.mxu0 %v3779
    %3891 = vmatprep.subr.bf16.mxu0 %v3784
    %3892 = vmatpush1.bf16.msra.mxu0 %v3783
    %3893 = vmatprep.subr.bf16.mxu0 %v3788
    %3894 = vmatpush1.bf16.msra.mxu0 %v3787
    %3895 = vmatprep.subr.bf16.mxu0 %v3792
    %3896 = vmatpush1.bf16.msra.mxu0 %v3791
    %3897 = vmatprep.subr.bf16.mxu0 %v3796
    %3898 = vmatpush1.bf16.msra.mxu0 %v3795
    %3899 = vmatprep.subr.bf16.mxu0 %v3800
    %3900 = vmatpush1.bf16.msra.mxu0 %v3799
    %3901 = vmatprep.subr.bf16.mxu0 %v3804
    %3902 = vmatpush1.bf16.msra.mxu0 %v3803
    %3903 = vmatprep.mubr.bf16.mxu0 %v2514
    %3904 = vmatmul.mubr.bf16.gmra.mrb[0].mxu0 %v2513
    %v3905 = vpop.f32.mrb[0].mxu0
    %v3906 = vadd.f32 %v3534, %v3905
    %v3907 = vpop.f32.mrb[0].mxu0
    %v3908 = vadd.f32 %v3538, %v3907
    %v3909 = vpop.f32.mrb[0].mxu0
    %v3910 = vadd.f32 %v3534, %v3909
    %v3911 = vpop.f32.mrb[0].mxu0
    %v3912 = vadd.f32 %v3538, %v3911
    %3913 = vmatprep.mubr.bf16.mxu0 %v2516
    %3914 = vmatmul.mubr.bf16.gmra.mrb[0].mxu0 %v2515
    %v3915 = vpop.f32.mrb[0].mxu0
    %v3916 = vadd.f32 %v3534, %v3915
    %v3917 = vpop.f32.mrb[0].mxu0
    %v3918 = vadd.f32 %v3538, %v3917
    %v3919 = vpop.f32.mrb[0].mxu0
    %v3920 = vadd.f32 %v3534, %v3919
    %v3921 = vpop.f32.mrb[0].mxu0
    %v3922 = vadd.f32 %v3538, %v3921
    %3923 = vmatprep.mubr.bf16.mxu0 %v2518
    %3924 = vmatmul.mubr.bf16.gmra.mrb[0].mxu0 %v2517
    %v3925 = vpop.f32.mrb[0].mxu0
    %v3926 = vadd.f32 %v3534, %v3925
    %v3927 = vpop.f32.mrb[0].mxu0
    %v3928 = vadd.f32 %v3538, %v3927
    %v3929 = vpop.f32.mrb[0].mxu0
    %v3930 = vadd.f32 %v3534, %v3929
    %v3931 = vpop.f32.mrb[0].mxu0
    %v3932 = vadd.f32 %v3538, %v3931
    %3933 = vmatprep.mubr.bf16.mxu0 %v2520
    %3934 = vmatmul.mubr.bf16.gmra.mrb[0].mxu0 %v2519
    %v3935 = vpop.f32.mrb[0].mxu0
    %v3936 = vadd.f32 %v3534, %v3935
    %v3937 = vpop.f32.mrb[0].mxu0
    %v3938 = vadd.f32 %v3538, %v3937
    %v3939 = vpop.f32.mrb[0].mxu0
    %v3940 = vadd.f32 %v3534, %v3939
    %v3941 = vpop.f32.mrb[0].mxu0
    %v3942 = vadd.f32 %v3538, %v3941
    %3943 = vmatprep.mubr.bf16.mxu0 %v2522
    %3944 = vmatmul.mubr.bf16.gmra.mrb[0].mxu0 %v2521
    %v3945 = vpop.f32.mrb[0].mxu0
    %v3946 = vadd.f32 %v3534, %v3945
    %v3947 = vpop.f32.mrb[0].mxu0
    %v3948 = vadd.f32 %v3538, %v3947
    %v3949 = vpop.f32.mrb[0].mxu0
    %v3950 = vadd.f32 %v3534, %v3949
    %v3951 = vpop.f32.mrb[0].mxu0
    %v3952 = vadd.f32 %v3538, %v3951
    %3953 = vmatprep.mubr.bf16.mxu0 %v2524
    %3954 = vmatmul.mubr.bf16.gmra.mrb[0].mxu0 %v2523
    %v3955 = vpop.f32.mrb[0].mxu0
    %v3956 = vadd.f32 %v3534, %v3955
    %v3957 = vpop.f32.mrb[0].mxu0
    %v3958 = vadd.f32 %v3538, %v3957
    %v3959 = vpop.f32.mrb[0].mxu0
    %v3960 = vadd.f32 %v3534, %v3959
    %v3961 = vpop.f32.mrb[0].mxu0
    %v3962 = vadd.f32 %v3538, %v3961
    %3963 = vmatprep.mubr.bf16.mxu0 %v2526
    %3964 = vmatmul.mubr.bf16.gmra.mrb[0].mxu0 %v2525
    %v3965 = vpop.f32.mrb[0].mxu0
    %v3966 = vadd.f32 %v3534, %v3965
    %v3967 = vpop.f32.mrb[0].mxu0
    %v3968 = vadd.f32 %v3538, %v3967
    %v3969 = vpop.f32.mrb[0].mxu0
    %v3970 = vadd.f32 %v3534, %v3969
    %v3971 = vpop.f32.mrb[0].mxu0
    %v3972 = vadd.f32 %v3538, %v3971
    %3973 = vmatprep.mubr.bf16.mxu0 %v2528
    %3974 = vmatmul.mubr.bf16.gmra.mrb[0].mxu0 %v2527
    %v3975 = vpop.f32.mrb[0].mxu0
    %v3976 = vadd.f32 %v3534, %v3975
    %v3977 = vpop.f32.mrb[0].mxu0
    %v3978 = vadd.f32 %v3538, %v3977
    %v3979 = vpop.f32.mrb[0].mxu0
    %v3980 = vadd.f32 %v3534, %v3979
    %v3981 = vpop.f32.mrb[0].mxu0
    %v3982 = vadd.f32 %v3538, %v3981
    %3983 = vmatprep.mubr.bf16.mxu0 %v2530
    %3984 = vmatmul.mubr.bf16.gmra.mrb[0].mxu0 %v2529
    %v3985 = vpop.f32.mrb[0].mxu0
    %v3986 = vadd.f32 %v3534, %v3985
    %v3987 = vpop.f32.mrb[0].mxu0
    %v3988 = vadd.f32 %v3538, %v3987
    %v3989 = vpop.f32.mrb[0].mxu0
    %v3990 = vadd.f32 %v3534, %v3989
    %v3991 = vpop.f32.mrb[0].mxu0
    %v3992 = vadd.f32 %v3538, %v3991
    %3993 = vmatprep.mubr.bf16.mxu0 %v2532
    %3994 = vmatmul.mubr.bf16.gmra.mrb[0].mxu0 %v2531
    %v3995 = vpop.f32.mrb[0].mxu0
    %v3996 = vadd.f32 %v3534, %v3995
    %v3997 = vpop.f32.mrb[0].mxu0
    %v3998 = vadd.f32 %v3538, %v3997
    %v3999 = vpop.f32.mrb[0].mxu0
    %v4000 = vadd.f32 %v3534, %v3999
    %v4001 = vpop.f32.mrb[0].mxu0
    %v4002 = vadd.f32 %v3538, %v4001
    %4003 = vmatprep.mubr.bf16.mxu0 %v2534
    %4004 = vmatmul.mubr.bf16.gmra.mrb[0].mxu0 %v2533
    %v4005 = vpop.f32.mrb[0].mxu0
    %v4006 = vadd.f32 %v3534, %v4005
    %v4007 = vpop.f32.mrb[0].mxu0
    %v4008 = vadd.f32 %v3538, %v4007
    %v4009 = vpop.f32.mrb[0].mxu0
    %v4010 = vadd.f32 %v3534, %v4009
    %v4011 = vpop.f32.mrb[0].mxu0
    %v4012 = vadd.f32 %v3538, %v4011
    %4013 = vmatprep.mubr.bf16.mxu0 %v2536
    %4014 = vmatmul.mubr.bf16.gmra.mrb[0].mxu0 %v2535
    %v4015 = vpop.f32.mrb[0].mxu0
    %v4016 = vadd.f32 %v3534, %v4015
    %v4017 = vpop.f32.mrb[0].mxu0
    %v4018 = vadd.f32 %v3538, %v4017
    %v4019 = vpop.f32.mrb[0].mxu0
    %v4020 = vadd.f32 %v3534, %v4019
    %v4021 = vpop.f32.mrb[0].mxu0
    %v4022 = vadd.f32 %v3538, %v4021
    %4023 = vmatprep.mubr.bf16.mxu0 %v2538
    %4024 = vmatmul.mubr.bf16.gmra.mrb[0].mxu0 %v2537
    %v4025 = vpop.f32.mrb[0].mxu0
    %v4026 = vadd.f32 %v3534, %v4025
    %v4027 = vpop.f32.mrb[0].mxu0
    %v4028 = vadd.f32 %v3538, %v4027
    %v4029 = vpop.f32.mrb[0].mxu0
    %v4030 = vadd.f32 %v3534, %v4029
    %v4031 = vpop.f32.mrb[0].mxu0
    %v4032 = vadd.f32 %v3538, %v4031
    %4033 = vmatprep.mubr.bf16.mxu0 %v2540
    %4034 = vmatmul.mubr.bf16.gmra.mrb[0].mxu0 %v2539
    %v4035 = vpop.f32.mrb[0].mxu0
    %v4036 = vadd.f32 %v3534, %v4035
    %v4037 = vpop.f32.mrb[0].mxu0
    %v4038 = vadd.f32 %v3538, %v4037
    %v4039 = vpop.f32.mrb[0].mxu0
    %v4040 = vadd.f32 %v3534, %v4039
    %v4041 = vpop.f32.mrb[0].mxu0
    %v4042 = vadd.f32 %v3538, %v4041
    %4043 = vmatprep.mubr.bf16.mxu0 %v2542
    %4044 = vmatmul.mubr.bf16.gmra.mrb[0].mxu0 %v2541
    %v4045 = vpop.f32.mrb[0].mxu0
    %v4046 = vadd.f32 %v3534, %v4045
    %v4047 = vpop.f32.mrb[0].mxu0
    %v4048 = vadd.f32 %v3538, %v4047
    %v4049 = vpop.f32.mrb[0].mxu0
    %v4050 = vadd.f32 %v3534, %v4049
    %v4051 = vpop.f32.mrb[0].mxu0
    %v4052 = vadd.f32 %v3538, %v4051
    %4053 = vmatprep.mubr.bf16.mxu0 %v2544
    %4054 = vmatmul.mubr.bf16.gmra.mrb[0].mxu0 %v2543
    %v4055 = vpop.f32.mrb[0].mxu0
    %v4056 = vadd.f32 %v3534, %v4055
    %v4057 = vpop.f32.mrb[0].mxu0
    %v4058 = vadd.f32 %v3538, %v4057
    %v4059 = vpop.f32.mrb[0].mxu0
    %v4060 = vadd.f32 %v3534, %v4059
    %v4061 = vpop.f32.mrb[0].mxu0
    %v4062 = vadd.f32 %v3538, %v4061
    %4063 = vdwg.mxu0
    %4064 = vmatprep.subr.bf16.mxu0 %v3746
    %4065 = vmatpush1.bf16.msra.mxu0 %v3745
    %4066 = vmatprep.subr.bf16.mxu0 %v3750
    %4067 = vmatpush1.bf16.msra.mxu0 %v3749
    %4068 = vmatprep.subr.bf16.mxu0 %v3754
    %4069 = vmatpush1.bf16.msra.mxu0 %v3753
    %4070 = vmatprep.subr.bf16.mxu0 %v3758
    %4071 = vmatpush1.bf16.msra.mxu0 %v3757
    %4072 = vmatprep.subr.bf16.mxu0 %v3762
    %4073 = vmatpush1.bf16.msra.mxu0 %v3761
    %4074 = vmatprep.subr.bf16.mxu0 %v3766
    %4075 = vmatpush1.bf16.msra.mxu0 %v3765
    %4076 = vmatprep.subr.bf16.mxu0 %v3770
    %4077 = vmatpush1.bf16.msra.mxu0 %v3769
    %4078 = vmatprep.subr.bf16.mxu0 %v3774
    %4079 = vmatpush1.bf16.msra.mxu0 %v3773
    %4080 = vmatprep.subr.bf16.mxu0 %v3778
    %4081 = vmatpush1.bf16.msra.mxu0 %v3777
    %4082 = vmatprep.subr.bf16.mxu0 %v3782
    %4083 = vmatpush1.bf16.msra.mxu0 %v3781
    %4084 = vmatprep.subr.bf16.mxu0 %v3786
    %4085 = vmatpush1.bf16.msra.mxu0 %v3785
    %4086 = vmatprep.subr.bf16.mxu0 %v3790
    %4087 = vmatpush1.bf16.msra.mxu0 %v3789
    %4088 = vmatprep.subr.bf16.mxu0 %v3794
    %4089 = vmatpush1.bf16.msra.mxu0 %v3793
    %4090 = vmatprep.subr.bf16.mxu0 %v3798
    %4091 = vmatpush1.bf16.msra.mxu0 %v3797
    %4092 = vmatprep.subr.bf16.mxu0 %v3802
    %4093 = vmatpush1.bf16.msra.mxu0 %v3801
    %4094 = vmatprep.subr.bf16.mxu0 %v3806
    %4095 = vmatpush1.bf16.msra.mxu0 %v3805
    %4096 = vmatprep.mubr.bf16.mxu0 %v2514
    %4097 = vmatmul.mubr.bf16.gmra.mrb[0].mxu0 %v2513
    %v4098 = vpop.f32.mrb[0].mxu0
    %v4099 = vadd.f32 %v3542, %v4098
    %v4100 = vpop.f32.mrb[0].mxu0
    %v4101 = vadd.f32 %v3546, %v4100
    %v4102 = vpop.f32.mrb[0].mxu0
    %v4103 = vadd.f32 %v3542, %v4102
    %v4104 = vpop.f32.mrb[0].mxu0
    %v4105 = vadd.f32 %v3546, %v4104
    %4106 = vmatprep.mubr.bf16.mxu0 %v2516
    %4107 = vmatmul.mubr.bf16.gmra.mrb[0].mxu0 %v2515
    %v4108 = vpop.f32.mrb[0].mxu0
    %v4109 = vadd.f32 %v3542, %v4108
    %v4110 = vpop.f32.mrb[0].mxu0
    %v4111 = vadd.f32 %v3546, %v4110
    %v4112 = vpop.f32.mrb[0].mxu0
    %v4113 = vadd.f32 %v3542, %v4112
    %v4114 = vpop.f32.mrb[0].mxu0
    %v4115 = vadd.f32 %v3546, %v4114
    %4116 = vmatprep.mubr.bf16.mxu0 %v2518
    %4117 = vmatmul.mubr.bf16.gmra.mrb[0].mxu0 %v2517
    %v4118 = vpop.f32.mrb[0].mxu0
    %v4119 = vadd.f32 %v3542, %v4118
    %v4120 = vpop.f32.mrb[0].mxu0
    %v4121 = vadd.f32 %v3546, %v4120
    %v4122 = vpop.f32.mrb[0].mxu0
    %v4123 = vadd.f32 %v3542, %v4122
    %v4124 = vpop.f32.mrb[0].mxu0
    %v4125 = vadd.f32 %v3546, %v4124
    %4126 = vmatprep.mubr.bf16.mxu0 %v2520
    %4127 = vmatmul.mubr.bf16.gmra.mrb[0].mxu0 %v2519
    %v4128 = vpop.f32.mrb[0].mxu0
    %v4129 = vadd.f32 %v3542, %v4128
    %v4130 = vpop.f32.mrb[0].mxu0
    %v4131 = vadd.f32 %v3546, %v4130
    %v4132 = vpop.f32.mrb[0].mxu0
    %v4133 = vadd.f32 %v3542, %v4132
    %v4134 = vpop.f32.mrb[0].mxu0
    %v4135 = vadd.f32 %v3546, %v4134
    %4136 = vmatprep.mubr.bf16.mxu0 %v2522
    %4137 = vmatmul.mubr.bf16.gmra.mrb[0].mxu0 %v2521
    %v4138 = vpop.f32.mrb[0].mxu0
    %v4139 = vadd.f32 %v3542, %v4138
    %v4140 = vpop.f32.mrb[0].mxu0
    %v4141 = vadd.f32 %v3546, %v4140
    %v4142 = vpop.f32.mrb[0].mxu0
    %v4143 = vadd.f32 %v3542, %v4142
    %v4144 = vpop.f32.mrb[0].mxu0
    %v4145 = vadd.f32 %v3546, %v4144
    %4146 = vmatprep.mubr.bf16.mxu0 %v2524
    %4147 = vmatmul.mubr.bf16.gmra.mrb[0].mxu0 %v2523
    %v4148 = vpop.f32.mrb[0].mxu0
    %v4149 = vadd.f32 %v3542, %v4148
    %v4150 = vpop.f32.mrb[0].mxu0
    %v4151 = vadd.f32 %v3546, %v4150
    %v4152 = vpop.f32.mrb[0].mxu0
    %v4153 = vadd.f32 %v3542, %v4152
    %v4154 = vpop.f32.mrb[0].mxu0
    %v4155 = vadd.f32 %v3546, %v4154
    %4156 = vmatprep.mubr.bf16.mxu0 %v2526
    %4157 = vmatmul.mubr.bf16.gmra.mrb[0].mxu0 %v2525
    %v4158 = vpop.f32.mrb[0].mxu0
    %v4159 = vadd.f32 %v3542, %v4158
    %v4160 = vpop.f32.mrb[0].mxu0
    %v4161 = vadd.f32 %v3546, %v4160
    %v4162 = vpop.f32.mrb[0].mxu0
    %v4163 = vadd.f32 %v3542, %v4162
    %v4164 = vpop.f32.mrb[0].mxu0
    %v4165 = vadd.f32 %v3546, %v4164
    %4166 = vmatprep.mubr.bf16.mxu0 %v2528
    %4167 = vmatmul.mubr.bf16.gmra.mrb[0].mxu0 %v2527
    %v4168 = vpop.f32.mrb[0].mxu0
    %v4169 = vadd.f32 %v3542, %v4168
    %v4170 = vpop.f32.mrb[0].mxu0
    %v4171 = vadd.f32 %v3546, %v4170
    %v4172 = vpop.f32.mrb[0].mxu0
    %v4173 = vadd.f32 %v3542, %v4172
    %v4174 = vpop.f32.mrb[0].mxu0
    %v4175 = vadd.f32 %v3546, %v4174
    %4176 = vmatprep.mubr.bf16.mxu0 %v2530
    %4177 = vmatmul.mubr.bf16.gmra.mrb[0].mxu0 %v2529
    %v4178 = vpop.f32.mrb[0].mxu0
    %v4179 = vadd.f32 %v3542, %v4178
    %v4180 = vpop.f32.mrb[0].mxu0
    %v4181 = vadd.f32 %v3546, %v4180
    %v4182 = vpop.f32.mrb[0].mxu0
    %v4183 = vadd.f32 %v3542, %v4182
    %v4184 = vpop.f32.mrb[0].mxu0
    %v4185 = vadd.f32 %v3546, %v4184
    %4186 = vmatprep.mubr.bf16.mxu0 %v2532
    %4187 = vmatmul.mubr.bf16.gmra.mrb[0].mxu0 %v2531
    %v4188 = vpop.f32.mrb[0].mxu0
    %v4189 = vadd.f32 %v3542, %v4188
    %v4190 = vpop.f32.mrb[0].mxu0
    %v4191 = vadd.f32 %v3546, %v4190
    %v4192 = vpop.f32.mrb[0].mxu0
    %v4193 = vadd.f32 %v3542, %v4192
    %v4194 = vpop.f32.mrb[0].mxu0
    %v4195 = vadd.f32 %v3546, %v4194
    %4196 = vmatprep.mubr.bf16.mxu0 %v2534
    %4197 = vmatmul.mubr.bf16.gmra.mrb[0].mxu0 %v2533
    %v4198 = vpop.f32.mrb[0].mxu0
    %v4199 = vadd.f32 %v3542, %v4198
    %v4200 = vpop.f32.mrb[0].mxu0
    %v4201 = vadd.f32 %v3546, %v4200
    %v4202 = vpop.f32.mrb[0].mxu0
    %v4203 = vadd.f32 %v3542, %v4202
    %v4204 = vpop.f32.mrb[0].mxu0
    %v4205 = vadd.f32 %v3546, %v4204
    %4206 = vmatprep.mubr.bf16.mxu0 %v2536
    %4207 = vmatmul.mubr.bf16.gmra.mrb[0].mxu0 %v2535
    %v4208 = vpop.f32.mrb[0].mxu0
    %v4209 = vadd.f32 %v3542, %v4208
    %v4210 = vpop.f32.mrb[0].mxu0
    %v4211 = vadd.f32 %v3546, %v4210
    %v4212 = vpop.f32.mrb[0].mxu0
    %v4213 = vadd.f32 %v3542, %v4212
    %v4214 = vpop.f32.mrb[0].mxu0
    %v4215 = vadd.f32 %v3546, %v4214
    %4216 = vmatprep.mubr.bf16.mxu0 %v2538
    %4217 = vmatmul.mubr.bf16.gmra.mrb[0].mxu0 %v2537
    %v4218 = vpop.f32.mrb[0].mxu0
    %v4219 = vadd.f32 %v3542, %v4218
    %v4220 = vpop.f32.mrb[0].mxu0
    %v4221 = vadd.f32 %v3546, %v4220
    %v4222 = vpop.f32.mrb[0].mxu0
    %v4223 = vadd.f32 %v3542, %v4222
    %v4224 = vpop.f32.mrb[0].mxu0
    %v4225 = vadd.f32 %v3546, %v4224
    %4226 = vmatprep.mubr.bf16.mxu0 %v2540
    %4227 = vmatmul.mubr.bf16.gmra.mrb[0].mxu0 %v2539
    %v4228 = vpop.f32.mrb[0].mxu0
    %v4229 = vadd.f32 %v3542, %v4228
    %v4230 = vpop.f32.mrb[0].mxu0
    %v4231 = vadd.f32 %v3546, %v4230
    %v4232 = vpop.f32.mrb[0].mxu0
    %v4233 = vadd.f32 %v3542, %v4232
    %v4234 = vpop.f32.mrb[0].mxu0
    %v4235 = vadd.f32 %v3546, %v4234
    %4236 = vmatprep.mubr.bf16.mxu0 %v2542
    %4237 = vmatmul.mubr.bf16.gmra.mrb[0].mxu0 %v2541
    %v4238 = vpop.f32.mrb[0].mxu0
    %v4239 = vadd.f32 %v3542, %v4238
    %v4240 = vpop.f32.mrb[0].mxu0
    %v4241 = vadd.f32 %v3546, %v4240
    %v4242 = vpop.f32.mrb[0].mxu0
    %v4243 = vadd.f32 %v3542, %v4242
    %v4244 = vpop.f32.mrb[0].mxu0
    %v4245 = vadd.f32 %v3546, %v4244
    %4246 = vmatprep.mubr.bf16.mxu0 %v2544
    %4247 = vmatmul.mubr.bf16.gmra.mrb[0].mxu0 %v2543
    %v4248 = vpop.f32.mrb[0].mxu0
    %v4249 = vadd.f32 %v3542, %v4248
    %v4250 = vpop.f32.mrb[0].mxu0
    %v4251 = vadd.f32 %v3546, %v4250
    %v4252 = vpop.f32.mrb[0].mxu0
    %v4253 = vadd.f32 %v3542, %v4252
    %v4254 = vpop.f32.mrb[0].mxu0
    %v4255 = vadd.f32 %v3546, %v4254
    %4256 = vdwg.mxu0
    %4257 = vst [vmem:[#allocation5] sm:$0xff] %v3906
    %4258 = vst [vmem:[#allocation5 + $0x8] sm:$0xff] %v3908
    %4259 = vst [vmem:[#allocation5 + $0x10] sm:$0xff] %v4099
    %4260 = vst [vmem:[#allocation5 + $0x18] sm:$0xff] %v4101
    %4261 = vst [vmem:[#allocation5 + $0x20] sm:$0xff] %v3910
    %4262 = vst [vmem:[#allocation5 + $0x28] sm:$0xff] %v3912
    %4263 = vst [vmem:[#allocation5 + $0x30] sm:$0xff] %v4103
    %4264 = vst [vmem:[#allocation5 + $0x38] sm:$0xff] %v4105
    %4265 = vst [vmem:[#allocation5 + $0x40] sm:$0xff] %v3916
    %4266 = vst [vmem:[#allocation5 + $0x48] sm:$0xff] %v3918
    %4267 = vst [vmem:[#allocation5 + $0x50] sm:$0xff] %v4109
    %4268 = vst [vmem:[#allocation5 + $0x58] sm:$0xff] %v4111
    %4269 = vst [vmem:[#allocation5 + $0x60] sm:$0xff] %v3920
    %4270 = vst [vmem:[#allocation5 + $0x68] sm:$0xff] %v3922
    %4271 = vst [vmem:[#allocation5 + $0x70] sm:$0xff] %v4113
    %4272 = vst [vmem:[#allocation5 + $0x78] sm:$0xff] %v4115
    %4273 = vst [vmem:[#allocation5 + $0x80] sm:$0xff] %v3926
    %4274 = vst [vmem:[#allocation5 + $0x88] sm:$0xff] %v3928
    %4275 = vst [vmem:[#allocation5 + $0x90] sm:$0xff] %v4119
    %4276 = vst [vmem:[#allocation5 + $0x98] sm:$0xff] %v4121
    %4277 = vst [vmem:[#allocation5 + $0xa0] sm:$0xff] %v3930
    %4278 = vst [vmem:[#allocation5 + $0xa8] sm:$0xff] %v3932
    %4279 = vst [vmem:[#allocation5 + $0xb0] sm:$0xff] %v4123
    %4280 = vst [vmem:[#allocation5 + $0xb8] sm:$0xff] %v4125
    %4281 = vst [vmem:[#allocation5 + $0xc0] sm:$0xff] %v3936
    %4282 = vst [vmem:[#allocation5 + $0xc8] sm:$0xff] %v3938
    %4283 = vst [vmem:[#allocation5 + $0xd0] sm:$0xff] %v4129
    %4284 = vst [vmem:[#allocation5 + $0xd8] sm:$0xff] %v4131
    %4285 = vst [vmem:[#allocation5 + $0xe0] sm:$0xff] %v3940
    %4286 = vst [vmem:[#allocation5 + $0xe8] sm:$0xff] %v3942
    %4287 = vst [vmem:[#allocation5 + $0xf0] sm:$0xff] %v4133
    %4288 = vst [vmem:[#allocation5 + $0xf8] sm:$0xff] %v4135
    %4289 = vst [vmem:[#allocation5 + $0x100] sm:$0xff] %v3946
    %4290 = vst [vmem:[#allocation5 + $0x108] sm:$0xff] %v3948
    %4291 = vst [vmem:[#allocation5 + $0x110] sm:$0xff] %v4139
    %4292 = vst [vmem:[#allocation5 + $0x118] sm:$0xff] %v4141
    %4293 = vst [vmem:[#allocation5 + $0x120] sm:$0xff] %v3950
    %4294 = vst [vmem:[#allocation5 + $0x128] sm:$0xff] %v3952
    %4295 = vst [vmem:[#allocation5 + $0x130] sm:$0xff] %v4143
    %4296 = vst [vmem:[#allocation5 + $0x138] sm:$0xff] %v4145
    %4297 = vst [vmem:[#allocation5 + $0x140] sm:$0xff] %v3956
    %4298 = vst [vmem:[#allocation5 + $0x148] sm:$0xff] %v3958
    %4299 = vst [vmem:[#allocation5 + $0x150] sm:$0xff] %v4149
    %4300 = vst [vmem:[#allocation5 + $0x158] sm:$0xff] %v4151
    %4301 = vst [vmem:[#allocation5 + $0x160] sm:$0xff] %v3960
    %4302 = vst [vmem:[#allocation5 + $0x168] sm:$0xff] %v3962
    %4303 = vst [vmem:[#allocation5 + $0x170] sm:$0xff] %v4153
    %4304 = vst [vmem:[#allocation5 + $0x178] sm:$0xff] %v4155
    %4305 = vst [vmem:[#allocation5 + $0x180] sm:$0xff] %v3966
    %4306 = vst [vmem:[#allocation5 + $0x188] sm:$0xff] %v3968
    %4307 = vst [vmem:[#allocation5 + $0x190] sm:$0xff] %v4159
    %4308 = vst [vmem:[#allocation5 + $0x198] sm:$0xff] %v4161
    %4309 = vst [vmem:[#allocation5 + $0x1a0] sm:$0xff] %v3970
    %4310 = vst [vmem:[#allocation5 + $0x1a8] sm:$0xff] %v3972
    %4311 = vst [vmem:[#allocation5 + $0x1b0] sm:$0xff] %v4163
    %4312 = vst [vmem:[#allocation5 + $0x1b8] sm:$0xff] %v4165
    %4313 = vst [vmem:[#allocation5 + $0x1c0] sm:$0xff] %v3976
    %4314 = vst [vmem:[#allocation5 + $0x1c8] sm:$0xff] %v3978
    %4315 = vst [vmem:[#allocation5 + $0x1d0] sm:$0xff] %v4169
    %4316 = vst [vmem:[#allocation5 + $0x1d8] sm:$0xff] %v4171
    %4317 = vst [vmem:[#allocation5 + $0x1e0] sm:$0xff] %v3980
    %4318 = vst [vmem:[#allocation5 + $0x1e8] sm:$0xff] %v3982
    %4319 = vst [vmem:[#allocation5 + $0x1f0] sm:$0xff] %v4173
    %4320 = vst [vmem:[#allocation5 + $0x1f8] sm:$0xff] %v4175
    %4321 = vst [vmem:[#allocation5 + $0x200] sm:$0xff] %v3986
    %4322 = vst [vmem:[#allocation5 + $0x208] sm:$0xff] %v3988
    %4323 = vst [vmem:[#allocation5 + $0x210] sm:$0xff] %v4179
    %4324 = vst [vmem:[#allocation5 + $0x218] sm:$0xff] %v4181
    %4325 = vst [vmem:[#allocation5 + $0x220] sm:$0xff] %v3990
    %4326 = vst [vmem:[#allocation5 + $0x228] sm:$0xff] %v3992
    %4327 = vst [vmem:[#allocation5 + $0x230] sm:$0xff] %v4183
    %4328 = vst [vmem:[#allocation5 + $0x238] sm:$0xff] %v4185
    %4329 = vst [vmem:[#allocation5 + $0x240] sm:$0xff] %v3996
    %4330 = vst [vmem:[#allocation5 + $0x248] sm:$0xff] %v3998
    %4331 = vst [vmem:[#allocation5 + $0x250] sm:$0xff] %v4189
    %4332 = vst [vmem:[#allocation5 + $0x258] sm:$0xff] %v4191
    %4333 = vst [vmem:[#allocation5 + $0x260] sm:$0xff] %v4000
    %4334 = vst [vmem:[#allocation5 + $0x268] sm:$0xff] %v4002
    %4335 = vst [vmem:[#allocation5 + $0x270] sm:$0xff] %v4193
    %4336 = vst [vmem:[#allocation5 + $0x278] sm:$0xff] %v4195
    %4337 = vst [vmem:[#allocation5 + $0x280] sm:$0xff] %v4006
    %4338 = vst [vmem:[#allocation5 + $0x288] sm:$0xff] %v4008
    %4339 = vst [vmem:[#allocation5 + $0x290] sm:$0xff] %v4199
    %4340 = vst [vmem:[#allocation5 + $0x298] sm:$0xff] %v4201
    %4341 = vst [vmem:[#allocation5 + $0x2a0] sm:$0xff] %v4010
    %4342 = vst [vmem:[#allocation5 + $0x2a8] sm:$0xff] %v4012
    %4343 = vst [vmem:[#allocation5 + $0x2b0] sm:$0xff] %v4203
    %4344 = vst [vmem:[#allocation5 + $0x2b8] sm:$0xff] %v4205
    %4345 = vst [vmem:[#allocation5 + $0x2c0] sm:$0xff] %v4016
    %4346 = vst [vmem:[#allocation5 + $0x2c8] sm:$0xff] %v4018
    %4347 = vst [vmem:[#allocation5 + $0x2d0] sm:$0xff] %v4209
    %4348 = vst [vmem:[#allocation5 + $0x2d8] sm:$0xff] %v4211
    %4349 = vst [vmem:[#allocation5 + $0x2e0] sm:$0xff] %v4020
    %4350 = vst [vmem:[#allocation5 + $0x2e8] sm:$0xff] %v4022
    %4351 = vst [vmem:[#allocation5 + $0x2f0] sm:$0xff] %v4213
    %4352 = vst [vmem:[#allocation5 + $0x2f8] sm:$0xff] %v4215
    %4353 = vst [vmem:[#allocation5 + $0x300] sm:$0xff] %v4026
    %4354 = vst [vmem:[#allocation5 + $0x308] sm:$0xff] %v4028
    %4355 = vst [vmem:[#allocation5 + $0x310] sm:$0xff] %v4219
    %4356 = vst [vmem:[#allocation5 + $0x318] sm:$0xff] %v4221
    %4357 = vst [vmem:[#allocation5 + $0x320] sm:$0xff] %v4030
    %4358 = vst [vmem:[#allocation5 + $0x328] sm:$0xff] %v4032
    %4359 = vst [vmem:[#allocation5 + $0x330] sm:$0xff] %v4223
    %4360 = vst [vmem:[#allocation5 + $0x338] sm:$0xff] %v4225
    %4361 = vst [vmem:[#allocation5 + $0x340] sm:$0xff] %v4036
    %4362 = vst [vmem:[#allocation5 + $0x348] sm:$0xff] %v4038
    %4363 = vst [vmem:[#allocation5 + $0x350] sm:$0xff] %v4229
    %4364 = vst [vmem:[#allocation5 + $0x358] sm:$0xff] %v4231
    %4365 = vst [vmem:[#allocation5 + $0x360] sm:$0xff] %v4040
    %4366 = vst [vmem:[#allocation5 + $0x368] sm:$0xff] %v4042
    %4367 = vst [vmem:[#allocation5 + $0x370] sm:$0xff] %v4233
    %4368 = vst [vmem:[#allocation5 + $0x378] sm:$0xff] %v4235
    %4369 = vst [vmem:[#allocation5 + $0x380] sm:$0xff] %v4046
    %4370 = vst [vmem:[#allocation5 + $0x388] sm:$0xff] %v4048
    %4371 = vst [vmem:[#allocation5 + $0x390] sm:$0xff] %v4239
    %4372 = vst [vmem:[#allocation5 + $0x398] sm:$0xff] %v4241
    %4373 = vst [vmem:[#allocation5 + $0x3a0] sm:$0xff] %v4050
    %4374 = vst [vmem:[#allocation5 + $0x3a8] sm:$0xff] %v4052
    %4375 = vst [vmem:[#allocation5 + $0x3b0] sm:$0xff] %v4243
    %4376 = vst [vmem:[#allocation5 + $0x3b8] sm:$0xff] %v4245
    %4377 = vst [vmem:[#allocation5 + $0x3c0] sm:$0xff] %v4056
    %4378 = vst [vmem:[#allocation5 + $0x3c8] sm:$0xff] %v4058
    %4379 = vst [vmem:[#allocation5 + $0x3d0] sm:$0xff] %v4249
    %4380 = vst [vmem:[#allocation5 + $0x3d8] sm:$0xff] %v4251
    %4381 = vst [vmem:[#allocation5 + $0x3e0] sm:$0xff] %v4060
    %4382 = vst [vmem:[#allocation5 + $0x3e8] sm:$0xff] %v4062
    %4383 = vst [vmem:[#allocation5 + $0x3f0] sm:$0xff] %v4253
    %4384 = vst [vmem:[#allocation5 + $0x3f8] sm:$0xff] %v4255
    loop: start=0, step=1, limit=32
    $region137: #{net_forward.1} parent=1 // loop_pre_header
      _
    $region138: #{net_forward.1} parent=1 // loop_header
      %s4386 = sphi 0, %s4390
      %p4387 = scmp.ge.s32.totalorder %s4386, 32
      %v4391 = vphi 0.0, %v4997
      %v4392 = vphi 0.0, %v4995
      %v4393 = vphi 0.0, %v5021
      %v4394 = vphi 0.0, %v5019
    $region139: #{net_forward.1} parent=1 // loop_header_branch
      %4389 = sbr.rel (%p4387) target = $region143
    $region140: #{net_forward.1} parent=1 // loop_body
      %s4395 = smul.u32 %s4386, 8
      %s4396 = ssub.s32 31, %s4386
      %s4397 = smul.u32 %s4396, 8
      %s4398 = sshra.s32 %s4395, 3
      %s4399 = sand.u32 %s4395, 7
      %s4400 = smul.u32 %s4398, 4
      %s4401 = smul.addr %s4400, 8
      %s4402 = scalar_lea.vmem [#allocation4], %s4401
      %v4403 = vld [vmem:[%s4402] sm:$0xff]
      %v4404 = vld [vmem:[%s4402 + $0x8] sm:$0xff]
      %v4405 = vld [vmem:[%s4402 + $0x10] sm:$0xff]
      %v4406 = vld [vmem:[%s4402 + $0x18] sm:$0xff]
      %v4407 = vpack.c.bf16 %v4391, %v4391
      %v4408 = vld [vmem:[#allocation13] sm:$0xff]
      %v4409 = vld [vmem:[#allocation13 + $0x8] sm:$0xff]
      %v4410 = vld [vmem:[#allocation13 + $0x10] sm:$0xff]
      %v4411 = vld [vmem:[#allocation13 + $0x18] sm:$0xff]
      %v4412 = vld [vmem:[#allocation13 + $0x20] sm:$0xff]
      %v4413 = vld [vmem:[#allocation13 + $0x28] sm:$0xff]
      %v4414 = vld [vmem:[#allocation13 + $0x30] sm:$0xff]
      %v4415 = vld [vmem:[#allocation13 + $0x38] sm:$0xff]
      %v4416 = vld [vmem:[#allocation13 + $0x40] sm:$0xff]
      %v4417 = vld [vmem:[#allocation13 + $0x48] sm:$0xff]
      %v4418 = vld [vmem:[#allocation13 + $0x50] sm:$0xff]
      %v4419 = vld [vmem:[#allocation13 + $0x58] sm:$0xff]
      %v4420 = vld [vmem:[#allocation13 + $0x60] sm:$0xff]
      %v4421 = vld [vmem:[#allocation13 + $0x68] sm:$0xff]
      %v4422 = vld [vmem:[#allocation13 + $0x70] sm:$0xff]
      %v4423 = vld [vmem:[#allocation13 + $0x78] sm:$0xff]
      %v4424 = vld [vmem:[#allocation13 + $0x80] sm:$0xff]
      %v4425 = vld [vmem:[#allocation13 + $0x88] sm:$0xff]
      %v4426 = vld [vmem:[#allocation13 + $0x90] sm:$0xff]
      %v4427 = vld [vmem:[#allocation13 + $0x98] sm:$0xff]
      %v4428 = vld [vmem:[#allocation13 + $0xa0] sm:$0xff]
      %v4429 = vld [vmem:[#allocation13 + $0xa8] sm:$0xff]
      %v4430 = vld [vmem:[#allocation13 + $0xb0] sm:$0xff]
      %v4431 = vld [vmem:[#allocation13 + $0xb8] sm:$0xff]
      %v4432 = vld [vmem:[#allocation13 + $0xc0] sm:$0xff]
      %v4433 = vld [vmem:[#allocation13 + $0xc8] sm:$0xff]
      %v4434 = vld [vmem:[#allocation13 + $0xd0] sm:$0xff]
      %v4435 = vld [vmem:[#allocation13 + $0xd8] sm:$0xff]
      %v4436 = vld [vmem:[#allocation13 + $0xe0] sm:$0xff]
      %v4437 = vld [vmem:[#allocation13 + $0xe8] sm:$0xff]
      %v4438 = vld [vmem:[#allocation13 + $0xf0] sm:$0xff]
      %v4439 = vld [vmem:[#allocation13 + $0xf8] sm:$0xff]
      %v4472 = vunpack.c.l.b16 %v4408
      %v4473 = vunpack.c.h.b16 %v4408
      %v4474 = vunpack.c.l.b16 %v4409
      %v4475 = vunpack.c.h.b16 %v4409
      %v4476 = vunpack.c.l.b16 %v4410
      %v4477 = vunpack.c.h.b16 %v4410
      %v4478 = vunpack.c.l.b16 %v4411
      %v4479 = vunpack.c.h.b16 %v4411
      %v4480 = vunpack.c.l.b16 %v4412
      %v4481 = vunpack.c.h.b16 %v4412
      %v4482 = vunpack.c.l.b16 %v4413
      %v4483 = vunpack.c.h.b16 %v4413
      %v4484 = vunpack.c.l.b16 %v4414
      %v4485 = vunpack.c.h.b16 %v4414
      %v4486 = vunpack.c.l.b16 %v4415
      %v4487 = vunpack.c.h.b16 %v4415
      %v4488 = vunpack.c.l.b16 %v4416
      %v4489 = vunpack.c.h.b16 %v4416
      %v4490 = vunpack.c.l.b16 %v4417
      %v4491 = vunpack.c.h.b16 %v4417
      %v4492 = vunpack.c.l.b16 %v4418
      %v4493 = vunpack.c.h.b16 %v4418
      %v4494 = vunpack.c.l.b16 %v4419
      %v4495 = vunpack.c.h.b16 %v4419
      %v4496 = vunpack.c.l.b16 %v4420
      %v4497 = vunpack.c.h.b16 %v4420
      %v4498 = vunpack.c.l.b16 %v4421
      %v4499 = vunpack.c.h.b16 %v4421
      %v4500 = vunpack.c.l.b16 %v4422
      %v4501 = vunpack.c.h.b16 %v4422
      %v4502 = vunpack.c.l.b16 %v4423
      %v4503 = vunpack.c.h.b16 %v4423
      %v4504 = vunpack.c.l.b16 %v4424
      %v4505 = vunpack.c.h.b16 %v4424
      %v4506 = vunpack.c.l.b16 %v4425
      %v4507 = vunpack.c.h.b16 %v4425
      %v4508 = vunpack.c.l.b16 %v4426
      %v4509 = vunpack.c.h.b16 %v4426
      %v4510 = vunpack.c.l.b16 %v4427
      %v4511 = vunpack.c.h.b16 %v4427
      %v4512 = vunpack.c.l.b16 %v4428
      %v4513 = vunpack.c.h.b16 %v4428
      %v4514 = vunpack.c.l.b16 %v4429
      %v4515 = vunpack.c.h.b16 %v4429
      %v4516 = vunpack.c.l.b16 %v4430
      %v4517 = vunpack.c.h.b16 %v4430
      %v4518 = vunpack.c.l.b16 %v4431
      %v4519 = vunpack.c.h.b16 %v4431
      %v4520 = vunpack.c.l.b16 %v4432
      %v4521 = vunpack.c.h.b16 %v4432
      %v4522 = vunpack.c.l.b16 %v4433
      %v4523 = vunpack.c.h.b16 %v4433
      %v4524 = vunpack.c.l.b16 %v4434
      %v4525 = vunpack.c.h.b16 %v4434
      %v4526 = vunpack.c.l.b16 %v4435
      %v4527 = vunpack.c.h.b16 %v4435
      %v4528 = vunpack.c.l.b16 %v4436
      %v4529 = vunpack.c.h.b16 %v4436
      %v4530 = vunpack.c.l.b16 %v4437
      %v4531 = vunpack.c.h.b16 %v4437
      %v4532 = vunpack.c.l.b16 %v4438
      %v4533 = vunpack.c.h.b16 %v4438
      %v4534 = vunpack.c.l.b16 %v4439
      %v4535 = vunpack.c.h.b16 %v4439
      %v4536 = vpack.c.b16 %v4476, %v4472
      %v4537 = vpack.c.b16 %v4477, %v4473
      %v4538 = vpack.c.b16 %v4478, %v4474
      %v4539 = vpack.c.b16 %v4479, %v4475
      %v4540 = vpack.c.b16 %v4484, %v4480
      %v4541 = vpack.c.b16 %v4485, %v4481
      %v4542 = vpack.c.b16 %v4486, %v4482
      %v4543 = vpack.c.b16 %v4487, %v4483
      %v4544 = vpack.c.b16 %v4492, %v4488
      %v4545 = vpack.c.b16 %v4493, %v4489
      %v4546 = vpack.c.b16 %v4494, %v4490
      %v4547 = vpack.c.b16 %v4495, %v4491
      %v4548 = vpack.c.b16 %v4500, %v4496
      %v4549 = vpack.c.b16 %v4501, %v4497
      %v4550 = vpack.c.b16 %v4502, %v4498
      %v4551 = vpack.c.b16 %v4503, %v4499
      %v4552 = vpack.c.b16 %v4508, %v4504
      %v4553 = vpack.c.b16 %v4509, %v4505
      %v4554 = vpack.c.b16 %v4510, %v4506
      %v4555 = vpack.c.b16 %v4511, %v4507
      %v4556 = vpack.c.b16 %v4516, %v4512
      %v4557 = vpack.c.b16 %v4517, %v4513
      %v4558 = vpack.c.b16 %v4518, %v4514
      %v4559 = vpack.c.b16 %v4519, %v4515
      %v4560 = vpack.c.b16 %v4524, %v4520
      %v4561 = vpack.c.b16 %v4525, %v4521
      %v4562 = vpack.c.b16 %v4526, %v4522
      %v4563 = vpack.c.b16 %v4527, %v4523
      %v4564 = vpack.c.b16 %v4532, %v4528
      %v4565 = vpack.c.b16 %v4533, %v4529
      %v4566 = vpack.c.b16 %v4534, %v4530
      %v4567 = vpack.c.b16 %v4535, %v4531
      %4600 = vmatprep.subr.bf16.mxu0 %v4537
      %4601 = vmatpush1.bf16.msra.mxu0 %v4536
      %4602 = vmatprep.subr.bf16.mxu0 %v4541
      %4603 = vmatpush1.bf16.msra.mxu0 %v4540
      %4604 = vmatprep.subr.bf16.mxu0 %v4545
      %4605 = vmatpush1.bf16.msra.mxu0 %v4544
      %4606 = vmatprep.subr.bf16.mxu0 %v4549
      %4607 = vmatpush1.bf16.msra.mxu0 %v4548
      %4608 = vmatprep.subr.bf16.mxu0 %v4553
      %4609 = vmatpush1.bf16.msra.mxu0 %v4552
      %4610 = vmatprep.subr.bf16.mxu0 %v4557
      %4611 = vmatpush1.bf16.msra.mxu0 %v4556
      %4612 = vmatprep.subr.bf16.mxu0 %v4561
      %4613 = vmatpush1.bf16.msra.mxu0 %v4560
      %4614 = vmatprep.subr.bf16.mxu0 %v4565
      %4615 = vmatpush1.bf16.msra.mxu0 %v4564
      %4616 = vmatprep.subr.bf16.mxu0 0
      %4617 = vmatpush1.bf16.msra.mxu0 0
      %4618 = vmatprep.subr.bf16.mxu0 0
      %4619 = vmatpush1.bf16.msra.mxu0 0
      %4620 = vmatprep.subr.bf16.mxu0 0
      %4621 = vmatpush1.bf16.msra.mxu0 0
      %4622 = vmatprep.subr.bf16.mxu0 0
      %4623 = vmatpush1.bf16.msra.mxu0 0
      %4624 = vmatprep.subr.bf16.mxu0 0
      %4625 = vmatpush1.bf16.msra.mxu0 0
      %4626 = vmatprep.subr.bf16.mxu0 0
      %4627 = vmatpush1.bf16.msra.mxu0 0
      %4628 = vmatprep.subr.bf16.mxu0 0
      %4629 = vmatpush1.bf16.msra.mxu0 0
      %4630 = vmatprep.subr.bf16.mxu0 0
      %4631 = vmatpush1.bf16.msra.mxu0 0
      %4632 = vmatprep.mubr.bf16.mxu0 0
      %4633 = vmatmul.mubr.bf16.gmra.mrb[0].mxu0 %v4407
      %v4634 = vpop.f32.mrb[0].mxu0
      %v4635 = vadd.f32 0.0, %v4634
      %v4636 = vpop.f32.mrb[0].mxu0
      %v4637 = vadd.f32 0.0, %v4636
      %v4638 = vpop.f32.mrb[0].mxu0
      %v4639 = vpop.f32.mrb[0].mxu0
      %4640 = vdwg.mxu0
      %4641 = vmatprep.subr.bf16.mxu0 %v4539
      %4642 = vmatpush1.bf16.msra.mxu0 %v4538
      %4643 = vmatprep.subr.bf16.mxu0 %v4543
      %4644 = vmatpush1.bf16.msra.mxu0 %v4542
      %4645 = vmatprep.subr.bf16.mxu0 %v4547
      %4646 = vmatpush1.bf16.msra.mxu0 %v4546
      %4647 = vmatprep.subr.bf16.mxu0 %v4551
      %4648 = vmatpush1.bf16.msra.mxu0 %v4550
      %4649 = vmatprep.subr.bf16.mxu0 %v4555
      %4650 = vmatpush1.bf16.msra.mxu0 %v4554
      %4651 = vmatprep.subr.bf16.mxu0 %v4559
      %4652 = vmatpush1.bf16.msra.mxu0 %v4558
      %4653 = vmatprep.subr.bf16.mxu0 %v4563
      %4654 = vmatpush1.bf16.msra.mxu0 %v4562
      %4655 = vmatprep.subr.bf16.mxu0 %v4567
      %4656 = vmatpush1.bf16.msra.mxu0 %v4566
      %4657 = vmatprep.subr.bf16.mxu0 0
      %4658 = vmatpush1.bf16.msra.mxu0 0
      %4659 = vmatprep.subr.bf16.mxu0 0
      %4660 = vmatpush1.bf16.msra.mxu0 0
      %4661 = vmatprep.subr.bf16.mxu0 0
      %4662 = vmatpush1.bf16.msra.mxu0 0
      %4663 = vmatprep.subr.bf16.mxu0 0
      %4664 = vmatpush1.bf16.msra.mxu0 0
      %4665 = vmatprep.subr.bf16.mxu0 0
      %4666 = vmatpush1.bf16.msra.mxu0 0
      %4667 = vmatprep.subr.bf16.mxu0 0
      %4668 = vmatpush1.bf16.msra.mxu0 0
      %4669 = vmatprep.subr.bf16.mxu0 0
      %4670 = vmatpush1.bf16.msra.mxu0 0
      %4671 = vmatprep.subr.bf16.mxu0 0
      %4672 = vmatpush1.bf16.msra.mxu0 0
      %4673 = vmatprep.mubr.bf16.mxu0 0
      %4674 = vmatmul.mubr.bf16.gmra.mrb[0].mxu0 %v4407
      %v4675 = vpop.f32.mrb[0].mxu0
      %v4676 = vadd.f32 0.0, %v4675
      %v4677 = vpop.f32.mrb[0].mxu0
      %v4678 = vadd.f32 0.0, %v4677
      %v4679 = vpop.f32.mrb[0].mxu0
      %v4680 = vpop.f32.mrb[0].mxu0
      %4681 = vdwg.mxu0
      %v4682 = vadd.f32 %v4403, %v4635
      %v4683 = vadd.f32 %v4404, %v4637
      %v4684 = vadd.f32 %v4405, %v4676
      %v4685 = vadd.f32 %v4406, %v4678
      %s4686 = sshra.s32 %s4397, 3
      %s4687 = sand.u32 %s4397, 7
      %s4688 = smul.u32 %s4686, 4
      %s4689 = smul.addr %s4688, 8
      %s4690 = scalar_lea.vmem [#allocation5], %s4689
      %v4691 = vld [vmem:[%s4690] sm:$0xff]
      %v4692 = vld [vmem:[%s4690 + $0x8] sm:$0xff]
      %v4693 = vld [vmem:[%s4690 + $0x10] sm:$0xff]
      %v4694 = vld [vmem:[%s4690 + $0x18] sm:$0xff]
      %v4695 = vpack.c.bf16 %v4393, %v4393
      %v4696 = vld [vmem:[#allocation16] sm:$0xff]
      %v4697 = vld [vmem:[#allocation16 + $0x8] sm:$0xff]
      %v4698 = vld [vmem:[#allocation16 + $0x10] sm:$0xff]
      %v4699 = vld [vmem:[#allocation16 + $0x18] sm:$0xff]
      %v4700 = vld [vmem:[#allocation16 + $0x20] sm:$0xff]
      %v4701 = vld [vmem:[#allocation16 + $0x28] sm:$0xff]
      %v4702 = vld [vmem:[#allocation16 + $0x30] sm:$0xff]
      %v4703 = vld [vmem:[#allocation16 + $0x38] sm:$0xff]
      %v4704 = vld [vmem:[#allocation16 + $0x40] sm:$0xff]
      %v4705 = vld [vmem:[#allocation16 + $0x48] sm:$0xff]
      %v4706 = vld [vmem:[#allocation16 + $0x50] sm:$0xff]
      %v4707 = vld [vmem:[#allocation16 + $0x58] sm:$0xff]
      %v4708 = vld [vmem:[#allocation16 + $0x60] sm:$0xff]
      %v4709 = vld [vmem:[#allocation16 + $0x68] sm:$0xff]
      %v4710 = vld [vmem:[#allocation16 + $0x70] sm:$0xff]
      %v4711 = vld [vmem:[#allocation16 + $0x78] sm:$0xff]
      %v4712 = vld [vmem:[#allocation16 + $0x80] sm:$0xff]
      %v4713 = vld [vmem:[#allocation16 + $0x88] sm:$0xff]
      %v4714 = vld [vmem:[#allocation16 + $0x90] sm:$0xff]
      %v4715 = vld [vmem:[#allocation16 + $0x98] sm:$0xff]
      %v4716 = vld [vmem:[#allocation16 + $0xa0] sm:$0xff]
      %v4717 = vld [vmem:[#allocation16 + $0xa8] sm:$0xff]
      %v4718 = vld [vmem:[#allocation16 + $0xb0] sm:$0xff]
      %v4719 = vld [vmem:[#allocation16 + $0xb8] sm:$0xff]
      %v4720 = vld [vmem:[#allocation16 + $0xc0] sm:$0xff]
      %v4721 = vld [vmem:[#allocation16 + $0xc8] sm:$0xff]
      %v4722 = vld [vmem:[#allocation16 + $0xd0] sm:$0xff]
      %v4723 = vld [vmem:[#allocation16 + $0xd8] sm:$0xff]
      %v4724 = vld [vmem:[#allocation16 + $0xe0] sm:$0xff]
      %v4725 = vld [vmem:[#allocation16 + $0xe8] sm:$0xff]
      %v4726 = vld [vmem:[#allocation16 + $0xf0] sm:$0xff]
      %v4727 = vld [vmem:[#allocation16 + $0xf8] sm:$0xff]
      %v4760 = vunpack.c.l.b16 %v4696
      %v4761 = vunpack.c.h.b16 %v4696
      %v4762 = vunpack.c.l.b16 %v4697
      %v4763 = vunpack.c.h.b16 %v4697
      %v4764 = vunpack.c.l.b16 %v4698
      %v4765 = vunpack.c.h.b16 %v4698
      %v4766 = vunpack.c.l.b16 %v4699
      %v4767 = vunpack.c.h.b16 %v4699
      %v4768 = vunpack.c.l.b16 %v4700
      %v4769 = vunpack.c.h.b16 %v4700
      %v4770 = vunpack.c.l.b16 %v4701
      %v4771 = vunpack.c.h.b16 %v4701
      %v4772 = vunpack.c.l.b16 %v4702
      %v4773 = vunpack.c.h.b16 %v4702
      %v4774 = vunpack.c.l.b16 %v4703
      %v4775 = vunpack.c.h.b16 %v4703
      %v4776 = vunpack.c.l.b16 %v4704
      %v4777 = vunpack.c.h.b16 %v4704
      %v4778 = vunpack.c.l.b16 %v4705
      %v4779 = vunpack.c.h.b16 %v4705
      %v4780 = vunpack.c.l.b16 %v4706
      %v4781 = vunpack.c.h.b16 %v4706
      %v4782 = vunpack.c.l.b16 %v4707
      %v4783 = vunpack.c.h.b16 %v4707
      %v4784 = vunpack.c.l.b16 %v4708
      %v4785 = vunpack.c.h.b16 %v4708
      %v4786 = vunpack.c.l.b16 %v4709
      %v4787 = vunpack.c.h.b16 %v4709
      %v4788 = vunpack.c.l.b16 %v4710
      %v4789 = vunpack.c.h.b16 %v4710
      %v4790 = vunpack.c.l.b16 %v4711
      %v4791 = vunpack.c.h.b16 %v4711
      %v4792 = vunpack.c.l.b16 %v4712
      %v4793 = vunpack.c.h.b16 %v4712
      %v4794 = vunpack.c.l.b16 %v4713
      %v4795 = vunpack.c.h.b16 %v4713
      %v4796 = vunpack.c.l.b16 %v4714
      %v4797 = vunpack.c.h.b16 %v4714
      %v4798 = vunpack.c.l.b16 %v4715
      %v4799 = vunpack.c.h.b16 %v4715
      %v4800 = vunpack.c.l.b16 %v4716
      %v4801 = vunpack.c.h.b16 %v4716
      %v4802 = vunpack.c.l.b16 %v4717
      %v4803 = vunpack.c.h.b16 %v4717
      %v4804 = vunpack.c.l.b16 %v4718
      %v4805 = vunpack.c.h.b16 %v4718
      %v4806 = vunpack.c.l.b16 %v4719
      %v4807 = vunpack.c.h.b16 %v4719
      %v4808 = vunpack.c.l.b16 %v4720
      %v4809 = vunpack.c.h.b16 %v4720
      %v4810 = vunpack.c.l.b16 %v4721
      %v4811 = vunpack.c.h.b16 %v4721
      %v4812 = vunpack.c.l.b16 %v4722
      %v4813 = vunpack.c.h.b16 %v4722
      %v4814 = vunpack.c.l.b16 %v4723
      %v4815 = vunpack.c.h.b16 %v4723
      %v4816 = vunpack.c.l.b16 %v4724
      %v4817 = vunpack.c.h.b16 %v4724
      %v4818 = vunpack.c.l.b16 %v4725
      %v4819 = vunpack.c.h.b16 %v4725
      %v4820 = vunpack.c.l.b16 %v4726
      %v4821 = vunpack.c.h.b16 %v4726
      %v4822 = vunpack.c.l.b16 %v4727
      %v4823 = vunpack.c.h.b16 %v4727
      %v4824 = vpack.c.b16 %v4764, %v4760
      %v4825 = vpack.c.b16 %v4765, %v4761
      %v4826 = vpack.c.b16 %v4766, %v4762
      %v4827 = vpack.c.b16 %v4767, %v4763
      %v4828 = vpack.c.b16 %v4772, %v4768
      %v4829 = vpack.c.b16 %v4773, %v4769
      %v4830 = vpack.c.b16 %v4774, %v4770
      %v4831 = vpack.c.b16 %v4775, %v4771
      %v4832 = vpack.c.b16 %v4780, %v4776
      %v4833 = vpack.c.b16 %v4781, %v4777
      %v4834 = vpack.c.b16 %v4782, %v4778
      %v4835 = vpack.c.b16 %v4783, %v4779
      %v4836 = vpack.c.b16 %v4788, %v4784
      %v4837 = vpack.c.b16 %v4789, %v4785
      %v4838 = vpack.c.b16 %v4790, %v4786
      %v4839 = vpack.c.b16 %v4791, %v4787
      %v4840 = vpack.c.b16 %v4796, %v4792
      %v4841 = vpack.c.b16 %v4797, %v4793
      %v4842 = vpack.c.b16 %v4798, %v4794
      %v4843 = vpack.c.b16 %v4799, %v4795
      %v4844 = vpack.c.b16 %v4804, %v4800
      %v4845 = vpack.c.b16 %v4805, %v4801
      %v4846 = vpack.c.b16 %v4806, %v4802
      %v4847 = vpack.c.b16 %v4807, %v4803
      %v4848 = vpack.c.b16 %v4812, %v4808
      %v4849 = vpack.c.b16 %v4813, %v4809
      %v4850 = vpack.c.b16 %v4814, %v4810
      %v4851 = vpack.c.b16 %v4815, %v4811
      %v4852 = vpack.c.b16 %v4820, %v4816
      %v4853 = vpack.c.b16 %v4821, %v4817
      %v4854 = vpack.c.b16 %v4822, %v4818
      %v4855 = vpack.c.b16 %v4823, %v4819
      %4888 = vmatprep.subr.bf16.mxu0 %v4825
      %4889 = vmatpush1.bf16.msra.mxu0 %v4824
      %4890 = vmatprep.subr.bf16.mxu0 %v4829
      %4891 = vmatpush1.bf16.msra.mxu0 %v4828
      %4892 = vmatprep.subr.bf16.mxu0 %v4833
      %4893 = vmatpush1.bf16.msra.mxu0 %v4832
      %4894 = vmatprep.subr.bf16.mxu0 %v4837
      %4895 = vmatpush1.bf16.msra.mxu0 %v4836
      %4896 = vmatprep.subr.bf16.mxu0 %v4841
      %4897 = vmatpush1.bf16.msra.mxu0 %v4840
      %4898 = vmatprep.subr.bf16.mxu0 %v4845
      %4899 = vmatpush1.bf16.msra.mxu0 %v4844
      %4900 = vmatprep.subr.bf16.mxu0 %v4849
      %4901 = vmatpush1.bf16.msra.mxu0 %v4848
      %4902 = vmatprep.subr.bf16.mxu0 %v4853
      %4903 = vmatpush1.bf16.msra.mxu0 %v4852
      %4904 = vmatprep.subr.bf16.mxu0 0
      %4905 = vmatpush1.bf16.msra.mxu0 0
      %4906 = vmatprep.subr.bf16.mxu0 0
      %4907 = vmatpush1.bf16.msra.mxu0 0
      %4908 = vmatprep.subr.bf16.mxu0 0
      %4909 = vmatpush1.bf16.msra.mxu0 0
      %4910 = vmatprep.subr.bf16.mxu0 0
      %4911 = vmatpush1.bf16.msra.mxu0 0
      %4912 = vmatprep.subr.bf16.mxu0 0
      %4913 = vmatpush1.bf16.msra.mxu0 0
      %4914 = vmatprep.subr.bf16.mxu0 0
      %4915 = vmatpush1.bf16.msra.mxu0 0
      %4916 = vmatprep.subr.bf16.mxu0 0
      %4917 = vmatpush1.bf16.msra.mxu0 0
      %4918 = vmatprep.subr.bf16.mxu0 0
      %4919 = vmatpush1.bf16.msra.mxu0 0
      %4920 = vmatprep.mubr.bf16.mxu0 0
      %4921 = vmatmul.mubr.bf16.gmra.mrb[0].mxu0 %v4695
      %v4922 = vpop.f32.mrb[0].mxu0
      %v4923 = vadd.f32 0.0, %v4922
      %v4924 = vpop.f32.mrb[0].mxu0
      %v4925 = vadd.f32 0.0, %v4924
      %v4926 = vpop.f32.mrb[0].mxu0
      %v4927 = vpop.f32.mrb[0].mxu0
      %4928 = vdwg.mxu0
      %4929 = vmatprep.subr.bf16.mxu0 %v4827
      %4930 = vmatpush1.bf16.msra.mxu0 %v4826
      %4931 = vmatprep.subr.bf16.mxu0 %v4831
      %4932 = vmatpush1.bf16.msra.mxu0 %v4830
      %4933 = vmatprep.subr.bf16.mxu0 %v4835
      %4934 = vmatpush1.bf16.msra.mxu0 %v4834
      %4935 = vmatprep.subr.bf16.mxu0 %v4839
      %4936 = vmatpush1.bf16.msra.mxu0 %v4838
      %4937 = vmatprep.subr.bf16.mxu0 %v4843
      %4938 = vmatpush1.bf16.msra.mxu0 %v4842
      %4939 = vmatprep.subr.bf16.mxu0 %v4847
      %4940 = vmatpush1.bf16.msra.mxu0 %v4846
      %4941 = vmatprep.subr.bf16.mxu0 %v4851
      %4942 = vmatpush1.bf16.msra.mxu0 %v4850
      %4943 = vmatprep.subr.bf16.mxu0 %v4855
      %4944 = vmatpush1.bf16.msra.mxu0 %v4854
      %4945 = vmatprep.subr.bf16.mxu0 0
      %4946 = vmatpush1.bf16.msra.mxu0 0
      %4947 = vmatprep.subr.bf16.mxu0 0
      %4948 = vmatpush1.bf16.msra.mxu0 0
      %4949 = vmatprep.subr.bf16.mxu0 0
      %4950 = vmatpush1.bf16.msra.mxu0 0
      %4951 = vmatprep.subr.bf16.mxu0 0
      %4952 = vmatpush1.bf16.msra.mxu0 0
      %4953 = vmatprep.subr.bf16.mxu0 0
      %4954 = vmatpush1.bf16.msra.mxu0 0
      %4955 = vmatprep.subr.bf16.mxu0 0
      %4956 = vmatpush1.bf16.msra.mxu0 0
      %4957 = vmatprep.subr.bf16.mxu0 0
      %4958 = vmatpush1.bf16.msra.mxu0 0
      %4959 = vmatprep.subr.bf16.mxu0 0
      %4960 = vmatpush1.bf16.msra.mxu0 0
      %4961 = vmatprep.mubr.bf16.mxu0 0
      %4962 = vmatmul.mubr.bf16.gmra.mrb[0].mxu0 %v4695
      %v4963 = vpop.f32.mrb[0].mxu0
      %v4964 = vadd.f32 0.0, %v4963
      %v4965 = vpop.f32.mrb[0].mxu0
      %v4966 = vadd.f32 0.0, %v4965
      %v4967 = vpop.f32.mrb[0].mxu0
      %v4968 = vpop.f32.mrb[0].mxu0
      %4969 = vdwg.mxu0
      %v4970 = vadd.f32 %v4691, %v4923
      %v4971 = vadd.f32 %v4692, %v4925
      %v4972 = vadd.f32 %v4693, %v4964
      %v4973 = vadd.f32 %v4694, %v4966
      %v4974 = vxor.u32 %v4682, 2147483648
      %v4975 = vmul.f32 %v4974, 1.442695
      %v4976 = vpow.pop %v4975
      %v4977 = vadd.f32 %v4976, 1.0
      %v4978 = vrcp.pop %v4977
      %v4979 = vmul.f32 1.0, %v4978
      %v4980 = vxor.u32 %v4683, 2147483648
      %v4981 = vmul.f32 %v4980, 1.442695
      %v4982 = vpow.pop %v4981
      %v4983 = vadd.f32 %v4982, 1.0
      %v4984 = vrcp.pop %v4983
      %v4985 = vmul.f32 1.0, %v4984
      %v4986 = vtanh.pop %v4684
      %v4987 = vxor.u32 %v4685, 2147483648
      %v4988 = vmul.f32 %v4987, 1.442695
      %v4989 = vpow.pop %v4988
      %v4990 = vadd.f32 %v4989, 1.0
      %v4991 = vrcp.pop %v4990
      %v4992 = vmul.f32 1.0, %v4991
      %v4993 = vmul.f32 %v4985, %v4392
      %v4994 = vmul.f32 %v4979, %v4986
      %v4995 = vadd.f32 %v4993, %v4994
      %v4996 = vtanh.pop %v4995
      %v4997 = vmul.f32 %v4992, %v4996
      %v4998 = vxor.u32 %v4970, 2147483648
      %v4999 = vmul.f32 %v4998, 1.442695
      %v5000 = vpow.pop %v4999
      %v5001 = vadd.f32 %v5000, 1.0
      %v5002 = vrcp.pop %v5001
      %v5003 = vmul.f32 1.0, %v5002
      %v5004 = vxor.u32 %v4971, 2147483648
      %v5005 = vmul.f32 %v5004, 1.442695
      %v5006 = vpow.pop %v5005
      %v5007 = vadd.f32 %v5006, 1.0
      %v5008 = vrcp.pop %v5007
      %v5009 = vmul.f32 1.0, %v5008
      %v5010 = vtanh.pop %v4972
      %v5011 = vxor.u32 %v4973, 2147483648
      %v5012 = vmul.f32 %v5011, 1.442695
      %v5013 = vpow.pop %v5012
      %v5014 = vadd.f32 %v5013, 1.0
      %v5015 = vrcp.pop %v5014
      %v5016 = vmul.f32 1.0, %v5015
      %v5017 = vmul.f32 %v5009, %v4394
      %v5018 = vmul.f32 %v5003, %v5010
      %v5019 = vadd.f32 %v5017, %v5018
      %v5020 = vtanh.pop %v5019
      %v5021 = vmul.f32 %v5016, %v5020
      %s5022 = smul.u32 %s4398, 2
      %s5023 = smul.addr %s5022, 8
      %s5024 = scalar_lea.vmem [#allocation3], %s5023
      %5025 = vst [vmem:[%s5024] sm:$0xff] %v4997
      %s5026 = smul.u32 %s4686, 2
      %s5027 = smul.addr %s5026, 8
      %s5028 = scalar_lea.vmem [#allocation3], %s5027
      %5029 = vst [vmem:[%s5028 + $0x8] sm:$0xff] %v5021
    $region141: #{net_forward.1} parent=1 // loop_footer
      %s4390 = sadd.s32 1, %s4386
    $region142: #{net_forward.1} parent=1 // loop_footer_branch
      %4385 = sbr.rel target = $region138
    $region143: #{net_forward.1} parent=1 // loop_exit
      _
    %v5030 = vld [vmem:[#allocation3] sm:$0xff]
    %v5031 = vld [vmem:[#allocation3 + $0x8] sm:$0xff]
    %v5032 = vld [vmem:[#allocation3 + $0x10] sm:$0xff]
    %v5033 = vld [vmem:[#allocation3 + $0x18] sm:$0xff]
    %v5034 = vld [vmem:[#allocation3 + $0x20] sm:$0xff]
    %v5035 = vld [vmem:[#allocation3 + $0x28] sm:$0xff]
    %v5036 = vld [vmem:[#allocation3 + $0x30] sm:$0xff]
    %v5037 = vld [vmem:[#allocation3 + $0x38] sm:$0xff]
    %v5038 = vld [vmem:[#allocation3 + $0x40] sm:$0xff]
    %v5039 = vld [vmem:[#allocation3 + $0x48] sm:$0xff]
    %v5040 = vld [vmem:[#allocation3 + $0x50] sm:$0xff]
    %v5041 = vld [vmem:[#allocation3 + $0x58] sm:$0xff]
    %v5042 = vld [vmem:[#allocation3 + $0x60] sm:$0xff]
    %v5043 = vld [vmem:[#allocation3 + $0x68] sm:$0xff]
    %v5044 = vld [vmem:[#allocation3 + $0x70] sm:$0xff]
    %v5045 = vld [vmem:[#allocation3 + $0x78] sm:$0xff]
    %v5046 = vld [vmem:[#allocation3 + $0x80] sm:$0xff]
    %v5047 = vld [vmem:[#allocation3 + $0x88] sm:$0xff]
    %v5048 = vld [vmem:[#allocation3 + $0x90] sm:$0xff]
    %v5049 = vld [vmem:[#allocation3 + $0x98] sm:$0xff]
    %v5050 = vld [vmem:[#allocation3 + $0xa0] sm:$0xff]
    %v5051 = vld [vmem:[#allocation3 + $0xa8] sm:$0xff]
    %v5052 = vld [vmem:[#allocation3 + $0xb0] sm:$0xff]
    %v5053 = vld [vmem:[#allocation3 + $0xb8] sm:$0xff]
    %v5054 = vld [vmem:[#allocation3 + $0xc0] sm:$0xff]
    %v5055 = vld [vmem:[#allocation3 + $0xc8] sm:$0xff]
    %v5056 = vld [vmem:[#allocation3 + $0xd0] sm:$0xff]
    %v5057 = vld [vmem:[#allocation3 + $0xd8] sm:$0xff]
    %v5058 = vld [vmem:[#allocation3 + $0xe0] sm:$0xff]
    %v5059 = vld [vmem:[#allocation3 + $0xe8] sm:$0xff]
    %v5060 = vld [vmem:[#allocation3 + $0xf0] sm:$0xff]
    %v5061 = vld [vmem:[#allocation3 + $0xf8] sm:$0xff]
    %v5062 = vld [vmem:[#allocation3 + $0x100] sm:$0xff]
    %v5063 = vld [vmem:[#allocation3 + $0x108] sm:$0xff]
    %v5064 = vld [vmem:[#allocation3 + $0x110] sm:$0xff]
    %v5065 = vld [vmem:[#allocation3 + $0x118] sm:$0xff]
    %v5066 = vld [vmem:[#allocation3 + $0x120] sm:$0xff]
    %v5067 = vld [vmem:[#allocation3 + $0x128] sm:$0xff]
    %v5068 = vld [vmem:[#allocation3 + $0x130] sm:$0xff]
    %v5069 = vld [vmem:[#allocation3 + $0x138] sm:$0xff]
    %v5070 = vld [vmem:[#allocation3 + $0x140] sm:$0xff]
    %v5071 = vld [vmem:[#allocation3 + $0x148] sm:$0xff]
    %v5072 = vld [vmem:[#allocation3 + $0x150] sm:$0xff]
    %v5073 = vld [vmem:[#allocation3 + $0x158] sm:$0xff]
    %v5074 = vld [vmem:[#allocation3 + $0x160] sm:$0xff]
    %v5075 = vld [vmem:[#allocation3 + $0x168] sm:$0xff]
    %v5076 = vld [vmem:[#allocation3 + $0x170] sm:$0xff]
    %v5077 = vld [vmem:[#allocation3 + $0x178] sm:$0xff]
    %v5078 = vld [vmem:[#allocation3 + $0x180] sm:$0xff]
    %v5079 = vld [vmem:[#allocation3 + $0x188] sm:$0xff]
    %v5080 = vld [vmem:[#allocation3 + $0x190] sm:$0xff]
    %v5081 = vld [vmem:[#allocation3 + $0x198] sm:$0xff]
    %v5082 = vld [vmem:[#allocation3 + $0x1a0] sm:$0xff]
    %v5083 = vld [vmem:[#allocation3 + $0x1a8] sm:$0xff]
    %v5084 = vld [vmem:[#allocation3 + $0x1b0] sm:$0xff]
    %v5085 = vld [vmem:[#allocation3 + $0x1b8] sm:$0xff]
    %v5086 = vld [vmem:[#allocation3 + $0x1c0] sm:$0xff]
    %v5087 = vld [vmem:[#allocation3 + $0x1c8] sm:$0xff]
    %v5088 = vld [vmem:[#allocation3 + $0x1d0] sm:$0xff]
    %v5089 = vld [vmem:[#allocation3 + $0x1d8] sm:$0xff]
    %v5090 = vld [vmem:[#allocation3 + $0x1e0] sm:$0xff]
    %v5091 = vld [vmem:[#allocation3 + $0x1e8] sm:$0xff]
    %v5092 = vld [vmem:[#allocation3 + $0x1f0] sm:$0xff]
    %v5093 = vld [vmem:[#allocation3 + $0x1f8] sm:$0xff]
    %v5094 = vpack.c.bf16 %v5032, %v5030
    %v5095 = vpack.c.bf16 %v5033, %v5031
    %v5096 = vpack.c.bf16 %v5036, %v5034
    %v5097 = vpack.c.bf16 %v5037, %v5035
    %v5098 = vpack.c.bf16 %v5040, %v5038
    %v5099 = vpack.c.bf16 %v5041, %v5039
    %v5100 = vpack.c.bf16 %v5044, %v5042
    %v5101 = vpack.c.bf16 %v5045, %v5043
    %v5102 = vpack.c.bf16 %v5048, %v5046
    %v5103 = vpack.c.bf16 %v5049, %v5047
    %v5104 = vpack.c.bf16 %v5052, %v5050
    %v5105 = vpack.c.bf16 %v5053, %v5051
    %v5106 = vpack.c.bf16 %v5056, %v5054
    %v5107 = vpack.c.bf16 %v5057, %v5055
    %v5108 = vpack.c.bf16 %v5060, %v5058
    %v5109 = vpack.c.bf16 %v5061, %v5059
    %v5110 = vpack.c.bf16 %v5064, %v5062
    %v5111 = vpack.c.bf16 %v5065, %v5063
    %v5112 = vpack.c.bf16 %v5068, %v5066
    %v5113 = vpack.c.bf16 %v5069, %v5067
    %v5114 = vpack.c.bf16 %v5072, %v5070
    %v5115 = vpack.c.bf16 %v5073, %v5071
    %v5116 = vpack.c.bf16 %v5076, %v5074
    %v5117 = vpack.c.bf16 %v5077, %v5075
    %v5118 = vpack.c.bf16 %v5080, %v5078
    %v5119 = vpack.c.bf16 %v5081, %v5079
    %v5120 = vpack.c.bf16 %v5084, %v5082
    %v5121 = vpack.c.bf16 %v5085, %v5083
    %v5122 = vpack.c.bf16 %v5088, %v5086
    %v5123 = vpack.c.bf16 %v5089, %v5087
    %v5124 = vpack.c.bf16 %v5092, %v5090
    %v5125 = vpack.c.bf16 %v5093, %v5091
    %v5126 = vld [vmem:[#allocation17] sm:$0xff]
    %v5127 = vld [vmem:[#allocation17 + $0x8] sm:$0xff]
    %v5128 = vld [vmem:[#allocation17 + $0x10] sm:$0xff]
    %v5129 = vld [vmem:[#allocation17 + $0x18] sm:$0xff]
    %v5130 = vld [vmem:[#allocation17 + $0x20] sm:$0xff]
    %v5131 = vld [vmem:[#allocation17 + $0x28] sm:$0xff]
    %v5132 = vld [vmem:[#allocation17 + $0x30] sm:$0xff]
    %v5133 = vld [vmem:[#allocation17 + $0x38] sm:$0xff]
    %v5134 = vld [vmem:[#allocation17 + $0x40] sm:$0xff]
    %v5135 = vld [vmem:[#allocation17 + $0x48] sm:$0xff]
    %v5136 = vld [vmem:[#allocation17 + $0x50] sm:$0xff]
    %v5137 = vld [vmem:[#allocation17 + $0x58] sm:$0xff]
    %v5138 = vld [vmem:[#allocation17 + $0x60] sm:$0xff]
    %v5139 = vld [vmem:[#allocation17 + $0x68] sm:$0xff]
    %v5140 = vld [vmem:[#allocation17 + $0x70] sm:$0xff]
    %v5141 = vld [vmem:[#allocation17 + $0x78] sm:$0xff]
    %v5142 = vld [vmem:[#allocation17 + $0x80] sm:$0xff]
    %v5143 = vld [vmem:[#allocation17 + $0x88] sm:$0xff]
    %v5144 = vld [vmem:[#allocation17 + $0x90] sm:$0xff]
    %v5145 = vld [vmem:[#allocation17 + $0x98] sm:$0xff]
    %v5146 = vld [vmem:[#allocation17 + $0xa0] sm:$0xff]
    %v5147 = vld [vmem:[#allocation17 + $0xa8] sm:$0xff]
    %v5148 = vld [vmem:[#allocation17 + $0xb0] sm:$0xff]
    %v5149 = vld [vmem:[#allocation17 + $0xb8] sm:$0xff]
    %v5150 = vld [vmem:[#allocation17 + $0xc0] sm:$0xff]
    %v5151 = vld [vmem:[#allocation17 + $0xc8] sm:$0xff]
    %v5152 = vld [vmem:[#allocation17 + $0xd0] sm:$0xff]
    %v5153 = vld [vmem:[#allocation17 + $0xd8] sm:$0xff]
    %v5154 = vld [vmem:[#allocation17 + $0xe0] sm:$0xff]
    %v5155 = vld [vmem:[#allocation17 + $0xe8] sm:$0xff]
    %v5156 = vld [vmem:[#allocation17 + $0xf0] sm:$0xff]
    %v5157 = vld [vmem:[#allocation17 + $0xf8] sm:$0xff]
    %v5158 = vld [vmem:[#allocation17 + $0x100] sm:$0xff]
    %v5159 = vld [vmem:[#allocation17 + $0x108] sm:$0xff]
    %v5160 = vld [vmem:[#allocation17 + $0x110] sm:$0xff]
    %v5161 = vld [vmem:[#allocation17 + $0x118] sm:$0xff]
    %v5162 = vld [vmem:[#allocation17 + $0x120] sm:$0xff]
    %v5163 = vld [vmem:[#allocation17 + $0x128] sm:$0xff]
    %v5164 = vld [vmem:[#allocation17 + $0x130] sm:$0xff]
    %v5165 = vld [vmem:[#allocation17 + $0x138] sm:$0xff]
    %v5166 = vld [vmem:[#allocation17 + $0x140] sm:$0xff]
    %v5167 = vld [vmem:[#allocation17 + $0x148] sm:$0xff]
    %v5168 = vld [vmem:[#allocation17 + $0x150] sm:$0xff]
    %v5169 = vld [vmem:[#allocation17 + $0x158] sm:$0xff]
    %v5170 = vld [vmem:[#allocation17 + $0x160] sm:$0xff]
    %v5171 = vld [vmem:[#allocation17 + $0x168] sm:$0xff]
    %v5172 = vld [vmem:[#allocation17 + $0x170] sm:$0xff]
    %v5173 = vld [vmem:[#allocation17 + $0x178] sm:$0xff]
    %v5174 = vld [vmem:[#allocation17 + $0x180] sm:$0xff]
    %v5175 = vld [vmem:[#allocation17 + $0x188] sm:$0xff]
    %v5176 = vld [vmem:[#allocation17 + $0x190] sm:$0xff]
    %v5177 = vld [vmem:[#allocation17 + $0x198] sm:$0xff]
    %v5178 = vld [vmem:[#allocation17 + $0x1a0] sm:$0xff]
    %v5179 = vld [vmem:[#allocation17 + $0x1a8] sm:$0xff]
    %v5180 = vld [vmem:[#allocation17 + $0x1b0] sm:$0xff]
    %v5181 = vld [vmem:[#allocation17 + $0x1b8] sm:$0xff]
    %v5182 = vld [vmem:[#allocation17 + $0x1c0] sm:$0xff]
    %v5183 = vld [vmem:[#allocation17 + $0x1c8] sm:$0xff]
    %v5184 = vld [vmem:[#allocation17 + $0x1d0] sm:$0xff]
    %v5185 = vld [vmem:[#allocation17 + $0x1d8] sm:$0xff]
    %v5186 = vld [vmem:[#allocation17 + $0x1e0] sm:$0xff]
    %v5187 = vld [vmem:[#allocation17 + $0x1e8] sm:$0xff]
    %v5188 = vld [vmem:[#allocation17 + $0x1f0] sm:$0xff]
    %v5189 = vld [vmem:[#allocation17 + $0x1f8] sm:$0xff]
    %v5190 = vld [vmem:[%s15] sm:$0xf]
    %v5192 = vlaneseq
    %v5193 = vshrl.u32 %v5192, 7
    %v5194 = vsub.s32 0, %v5193
    %v5195 = vrot.slane %v5190, %v5194
    %v5196 = vlaneseq
    %v5197 = vshrl.u32 %v5196, 7
    %v5198 = vsub.s32 1, %v5197
    %v5199 = vrot.slane %v5190, %v5198
    %v5200 = vlaneseq
    %v5201 = vshrl.u32 %v5200, 7
    %v5202 = vsub.s32 2, %v5201
    %v5203 = vrot.slane %v5190, %v5202
    %v5204 = vlaneseq
    %v5205 = vshrl.u32 %v5204, 7
    %v5206 = vsub.s32 3, %v5205
    %v5207 = vrot.slane %v5190, %v5206
    %v5276 = vunpack.c.l.b16 %v5126
    %v5277 = vunpack.c.h.b16 %v5126
    %v5278 = vunpack.c.l.b16 %v5127
    %v5279 = vunpack.c.h.b16 %v5127
    %v5280 = vunpack.c.l.b16 %v5128
    %v5281 = vunpack.c.h.b16 %v5128
    %v5282 = vunpack.c.l.b16 %v5129
    %v5283 = vunpack.c.h.b16 %v5129
    %v5284 = vunpack.c.l.b16 %v5130
    %v5285 = vunpack.c.h.b16 %v5130
    %v5286 = vunpack.c.l.b16 %v5131
    %v5287 = vunpack.c.h.b16 %v5131
    %v5288 = vunpack.c.l.b16 %v5132
    %v5289 = vunpack.c.h.b16 %v5132
    %v5290 = vunpack.c.l.b16 %v5133
    %v5291 = vunpack.c.h.b16 %v5133
    %v5292 = vunpack.c.l.b16 %v5134
    %v5293 = vunpack.c.h.b16 %v5134
    %v5294 = vunpack.c.l.b16 %v5135
    %v5295 = vunpack.c.h.b16 %v5135
    %v5296 = vunpack.c.l.b16 %v5136
    %v5297 = vunpack.c.h.b16 %v5136
    %v5298 = vunpack.c.l.b16 %v5137
    %v5299 = vunpack.c.h.b16 %v5137
    %v5300 = vunpack.c.l.b16 %v5138
    %v5301 = vunpack.c.h.b16 %v5138
    %v5302 = vunpack.c.l.b16 %v5139
    %v5303 = vunpack.c.h.b16 %v5139
    %v5304 = vunpack.c.l.b16 %v5140
    %v5305 = vunpack.c.h.b16 %v5140
    %v5306 = vunpack.c.l.b16 %v5141
    %v5307 = vunpack.c.h.b16 %v5141
    %v5308 = vunpack.c.l.b16 %v5142
    %v5309 = vunpack.c.h.b16 %v5142
    %v5310 = vunpack.c.l.b16 %v5143
    %v5311 = vunpack.c.h.b16 %v5143
    %v5312 = vunpack.c.l.b16 %v5144
    %v5313 = vunpack.c.h.b16 %v5144
    %v5314 = vunpack.c.l.b16 %v5145
    %v5315 = vunpack.c.h.b16 %v5145
    %v5316 = vunpack.c.l.b16 %v5146
    %v5317 = vunpack.c.h.b16 %v5146
    %v5318 = vunpack.c.l.b16 %v5147
    %v5319 = vunpack.c.h.b16 %v5147
    %v5320 = vunpack.c.l.b16 %v5148
    %v5321 = vunpack.c.h.b16 %v5148
    %v5322 = vunpack.c.l.b16 %v5149
    %v5323 = vunpack.c.h.b16 %v5149
    %v5324 = vunpack.c.l.b16 %v5150
    %v5325 = vunpack.c.h.b16 %v5150
    %v5326 = vunpack.c.l.b16 %v5151
    %v5327 = vunpack.c.h.b16 %v5151
    %v5328 = vunpack.c.l.b16 %v5152
    %v5329 = vunpack.c.h.b16 %v5152
    %v5330 = vunpack.c.l.b16 %v5153
    %v5331 = vunpack.c.h.b16 %v5153
    %v5332 = vunpack.c.l.b16 %v5154
    %v5333 = vunpack.c.h.b16 %v5154
    %v5334 = vunpack.c.l.b16 %v5155
    %v5335 = vunpack.c.h.b16 %v5155
    %v5336 = vunpack.c.l.b16 %v5156
    %v5337 = vunpack.c.h.b16 %v5156
    %v5338 = vunpack.c.l.b16 %v5157
    %v5339 = vunpack.c.h.b16 %v5157
    %v5340 = vunpack.c.l.b16 %v5158
    %v5341 = vunpack.c.h.b16 %v5158
    %v5342 = vunpack.c.l.b16 %v5159
    %v5343 = vunpack.c.h.b16 %v5159
    %v5344 = vunpack.c.l.b16 %v5160
    %v5345 = vunpack.c.h.b16 %v5160
    %v5346 = vunpack.c.l.b16 %v5161
    %v5347 = vunpack.c.h.b16 %v5161
    %v5348 = vunpack.c.l.b16 %v5162
    %v5349 = vunpack.c.h.b16 %v5162
    %v5350 = vunpack.c.l.b16 %v5163
    %v5351 = vunpack.c.h.b16 %v5163
    %v5352 = vunpack.c.l.b16 %v5164
    %v5353 = vunpack.c.h.b16 %v5164
    %v5354 = vunpack.c.l.b16 %v5165
    %v5355 = vunpack.c.h.b16 %v5165
    %v5356 = vunpack.c.l.b16 %v5166
    %v5357 = vunpack.c.h.b16 %v5166
    %v5358 = vunpack.c.l.b16 %v5167
    %v5359 = vunpack.c.h.b16 %v5167
    %v5360 = vunpack.c.l.b16 %v5168
    %v5361 = vunpack.c.h.b16 %v5168
    %v5362 = vunpack.c.l.b16 %v5169
    %v5363 = vunpack.c.h.b16 %v5169
    %v5364 = vunpack.c.l.b16 %v5170
    %v5365 = vunpack.c.h.b16 %v5170
    %v5366 = vunpack.c.l.b16 %v5171
    %v5367 = vunpack.c.h.b16 %v5171
    %v5368 = vunpack.c.l.b16 %v5172
    %v5369 = vunpack.c.h.b16 %v5172
    %v5370 = vunpack.c.l.b16 %v5173
    %v5371 = vunpack.c.h.b16 %v5173
    %v5372 = vunpack.c.l.b16 %v5174
    %v5373 = vunpack.c.h.b16 %v5174
    %v5374 = vunpack.c.l.b16 %v5175
    %v5375 = vunpack.c.h.b16 %v5175
    %v5376 = vunpack.c.l.b16 %v5176
    %v5377 = vunpack.c.h.b16 %v5176
    %v5378 = vunpack.c.l.b16 %v5177
    %v5379 = vunpack.c.h.b16 %v5177
    %v5380 = vunpack.c.l.b16 %v5178
    %v5381 = vunpack.c.h.b16 %v5178
    %v5382 = vunpack.c.l.b16 %v5179
    %v5383 = vunpack.c.h.b16 %v5179
    %v5384 = vunpack.c.l.b16 %v5180
    %v5385 = vunpack.c.h.b16 %v5180
    %v5386 = vunpack.c.l.b16 %v5181
    %v5387 = vunpack.c.h.b16 %v5181
    %v5388 = vunpack.c.l.b16 %v5182
    %v5389 = vunpack.c.h.b16 %v5182
    %v5390 = vunpack.c.l.b16 %v5183
    %v5391 = vunpack.c.h.b16 %v5183
    %v5392 = vunpack.c.l.b16 %v5184
    %v5393 = vunpack.c.h.b16 %v5184
    %v5394 = vunpack.c.l.b16 %v5185
    %v5395 = vunpack.c.h.b16 %v5185
    %v5396 = vunpack.c.l.b16 %v5186
    %v5397 = vunpack.c.h.b16 %v5186
    %v5398 = vunpack.c.l.b16 %v5187
    %v5399 = vunpack.c.h.b16 %v5187
    %v5400 = vunpack.c.l.b16 %v5188
    %v5401 = vunpack.c.h.b16 %v5188
    %v5402 = vunpack.c.l.b16 %v5189
    %v5403 = vunpack.c.h.b16 %v5189
    %v5404 = vpack.c.b16 %v5280, %v5276
    %v5405 = vpack.c.b16 %v5281, %v5277
    %v5406 = vpack.c.b16 %v5282, %v5278
    %v5407 = vpack.c.b16 %v5283, %v5279
    %v5408 = vpack.c.b16 %v5288, %v5284
    %v5409 = vpack.c.b16 %v5289, %v5285
    %v5410 = vpack.c.b16 %v5290, %v5286
    %v5411 = vpack.c.b16 %v5291, %v5287
    %v5412 = vpack.c.b16 %v5296, %v5292
    %v5413 = vpack.c.b16 %v5297, %v5293
    %v5414 = vpack.c.b16 %v5298, %v5294
    %v5415 = vpack.c.b16 %v5299, %v5295
    %v5416 = vpack.c.b16 %v5304, %v5300
    %v5417 = vpack.c.b16 %v5305, %v5301
    %v5418 = vpack.c.b16 %v5306, %v5302
    %v5419 = vpack.c.b16 %v5307, %v5303
    %v5420 = vpack.c.b16 %v5312, %v5308
    %v5421 = vpack.c.b16 %v5313, %v5309
    %v5422 = vpack.c.b16 %v5314, %v5310
    %v5423 = vpack.c.b16 %v5315, %v5311
    %v5424 = vpack.c.b16 %v5320, %v5316
    %v5425 = vpack.c.b16 %v5321, %v5317
    %v5426 = vpack.c.b16 %v5322, %v5318
    %v5427 = vpack.c.b16 %v5323, %v5319
    %v5428 = vpack.c.b16 %v5328, %v5324
    %v5429 = vpack.c.b16 %v5329, %v5325
    %v5430 = vpack.c.b16 %v5330, %v5326
    %v5431 = vpack.c.b16 %v5331, %v5327
    %v5432 = vpack.c.b16 %v5336, %v5332
    %v5433 = vpack.c.b16 %v5337, %v5333
    %v5434 = vpack.c.b16 %v5338, %v5334
    %v5435 = vpack.c.b16 %v5339, %v5335
    %v5436 = vpack.c.b16 %v5344, %v5340
    %v5437 = vpack.c.b16 %v5345, %v5341
    %v5438 = vpack.c.b16 %v5346, %v5342
    %v5439 = vpack.c.b16 %v5347, %v5343
    %v5440 = vpack.c.b16 %v5352, %v5348
    %v5441 = vpack.c.b16 %v5353, %v5349
    %v5442 = vpack.c.b16 %v5354, %v5350
    %v5443 = vpack.c.b16 %v5355, %v5351
    %v5444 = vpack.c.b16 %v5360, %v5356
    %v5445 = vpack.c.b16 %v5361, %v5357
    %v5446 = vpack.c.b16 %v5362, %v5358
    %v5447 = vpack.c.b16 %v5363, %v5359
    %v5448 = vpack.c.b16 %v5368, %v5364
    %v5449 = vpack.c.b16 %v5369, %v5365
    %v5450 = vpack.c.b16 %v5370, %v5366
    %v5451 = vpack.c.b16 %v5371, %v5367
    %v5452 = vpack.c.b16 %v5376, %v5372
    %v5453 = vpack.c.b16 %v5377, %v5373
    %v5454 = vpack.c.b16 %v5378, %v5374
    %v5455 = vpack.c.b16 %v5379, %v5375
    %v5456 = vpack.c.b16 %v5384, %v5380
    %v5457 = vpack.c.b16 %v5385, %v5381
    %v5458 = vpack.c.b16 %v5386, %v5382
    %v5459 = vpack.c.b16 %v5387, %v5383
    %v5460 = vpack.c.b16 %v5392, %v5388
    %v5461 = vpack.c.b16 %v5393, %v5389
    %v5462 = vpack.c.b16 %v5394, %v5390
    %v5463 = vpack.c.b16 %v5395, %v5391
    %v5464 = vpack.c.b16 %v5400, %v5396
    %v5465 = vpack.c.b16 %v5401, %v5397
    %v5466 = vpack.c.b16 %v5402, %v5398
    %v5467 = vpack.c.b16 %v5403, %v5399
    %5532 = vmatprep.subr.bf16.mxu0 %v5405
    %5533 = vmatpush1.bf16.msra.mxu0 %v5404
    %5534 = vmatprep.subr.bf16.mxu0 %v5409
    %5535 = vmatpush1.bf16.msra.mxu0 %v5408
    %5536 = vmatprep.subr.bf16.mxu0 %v5413
    %5537 = vmatpush1.bf16.msra.mxu0 %v5412
    %5538 = vmatprep.subr.bf16.mxu0 %v5417
    %5539 = vmatpush1.bf16.msra.mxu0 %v5416
    %5540 = vmatprep.subr.bf16.mxu0 %v5421
    %5541 = vmatpush1.bf16.msra.mxu0 %v5420
    %5542 = vmatprep.subr.bf16.mxu0 %v5425
    %5543 = vmatpush1.bf16.msra.mxu0 %v5424
    %5544 = vmatprep.subr.bf16.mxu0 %v5429
    %5545 = vmatpush1.bf16.msra.mxu0 %v5428
    %5546 = vmatprep.subr.bf16.mxu0 %v5433
    %5547 = vmatpush1.bf16.msra.mxu0 %v5432
    %5548 = vmatprep.subr.bf16.mxu0 %v5437
    %5549 = vmatpush1.bf16.msra.mxu0 %v5436
    %5550 = vmatprep.subr.bf16.mxu0 %v5441
    %5551 = vmatpush1.bf16.msra.mxu0 %v5440
    %5552 = vmatprep.subr.bf16.mxu0 %v5445
    %5553 = vmatpush1.bf16.msra.mxu0 %v5444
    %5554 = vmatprep.subr.bf16.mxu0 %v5449
    %5555 = vmatpush1.bf16.msra.mxu0 %v5448
    %5556 = vmatprep.subr.bf16.mxu0 %v5453
    %5557 = vmatpush1.bf16.msra.mxu0 %v5452
    %5558 = vmatprep.subr.bf16.mxu0 %v5457
    %5559 = vmatpush1.bf16.msra.mxu0 %v5456
    %5560 = vmatprep.subr.bf16.mxu0 %v5461
    %5561 = vmatpush1.bf16.msra.mxu0 %v5460
    %5562 = vmatprep.subr.bf16.mxu0 %v5465
    %5563 = vmatpush1.bf16.msra.mxu0 %v5464
    %5564 = vmatprep.mubr.bf16.mxu0 %v5095
    %5565 = vmatmul.mubr.bf16.gmra.mrb[0].mxu0 %v5094
    %v5566 = vpop.f32.mrb[0].mxu0
    %v5567 = vadd.f32 %v5195, %v5566
    %v5568 = vpop.f32.mrb[0].mxu0
    %v5569 = vadd.f32 %v5199, %v5568
    %v5570 = vpop.f32.mrb[0].mxu0
    %v5571 = vadd.f32 %v5195, %v5570
    %v5572 = vpop.f32.mrb[0].mxu0
    %v5573 = vadd.f32 %v5199, %v5572
    %5574 = vmatprep.mubr.bf16.mxu0 %v5097
    %5575 = vmatmul.mubr.bf16.gmra.mrb[0].mxu0 %v5096
    %v5576 = vpop.f32.mrb[0].mxu0
    %v5577 = vadd.f32 %v5195, %v5576
    %v5578 = vpop.f32.mrb[0].mxu0
    %v5579 = vadd.f32 %v5199, %v5578
    %v5580 = vpop.f32.mrb[0].mxu0
    %v5581 = vadd.f32 %v5195, %v5580
    %v5582 = vpop.f32.mrb[0].mxu0
    %v5583 = vadd.f32 %v5199, %v5582
    %5584 = vmatprep.mubr.bf16.mxu0 %v5099
    %5585 = vmatmul.mubr.bf16.gmra.mrb[0].mxu0 %v5098
    %v5586 = vpop.f32.mrb[0].mxu0
    %v5587 = vadd.f32 %v5195, %v5586
    %v5588 = vpop.f32.mrb[0].mxu0
    %v5589 = vadd.f32 %v5199, %v5588
    %v5590 = vpop.f32.mrb[0].mxu0
    %v5591 = vadd.f32 %v5195, %v5590
    %v5592 = vpop.f32.mrb[0].mxu0
    %v5593 = vadd.f32 %v5199, %v5592
    %5594 = vmatprep.mubr.bf16.mxu0 %v5101
    %5595 = vmatmul.mubr.bf16.gmra.mrb[0].mxu0 %v5100
    %v5596 = vpop.f32.mrb[0].mxu0
    %v5597 = vadd.f32 %v5195, %v5596
    %v5598 = vpop.f32.mrb[0].mxu0
    %v5599 = vadd.f32 %v5199, %v5598
    %v5600 = vpop.f32.mrb[0].mxu0
    %v5601 = vadd.f32 %v5195, %v5600
    %v5602 = vpop.f32.mrb[0].mxu0
    %v5603 = vadd.f32 %v5199, %v5602
    %5604 = vmatprep.mubr.bf16.mxu0 %v5103
    %5605 = vmatmul.mubr.bf16.gmra.mrb[0].mxu0 %v5102
    %v5606 = vpop.f32.mrb[0].mxu0
    %v5607 = vadd.f32 %v5195, %v5606
    %v5608 = vpop.f32.mrb[0].mxu0
    %v5609 = vadd.f32 %v5199, %v5608
    %v5610 = vpop.f32.mrb[0].mxu0
    %v5611 = vadd.f32 %v5195, %v5610
    %v5612 = vpop.f32.mrb[0].mxu0
    %v5613 = vadd.f32 %v5199, %v5612
    %5614 = vmatprep.mubr.bf16.mxu0 %v5105
    %5615 = vmatmul.mubr.bf16.gmra.mrb[0].mxu0 %v5104
    %v5616 = vpop.f32.mrb[0].mxu0
    %v5617 = vadd.f32 %v5195, %v5616
    %v5618 = vpop.f32.mrb[0].mxu0
    %v5619 = vadd.f32 %v5199, %v5618
    %v5620 = vpop.f32.mrb[0].mxu0
    %v5621 = vadd.f32 %v5195, %v5620
    %v5622 = vpop.f32.mrb[0].mxu0
    %v5623 = vadd.f32 %v5199, %v5622
    %5624 = vmatprep.mubr.bf16.mxu0 %v5107
    %5625 = vmatmul.mubr.bf16.gmra.mrb[0].mxu0 %v5106
    %v5626 = vpop.f32.mrb[0].mxu0
    %v5627 = vadd.f32 %v5195, %v5626
    %v5628 = vpop.f32.mrb[0].mxu0
    %v5629 = vadd.f32 %v5199, %v5628
    %v5630 = vpop.f32.mrb[0].mxu0
    %v5631 = vadd.f32 %v5195, %v5630
    %v5632 = vpop.f32.mrb[0].mxu0
    %v5633 = vadd.f32 %v5199, %v5632
    %5634 = vmatprep.mubr.bf16.mxu0 %v5109
    %5635 = vmatmul.mubr.bf16.gmra.mrb[0].mxu0 %v5108
    %v5636 = vpop.f32.mrb[0].mxu0
    %v5637 = vadd.f32 %v5195, %v5636
    %v5638 = vpop.f32.mrb[0].mxu0
    %v5639 = vadd.f32 %v5199, %v5638
    %v5640 = vpop.f32.mrb[0].mxu0
    %v5641 = vadd.f32 %v5195, %v5640
    %v5642 = vpop.f32.mrb[0].mxu0
    %v5643 = vadd.f32 %v5199, %v5642
    %5644 = vmatprep.mubr.bf16.mxu0 %v5111
    %5645 = vmatmul.mubr.bf16.gmra.mrb[0].mxu0 %v5110
    %v5646 = vpop.f32.mrb[0].mxu0
    %v5647 = vadd.f32 %v5195, %v5646
    %v5648 = vpop.f32.mrb[0].mxu0
    %v5649 = vadd.f32 %v5199, %v5648
    %v5650 = vpop.f32.mrb[0].mxu0
    %v5651 = vadd.f32 %v5195, %v5650
    %v5652 = vpop.f32.mrb[0].mxu0
    %v5653 = vadd.f32 %v5199, %v5652
    %5654 = vmatprep.mubr.bf16.mxu0 %v5113
    %5655 = vmatmul.mubr.bf16.gmra.mrb[0].mxu0 %v5112
    %v5656 = vpop.f32.mrb[0].mxu0
    %v5657 = vadd.f32 %v5195, %v5656
    %v5658 = vpop.f32.mrb[0].mxu0
    %v5659 = vadd.f32 %v5199, %v5658
    %v5660 = vpop.f32.mrb[0].mxu0
    %v5661 = vadd.f32 %v5195, %v5660
    %v5662 = vpop.f32.mrb[0].mxu0
    %v5663 = vadd.f32 %v5199, %v5662
    %5664 = vmatprep.mubr.bf16.mxu0 %v5115
    %5665 = vmatmul.mubr.bf16.gmra.mrb[0].mxu0 %v5114
    %v5666 = vpop.f32.mrb[0].mxu0
    %v5667 = vadd.f32 %v5195, %v5666
    %v5668 = vpop.f32.mrb[0].mxu0
    %v5669 = vadd.f32 %v5199, %v5668
    %v5670 = vpop.f32.mrb[0].mxu0
    %v5671 = vadd.f32 %v5195, %v5670
    %v5672 = vpop.f32.mrb[0].mxu0
    %v5673 = vadd.f32 %v5199, %v5672
    %5674 = vmatprep.mubr.bf16.mxu0 %v5117
    %5675 = vmatmul.mubr.bf16.gmra.mrb[0].mxu0 %v5116
    %v5676 = vpop.f32.mrb[0].mxu0
    %v5677 = vadd.f32 %v5195, %v5676
    %v5678 = vpop.f32.mrb[0].mxu0
    %v5679 = vadd.f32 %v5199, %v5678
    %v5680 = vpop.f32.mrb[0].mxu0
    %v5681 = vadd.f32 %v5195, %v5680
    %v5682 = vpop.f32.mrb[0].mxu0
    %v5683 = vadd.f32 %v5199, %v5682
    %5684 = vmatprep.mubr.bf16.mxu0 %v5119
    %5685 = vmatmul.mubr.bf16.gmra.mrb[0].mxu0 %v5118
    %v5686 = vpop.f32.mrb[0].mxu0
    %v5687 = vadd.f32 %v5195, %v5686
    %v5688 = vpop.f32.mrb[0].mxu0
    %v5689 = vadd.f32 %v5199, %v5688
    %v5690 = vpop.f32.mrb[0].mxu0
    %v5691 = vadd.f32 %v5195, %v5690
    %v5692 = vpop.f32.mrb[0].mxu0
    %v5693 = vadd.f32 %v5199, %v5692
    %5694 = vmatprep.mubr.bf16.mxu0 %v5121
    %5695 = vmatmul.mubr.bf16.gmra.mrb[0].mxu0 %v5120
    %v5696 = vpop.f32.mrb[0].mxu0
    %v5697 = vadd.f32 %v5195, %v5696
    %v5698 = vpop.f32.mrb[0].mxu0
    %v5699 = vadd.f32 %v5199, %v5698
    %v5700 = vpop.f32.mrb[0].mxu0
    %v5701 = vadd.f32 %v5195, %v5700
    %v5702 = vpop.f32.mrb[0].mxu0
    %v5703 = vadd.f32 %v5199, %v5702
    %5704 = vmatprep.mubr.bf16.mxu0 %v5123
    %5705 = vmatmul.mubr.bf16.gmra.mrb[0].mxu0 %v5122
    %v5706 = vpop.f32.mrb[0].mxu0
    %v5707 = vadd.f32 %v5195, %v5706
    %v5708 = vpop.f32.mrb[0].mxu0
    %v5709 = vadd.f32 %v5199, %v5708
    %v5710 = vpop.f32.mrb[0].mxu0
    %v5711 = vadd.f32 %v5195, %v5710
    %v5712 = vpop.f32.mrb[0].mxu0
    %v5713 = vadd.f32 %v5199, %v5712
    %5714 = vmatprep.mubr.bf16.mxu0 %v5125
    %5715 = vmatmul.mubr.bf16.gmra.mrb[0].mxu0 %v5124
    %v5716 = vpop.f32.mrb[0].mxu0
    %v5717 = vadd.f32 %v5195, %v5716
    %v5718 = vpop.f32.mrb[0].mxu0
    %v5719 = vadd.f32 %v5199, %v5718
    %v5720 = vpop.f32.mrb[0].mxu0
    %v5721 = vadd.f32 %v5195, %v5720
    %v5722 = vpop.f32.mrb[0].mxu0
    %v5723 = vadd.f32 %v5199, %v5722
    %5724 = vdwg.mxu0
    %5725 = vmatprep.subr.bf16.mxu0 %v5407
    %5726 = vmatpush1.bf16.msra.mxu0 %v5406
    %5727 = vmatprep.subr.bf16.mxu0 %v5411
    %5728 = vmatpush1.bf16.msra.mxu0 %v5410
    %5729 = vmatprep.subr.bf16.mxu0 %v5415
    %5730 = vmatpush1.bf16.msra.mxu0 %v5414
    %5731 = vmatprep.subr.bf16.mxu0 %v5419
    %5732 = vmatpush1.bf16.msra.mxu0 %v5418
    %5733 = vmatprep.subr.bf16.mxu0 %v5423
    %5734 = vmatpush1.bf16.msra.mxu0 %v5422
    %5735 = vmatprep.subr.bf16.mxu0 %v5427
    %5736 = vmatpush1.bf16.msra.mxu0 %v5426
    %5737 = vmatprep.subr.bf16.mxu0 %v5431
    %5738 = vmatpush1.bf16.msra.mxu0 %v5430
    %5739 = vmatprep.subr.bf16.mxu0 %v5435
    %5740 = vmatpush1.bf16.msra.mxu0 %v5434
    %5741 = vmatprep.subr.bf16.mxu0 %v5439
    %5742 = vmatpush1.bf16.msra.mxu0 %v5438
    %5743 = vmatprep.subr.bf16.mxu0 %v5443
    %5744 = vmatpush1.bf16.msra.mxu0 %v5442
    %5745 = vmatprep.subr.bf16.mxu0 %v5447
    %5746 = vmatpush1.bf16.msra.mxu0 %v5446
    %5747 = vmatprep.subr.bf16.mxu0 %v5451
    %5748 = vmatpush1.bf16.msra.mxu0 %v5450
    %5749 = vmatprep.subr.bf16.mxu0 %v5455
    %5750 = vmatpush1.bf16.msra.mxu0 %v5454
    %5751 = vmatprep.subr.bf16.mxu0 %v5459
    %5752 = vmatpush1.bf16.msra.mxu0 %v5458
    %5753 = vmatprep.subr.bf16.mxu0 %v5463
    %5754 = vmatpush1.bf16.msra.mxu0 %v5462
    %5755 = vmatprep.subr.bf16.mxu0 %v5467
    %5756 = vmatpush1.bf16.msra.mxu0 %v5466
    %5757 = vmatprep.mubr.bf16.mxu0 %v5095
    %5758 = vmatmul.mubr.bf16.gmra.mrb[0].mxu0 %v5094
    %v5759 = vpop.f32.mrb[0].mxu0
    %v5760 = vadd.f32 %v5203, %v5759
    %v5761 = vpop.f32.mrb[0].mxu0
    %v5762 = vadd.f32 %v5207, %v5761
    %v5763 = vpop.f32.mrb[0].mxu0
    %v5764 = vadd.f32 %v5203, %v5763
    %v5765 = vpop.f32.mrb[0].mxu0
    %v5766 = vadd.f32 %v5207, %v5765
    %5767 = vmatprep.mubr.bf16.mxu0 %v5097
    %5768 = vmatmul.mubr.bf16.gmra.mrb[0].mxu0 %v5096
    %v5769 = vpop.f32.mrb[0].mxu0
    %v5770 = vadd.f32 %v5203, %v5769
    %v5771 = vpop.f32.mrb[0].mxu0
    %v5772 = vadd.f32 %v5207, %v5771
    %v5773 = vpop.f32.mrb[0].mxu0
    %v5774 = vadd.f32 %v5203, %v5773
    %v5775 = vpop.f32.mrb[0].mxu0
    %v5776 = vadd.f32 %v5207, %v5775
    %5777 = vmatprep.mubr.bf16.mxu0 %v5099
    %5778 = vmatmul.mubr.bf16.gmra.mrb[0].mxu0 %v5098
    %v5779 = vpop.f32.mrb[0].mxu0
    %v5780 = vadd.f32 %v5203, %v5779
    %v5781 = vpop.f32.mrb[0].mxu0
    %v5782 = vadd.f32 %v5207, %v5781
    %v5783 = vpop.f32.mrb[0].mxu0
    %v5784 = vadd.f32 %v5203, %v5783
    %v5785 = vpop.f32.mrb[0].mxu0
    %v5786 = vadd.f32 %v5207, %v5785
    %5787 = vmatprep.mubr.bf16.mxu0 %v5101
    %5788 = vmatmul.mubr.bf16.gmra.mrb[0].mxu0 %v5100
    %v5789 = vpop.f32.mrb[0].mxu0
    %v5790 = vadd.f32 %v5203, %v5789
    %v5791 = vpop.f32.mrb[0].mxu0
    %v5792 = vadd.f32 %v5207, %v5791
    %v5793 = vpop.f32.mrb[0].mxu0
    %v5794 = vadd.f32 %v5203, %v5793
    %v5795 = vpop.f32.mrb[0].mxu0
    %v5796 = vadd.f32 %v5207, %v5795
    %5797 = vmatprep.mubr.bf16.mxu0 %v5103
    %5798 = vmatmul.mubr.bf16.gmra.mrb[0].mxu0 %v5102
    %v5799 = vpop.f32.mrb[0].mxu0
    %v5800 = vadd.f32 %v5203, %v5799
    %v5801 = vpop.f32.mrb[0].mxu0
    %v5802 = vadd.f32 %v5207, %v5801
    %v5803 = vpop.f32.mrb[0].mxu0
    %v5804 = vadd.f32 %v5203, %v5803
    %v5805 = vpop.f32.mrb[0].mxu0
    %v5806 = vadd.f32 %v5207, %v5805
    %5807 = vmatprep.mubr.bf16.mxu0 %v5105
    %5808 = vmatmul.mubr.bf16.gmra.mrb[0].mxu0 %v5104
    %v5809 = vpop.f32.mrb[0].mxu0
    %v5810 = vadd.f32 %v5203, %v5809
    %v5811 = vpop.f32.mrb[0].mxu0
    %v5812 = vadd.f32 %v5207, %v5811
    %v5813 = vpop.f32.mrb[0].mxu0
    %v5814 = vadd.f32 %v5203, %v5813
    %v5815 = vpop.f32.mrb[0].mxu0
    %v5816 = vadd.f32 %v5207, %v5815
    %5817 = vmatprep.mubr.bf16.mxu0 %v5107
    %5818 = vmatmul.mubr.bf16.gmra.mrb[0].mxu0 %v5106
    %v5819 = vpop.f32.mrb[0].mxu0
    %v5820 = vadd.f32 %v5203, %v5819
    %v5821 = vpop.f32.mrb[0].mxu0
    %v5822 = vadd.f32 %v5207, %v5821
    %v5823 = vpop.f32.mrb[0].mxu0
    %v5824 = vadd.f32 %v5203, %v5823
    %v5825 = vpop.f32.mrb[0].mxu0
    %v5826 = vadd.f32 %v5207, %v5825
    %5827 = vmatprep.mubr.bf16.mxu0 %v5109
    %5828 = vmatmul.mubr.bf16.gmra.mrb[0].mxu0 %v5108
    %v5829 = vpop.f32.mrb[0].mxu0
    %v5830 = vadd.f32 %v5203, %v5829
    %v5831 = vpop.f32.mrb[0].mxu0
    %v5832 = vadd.f32 %v5207, %v5831
    %v5833 = vpop.f32.mrb[0].mxu0
    %v5834 = vadd.f32 %v5203, %v5833
    %v5835 = vpop.f32.mrb[0].mxu0
    %v5836 = vadd.f32 %v5207, %v5835
    %5837 = vmatprep.mubr.bf16.mxu0 %v5111
    %5838 = vmatmul.mubr.bf16.gmra.mrb[0].mxu0 %v5110
    %v5839 = vpop.f32.mrb[0].mxu0
    %v5840 = vadd.f32 %v5203, %v5839
    %v5841 = vpop.f32.mrb[0].mxu0
    %v5842 = vadd.f32 %v5207, %v5841
    %v5843 = vpop.f32.mrb[0].mxu0
    %v5844 = vadd.f32 %v5203, %v5843
    %v5845 = vpop.f32.mrb[0].mxu0
    %v5846 = vadd.f32 %v5207, %v5845
    %5847 = vmatprep.mubr.bf16.mxu0 %v5113
    %5848 = vmatmul.mubr.bf16.gmra.mrb[0].mxu0 %v5112
    %v5849 = vpop.f32.mrb[0].mxu0
    %v5850 = vadd.f32 %v5203, %v5849
    %v5851 = vpop.f32.mrb[0].mxu0
    %v5852 = vadd.f32 %v5207, %v5851
    %v5853 = vpop.f32.mrb[0].mxu0
    %v5854 = vadd.f32 %v5203, %v5853
    %v5855 = vpop.f32.mrb[0].mxu0
    %v5856 = vadd.f32 %v5207, %v5855
    %5857 = vmatprep.mubr.bf16.mxu0 %v5115
    %5858 = vmatmul.mubr.bf16.gmra.mrb[0].mxu0 %v5114
    %v5859 = vpop.f32.mrb[0].mxu0
    %v5860 = vadd.f32 %v5203, %v5859
    %v5861 = vpop.f32.mrb[0].mxu0
    %v5862 = vadd.f32 %v5207, %v5861
    %v5863 = vpop.f32.mrb[0].mxu0
    %v5864 = vadd.f32 %v5203, %v5863
    %v5865 = vpop.f32.mrb[0].mxu0
    %v5866 = vadd.f32 %v5207, %v5865
    %5867 = vmatprep.mubr.bf16.mxu0 %v5117
    %5868 = vmatmul.mubr.bf16.gmra.mrb[0].mxu0 %v5116
    %v5869 = vpop.f32.mrb[0].mxu0
    %v5870 = vadd.f32 %v5203, %v5869
    %v5871 = vpop.f32.mrb[0].mxu0
    %v5872 = vadd.f32 %v5207, %v5871
    %v5873 = vpop.f32.mrb[0].mxu0
    %v5874 = vadd.f32 %v5203, %v5873
    %v5875 = vpop.f32.mrb[0].mxu0
    %v5876 = vadd.f32 %v5207, %v5875
    %5877 = vmatprep.mubr.bf16.mxu0 %v5119
    %5878 = vmatmul.mubr.bf16.gmra.mrb[0].mxu0 %v5118
    %v5879 = vpop.f32.mrb[0].mxu0
    %v5880 = vadd.f32 %v5203, %v5879
    %v5881 = vpop.f32.mrb[0].mxu0
    %v5882 = vadd.f32 %v5207, %v5881
    %v5883 = vpop.f32.mrb[0].mxu0
    %v5884 = vadd.f32 %v5203, %v5883
    %v5885 = vpop.f32.mrb[0].mxu0
    %v5886 = vadd.f32 %v5207, %v5885
    %5887 = vmatprep.mubr.bf16.mxu0 %v5121
    %5888 = vmatmul.mubr.bf16.gmra.mrb[0].mxu0 %v5120
    %v5889 = vpop.f32.mrb[0].mxu0
    %v5890 = vadd.f32 %v5203, %v5889
    %v5891 = vpop.f32.mrb[0].mxu0
    %v5892 = vadd.f32 %v5207, %v5891
    %v5893 = vpop.f32.mrb[0].mxu0
    %v5894 = vadd.f32 %v5203, %v5893
    %v5895 = vpop.f32.mrb[0].mxu0
    %v5896 = vadd.f32 %v5207, %v5895
    %5897 = vmatprep.mubr.bf16.mxu0 %v5123
    %5898 = vmatmul.mubr.bf16.gmra.mrb[0].mxu0 %v5122
    %v5899 = vpop.f32.mrb[0].mxu0
    %v5900 = vadd.f32 %v5203, %v5899
    %v5901 = vpop.f32.mrb[0].mxu0
    %v5902 = vadd.f32 %v5207, %v5901
    %v5903 = vpop.f32.mrb[0].mxu0
    %v5904 = vadd.f32 %v5203, %v5903
    %v5905 = vpop.f32.mrb[0].mxu0
    %v5906 = vadd.f32 %v5207, %v5905
    %5907 = vmatprep.mubr.bf16.mxu0 %v5125
    %5908 = vmatmul.mubr.bf16.gmra.mrb[0].mxu0 %v5124
    %v5909 = vpop.f32.mrb[0].mxu0
    %v5910 = vadd.f32 %v5203, %v5909
    %v5911 = vpop.f32.mrb[0].mxu0
    %v5912 = vadd.f32 %v5207, %v5911
    %v5913 = vpop.f32.mrb[0].mxu0
    %v5914 = vadd.f32 %v5203, %v5913
    %v5915 = vpop.f32.mrb[0].mxu0
    %v5916 = vadd.f32 %v5207, %v5915
    %5917 = vdwg.mxu0
    %5918 = vst [vmem:[#allocation4] sm:$0xff] %v5567
    %5919 = vst [vmem:[#allocation4 + $0x8] sm:$0xff] %v5569
    %5920 = vst [vmem:[#allocation4 + $0x10] sm:$0xff] %v5760
    %5921 = vst [vmem:[#allocation4 + $0x18] sm:$0xff] %v5762
    %5922 = vst [vmem:[#allocation4 + $0x20] sm:$0xff] %v5571
    %5923 = vst [vmem:[#allocation4 + $0x28] sm:$0xff] %v5573
    %5924 = vst [vmem:[#allocation4 + $0x30] sm:$0xff] %v5764
    %5925 = vst [vmem:[#allocation4 + $0x38] sm:$0xff] %v5766
    %5926 = vst [vmem:[#allocation4 + $0x40] sm:$0xff] %v5577
    %5927 = vst [vmem:[#allocation4 + $0x48] sm:$0xff] %v5579
    %5928 = vst [vmem:[#allocation4 + $0x50] sm:$0xff] %v5770
    %5929 = vst [vmem:[#allocation4 + $0x58] sm:$0xff] %v5772
    %5930 = vst [vmem:[#allocation4 + $0x60] sm:$0xff] %v5581
    %5931 = vst [vmem:[#allocation4 + $0x68] sm:$0xff] %v5583
    %5932 = vst [vmem:[#allocation4 + $0x70] sm:$0xff] %v5774
    %5933 = vst [vmem:[#allocation4 + $0x78] sm:$0xff] %v5776
    %5934 = vst [vmem:[#allocation4 + $0x80] sm:$0xff] %v5587
    %5935 = vst [vmem:[#allocation4 + $0x88] sm:$0xff] %v5589
    %5936 = vst [vmem:[#allocation4 + $0x90] sm:$0xff] %v5780
    %5937 = vst [vmem:[#allocation4 + $0x98] sm:$0xff] %v5782
    %5938 = vst [vmem:[#allocation4 + $0xa0] sm:$0xff] %v5591
    %5939 = vst [vmem:[#allocation4 + $0xa8] sm:$0xff] %v5593
    %5940 = vst [vmem:[#allocation4 + $0xb0] sm:$0xff] %v5784
    %5941 = vst [vmem:[#allocation4 + $0xb8] sm:$0xff] %v5786
    %5942 = vst [vmem:[#allocation4 + $0xc0] sm:$0xff] %v5597
    %5943 = vst [vmem:[#allocation4 + $0xc8] sm:$0xff] %v5599
    %5944 = vst [vmem:[#allocation4 + $0xd0] sm:$0xff] %v5790
    %5945 = vst [vmem:[#allocation4 + $0xd8] sm:$0xff] %v5792
    %5946 = vst [vmem:[#allocation4 + $0xe0] sm:$0xff] %v5601
    %5947 = vst [vmem:[#allocation4 + $0xe8] sm:$0xff] %v5603
    %5948 = vst [vmem:[#allocation4 + $0xf0] sm:$0xff] %v5794
    %5949 = vst [vmem:[#allocation4 + $0xf8] sm:$0xff] %v5796
    %5950 = vst [vmem:[#allocation4 + $0x100] sm:$0xff] %v5607
    %5951 = vst [vmem:[#allocation4 + $0x108] sm:$0xff] %v5609
    %5952 = vst [vmem:[#allocation4 + $0x110] sm:$0xff] %v5800
    %5953 = vst [vmem:[#allocation4 + $0x118] sm:$0xff] %v5802
    %5954 = vst [vmem:[#allocation4 + $0x120] sm:$0xff] %v5611
    %5955 = vst [vmem:[#allocation4 + $0x128] sm:$0xff] %v5613
    %5956 = vst [vmem:[#allocation4 + $0x130] sm:$0xff] %v5804
    %5957 = vst [vmem:[#allocation4 + $0x138] sm:$0xff] %v5806
    %5958 = vst [vmem:[#allocation4 + $0x140] sm:$0xff] %v5617
    %5959 = vst [vmem:[#allocation4 + $0x148] sm:$0xff] %v5619
    %5960 = vst [vmem:[#allocation4 + $0x150] sm:$0xff] %v5810
    %5961 = vst [vmem:[#allocation4 + $0x158] sm:$0xff] %v5812
    %5962 = vst [vmem:[#allocation4 + $0x160] sm:$0xff] %v5621
    %5963 = vst [vmem:[#allocation4 + $0x168] sm:$0xff] %v5623
    %5964 = vst [vmem:[#allocation4 + $0x170] sm:$0xff] %v5814
    %5965 = vst [vmem:[#allocation4 + $0x178] sm:$0xff] %v5816
    %5966 = vst [vmem:[#allocation4 + $0x180] sm:$0xff] %v5627
    %5967 = vst [vmem:[#allocation4 + $0x188] sm:$0xff] %v5629
    %5968 = vst [vmem:[#allocation4 + $0x190] sm:$0xff] %v5820
    %5969 = vst [vmem:[#allocation4 + $0x198] sm:$0xff] %v5822
    %5970 = vst [vmem:[#allocation4 + $0x1a0] sm:$0xff] %v5631
    %5971 = vst [vmem:[#allocation4 + $0x1a8] sm:$0xff] %v5633
    %5972 = vst [vmem:[#allocation4 + $0x1b0] sm:$0xff] %v5824
    %5973 = vst [vmem:[#allocation4 + $0x1b8] sm:$0xff] %v5826
    %5974 = vst [vmem:[#allocation4 + $0x1c0] sm:$0xff] %v5637
    %5975 = vst [vmem:[#allocation4 + $0x1c8] sm:$0xff] %v5639
    %5976 = vst [vmem:[#allocation4 + $0x1d0] sm:$0xff] %v5830
    %5977 = vst [vmem:[#allocation4 + $0x1d8] sm:$0xff] %v5832
    %5978 = vst [vmem:[#allocation4 + $0x1e0] sm:$0xff] %v5641
    %5979 = vst [vmem:[#allocation4 + $0x1e8] sm:$0xff] %v5643
    %5980 = vst [vmem:[#allocation4 + $0x1f0] sm:$0xff] %v5834
    %5981 = vst [vmem:[#allocation4 + $0x1f8] sm:$0xff] %v5836
    %5982 = vst [vmem:[#allocation4 + $0x200] sm:$0xff] %v5647
    %5983 = vst [vmem:[#allocation4 + $0x208] sm:$0xff] %v5649
    %5984 = vst [vmem:[#allocation4 + $0x210] sm:$0xff] %v5840
    %5985 = vst [vmem:[#allocation4 + $0x218] sm:$0xff] %v5842
    %5986 = vst [vmem:[#allocation4 + $0x220] sm:$0xff] %v5651
    %5987 = vst [vmem:[#allocation4 + $0x228] sm:$0xff] %v5653
    %5988 = vst [vmem:[#allocation4 + $0x230] sm:$0xff] %v5844
    %5989 = vst [vmem:[#allocation4 + $0x238] sm:$0xff] %v5846
    %5990 = vst [vmem:[#allocation4 + $0x240] sm:$0xff] %v5657
    %5991 = vst [vmem:[#allocation4 + $0x248] sm:$0xff] %v5659
    %5992 = vst [vmem:[#allocation4 + $0x250] sm:$0xff] %v5850
    %5993 = vst [vmem:[#allocation4 + $0x258] sm:$0xff] %v5852
    %5994 = vst [vmem:[#allocation4 + $0x260] sm:$0xff] %v5661
    %5995 = vst [vmem:[#allocation4 + $0x268] sm:$0xff] %v5663
    %5996 = vst [vmem:[#allocation4 + $0x270] sm:$0xff] %v5854
    %5997 = vst [vmem:[#allocation4 + $0x278] sm:$0xff] %v5856
    %5998 = vst [vmem:[#allocation4 + $0x280] sm:$0xff] %v5667
    %5999 = vst [vmem:[#allocation4 + $0x288] sm:$0xff] %v5669
    %6000 = vst [vmem:[#allocation4 + $0x290] sm:$0xff] %v5860
    %6001 = vst [vmem:[#allocation4 + $0x298] sm:$0xff] %v5862
    %6002 = vst [vmem:[#allocation4 + $0x2a0] sm:$0xff] %v5671
    %6003 = vst [vmem:[#allocation4 + $0x2a8] sm:$0xff] %v5673
    %6004 = vst [vmem:[#allocation4 + $0x2b0] sm:$0xff] %v5864
    %6005 = vst [vmem:[#allocation4 + $0x2b8] sm:$0xff] %v5866
    %6006 = vst [vmem:[#allocation4 + $0x2c0] sm:$0xff] %v5677
    %6007 = vst [vmem:[#allocation4 + $0x2c8] sm:$0xff] %v5679
    %6008 = vst [vmem:[#allocation4 + $0x2d0] sm:$0xff] %v5870
    %6009 = vst [vmem:[#allocation4 + $0x2d8] sm:$0xff] %v5872
    %6010 = vst [vmem:[#allocation4 + $0x2e0] sm:$0xff] %v5681
    %6011 = vst [vmem:[#allocation4 + $0x2e8] sm:$0xff] %v5683
    %6012 = vst [vmem:[#allocation4 + $0x2f0] sm:$0xff] %v5874
    %6013 = vst [vmem:[#allocation4 + $0x2f8] sm:$0xff] %v5876
    %6014 = vst [vmem:[#allocation4 + $0x300] sm:$0xff] %v5687
    %6015 = vst [vmem:[#allocation4 + $0x308] sm:$0xff] %v5689
    %6016 = vst [vmem:[#allocation4 + $0x310] sm:$0xff] %v5880
    %6017 = vst [vmem:[#allocation4 + $0x318] sm:$0xff] %v5882
    %6018 = vst [vmem:[#allocation4 + $0x320] sm:$0xff] %v5691
    %6019 = vst [vmem:[#allocation4 + $0x328] sm:$0xff] %v5693
    %6020 = vst [vmem:[#allocation4 + $0x330] sm:$0xff] %v5884
    %6021 = vst [vmem:[#allocation4 + $0x338] sm:$0xff] %v5886
    %6022 = vst [vmem:[#allocation4 + $0x340] sm:$0xff] %v5697
    %6023 = vst [vmem:[#allocation4 + $0x348] sm:$0xff] %v5699
    %6024 = vst [vmem:[#allocation4 + $0x350] sm:$0xff] %v5890
    %6025 = vst [vmem:[#allocation4 + $0x358] sm:$0xff] %v5892
    %6026 = vst [vmem:[#allocation4 + $0x360] sm:$0xff] %v5701
    %6027 = vst [vmem:[#allocation4 + $0x368] sm:$0xff] %v5703
    %6028 = vst [vmem:[#allocation4 + $0x370] sm:$0xff] %v5894
    %6029 = vst [vmem:[#allocation4 + $0x378] sm:$0xff] %v5896
    %6030 = vst [vmem:[#allocation4 + $0x380] sm:$0xff] %v5707
    %6031 = vst [vmem:[#allocation4 + $0x388] sm:$0xff] %v5709
    %6032 = vst [vmem:[#allocation4 + $0x390] sm:$0xff] %v5900
    %6033 = vst [vmem:[#allocation4 + $0x398] sm:$0xff] %v5902
    %6034 = vst [vmem:[#allocation4 + $0x3a0] sm:$0xff] %v5711
    %6035 = vst [vmem:[#allocation4 + $0x3a8] sm:$0xff] %v5713
    %6036 = vst [vmem:[#allocation4 + $0x3b0] sm:$0xff] %v5904
    %6037 = vst [vmem:[#allocation4 + $0x3b8] sm:$0xff] %v5906
    %6038 = vst [vmem:[#allocation4 + $0x3c0] sm:$0xff] %v5717
    %6039 = vst [vmem:[#allocation4 + $0x3c8] sm:$0xff] %v5719
    %6040 = vst [vmem:[#allocation4 + $0x3d0] sm:$0xff] %v5910
    %6041 = vst [vmem:[#allocation4 + $0x3d8] sm:$0xff] %v5912
    %6042 = vst [vmem:[#allocation4 + $0x3e0] sm:$0xff] %v5721
    %6043 = vst [vmem:[#allocation4 + $0x3e8] sm:$0xff] %v5723
    %6044 = vst [vmem:[#allocation4 + $0x3f0] sm:$0xff] %v5914
    %6045 = vst [vmem:[#allocation4 + $0x3f8] sm:$0xff] %v5916
    loop: start=0, step=1, limit=32
    $region144: #{net_forward.1} parent=1 // loop_pre_header
      _
    $region145: #{net_forward.1} parent=1 // loop_header
      %s6047 = sphi 0, %s6051
      %p6048 = scmp.ge.s32.totalorder %s6047, 32
      %v6052 = vphi 0.0, %v6366
      %v6053 = vphi 0.0, %v6364
    $region146: #{net_forward.1} parent=1 // loop_header_branch
      %6050 = sbr.rel (%p6048) target = $region150
    $region147: #{net_forward.1} parent=1 // loop_body
      %s6054 = smul.u32 %s6047, 8
      %s6055 = sshra.s32 %s6054, 3
      %s6056 = sand.u32 %s6054, 7
      %s6057 = smul.u32 %s6055, 4
      %s6058 = smul.addr %s6057, 8
      %s6059 = scalar_lea.vmem [#allocation4], %s6058
      %v6060 = vld [vmem:[%s6059] sm:$0xff]
      %v6061 = vld [vmem:[%s6059 + $0x8] sm:$0xff]
      %v6062 = vld [vmem:[%s6059 + $0x10] sm:$0xff]
      %v6063 = vld [vmem:[%s6059 + $0x18] sm:$0xff]
      %v6064 = vpack.c.bf16 %v6052, %v6052
      %v6065 = vld [vmem:[#allocation19] sm:$0xff]
      %v6066 = vld [vmem:[#allocation19 + $0x8] sm:$0xff]
      %v6067 = vld [vmem:[#allocation19 + $0x10] sm:$0xff]
      %v6068 = vld [vmem:[#allocation19 + $0x18] sm:$0xff]
      %v6069 = vld [vmem:[#allocation19 + $0x20] sm:$0xff]
      %v6070 = vld [vmem:[#allocation19 + $0x28] sm:$0xff]
      %v6071 = vld [vmem:[#allocation19 + $0x30] sm:$0xff]
      %v6072 = vld [vmem:[#allocation19 + $0x38] sm:$0xff]
      %v6073 = vld [vmem:[#allocation19 + $0x40] sm:$0xff]
      %v6074 = vld [vmem:[#allocation19 + $0x48] sm:$0xff]
      %v6075 = vld [vmem:[#allocation19 + $0x50] sm:$0xff]
      %v6076 = vld [vmem:[#allocation19 + $0x58] sm:$0xff]
      %v6077 = vld [vmem:[#allocation19 + $0x60] sm:$0xff]
      %v6078 = vld [vmem:[#allocation19 + $0x68] sm:$0xff]
      %v6079 = vld [vmem:[#allocation19 + $0x70] sm:$0xff]
      %v6080 = vld [vmem:[#allocation19 + $0x78] sm:$0xff]
      %v6081 = vld [vmem:[#allocation19 + $0x80] sm:$0xff]
      %v6082 = vld [vmem:[#allocation19 + $0x88] sm:$0xff]
      %v6083 = vld [vmem:[#allocation19 + $0x90] sm:$0xff]
      %v6084 = vld [vmem:[#allocation19 + $0x98] sm:$0xff]
      %v6085 = vld [vmem:[#allocation19 + $0xa0] sm:$0xff]
      %v6086 = vld [vmem:[#allocation19 + $0xa8] sm:$0xff]
      %v6087 = vld [vmem:[#allocation19 + $0xb0] sm:$0xff]
      %v6088 = vld [vmem:[#allocation19 + $0xb8] sm:$0xff]
      %v6089 = vld [vmem:[#allocation19 + $0xc0] sm:$0xff]
      %v6090 = vld [vmem:[#allocation19 + $0xc8] sm:$0xff]
      %v6091 = vld [vmem:[#allocation19 + $0xd0] sm:$0xff]
      %v6092 = vld [vmem:[#allocation19 + $0xd8] sm:$0xff]
      %v6093 = vld [vmem:[#allocation19 + $0xe0] sm:$0xff]
      %v6094 = vld [vmem:[#allocation19 + $0xe8] sm:$0xff]
      %v6095 = vld [vmem:[#allocation19 + $0xf0] sm:$0xff]
      %v6096 = vld [vmem:[#allocation19 + $0xf8] sm:$0xff]
      %v6129 = vunpack.c.l.b16 %v6065
      %v6130 = vunpack.c.h.b16 %v6065
      %v6131 = vunpack.c.l.b16 %v6066
      %v6132 = vunpack.c.h.b16 %v6066
      %v6133 = vunpack.c.l.b16 %v6067
      %v6134 = vunpack.c.h.b16 %v6067
      %v6135 = vunpack.c.l.b16 %v6068
      %v6136 = vunpack.c.h.b16 %v6068
      %v6137 = vunpack.c.l.b16 %v6069
      %v6138 = vunpack.c.h.b16 %v6069
      %v6139 = vunpack.c.l.b16 %v6070
      %v6140 = vunpack.c.h.b16 %v6070
      %v6141 = vunpack.c.l.b16 %v6071
      %v6142 = vunpack.c.h.b16 %v6071
      %v6143 = vunpack.c.l.b16 %v6072
      %v6144 = vunpack.c.h.b16 %v6072
      %v6145 = vunpack.c.l.b16 %v6073
      %v6146 = vunpack.c.h.b16 %v6073
      %v6147 = vunpack.c.l.b16 %v6074
      %v6148 = vunpack.c.h.b16 %v6074
      %v6149 = vunpack.c.l.b16 %v6075
      %v6150 = vunpack.c.h.b16 %v6075
      %v6151 = vunpack.c.l.b16 %v6076
      %v6152 = vunpack.c.h.b16 %v6076
      %v6153 = vunpack.c.l.b16 %v6077
      %v6154 = vunpack.c.h.b16 %v6077
      %v6155 = vunpack.c.l.b16 %v6078
      %v6156 = vunpack.c.h.b16 %v6078
      %v6157 = vunpack.c.l.b16 %v6079
      %v6158 = vunpack.c.h.b16 %v6079
      %v6159 = vunpack.c.l.b16 %v6080
      %v6160 = vunpack.c.h.b16 %v6080
      %v6161 = vunpack.c.l.b16 %v6081
      %v6162 = vunpack.c.h.b16 %v6081
      %v6163 = vunpack.c.l.b16 %v6082
      %v6164 = vunpack.c.h.b16 %v6082
      %v6165 = vunpack.c.l.b16 %v6083
      %v6166 = vunpack.c.h.b16 %v6083
      %v6167 = vunpack.c.l.b16 %v6084
      %v6168 = vunpack.c.h.b16 %v6084
      %v6169 = vunpack.c.l.b16 %v6085
      %v6170 = vunpack.c.h.b16 %v6085
      %v6171 = vunpack.c.l.b16 %v6086
      %v6172 = vunpack.c.h.b16 %v6086
      %v6173 = vunpack.c.l.b16 %v6087
      %v6174 = vunpack.c.h.b16 %v6087
      %v6175 = vunpack.c.l.b16 %v6088
      %v6176 = vunpack.c.h.b16 %v6088
      %v6177 = vunpack.c.l.b16 %v6089
      %v6178 = vunpack.c.h.b16 %v6089
      %v6179 = vunpack.c.l.b16 %v6090
      %v6180 = vunpack.c.h.b16 %v6090
      %v6181 = vunpack.c.l.b16 %v6091
      %v6182 = vunpack.c.h.b16 %v6091
      %v6183 = vunpack.c.l.b16 %v6092
      %v6184 = vunpack.c.h.b16 %v6092
      %v6185 = vunpack.c.l.b16 %v6093
      %v6186 = vunpack.c.h.b16 %v6093
      %v6187 = vunpack.c.l.b16 %v6094
      %v6188 = vunpack.c.h.b16 %v6094
      %v6189 = vunpack.c.l.b16 %v6095
      %v6190 = vunpack.c.h.b16 %v6095
      %v6191 = vunpack.c.l.b16 %v6096
      %v6192 = vunpack.c.h.b16 %v6096
      %v6193 = vpack.c.b16 %v6133, %v6129
      %v6194 = vpack.c.b16 %v6134, %v6130
      %v6195 = vpack.c.b16 %v6135, %v6131
      %v6196 = vpack.c.b16 %v6136, %v6132
      %v6197 = vpack.c.b16 %v6141, %v6137
      %v6198 = vpack.c.b16 %v6142, %v6138
      %v6199 = vpack.c.b16 %v6143, %v6139
      %v6200 = vpack.c.b16 %v6144, %v6140
      %v6201 = vpack.c.b16 %v6149, %v6145
      %v6202 = vpack.c.b16 %v6150, %v6146
      %v6203 = vpack.c.b16 %v6151, %v6147
      %v6204 = vpack.c.b16 %v6152, %v6148
      %v6205 = vpack.c.b16 %v6157, %v6153
      %v6206 = vpack.c.b16 %v6158, %v6154
      %v6207 = vpack.c.b16 %v6159, %v6155
      %v6208 = vpack.c.b16 %v6160, %v6156
      %v6209 = vpack.c.b16 %v6165, %v6161
      %v6210 = vpack.c.b16 %v6166, %v6162
      %v6211 = vpack.c.b16 %v6167, %v6163
      %v6212 = vpack.c.b16 %v6168, %v6164
      %v6213 = vpack.c.b16 %v6173, %v6169
      %v6214 = vpack.c.b16 %v6174, %v6170
      %v6215 = vpack.c.b16 %v6175, %v6171
      %v6216 = vpack.c.b16 %v6176, %v6172
      %v6217 = vpack.c.b16 %v6181, %v6177
      %v6218 = vpack.c.b16 %v6182, %v6178
      %v6219 = vpack.c.b16 %v6183, %v6179
      %v6220 = vpack.c.b16 %v6184, %v6180
      %v6221 = vpack.c.b16 %v6189, %v6185
      %v6222 = vpack.c.b16 %v6190, %v6186
      %v6223 = vpack.c.b16 %v6191, %v6187
      %v6224 = vpack.c.b16 %v6192, %v6188
      %6257 = vmatprep.subr.bf16.mxu0 %v6194
      %6258 = vmatpush1.bf16.msra.mxu0 %v6193
      %6259 = vmatprep.subr.bf16.mxu0 %v6198
      %6260 = vmatpush1.bf16.msra.mxu0 %v6197
      %6261 = vmatprep.subr.bf16.mxu0 %v6202
      %6262 = vmatpush1.bf16.msra.mxu0 %v6201
      %6263 = vmatprep.subr.bf16.mxu0 %v6206
      %6264 = vmatpush1.bf16.msra.mxu0 %v6205
      %6265 = vmatprep.subr.bf16.mxu0 %v6210
      %6266 = vmatpush1.bf16.msra.mxu0 %v6209
      %6267 = vmatprep.subr.bf16.mxu0 %v6214
      %6268 = vmatpush1.bf16.msra.mxu0 %v6213
      %6269 = vmatprep.subr.bf16.mxu0 %v6218
      %6270 = vmatpush1.bf16.msra.mxu0 %v6217
      %6271 = vmatprep.subr.bf16.mxu0 %v6222
      %6272 = vmatpush1.bf16.msra.mxu0 %v6221
      %6273 = vmatprep.subr.bf16.mxu0 0
      %6274 = vmatpush1.bf16.msra.mxu0 0
      %6275 = vmatprep.subr.bf16.mxu0 0
      %6276 = vmatpush1.bf16.msra.mxu0 0
      %6277 = vmatprep.subr.bf16.mxu0 0
      %6278 = vmatpush1.bf16.msra.mxu0 0
      %6279 = vmatprep.subr.bf16.mxu0 0
      %6280 = vmatpush1.bf16.msra.mxu0 0
      %6281 = vmatprep.subr.bf16.mxu0 0
      %6282 = vmatpush1.bf16.msra.mxu0 0
      %6283 = vmatprep.subr.bf16.mxu0 0
      %6284 = vmatpush1.bf16.msra.mxu0 0
      %6285 = vmatprep.subr.bf16.mxu0 0
      %6286 = vmatpush1.bf16.msra.mxu0 0
      %6287 = vmatprep.subr.bf16.mxu0 0
      %6288 = vmatpush1.bf16.msra.mxu0 0
      %6289 = vmatprep.mubr.bf16.mxu0 0
      %6290 = vmatmul.mubr.bf16.gmra.mrb[0].mxu0 %v6064
      %v6291 = vpop.f32.mrb[0].mxu0
      %v6292 = vadd.f32 0.0, %v6291
      %v6293 = vpop.f32.mrb[0].mxu0
      %v6294 = vadd.f32 0.0, %v6293
      %v6295 = vpop.f32.mrb[0].mxu0
      %v6296 = vpop.f32.mrb[0].mxu0
      %6297 = vdwg.mxu0
      %6298 = vmatprep.subr.bf16.mxu0 %v6196
      %6299 = vmatpush1.bf16.msra.mxu0 %v6195
      %6300 = vmatprep.subr.bf16.mxu0 %v6200
      %6301 = vmatpush1.bf16.msra.mxu0 %v6199
      %6302 = vmatprep.subr.bf16.mxu0 %v6204
      %6303 = vmatpush1.bf16.msra.mxu0 %v6203
      %6304 = vmatprep.subr.bf16.mxu0 %v6208
      %6305 = vmatpush1.bf16.msra.mxu0 %v6207
      %6306 = vmatprep.subr.bf16.mxu0 %v6212
      %6307 = vmatpush1.bf16.msra.mxu0 %v6211
      %6308 = vmatprep.subr.bf16.mxu0 %v6216
      %6309 = vmatpush1.bf16.msra.mxu0 %v6215
      %6310 = vmatprep.subr.bf16.mxu0 %v6220
      %6311 = vmatpush1.bf16.msra.mxu0 %v6219
      %6312 = vmatprep.subr.bf16.mxu0 %v6224
      %6313 = vmatpush1.bf16.msra.mxu0 %v6223
      %6314 = vmatprep.subr.bf16.mxu0 0
      %6315 = vmatpush1.bf16.msra.mxu0 0
      %6316 = vmatprep.subr.bf16.mxu0 0
      %6317 = vmatpush1.bf16.msra.mxu0 0
      %6318 = vmatprep.subr.bf16.mxu0 0
      %6319 = vmatpush1.bf16.msra.mxu0 0
      %6320 = vmatprep.subr.bf16.mxu0 0
      %6321 = vmatpush1.bf16.msra.mxu0 0
      %6322 = vmatprep.subr.bf16.mxu0 0
      %6323 = vmatpush1.bf16.msra.mxu0 0
      %6324 = vmatprep.subr.bf16.mxu0 0
      %6325 = vmatpush1.bf16.msra.mxu0 0
      %6326 = vmatprep.subr.bf16.mxu0 0
      %6327 = vmatpush1.bf16.msra.mxu0 0
      %6328 = vmatprep.subr.bf16.mxu0 0
      %6329 = vmatpush1.bf16.msra.mxu0 0
      %6330 = vmatprep.mubr.bf16.mxu0 0
      %6331 = vmatmul.mubr.bf16.gmra.mrb[0].mxu0 %v6064
      %v6332 = vpop.f32.mrb[0].mxu0
      %v6333 = vadd.f32 0.0, %v6332
      %v6334 = vpop.f32.mrb[0].mxu0
      %v6335 = vadd.f32 0.0, %v6334
      %v6336 = vpop.f32.mrb[0].mxu0
      %v6337 = vpop.f32.mrb[0].mxu0
      %6338 = vdwg.mxu0
      %v6339 = vadd.f32 %v6060, %v6292
      %v6340 = vadd.f32 %v6061, %v6294
      %v6341 = vadd.f32 %v6062, %v6333
      %v6342 = vadd.f32 %v6063, %v6335
      %v6343 = vxor.u32 %v6339, 2147483648
      %v6344 = vmul.f32 %v6343, 1.442695
      %v6345 = vpow.pop %v6344
      %v6346 = vadd.f32 %v6345, 1.0
      %v6347 = vrcp.pop %v6346
      %v6348 = vmul.f32 1.0, %v6347
      %v6349 = vxor.u32 %v6340, 2147483648
      %v6350 = vmul.f32 %v6349, 1.442695
      %v6351 = vpow.pop %v6350
      %v6352 = vadd.f32 %v6351, 1.0
      %v6353 = vrcp.pop %v6352
      %v6354 = vmul.f32 1.0, %v6353
      %v6355 = vtanh.pop %v6341
      %v6356 = vxor.u32 %v6342, 2147483648
      %v6357 = vmul.f32 %v6356, 1.442695
      %v6358 = vpow.pop %v6357
      %v6359 = vadd.f32 %v6358, 1.0
      %v6360 = vrcp.pop %v6359
      %v6361 = vmul.f32 1.0, %v6360
      %v6362 = vmul.f32 %v6354, %v6053
      %v6363 = vmul.f32 %v6348, %v6355
      %v6364 = vadd.f32 %v6362, %v6363
      %v6365 = vtanh.pop %v6364
      %v6366 = vmul.f32 %v6361, %v6365
    $region148: #{net_forward.1} parent=1 // loop_footer
      %s6051 = sadd.s32 1, %s6047
    $region149: #{net_forward.1} parent=1 // loop_footer_branch
      %6046 = sbr.rel target = $region145
    $region150: #{net_forward.1} parent=1 // loop_exit
      _
    %v6367 = vld [vmem:[#allocation3 + $0x1f0] sm:$0xff]
    %v6368 = vld [vmem:[#allocation3 + $0x1f8] sm:$0xff]
    %v6369 = vpack.c.bf16 %v6367, %v6367
    %v6370 = vpack.c.bf16 %v6368, %v6368
    %v6371 = vld [vmem:[#allocation20] sm:$0xff]
    %v6372 = vld [vmem:[#allocation20 + $0x8] sm:$0xff]
    %v6373 = vld [vmem:[#allocation20 + $0x10] sm:$0xff]
    %v6374 = vld [vmem:[#allocation20 + $0x18] sm:$0xff]
    %v6375 = vld [vmem:[#allocation20 + $0x20] sm:$0xff]
    %v6376 = vld [vmem:[#allocation20 + $0x28] sm:$0xff]
    %v6377 = vld [vmem:[#allocation20 + $0x30] sm:$0xff]
    %v6378 = vld [vmem:[#allocation20 + $0x38] sm:$0xff]
    %v6379 = vld [vmem:[#allocation20 + $0x40] sm:$0xff]
    %v6380 = vld [vmem:[#allocation20 + $0x48] sm:$0xff]
    %v6381 = vld [vmem:[#allocation20 + $0x50] sm:$0xff]
    %v6382 = vld [vmem:[#allocation20 + $0x58] sm:$0xff]
    %v6383 = vld [vmem:[#allocation20 + $0x60] sm:$0xff]
    %v6384 = vld [vmem:[#allocation20 + $0x68] sm:$0xff]
    %v6385 = vld [vmem:[#allocation20 + $0x70] sm:$0xff]
    %v6386 = vld [vmem:[#allocation20 + $0x78] sm:$0xff]
    %v6387 = vld [vmem:[#allocation20 + $0x80] sm:$0xff]
    %v6388 = vld [vmem:[#allocation20 + $0x88] sm:$0xff]
    %v6389 = vld [vmem:[#allocation20 + $0x90] sm:$0xff]
    %v6390 = vld [vmem:[#allocation20 + $0x98] sm:$0xff]
    %v6391 = vld [vmem:[#allocation20 + $0xa0] sm:$0xff]
    %v6392 = vld [vmem:[#allocation20 + $0xa8] sm:$0xff]
    %v6393 = vld [vmem:[#allocation20 + $0xb0] sm:$0xff]
    %v6394 = vld [vmem:[#allocation20 + $0xb8] sm:$0xff]
    %v6395 = vld [vmem:[#allocation20 + $0xc0] sm:$0xff]
    %v6396 = vld [vmem:[#allocation20 + $0xc8] sm:$0xff]
    %v6397 = vld [vmem:[#allocation20 + $0xd0] sm:$0xff]
    %v6398 = vld [vmem:[#allocation20 + $0xd8] sm:$0xff]
    %v6399 = vld [vmem:[#allocation20 + $0xe0] sm:$0xff]
    %v6400 = vld [vmem:[#allocation20 + $0xe8] sm:$0xff]
    %v6401 = vld [vmem:[#allocation20 + $0xf0] sm:$0xff]
    %v6402 = vld [vmem:[#allocation20 + $0xf8] sm:$0xff]
    %v6403 = vld [vmem:[#allocation20 + $0x100] sm:$0xff]
    %v6404 = vld [vmem:[#allocation20 + $0x108] sm:$0xff]
    %v6405 = vld [vmem:[#allocation20 + $0x110] sm:$0xff]
    %v6406 = vld [vmem:[#allocation20 + $0x118] sm:$0xff]
    %v6407 = vld [vmem:[#allocation20 + $0x120] sm:$0xff]
    %v6408 = vld [vmem:[#allocation20 + $0x128] sm:$0xff]
    %v6409 = vld [vmem:[#allocation20 + $0x130] sm:$0xff]
    %v6410 = vld [vmem:[#allocation20 + $0x138] sm:$0xff]
    %v6411 = vld [vmem:[#allocation20 + $0x140] sm:$0xff]
    %v6412 = vld [vmem:[#allocation20 + $0x148] sm:$0xff]
    %v6413 = vld [vmem:[#allocation20 + $0x150] sm:$0xff]
    %v6414 = vld [vmem:[#allocation20 + $0x158] sm:$0xff]
    %v6415 = vld [vmem:[#allocation20 + $0x160] sm:$0xff]
    %v6416 = vld [vmem:[#allocation20 + $0x168] sm:$0xff]
    %v6417 = vld [vmem:[#allocation20 + $0x170] sm:$0xff]
    %v6418 = vld [vmem:[#allocation20 + $0x178] sm:$0xff]
    %v6419 = vld [vmem:[#allocation20 + $0x180] sm:$0xff]
    %v6420 = vld [vmem:[#allocation20 + $0x188] sm:$0xff]
    %v6421 = vld [vmem:[#allocation20 + $0x190] sm:$0xff]
    %v6422 = vld [vmem:[#allocation20 + $0x198] sm:$0xff]
    %v6423 = vld [vmem:[#allocation20 + $0x1a0] sm:$0xff]
    %v6424 = vld [vmem:[#allocation20 + $0x1a8] sm:$0xff]
    %v6425 = vld [vmem:[#allocation20 + $0x1b0] sm:$0xff]
    %v6426 = vld [vmem:[#allocation20 + $0x1b8] sm:$0xff]
    %v6427 = vld [vmem:[#allocation20 + $0x1c0] sm:$0xff]
    %v6428 = vld [vmem:[#allocation20 + $0x1c8] sm:$0xff]
    %v6429 = vld [vmem:[#allocation20 + $0x1d0] sm:$0xff]
    %v6430 = vld [vmem:[#allocation20 + $0x1d8] sm:$0xff]
    %v6431 = vld [vmem:[#allocation20 + $0x1e0] sm:$0xff]
    %v6432 = vld [vmem:[#allocation20 + $0x1e8] sm:$0xff]
    %v6433 = vld [vmem:[#allocation20 + $0x1f0] sm:$0xff]
    %v6434 = vld [vmem:[#allocation20 + $0x1f8] sm:$0xff]
    %v6435 = vld [vmem:[%s18] sm:$0xf]
    %v6437 = vlaneseq
    %v6438 = vshrl.u32 %v6437, 7
    %v6439 = vsub.s32 0, %v6438
    %v6440 = vrot.slane %v6435, %v6439
    %v6441 = vlaneseq
    %v6442 = vshrl.u32 %v6441, 7
    %v6443 = vsub.s32 1, %v6442
    %v6444 = vrot.slane %v6435, %v6443
    %v6445 = vlaneseq
    %v6446 = vshrl.u32 %v6445, 7
    %v6447 = vsub.s32 2, %v6446
    %v6448 = vrot.slane %v6435, %v6447
    %v6449 = vlaneseq
    %v6450 = vshrl.u32 %v6449, 7
    %v6451 = vsub.s32 3, %v6450
    %v6452 = vrot.slane %v6435, %v6451
    %v6521 = vunpack.c.l.b16 %v6371
    %v6522 = vunpack.c.h.b16 %v6371
    %v6523 = vunpack.c.l.b16 %v6372
    %v6524 = vunpack.c.h.b16 %v6372
    %v6525 = vunpack.c.l.b16 %v6373
    %v6526 = vunpack.c.h.b16 %v6373
    %v6527 = vunpack.c.l.b16 %v6374
    %v6528 = vunpack.c.h.b16 %v6374
    %v6529 = vunpack.c.l.b16 %v6375
    %v6530 = vunpack.c.h.b16 %v6375
    %v6531 = vunpack.c.l.b16 %v6376
    %v6532 = vunpack.c.h.b16 %v6376
    %v6533 = vunpack.c.l.b16 %v6377
    %v6534 = vunpack.c.h.b16 %v6377
    %v6535 = vunpack.c.l.b16 %v6378
    %v6536 = vunpack.c.h.b16 %v6378
    %v6537 = vunpack.c.l.b16 %v6379
    %v6538 = vunpack.c.h.b16 %v6379
    %v6539 = vunpack.c.l.b16 %v6380
    %v6540 = vunpack.c.h.b16 %v6380
    %v6541 = vunpack.c.l.b16 %v6381
    %v6542 = vunpack.c.h.b16 %v6381
    %v6543 = vunpack.c.l.b16 %v6382
    %v6544 = vunpack.c.h.b16 %v6382
    %v6545 = vunpack.c.l.b16 %v6383
    %v6546 = vunpack.c.h.b16 %v6383
    %v6547 = vunpack.c.l.b16 %v6384
    %v6548 = vunpack.c.h.b16 %v6384
    %v6549 = vunpack.c.l.b16 %v6385
    %v6550 = vunpack.c.h.b16 %v6385
    %v6551 = vunpack.c.l.b16 %v6386
    %v6552 = vunpack.c.h.b16 %v6386
    %v6553 = vunpack.c.l.b16 %v6387
    %v6554 = vunpack.c.h.b16 %v6387
    %v6555 = vunpack.c.l.b16 %v6388
    %v6556 = vunpack.c.h.b16 %v6388
    %v6557 = vunpack.c.l.b16 %v6389
    %v6558 = vunpack.c.h.b16 %v6389
    %v6559 = vunpack.c.l.b16 %v6390
    %v6560 = vunpack.c.h.b16 %v6390
    %v6561 = vunpack.c.l.b16 %v6391
    %v6562 = vunpack.c.h.b16 %v6391
    %v6563 = vunpack.c.l.b16 %v6392
    %v6564 = vunpack.c.h.b16 %v6392
    %v6565 = vunpack.c.l.b16 %v6393
    %v6566 = vunpack.c.h.b16 %v6393
    %v6567 = vunpack.c.l.b16 %v6394
    %v6568 = vunpack.c.h.b16 %v6394
    %v6569 = vunpack.c.l.b16 %v6395
    %v6570 = vunpack.c.h.b16 %v6395
    %v6571 = vunpack.c.l.b16 %v6396
    %v6572 = vunpack.c.h.b16 %v6396
    %v6573 = vunpack.c.l.b16 %v6397
    %v6574 = vunpack.c.h.b16 %v6397
    %v6575 = vunpack.c.l.b16 %v6398
    %v6576 = vunpack.c.h.b16 %v6398
    %v6577 = vunpack.c.l.b16 %v6399
    %v6578 = vunpack.c.h.b16 %v6399
    %v6579 = vunpack.c.l.b16 %v6400
    %v6580 = vunpack.c.h.b16 %v6400
    %v6581 = vunpack.c.l.b16 %v6401
    %v6582 = vunpack.c.h.b16 %v6401
    %v6583 = vunpack.c.l.b16 %v6402
    %v6584 = vunpack.c.h.b16 %v6402
    %v6585 = vunpack.c.l.b16 %v6403
    %v6586 = vunpack.c.h.b16 %v6403
    %v6587 = vunpack.c.l.b16 %v6404
    %v6588 = vunpack.c.h.b16 %v6404
    %v6589 = vunpack.c.l.b16 %v6405
    %v6590 = vunpack.c.h.b16 %v6405
    %v6591 = vunpack.c.l.b16 %v6406
    %v6592 = vunpack.c.h.b16 %v6406
    %v6593 = vunpack.c.l.b16 %v6407
    %v6594 = vunpack.c.h.b16 %v6407
    %v6595 = vunpack.c.l.b16 %v6408
    %v6596 = vunpack.c.h.b16 %v6408
    %v6597 = vunpack.c.l.b16 %v6409
    %v6598 = vunpack.c.h.b16 %v6409
    %v6599 = vunpack.c.l.b16 %v6410
    %v6600 = vunpack.c.h.b16 %v6410
    %v6601 = vunpack.c.l.b16 %v6411
    %v6602 = vunpack.c.h.b16 %v6411
    %v6603 = vunpack.c.l.b16 %v6412
    %v6604 = vunpack.c.h.b16 %v6412
    %v6605 = vunpack.c.l.b16 %v6413
    %v6606 = vunpack.c.h.b16 %v6413
    %v6607 = vunpack.c.l.b16 %v6414
    %v6608 = vunpack.c.h.b16 %v6414
    %v6609 = vunpack.c.l.b16 %v6415
    %v6610 = vunpack.c.h.b16 %v6415
    %v6611 = vunpack.c.l.b16 %v6416
    %v6612 = vunpack.c.h.b16 %v6416
    %v6613 = vunpack.c.l.b16 %v6417
    %v6614 = vunpack.c.h.b16 %v6417
    %v6615 = vunpack.c.l.b16 %v6418
    %v6616 = vunpack.c.h.b16 %v6418
    %v6617 = vunpack.c.l.b16 %v6419
    %v6618 = vunpack.c.h.b16 %v6419
    %v6619 = vunpack.c.l.b16 %v6420
    %v6620 = vunpack.c.h.b16 %v6420
    %v6621 = vunpack.c.l.b16 %v6421
    %v6622 = vunpack.c.h.b16 %v6421
    %v6623 = vunpack.c.l.b16 %v6422
    %v6624 = vunpack.c.h.b16 %v6422
    %v6625 = vunpack.c.l.b16 %v6423
    %v6626 = vunpack.c.h.b16 %v6423
    %v6627 = vunpack.c.l.b16 %v6424
    %v6628 = vunpack.c.h.b16 %v6424
    %v6629 = vunpack.c.l.b16 %v6425
    %v6630 = vunpack.c.h.b16 %v6425
    %v6631 = vunpack.c.l.b16 %v6426
    %v6632 = vunpack.c.h.b16 %v6426
    %v6633 = vunpack.c.l.b16 %v6427
    %v6634 = vunpack.c.h.b16 %v6427
    %v6635 = vunpack.c.l.b16 %v6428
    %v6636 = vunpack.c.h.b16 %v6428
    %v6637 = vunpack.c.l.b16 %v6429
    %v6638 = vunpack.c.h.b16 %v6429
    %v6639 = vunpack.c.l.b16 %v6430
    %v6640 = vunpack.c.h.b16 %v6430
    %v6641 = vunpack.c.l.b16 %v6431
    %v6642 = vunpack.c.h.b16 %v6431
    %v6643 = vunpack.c.l.b16 %v6432
    %v6644 = vunpack.c.h.b16 %v6432
    %v6645 = vunpack.c.l.b16 %v6433
    %v6646 = vunpack.c.h.b16 %v6433
    %v6647 = vunpack.c.l.b16 %v6434
    %v6648 = vunpack.c.h.b16 %v6434
    %v6649 = vpack.c.b16 %v6525, %v6521
    %v6650 = vpack.c.b16 %v6526, %v6522
    %v6651 = vpack.c.b16 %v6527, %v6523
    %v6652 = vpack.c.b16 %v6528, %v6524
    %v6653 = vpack.c.b16 %v6533, %v6529
    %v6654 = vpack.c.b16 %v6534, %v6530
    %v6655 = vpack.c.b16 %v6535, %v6531
    %v6656 = vpack.c.b16 %v6536, %v6532
    %v6657 = vpack.c.b16 %v6541, %v6537
    %v6658 = vpack.c.b16 %v6542, %v6538
    %v6659 = vpack.c.b16 %v6543, %v6539
    %v6660 = vpack.c.b16 %v6544, %v6540
    %v6661 = vpack.c.b16 %v6549, %v6545
    %v6662 = vpack.c.b16 %v6550, %v6546
    %v6663 = vpack.c.b16 %v6551, %v6547
    %v6664 = vpack.c.b16 %v6552, %v6548
    %v6665 = vpack.c.b16 %v6557, %v6553
    %v6666 = vpack.c.b16 %v6558, %v6554
    %v6667 = vpack.c.b16 %v6559, %v6555
    %v6668 = vpack.c.b16 %v6560, %v6556
    %v6669 = vpack.c.b16 %v6565, %v6561
    %v6670 = vpack.c.b16 %v6566, %v6562
    %v6671 = vpack.c.b16 %v6567, %v6563
    %v6672 = vpack.c.b16 %v6568, %v6564
    %v6673 = vpack.c.b16 %v6573, %v6569
    %v6674 = vpack.c.b16 %v6574, %v6570
    %v6675 = vpack.c.b16 %v6575, %v6571
    %v6676 = vpack.c.b16 %v6576, %v6572
    %v6677 = vpack.c.b16 %v6581, %v6577
    %v6678 = vpack.c.b16 %v6582, %v6578
    %v6679 = vpack.c.b16 %v6583, %v6579
    %v6680 = vpack.c.b16 %v6584, %v6580
    %v6681 = vpack.c.b16 %v6589, %v6585
    %v6682 = vpack.c.b16 %v6590, %v6586
    %v6683 = vpack.c.b16 %v6591, %v6587
    %v6684 = vpack.c.b16 %v6592, %v6588
    %v6685 = vpack.c.b16 %v6597, %v6593
    %v6686 = vpack.c.b16 %v6598, %v6594
    %v6687 = vpack.c.b16 %v6599, %v6595
    %v6688 = vpack.c.b16 %v6600, %v6596
    %v6689 = vpack.c.b16 %v6605, %v6601
    %v6690 = vpack.c.b16 %v6606, %v6602
    %v6691 = vpack.c.b16 %v6607, %v6603
    %v6692 = vpack.c.b16 %v6608, %v6604
    %v6693 = vpack.c.b16 %v6613, %v6609
    %v6694 = vpack.c.b16 %v6614, %v6610
    %v6695 = vpack.c.b16 %v6615, %v6611
    %v6696 = vpack.c.b16 %v6616, %v6612
    %v6697 = vpack.c.b16 %v6621, %v6617
    %v6698 = vpack.c.b16 %v6622, %v6618
    %v6699 = vpack.c.b16 %v6623, %v6619
    %v6700 = vpack.c.b16 %v6624, %v6620
    %v6701 = vpack.c.b16 %v6629, %v6625
    %v6702 = vpack.c.b16 %v6630, %v6626
    %v6703 = vpack.c.b16 %v6631, %v6627
    %v6704 = vpack.c.b16 %v6632, %v6628
    %v6705 = vpack.c.b16 %v6637, %v6633
    %v6706 = vpack.c.b16 %v6638, %v6634
    %v6707 = vpack.c.b16 %v6639, %v6635
    %v6708 = vpack.c.b16 %v6640, %v6636
    %v6709 = vpack.c.b16 %v6645, %v6641
    %v6710 = vpack.c.b16 %v6646, %v6642
    %v6711 = vpack.c.b16 %v6647, %v6643
    %v6712 = vpack.c.b16 %v6648, %v6644
    %6777 = vmatprep.subr.bf16.mxu0 %v6650
    %6778 = vmatpush1.bf16.msra.mxu0 %v6649
    %6779 = vmatprep.subr.bf16.mxu0 %v6654
    %6780 = vmatpush1.bf16.msra.mxu0 %v6653
    %6781 = vmatprep.subr.bf16.mxu0 %v6658
    %6782 = vmatpush1.bf16.msra.mxu0 %v6657
    %6783 = vmatprep.subr.bf16.mxu0 %v6662
    %6784 = vmatpush1.bf16.msra.mxu0 %v6661
    %6785 = vmatprep.subr.bf16.mxu0 %v6666
    %6786 = vmatpush1.bf16.msra.mxu0 %v6665
    %6787 = vmatprep.subr.bf16.mxu0 %v6670
    %6788 = vmatpush1.bf16.msra.mxu0 %v6669
    %6789 = vmatprep.subr.bf16.mxu0 %v6674
    %6790 = vmatpush1.bf16.msra.mxu0 %v6673
    %6791 = vmatprep.subr.bf16.mxu0 %v6678
    %6792 = vmatpush1.bf16.msra.mxu0 %v6677
    %6793 = vmatprep.subr.bf16.mxu0 %v6682
    %6794 = vmatpush1.bf16.msra.mxu0 %v6681
    %6795 = vmatprep.subr.bf16.mxu0 %v6686
    %6796 = vmatpush1.bf16.msra.mxu0 %v6685
    %6797 = vmatprep.subr.bf16.mxu0 %v6690
    %6798 = vmatpush1.bf16.msra.mxu0 %v6689
    %6799 = vmatprep.subr.bf16.mxu0 %v6694
    %6800 = vmatpush1.bf16.msra.mxu0 %v6693
    %6801 = vmatprep.subr.bf16.mxu0 %v6698
    %6802 = vmatpush1.bf16.msra.mxu0 %v6697
    %6803 = vmatprep.subr.bf16.mxu0 %v6702
    %6804 = vmatpush1.bf16.msra.mxu0 %v6701
    %6805 = vmatprep.subr.bf16.mxu0 %v6706
    %6806 = vmatpush1.bf16.msra.mxu0 %v6705
    %6807 = vmatprep.subr.bf16.mxu0 %v6710
    %6808 = vmatpush1.bf16.msra.mxu0 %v6709
    %6809 = vmatprep.mubr.bf16.mxu0 %v6370
    %6810 = vmatmul.mubr.bf16.gmra.mrb[0].mxu0 %v6369
    %v6811 = vpop.f32.mrb[0].mxu0
    %v6812 = vadd.f32 %v6440, %v6811
    %v6813 = vpop.f32.mrb[0].mxu0
    %v6814 = vadd.f32 %v6444, %v6813
    %v6815 = vpop.f32.mrb[0].mxu0
    %v6816 = vpop.f32.mrb[0].mxu0
    %6817 = vdwg.mxu0
    %6818 = vmatprep.subr.bf16.mxu0 %v6652
    %6819 = vmatpush1.bf16.msra.mxu0 %v6651
    %6820 = vmatprep.subr.bf16.mxu0 %v6656
    %6821 = vmatpush1.bf16.msra.mxu0 %v6655
    %6822 = vmatprep.subr.bf16.mxu0 %v6660
    %6823 = vmatpush1.bf16.msra.mxu0 %v6659
    %6824 = vmatprep.subr.bf16.mxu0 %v6664
    %6825 = vmatpush1.bf16.msra.mxu0 %v6663
    %6826 = vmatprep.subr.bf16.mxu0 %v6668
    %6827 = vmatpush1.bf16.msra.mxu0 %v6667
    %6828 = vmatprep.subr.bf16.mxu0 %v6672
    %6829 = vmatpush1.bf16.msra.mxu0 %v6671
    %6830 = vmatprep.subr.bf16.mxu0 %v6676
    %6831 = vmatpush1.bf16.msra.mxu0 %v6675
    %6832 = vmatprep.subr.bf16.mxu0 %v6680
    %6833 = vmatpush1.bf16.msra.mxu0 %v6679
    %6834 = vmatprep.subr.bf16.mxu0 %v6684
    %6835 = vmatpush1.bf16.msra.mxu0 %v6683
    %6836 = vmatprep.subr.bf16.mxu0 %v6688
    %6837 = vmatpush1.bf16.msra.mxu0 %v6687
    %6838 = vmatprep.subr.bf16.mxu0 %v6692
    %6839 = vmatpush1.bf16.msra.mxu0 %v6691
    %6840 = vmatprep.subr.bf16.mxu0 %v6696
    %6841 = vmatpush1.bf16.msra.mxu0 %v6695
    %6842 = vmatprep.subr.bf16.mxu0 %v6700
    %6843 = vmatpush1.bf16.msra.mxu0 %v6699
    %6844 = vmatprep.subr.bf16.mxu0 %v6704
    %6845 = vmatpush1.bf16.msra.mxu0 %v6703
    %6846 = vmatprep.subr.bf16.mxu0 %v6708
    %6847 = vmatpush1.bf16.msra.mxu0 %v6707
    %6848 = vmatprep.subr.bf16.mxu0 %v6712
    %6849 = vmatpush1.bf16.msra.mxu0 %v6711
    %6850 = vmatprep.mubr.bf16.mxu0 %v6370
    %6851 = vmatmul.mubr.bf16.gmra.mrb[0].mxu0 %v6369
    %v6852 = vpop.f32.mrb[0].mxu0
    %v6853 = vadd.f32 %v6448, %v6852
    %v6854 = vpop.f32.mrb[0].mxu0
    %v6855 = vadd.f32 %v6452, %v6854
    %v6856 = vpop.f32.mrb[0].mxu0
    %v6857 = vpop.f32.mrb[0].mxu0
    %6858 = vdwg.mxu0
    %v6859 = vxor.u32 %v6812, 2147483648
    %v6860 = vmul.f32 %v6859, 1.442695
    %v6861 = vpow.pop %v6860
    %v6862 = vadd.f32 %v6861, 1.0
    %v6863 = vrcp.pop %v6862
    %v6864 = vmul.f32 1.0, %v6863
    %v6865 = vxor.u32 %v6814, 2147483648
    %v6866 = vmul.f32 %v6865, 1.442695
    %v6867 = vpow.pop %v6866
    %v6868 = vadd.f32 %v6867, 1.0
    %v6869 = vrcp.pop %v6868
    %v6870 = vmul.f32 1.0, %v6869
    %v6871 = vtanh.pop %v6853
    %v6872 = vxor.u32 %v6855, 2147483648
    %v6873 = vmul.f32 %v6872, 1.442695
    %v6874 = vpow.pop %v6873
    %v6875 = vadd.f32 %v6874, 1.0
    %v6876 = vrcp.pop %v6875
    %v6877 = vmul.f32 1.0, %v6876
    %v6878 = vmul.f32 %v6870, 0.0
    %v6879 = vmul.f32 %v6864, %v6871
    %v6880 = vadd.f32 %v6878, %v6879
    %v6881 = vtanh.pop %v6880
    %v6882 = vmul.f32 %v6877, %v6881
    %6883 = vst [vmem:[%s22] sm:$0xff] %v6052
    %6884 = vst [vmem:[%s22 + $0x8] sm:$0xff] %v6882
    %v6885 = vpack.c.bf16 %v6052, %v6052
    %v6886 = vld [vmem:[%s19] sm:$0xf]
    %v6887 = vld [vmem:[%s19 + $0x4] sm:$0xf]
    %v6888 = vld [vmem:[%s19 + $0x8] sm:$0xf]
    %v6889 = vld [vmem:[%s19 + $0xc] sm:$0xf]
    %v6890 = vld [vmem:[%s19 + $0x10] sm:$0xf]
    %v6891 = vld [vmem:[%s19 + $0x14] sm:$0xf]
    %v6892 = vld [vmem:[%s19 + $0x18] sm:$0xf]
    %v6893 = vld [vmem:[%s19 + $0x1c] sm:$0xf]
    %v6894 = vld [vmem:[%s19 + $0x20] sm:$0xf]
    %v6895 = vld [vmem:[%s19 + $0x24] sm:$0xf]
    %v6896 = vld [vmem:[%s19 + $0x28] sm:$0xf]
    %v6897 = vld [vmem:[%s19 + $0x2c] sm:$0xf]
    %v6898 = vld [vmem:[%s19 + $0x30] sm:$0xf]
    %v6899 = vld [vmem:[%s19 + $0x34] sm:$0xf]
    %v6900 = vld [vmem:[%s19 + $0x38] sm:$0xf]
    %v6901 = vld [vmem:[%s19 + $0x3c] sm:$0xf]
    %v6902 = vpack.c.bf16 %v6882, %v6882
    %v6903 = vld [vmem:[%s19 + $0x40] sm:$0xf]
    %v6904 = vld [vmem:[%s19 + $0x44] sm:$0xf]
    %v6905 = vld [vmem:[%s19 + $0x48] sm:$0xf]
    %v6906 = vld [vmem:[%s19 + $0x4c] sm:$0xf]
    %v6907 = vld [vmem:[%s19 + $0x50] sm:$0xf]
    %v6908 = vld [vmem:[%s19 + $0x54] sm:$0xf]
    %v6909 = vld [vmem:[%s19 + $0x58] sm:$0xf]
    %v6910 = vld [vmem:[%s19 + $0x5c] sm:$0xf]
    %v6911 = vld [vmem:[%s19 + $0x60] sm:$0xf]
    %v6912 = vld [vmem:[%s19 + $0x64] sm:$0xf]
    %v6913 = vld [vmem:[%s19 + $0x68] sm:$0xf]
    %v6914 = vld [vmem:[%s19 + $0x6c] sm:$0xf]
    %v6915 = vld [vmem:[%s19 + $0x70] sm:$0xf]
    %v6916 = vld [vmem:[%s19 + $0x74] sm:$0xf]
    %v6917 = vld [vmem:[%s19 + $0x78] sm:$0xf]
    %v6918 = vld [vmem:[%s19 + $0x7c] sm:$0xf]
    %v6935 = vunpack.c.l.b16 %v6903
    %v6936 = vunpack.c.l.b16 %v6904
    %v6937 = vunpack.c.l.b16 %v6905
    %v6938 = vunpack.c.l.b16 %v6906
    %v6939 = vunpack.c.l.b16 %v6907
    %v6940 = vunpack.c.l.b16 %v6908
    %v6941 = vunpack.c.l.b16 %v6909
    %v6942 = vunpack.c.l.b16 %v6910
    %v6943 = vunpack.c.l.b16 %v6911
    %v6944 = vunpack.c.l.b16 %v6912
    %v6945 = vunpack.c.l.b16 %v6913
    %v6946 = vunpack.c.l.b16 %v6914
    %v6947 = vunpack.c.l.b16 %v6915
    %v6948 = vunpack.c.l.b16 %v6916
    %v6949 = vunpack.c.l.b16 %v6917
    %v6950 = vunpack.c.l.b16 %v6918
    %v6951 = vpack.c.b16 %v6936, %v6935
    %v6952 = vpack.c.b16 %v6938, %v6937
    %v6953 = vpack.c.b16 %v6940, %v6939
    %v6954 = vpack.c.b16 %v6942, %v6941
    %v6955 = vpack.c.b16 %v6944, %v6943
    %v6956 = vpack.c.b16 %v6946, %v6945
    %v6957 = vpack.c.b16 %v6948, %v6947
    %v6958 = vpack.c.b16 %v6950, %v6949
    %6967 = vmatprep.subr.bf16.mxu0 0
    %6968 = vmatpush1.bf16.msra.mxu0 %v6951
    %6969 = vmatprep.subr.bf16.mxu0 0
    %6970 = vmatpush1.bf16.msra.mxu0 %v6952
    %6971 = vmatprep.subr.bf16.mxu0 0
    %6972 = vmatpush1.bf16.msra.mxu0 %v6953
    %6973 = vmatprep.subr.bf16.mxu0 0
    %6974 = vmatpush1.bf16.msra.mxu0 %v6954
    %6975 = vmatprep.subr.bf16.mxu0 0
    %6976 = vmatpush1.bf16.msra.mxu0 %v6955
    %6977 = vmatprep.subr.bf16.mxu0 0
    %6978 = vmatpush1.bf16.msra.mxu0 %v6956
    %6979 = vmatprep.subr.bf16.mxu0 0
    %6980 = vmatpush1.bf16.msra.mxu0 %v6957
    %6981 = vmatprep.subr.bf16.mxu0 0
    %6982 = vmatpush1.bf16.msra.mxu0 %v6958
    %6983 = vmatprep.subr.bf16.mxu0 0
    %6984 = vmatpush1.bf16.msra.mxu0 0
    %6985 = vmatprep.subr.bf16.mxu0 0
    %6986 = vmatpush1.bf16.msra.mxu0 0
    %6987 = vmatprep.subr.bf16.mxu0 0
    %6988 = vmatpush1.bf16.msra.mxu0 0
    %6989 = vmatprep.subr.bf16.mxu0 0
    %6990 = vmatpush1.bf16.msra.mxu0 0
    %6991 = vmatprep.subr.bf16.mxu0 0
    %6992 = vmatpush1.bf16.msra.mxu0 0
    %6993 = vmatprep.subr.bf16.mxu0 0
    %6994 = vmatpush1.bf16.msra.mxu0 0
    %6995 = vmatprep.subr.bf16.mxu0 0
    %6996 = vmatpush1.bf16.msra.mxu0 0
    %6997 = vmatprep.subr.bf16.mxu0 0
    %6998 = vmatpush1.bf16.msra.mxu0 0
    %6999 = vmatprep.mubr.bf16.mxu0 0
    %7000 = vmatmul.mubr.bf16.gmra.mrb[0].mxu0 %v6902
    %v7001 = vpop.f32.mrb[0].mxu0
    %v7002 = vadd.f32 0.0, %v7001
    %v7003 = vpop.f32.mrb[0].mxu0
    %v7004 = vpop.f32.mrb[0].mxu0
    %v7005 = vpop.f32.mrb[0].mxu0
    %7006 = vdwg.mxu0
    %v7023 = vunpack.c.l.b16 %v6886
    %v7024 = vunpack.c.l.b16 %v6887
    %v7025 = vunpack.c.l.b16 %v6888
    %v7026 = vunpack.c.l.b16 %v6889
    %v7027 = vunpack.c.l.b16 %v6890
    %v7028 = vunpack.c.l.b16 %v6891
    %v7029 = vunpack.c.l.b16 %v6892
    %v7030 = vunpack.c.l.b16 %v6893
    %v7031 = vunpack.c.l.b16 %v6894
    %v7032 = vunpack.c.l.b16 %v6895
    %v7033 = vunpack.c.l.b16 %v6896
    %v7034 = vunpack.c.l.b16 %v6897
    %v7035 = vunpack.c.l.b16 %v6898
    %v7036 = vunpack.c.l.b16 %v6899
    %v7037 = vunpack.c.l.b16 %v6900
    %v7038 = vunpack.c.l.b16 %v6901
    %v7039 = vpack.c.b16 %v7024, %v7023
    %v7040 = vpack.c.b16 %v7026, %v7025
    %v7041 = vpack.c.b16 %v7028, %v7027
    %v7042 = vpack.c.b16 %v7030, %v7029
    %v7043 = vpack.c.b16 %v7032, %v7031
    %v7044 = vpack.c.b16 %v7034, %v7033
    %v7045 = vpack.c.b16 %v7036, %v7035
    %v7046 = vpack.c.b16 %v7038, %v7037
    %7055 = vmatprep.subr.bf16.mxu0 0
    %7056 = vmatpush1.bf16.msra.mxu0 %v7039
    %7057 = vmatprep.subr.bf16.mxu0 0
    %7058 = vmatpush1.bf16.msra.mxu0 %v7040
    %7059 = vmatprep.subr.bf16.mxu0 0
    %7060 = vmatpush1.bf16.msra.mxu0 %v7041
    %7061 = vmatprep.subr.bf16.mxu0 0
    %7062 = vmatpush1.bf16.msra.mxu0 %v7042
    %7063 = vmatprep.subr.bf16.mxu0 0
    %7064 = vmatpush1.bf16.msra.mxu0 %v7043
    %7065 = vmatprep.subr.bf16.mxu0 0
    %7066 = vmatpush1.bf16.msra.mxu0 %v7044
    %7067 = vmatprep.subr.bf16.mxu0 0
    %7068 = vmatpush1.bf16.msra.mxu0 %v7045
    %7069 = vmatprep.subr.bf16.mxu0 0
    %7070 = vmatpush1.bf16.msra.mxu0 %v7046
    %7071 = vmatprep.subr.bf16.mxu0 0
    %7072 = vmatpush1.bf16.msra.mxu0 0
    %7073 = vmatprep.subr.bf16.mxu0 0
    %7074 = vmatpush1.bf16.msra.mxu0 0
    %7075 = vmatprep.subr.bf16.mxu0 0
    %7076 = vmatpush1.bf16.msra.mxu0 0
    %7077 = vmatprep.subr.bf16.mxu0 0
    %7078 = vmatpush1.bf16.msra.mxu0 0
    %7079 = vmatprep.subr.bf16.mxu0 0
    %7080 = vmatpush1.bf16.msra.mxu0 0
    %7081 = vmatprep.subr.bf16.mxu0 0
    %7082 = vmatpush1.bf16.msra.mxu0 0
    %7083 = vmatprep.subr.bf16.mxu0 0
    %7084 = vmatpush1.bf16.msra.mxu0 0
    %7085 = vmatprep.subr.bf16.mxu0 0
    %7086 = vmatpush1.bf16.msra.mxu0 0
    %7087 = vmatprep.mubr.bf16.mxu0 0
    %7088 = vmatmul.mubr.bf16.gmra.mrb[0].mxu0 %v6885
    %v7089 = vpop.f32.mrb[0].mxu0
    %v7090 = vadd.f32 %v7002, %v7089
    %v7091 = vpop.f32.mrb[0].mxu0
    %v7092 = vpop.f32.mrb[0].mxu0
    %v7093 = vpop.f32.mrb[0].mxu0
    %7094 = vdwg.mxu0
    %v7095 = vld [vmem:[%s20] sm:$0x1]
    %v7097 = vlaneseq
    %v7098 = vshrl.u32 %v7097, 7
    %v7099 = vsub.s32 0, %v7098
    %v7100 = vrot.slane %v7095, %v7099
    %v7102 = vadd.f32 %v7090, %v7100
    %7103 = vst [vmem:[%s21] sm:$0xff] %v7102
    // Predicated region
    $region151: #{net_forward.1} parent=1 // pred_check
      _
    $region152: #{net_forward.1} parent=1 // pred_check_branch
      %7105 = sbr.rel (0) target = $region154
    $region153: #{net_forward.1} parent=1 // pred_region
      _
    $region154: #{net_forward.1} parent=1 // pred_fallthru
      _
    // Predicated region
    $region155: #{net_forward.1} parent=1 // pred_check
      _
    $region156: #{net_forward.1} parent=1 // pred_check_branch
      %7107 = sbr.rel (0) target = $region158
    $region157: #{net_forward.1} parent=1 // pred_region
      _
    $region158: #{net_forward.1} parent=1 // pred_fallthru
      _
    // Predicated region
    $region159: #{net_forward.1} parent=1 // pred_check
      _
    $region160: #{net_forward.1} parent=1 // pred_check_branch
      %7109 = sbr.rel (0) target = $region162
    $region161: #{net_forward.1} parent=1 // pred_region
      _
    $region162: #{net_forward.1} parent=1 // pred_fallthru
      _
    // Predicated region
    $region163: #{net_forward.1} parent=1 // pred_check
      _
    $region164: #{net_forward.1} parent=1 // pred_check_branch
      %7111 = sbr.rel (0) target = $region166
    $region165: #{net_forward.1} parent=1 // pred_region
      _
    $region166: #{net_forward.1} parent=1 // pred_fallthru
      _
    %7112 = vsyncpa [#allocation7], 1
    %7113 = vsyncpa [#allocation9], 1
    %7114 = vsyncpa [#allocation12], 1
    %7115 = vsyncpa [#allocation15], 1
    %7116 = vsyncpa [#allocation18], 1
    %7117 = vsyncpa [#allocation21], 1

</llo_original>
